<compile_context>
chip_gen: v7x
topology: tpu7x:2x2x1
jax: 0.10.0
libtpu: 0.0.40
codegen_flags: <defaults>
</compile_context>

<pallas_src>
import functools
import math

import jax
import jax.numpy as jnp
from jax.experimental import pallas as pl
from jax.experimental.pallas import tpu as pltpu

# ----- small hyperparameters consistent with the ViTVAE constructor -----
IMG_SIZE = (16, 32)
PATCH = 4
IN_CHANS = 1
EMBED = 32
DEPTH = 2
HEADS = 4
MLP_RATIO = 4.0
LATENT = 4

HP = IMG_SIZE[0] // PATCH
WP = IMG_SIZE[1] // PATCH
NPATCH = HP * WP                       # 32 tokens
FFN = int(EMBED * MLP_RATIO)           # 128
HEAD_DIM = EMBED // HEADS              # 8
PATCH_DIM = IN_CHANS * PATCH * PATCH   # 16
LN_EPS = 1e-5

MM_DTYPE = jnp.bfloat16                # MXU operand dtype (f32 accumulation)

LAYER_KEYS = ("in_w", "in_b", "out_w", "out_b", "ff1_w", "ff1_b",
              "ff2_w", "ff2_b", "ln1_g", "ln1_b", "ln2_g", "ln2_b")
N_LAYER_PARAMS = len(LAYER_KEYS)

VMEM_SPEC = pl.BlockSpec(memory_space=pltpu.MemorySpace.VMEM)


def _vmem_specs(n):
    return [pl.BlockSpec(memory_space=pltpu.MemorySpace.VMEM) for _ in range(n)]


# ------------------------------------------------------------ in-kernel math
def _mm(a, b):
    """a @ b with bf16 MXU operands, f32 accumulation."""
    return jnp.dot(a.astype(MM_DTYPE), b.astype(MM_DTYPE),
                   preferred_element_type=jnp.float32)


def _mm_nt(a, b):
    """a @ b.T (contract last dims) without materializing a transpose."""
    return jax.lax.dot_general(
        a.astype(MM_DTYPE), b.astype(MM_DTYPE),
        dimension_numbers=(((1,), (1,)), ((), ())),
        preferred_element_type=jnp.float32)


def _layernorm(x, g, b):
    """LayerNorm over last dim, biased variance (PyTorch semantics)."""
    mu = jnp.mean(x, axis=-1, keepdims=True)
    xc = x - mu
    var = jnp.mean(xc * xc, axis=-1, keepdims=True)
    inv = jax.lax.rsqrt(var + LN_EPS)
    return xc * inv * g + b


def _transformer_layer(x, lp, B, S):
    """Post-norm nn.TransformerEncoderLayer (eval mode, relu MLP).

    x: (B*S, E) f32 value held in registers/VMEM; lp: loaded layer params.
    All heads / batches handled with static slices inside the kernel body.
    """
    scale = 1.0 / math.sqrt(HEAD_DIM)

    qkv = _mm(x, lp["in_w"]) + lp["in_b"]                  # (B*S, 3E)

    batch_rows = []
    for b in range(B):
        qkv_b = qkv[b * S:(b + 1) * S, :]                  # (S, 3E)
        heads = []
        for h in range(HEADS):
            q = qkv_b[:, h * HEAD_DIM:(h + 1) * HEAD_DIM]
            k = qkv_b[:, EMBED + h * HEAD_DIM:EMBED + (h + 1) * HEAD_DIM]
            v = qkv_b[:, 2 * EMBED + h * HEAD_DIM:2 * EMBED + (h + 1) * HEAD_DIM]
            s_mat = _mm_nt(q, k) * scale                   # (S, S)
            s_mat = s_mat - jnp.max(s_mat, axis=-1, keepdims=True)
            p_mat = jnp.exp(s_mat)
            p_mat = p_mat / jnp.sum(p_mat, axis=-1, keepdims=True)
            heads.append(_mm(p_mat, v))                    # (S, Dh)
        batch_rows.append(jnp.concatenate(heads, axis=-1))  # (S, E)
    a = jnp.concatenate(batch_rows, axis=0)                # (B*S, E)

    a = _mm(a, lp["out_w"]) + lp["out_b"]
    x = _layernorm(x + a, lp["ln1_g"], lp["ln1_b"])

    h = jnp.maximum(_mm(x, lp["ff1_w"]) + lp["ff1_b"], 0.0)
    h = _mm(h, lp["ff2_w"]) + lp["ff2_b"]
    x = _layernorm(x + h, lp["ln2_g"], lp["ln2_b"])
    return x


# ---------------------------------------------------------------- kernels ---
def _encoder_kernel(*refs, B):
    xp_ref, pos_ref, pw_ref, pb_ref = refs[0:4]
    n_lp = N_LAYER_PARAMS * DEPTH
    layer_refs = refs[4:4 + n_lp]
    out_ref = refs[4 + n_lp]

    tok = _mm(xp_ref[...], pw_ref[...]) + pb_ref[...]      # (B*S, E) patch embed
    tok = tok + jnp.concatenate([pos_ref[...]] * B, axis=0)
    for d in range(DEPTH):
        lp = {k: layer_refs[d * N_LAYER_PARAMS + i][...]
              for i, k in enumerate(LAYER_KEYS)}
        tok = _transformer_layer(tok, lp, B, NPATCH)
    out_ref[...] = tok


def _bottleneck_kernel(flat_ref, eps_ref, wmv_ref, bmv_ref, lw_ref, lb_ref,
                       mu_ref, logvar_ref, dec_ref):
    flat = flat_ref[...]                                    # (B, S*E)
    mv = _mm(flat, wmv_ref[...]) + bmv_ref[...]             # (B, 2L) fused mu|logvar
    mu = mv[:, :LATENT]
    logvar = mv[:, LATENT:]
    std = jnp.exp(0.5 * logvar)
    z = mu + eps_ref[...] * std                             # reparameterize
    dec_ref[...] = _mm(z, lw_ref[...]) + lb_ref[...]        # (B, S*E) latent_proj
    mu_ref[...] = mu
    logvar_ref[...] = logvar


def _decoder_kernel(*refs, B):
    tok_ref, pos_ref = refs[0:2]
    n_lp = N_LAYER_PARAMS * DEPTH
    layer_refs = refs[2:2 + n_lp]
    fw_ref = refs[2 + n_lp]
    fb_ref = refs[3 + n_lp]
    out_ref = refs[4 + n_lp]

    x = tok_ref[...] + jnp.concatenate([pos_ref[...]] * B, axis=0)
    for d in range(DEPTH):
        lp = {k: layer_refs[d * N_LAYER_PARAMS + i][...]
              for i, k in enumerate(LAYER_KEYS)}
        x = _transformer_layer(x, lp, B, NPATCH)
    y = _mm(x, fw_ref[...]) + fb_ref[...]                   # final_proj
    out_ref[...] = jax.nn.sigmoid(y)                        # fused sigmoid


# -------------------------------------------------------------- wrappers ----
def run_encoder(xp, params, B):
    args = [xp, params["pos_enc"], params["patch_w"], params["patch_b"]]
    for lp in params["enc_layers"]:
        args.extend(lp[k] for k in LAYER_KEYS)
    return pl.pallas_call(
        functools.partial(_encoder_kernel, B=B),
        out_shape=jax.ShapeDtypeStruct((B * NPATCH, EMBED), jnp.float32),
        in_specs=_vmem_specs(len(args)),
        out_specs=VMEM_SPEC,
    )(*args)


def run_bottleneck(flat, eps, params):
    B = flat.shape[0]
    args = [flat, eps, params["muvar_w"], params["muvar_b"],
            params["lat_w"], params["lat_b"]]
    out_shape = (
        jax.ShapeDtypeStruct((B, LATENT), jnp.float32),
        jax.ShapeDtypeStruct((B, LATENT), jnp.float32),
        jax.ShapeDtypeStruct((B, NPATCH * EMBED), jnp.float32),
    )
    return pl.pallas_call(
        _bottleneck_kernel,
        out_shape=out_shape,
        in_specs=_vmem_specs(len(args)),
        out_specs=tuple(_vmem_specs(3)),
    )(*args)


def run_decoder(dec_tok, params, B):
    args = [dec_tok, params["pos_dec"]]
    for lp in params["dec_layers"]:
        args.extend(lp[k] for k in LAYER_KEYS)
    args.extend([params["fin_w"], params["fin_b"]])
    return pl.pallas_call(
        functools.partial(_decoder_kernel, B=B),
        out_shape=jax.ShapeDtypeStruct((B * NPATCH, PATCH_DIM), jnp.float32),
        in_specs=_vmem_specs(len(args)),
        out_specs=VMEM_SPEC,
    )(*args)


# ------------------------------------------------------------- parameters ---
def init_params(key):
    keys = iter(jax.random.split(key, 64))

    def w(shape, std=0.02):
        return std * jax.random.normal(next(keys), shape, jnp.float32)

    def zeros(shape):
        return jnp.zeros(shape, jnp.float32)

    def ones(shape):
        return jnp.ones(shape, jnp.float32)

    def layer():
        return dict(
            in_w=w((EMBED, 3 * EMBED)), in_b=zeros((1, 3 * EMBED)),
            out_w=w((EMBED, EMBED)), out_b=zeros((1, EMBED)),
            ff1_w=w((EMBED, FFN)), ff1_b=zeros((1, FFN)),
            ff2_w=w((FFN, EMBED)), ff2_b=zeros((1, EMBED)),
            ln1_g=ones((1, EMBED)), ln1_b=zeros((1, EMBED)),
            ln2_g=ones((1, EMBED)), ln2_b=zeros((1, EMBED)),
        )

    params = dict(
        # encoder
        patch_w=w((PATCH_DIM, EMBED), std=0.1),      # conv-as-linear
        patch_b=zeros((1, EMBED)),
        pos_enc=w((NPATCH, EMBED)),
        enc_layers=[layer() for _ in range(DEPTH)],
        # fc_mu / fc_var fused into a single (S*E, 2L) projection
        muvar_w=w((NPATCH * EMBED, 2 * LATENT)),
        muvar_b=zeros((1, 2 * LATENT)),
        # decoder
        lat_w=w((LATENT, EMBED * NPATCH)),
        lat_b=zeros((1, EMBED * NPATCH)),
        pos_dec=w((NPATCH, EMBED)),
        dec_layers=[layer() for _ in range(DEPTH)],
        fin_w=w((EMBED, PATCH_DIM)),
        fin_b=zeros((1, PATCH_DIM)),
    )
    return params


# ----------------------------------------------------------------- model ----
@jax.jit
def vitvae_forward(params, x, eps):
    B = x.shape[0]
    # patchify (== Conv2d kernel_size=stride=patch): (B,C,H,W) -> (B*NP, C*P*P)
    xp = x.reshape(B, IN_CHANS, HP, PATCH, WP, PATCH)
    xp = xp.transpose(0, 2, 4, 1, 3, 5).reshape(B * NPATCH, PATCH_DIM)

    enc_tok = run_encoder(xp, params, B)                 # (B*NP, E)
    flat = enc_tok.reshape(B, NPATCH * EMBED)            # == torch flatten(1)
    mu, logvar, dec_flat = run_bottleneck(flat, eps, params)
    dec_tok = dec_flat.reshape(B * NPATCH, EMBED)        # == torch view(B, NP, E)
    rec = run_decoder(dec_tok, params, B)                # (B*NP, P*P*C)

    # un-patchify: view(B,HP,WP,P,P,C).permute(0,5,1,3,2,4).reshape(B,C,H,W)
    rec = rec.reshape(B, HP, WP, PATCH, PATCH, IN_CHANS)
    rec = rec.transpose(0, 5, 1, 3, 2, 4).reshape(B, IN_CHANS,
                                                  IMG_SIZE[0], IMG_SIZE[1])
    return rec.reshape(x.shape), mu, logvar


# ------------------------------------------------------------------ main ----
if __name__ == "__main__":
    key = jax.random.PRNGKey(0)
    kx, kp, ke = jax.random.split(key, 3)

    x = jax.random.normal(kx, (2, IN_CHANS, IMG_SIZE[0], IMG_SIZE[1]), jnp.float32)
    params = init_params(kp)
    # deterministic stand-in for torch.randn_like in reparameterize
    eps = jax.random.normal(ke, (2, LATENT), jnp.float32)

    x_recon, mu, logvar = vitvae_forward(params, x, eps)
    jax.block_until_ready((x_recon, mu, logvar))

    assert x_recon.shape == x.shape
    assert mu.shape == (2, LATENT) and logvar.shape == (2, LATENT)
    assert bool(jnp.all(jnp.isfinite(x_recon)))
    print("KERNEL_OK")
</pallas_src>

<mosaic_0001>
module attributes {stable_mosaic.version = 11 : i64} {
  func.func @_bottleneck_kernel(%arg0: memref<2x1024xf32, #tpu.memory_space<vmem>>, %arg1: memref<2x4xf32, #tpu.memory_space<vmem>>, %arg2: memref<1024x8xf32, #tpu.memory_space<vmem>>, %arg3: memref<1x8xf32, #tpu.memory_space<vmem>>, %arg4: memref<4x1024xf32, #tpu.memory_space<vmem>>, %arg5: memref<1x1024xf32, #tpu.memory_space<vmem>>, %arg6: memref<2x4xf32, #tpu.memory_space<vmem>>, %arg7: memref<2x4xf32, #tpu.memory_space<vmem>>, %arg8: memref<2x1024xf32, #tpu.memory_space<vmem>>) attributes {dimension_semantics = [], scalar_prefetch = 0 : i64, scratch_operands = 0 : i64, tpu.core_type = #tpu.core_type<tc>} {
    %c0 = arith.constant 0 : index
    %c0_0 = arith.constant 0 : index
    %0 = vector.load %arg0[%c0, %c0_0] : memref<2x1024xf32, #tpu.memory_space<vmem>>, vector<2x1024xf32>
    %c0_1 = arith.constant 0 : index
    %c0_2 = arith.constant 0 : index
    %1 = vector.load %arg2[%c0_1, %c0_2] : memref<1024x8xf32, #tpu.memory_space<vmem>>, vector<1024x8xf32>
    %2 = arith.truncf %0 : vector<2x1024xf32> to vector<2x1024xbf16>
    %3 = arith.truncf %1 : vector<1024x8xf32> to vector<1024x8xbf16>
    %cst = arith.constant dense<0.000000e+00> : vector<2x8xf32>
    %4 = tpu.matmul %2, %3, %cst {dimension_numbers = #tpu.dot_dimension_numbers<[1], [0], [0], [1], [0, 0, 1, 1], [], []>} : vector<2x1024xbf16>, vector<1024x8xbf16>, vector<2x8xf32> -> vector<2x8xf32>
    %c0_3 = arith.constant 0 : index
    %c0_4 = arith.constant 0 : index
    %5 = vector.load %arg3[%c0_3, %c0_4] : memref<1x8xf32, #tpu.memory_space<vmem>>, vector<1x8xf32>
    %6 = vector.broadcast %5 : vector<1x8xf32> to vector<2x8xf32>
    %7 = arith.addf %4, %6 : vector<2x8xf32>
    %8 = vector.extract_strided_slice %7 {offsets = [0, 0], sizes = [2, 4], strides = [1, 1]} : vector<2x8xf32> to vector<2x4xf32>
    %9 = vector.extract_strided_slice %7 {offsets = [0, 4], sizes = [2, 4], strides = [1, 1]} : vector<2x8xf32> to vector<2x4xf32>
    %cst_5 = arith.constant 5.000000e-01 : f32
    %10 = vector.broadcast %cst_5 : f32 to vector<2x4xf32>
    %11 = arith.mulf %10, %9 : vector<2x4xf32>
    %12 = math.exp %11 : vector<2x4xf32>
    %c0_6 = arith.constant 0 : index
    %c0_7 = arith.constant 0 : index
    %13 = vector.load %arg1[%c0_6, %c0_7] : memref<2x4xf32, #tpu.memory_space<vmem>>, vector<2x4xf32>
    %14 = arith.mulf %13, %12 : vector<2x4xf32>
    %15 = arith.addf %8, %14 : vector<2x4xf32>
    %c0_8 = arith.constant 0 : index
    %c0_9 = arith.constant 0 : index
    %16 = vector.load %arg4[%c0_8, %c0_9] : memref<4x1024xf32, #tpu.memory_space<vmem>>, vector<4x1024xf32>
    %17 = arith.truncf %15 : vector<2x4xf32> to vector<2x4xbf16>
    %18 = arith.truncf %16 : vector<4x1024xf32> to vector<4x1024xbf16>
    %cst_10 = arith.constant dense<0.000000e+00> : vector<2x1024xf32>
    %19 = tpu.matmul %17, %18, %cst_10 {dimension_numbers = #tpu.dot_dimension_numbers<[1], [0], [0], [1], [0, 0, 1, 1], [], []>} : vector<2x4xbf16>, vector<4x1024xbf16>, vector<2x1024xf32> -> vector<2x1024xf32>
    %c0_11 = arith.constant 0 : index
    %c0_12 = arith.constant 0 : index
    %20 = vector.load %arg5[%c0_11, %c0_12] : memref<1x1024xf32, #tpu.memory_space<vmem>>, vector<1x1024xf32>
    %21 = vector.broadcast %20 : vector<1x1024xf32> to vector<2x1024xf32>
    %22 = arith.addf %19, %21 : vector<2x1024xf32>
    %c0_13 = arith.constant 0 : index
    %c0_14 = arith.constant 0 : index
    %23 = vector.load %arg8[%c0_13, %c0_14] : memref<2x1024xf32, #tpu.memory_space<vmem>>, vector<2x1024xf32>
    tpu.vector_store %arg8[%c0_13, %c0_14], %22 {strides = array<i32>} : memref<2x1024xf32, #tpu.memory_space<vmem>>, vector<2x1024xf32>,
    %c0_15 = arith.constant 0 : index
    %c0_16 = arith.constant 0 : index
    %24 = vector.load %arg6[%c0_15, %c0_16] : memref<2x4xf32, #tpu.memory_space<vmem>>, vector<2x4xf32>
    tpu.vector_store %arg6[%c0_15, %c0_16], %8 {strides = array<i32>} : memref<2x4xf32, #tpu.memory_space<vmem>>, vector<2x4xf32>,
    %c0_17 = arith.constant 0 : index
    %c0_18 = arith.constant 0 : index
    %25 = vector.load %arg7[%c0_17, %c0_18] : memref<2x4xf32, #tpu.memory_space<vmem>>, vector<2x4xf32>
    tpu.vector_store %arg7[%c0_17, %c0_18], %9 {strides = array<i32>} : memref<2x4xf32, #tpu.memory_space<vmem>>, vector<2x4xf32>,
    return
  }
}

module attributes {stable_mosaic.version = 11 : i64} {
  func.func @_encoder_kernel(%arg0: memref<64x16xf32, #tpu.memory_space<vmem>>, %arg1: memref<32x32xf32, #tpu.memory_space<vmem>>, %arg2: memref<16x32xf32, #tpu.memory_space<vmem>>, %arg3: memref<1x32xf32, #tpu.memory_space<vmem>>, %arg4: memref<32x96xf32, #tpu.memory_space<vmem>>, %arg5: memref<1x96xf32, #tpu.memory_space<vmem>>, %arg6: memref<32x32xf32, #tpu.memory_space<vmem>>, %arg7: memref<1x32xf32, #tpu.memory_space<vmem>>, %arg8: memref<32x128xf32, #tpu.memory_space<vmem>>, %arg9: memref<1x128xf32, #tpu.memory_space<vmem>>, %arg10: memref<128x32xf32, #tpu.memory_space<vmem>>, %arg11: memref<1x32xf32, #tpu.memory_space<vmem>>, %arg12: memref<1x32xf32, #tpu.memory_space<vmem>>, %arg13: memref<1x32xf32, #tpu.memory_space<vmem>>, %arg14: memref<1x32xf32, #tpu.memory_space<vmem>>, %arg15: memref<1x32xf32, #tpu.memory_space<vmem>>, %arg16: memref<32x96xf32, #tpu.memory_space<vmem>>, %arg17: memref<1x96xf32, #tpu.memory_space<vmem>>, %arg18: memref<32x32xf32, #tpu.memory_space<vmem>>, %arg19: memref<1x32xf32, #tpu.memory_space<vmem>>, %arg20: memref<32x128xf32, #tpu.memory_space<vmem>>, %arg21: memref<1x128xf32, #tpu.memory_space<vmem>>, %arg22: memref<128x32xf32, #tpu.memory_space<vmem>>, %arg23: memref<1x32xf32, #tpu.memory_space<vmem>>, %arg24: memref<1x32xf32, #tpu.memory_space<vmem>>, %arg25: memref<1x32xf32, #tpu.memory_space<vmem>>, %arg26: memref<1x32xf32, #tpu.memory_space<vmem>>, %arg27: memref<1x32xf32, #tpu.memory_space<vmem>>, %arg28: memref<64x32xf32, #tpu.memory_space<vmem>>) attributes {dimension_semantics = [], scalar_prefetch = 0 : i64, scratch_operands = 0 : i64, tpu.core_type = #tpu.core_type<tc>} {
    %c0 = arith.constant 0 : index
    %c0_0 = arith.constant 0 : index
    %0 = vector.load %arg0[%c0, %c0_0] : memref<64x16xf32, #tpu.memory_space<vmem>>, vector<64x16xf32>
    %c0_1 = arith.constant 0 : index
    %c0_2 = arith.constant 0 : index
    %1 = vector.load %arg2[%c0_1, %c0_2] : memref<16x32xf32, #tpu.memory_space<vmem>>, vector<16x32xf32>
    %2 = arith.truncf %0 : vector<64x16xf32> to vector<64x16xbf16>
    %3 = arith.truncf %1 : vector<16x32xf32> to vector<16x32xbf16>
    %cst = arith.constant dense<0.000000e+00> : vector<64x32xf32>
    %4 = tpu.matmul %2, %3, %cst {dimension_numbers = #tpu.dot_dimension_numbers<[1], [0], [0], [1], [0, 0, 1, 1], [], []>} : vector<64x16xbf16>, vector<16x32xbf16>, vector<64x32xf32> -> vector<64x32xf32>
    %c0_3 = arith.constant 0 : index
    %c0_4 = arith.constant 0 : index
    %5 = vector.load %arg3[%c0_3, %c0_4] : memref<1x32xf32, #tpu.memory_space<vmem>>, vector<1x32xf32>
    %6 = vector.broadcast %5 : vector<1x32xf32> to vector<64x32xf32>
    %7 = arith.addf %4, %6 : vector<64x32xf32>
    %c0_5 = arith.constant 0 : index
    %c0_6 = arith.constant 0 : index
    %8 = vector.load %arg1[%c0_5, %c0_6] : memref<32x32xf32, #tpu.memory_space<vmem>>, vector<32x32xf32>
    %9 = tpu.concatenate %8, %8 in 0 : vector<32x32xf32>, vector<32x32xf32> -> vector<64x32xf32>
    %10 = arith.addf %7, %9 : vector<64x32xf32>
    %c0_7 = arith.constant 0 : index
    %c0_8 = arith.constant 0 : index
    %11 = vector.load %arg4[%c0_7, %c0_8] : memref<32x96xf32, #tpu.memory_space<vmem>>, vector<32x96xf32>
    %c0_9 = arith.constant 0 : index
    %c0_10 = arith.constant 0 : index
    %12 = vector.load %arg5[%c0_9, %c0_10] : memref<1x96xf32, #tpu.memory_space<vmem>>, vector<1x96xf32>
    %c0_11 = arith.constant 0 : index
    %c0_12 = arith.constant 0 : index
    %13 = vector.load %arg6[%c0_11, %c0_12] : memref<32x32xf32, #tpu.memory_space<vmem>>, vector<32x32xf32>
    %c0_13 = arith.constant 0 : index
    %c0_14 = arith.constant 0 : index
    %14 = vector.load %arg7[%c0_13, %c0_14] : memref<1x32xf32, #tpu.memory_space<vmem>>, vector<1x32xf32>
    %c0_15 = arith.constant 0 : index
    %c0_16 = arith.constant 0 : index
    %15 = vector.load %arg8[%c0_15, %c0_16] : memref<32x128xf32, #tpu.memory_space<vmem>>, vector<32x128xf32>
    %c0_17 = arith.constant 0 : index
    %c0_18 = arith.constant 0 : index
    %16 = vector.load %arg9[%c0_17, %c0_18] : memref<1x128xf32, #tpu.memory_space<vmem>>, vector<1x128xf32>
    %c0_19 = arith.constant 0 : index
    %c0_20 = arith.constant 0 : index
    %17 = vector.load %arg10[%c0_19, %c0_20] : memref<128x32xf32, #tpu.memory_space<vmem>>, vector<128x32xf32>
    %c0_21 = arith.constant 0 : index
    %c0_22 = arith.constant 0 : index
    %18 = vector.load %arg11[%c0_21, %c0_22] : memref<1x32xf32, #tpu.memory_space<vmem>>, vector<1x32xf32>
    %c0_23 = arith.constant 0 : index
    %c0_24 = arith.constant 0 : index
    %19 = vector.load %arg12[%c0_23, %c0_24] : memref<1x32xf32, #tpu.memory_space<vmem>>, vector<1x32xf32>
    %c0_25 = arith.constant 0 : index
    %c0_26 = arith.constant 0 : index
    %20 = vector.load %arg13[%c0_25, %c0_26] : memref<1x32xf32, #tpu.memory_space<vmem>>, vector<1x32xf32>
    %c0_27 = arith.constant 0 : index
    %c0_28 = arith.constant 0 : index
    %21 = vector.load %arg14[%c0_27, %c0_28] : memref<1x32xf32, #tpu.memory_space<vmem>>, vector<1x32xf32>
    %c0_29 = arith.constant 0 : index
    %c0_30 = arith.constant 0 : index
    %22 = vector.load %arg15[%c0_29, %c0_30] : memref<1x32xf32, #tpu.memory_space<vmem>>, vector<1x32xf32>
    %23 = arith.truncf %10 : vector<64x32xf32> to vector<64x32xbf16>
    %24 = arith.truncf %11 : vector<32x96xf32> to vector<32x96xbf16>
    %cst_31 = arith.constant dense<0.000000e+00> : vector<64x96xf32>
    %25 = tpu.matmul %23, %24, %cst_31 {dimension_numbers = #tpu.dot_dimension_numbers<[1], [0], [0], [1], [0, 0, 1, 1], [], []>} : vector<64x32xbf16>, vector<32x96xbf16>, vector<64x96xf32> -> vector<64x96xf32>
    %26 = vector.broadcast %12 : vector<1x96xf32> to vector<64x96xf32>
    %27 = arith.addf %25, %26 : vector<64x96xf32>
    %28 = vector.extract_strided_slice %27 {offsets = [0, 0], sizes = [32, 96], strides = [1, 1]} : vector<64x96xf32> to vector<32x96xf32>
    %29 = vector.extract_strided_slice %28 {offsets = [0, 0], sizes = [32, 8], strides = [1, 1]} : vector<32x96xf32> to vector<32x8xf32>
    %30 = vector.extract_strided_slice %28 {offsets = [0, 32], sizes = [32, 8], strides = [1, 1]} : vector<32x96xf32> to vector<32x8xf32>
    %31 = vector.extract_strided_slice %28 {offsets = [0, 64], sizes = [32, 8], strides = [1, 1]} : vector<32x96xf32> to vector<32x8xf32>
    %32 = arith.truncf %29 : vector<32x8xf32> to vector<32x8xbf16>
    %33 = arith.truncf %30 : vector<32x8xf32> to vector<32x8xbf16>
    %cst_32 = arith.constant dense<0.000000e+00> : vector<32x32xf32>
    %34 = tpu.matmul %32, %33, %cst_32 {dimension_numbers = #tpu.dot_dimension_numbers<[1], [1], [0], [0], [0, 0, 1, 0], [], []>} : vector<32x8xbf16>, vector<32x8xbf16>, vector<32x32xf32> -> vector<32x32xf32>
    %cst_33 = arith.constant 0.353553385 : f32
    %35 = vector.broadcast %cst_33 : f32 to vector<32x32xf32>
    %36 = arith.mulf %34, %35 : vector<32x32xf32>
    %cst_34 = arith.constant dense<0xFF800000> : vector<32xf32>
    %37 = vector.multi_reduction <maximumf>, %36, %cst_34 [1] : vector<32x32xf32> to vector<32xf32>
    %38 = vector.shape_cast %37 : vector<32xf32> to vector<32x1xf32>
    %39 = vector.broadcast %38 : vector<32x1xf32> to vector<32x32xf32>
    %40 = arith.subf %36, %39 : vector<32x32xf32>
    %41 = math.exp %40 : vector<32x32xf32>
    %cst_35 = arith.constant dense<0.000000e+00> : vector<32xf32>
    %42 = vector.multi_reduction <add>, %41, %cst_35 [1] : vector<32x32xf32> to vector<32xf32>
    %43 = vector.shape_cast %42 : vector<32xf32> to vector<32x1xf32>
    %44 = vector.broadcast %43 : vector<32x1xf32> to vector<32x32xf32>
    %45 = arith.divf %41, %44 : vector<32x32xf32>
    %46 = arith.truncf %45 : vector<32x32xf32> to vector<32x32xbf16>
    %47 = arith.truncf %31 : vector<32x8xf32> to vector<32x8xbf16>
    %cst_36 = arith.constant dense<0.000000e+00> : vector<32x8xf32>
    %48 = tpu.matmul %46, %47, %cst_36 {dimension_numbers = #tpu.dot_dimension_numbers<[1], [0], [0], [1], [0, 0, 1, 1], [], []>} : vector<32x32xbf16>, vector<32x8xbf16>, vector<32x8xf32> -> vector<32x8xf32>
    %49 = vector.extract_strided_slice %28 {offsets = [0, 8], sizes = [32, 8], strides = [1, 1]} : vector<32x96xf32> to vector<32x8xf32>
    %50 = vector.extract_strided_slice %28 {offsets = [0, 40], sizes = [32, 8], strides = [1, 1]} : vector<32x96xf32> to vector<32x8xf32>
    %51 = vector.extract_strided_slice %28 {offsets = [0, 72], sizes = [32, 8], strides = [1, 1]} : vector<32x96xf32> to vector<32x8xf32>
    %52 = arith.truncf %49 : vector<32x8xf32> to vector<32x8xbf16>
    %53 = arith.truncf %50 : vector<32x8xf32> to vector<32x8xbf16>
    %cst_37 = arith.constant dense<0.000000e+00> : vector<32x32xf32>
    %54 = tpu.matmul %52, %53, %cst_37 {dimension_numbers = #tpu.dot_dimension_numbers<[1], [1], [0], [0], [0, 0, 1, 0], [], []>} : vector<32x8xbf16>, vector<32x8xbf16>, vector<32x32xf32> -> vector<32x32xf32>
    %cst_38 = arith.constant 0.353553385 : f32
    %55 = vector.broadcast %cst_38 : f32 to vector<32x32xf32>
    %56 = arith.mulf %54, %55 : vector<32x32xf32>
    %cst_39 = arith.constant dense<0xFF800000> : vector<32xf32>
    %57 = vector.multi_reduction <maximumf>, %56, %cst_39 [1] : vector<32x32xf32> to vector<32xf32>
    %58 = vector.shape_cast %57 : vector<32xf32> to vector<32x1xf32>
    %59 = vector.broadcast %58 : vector<32x1xf32> to vector<32x32xf32>
    %60 = arith.subf %56, %59 : vector<32x32xf32>
    %61 = math.exp %60 : vector<32x32xf32>
    %cst_40 = arith.constant dense<0.000000e+00> : vector<32xf32>
    %62 = vector.multi_reduction <add>, %61, %cst_40 [1] : vector<32x32xf32> to vector<32xf32>
    %63 = vector.shape_cast %62 : vector<32xf32> to vector<32x1xf32>
    %64 = vector.broadcast %63 : vector<32x1xf32> to vector<32x32xf32>
    %65 = arith.divf %61, %64 : vector<32x32xf32>
    %66 = arith.truncf %65 : vector<32x32xf32> to vector<32x32xbf16>
    %67 = arith.truncf %51 : vector<32x8xf32> to vector<32x8xbf16>
    %cst_41 = arith.constant dense<0.000000e+00> : vector<32x8xf32>
    %68 = tpu.matmul %66, %67, %cst_41 {dimension_numbers = #tpu.dot_dimension_numbers<[1], [0], [0], [1], [0, 0, 1, 1], [], []>} : vector<32x32xbf16>, vector<32x8xbf16>, vector<32x8xf32> -> vector<32x8xf32>
    %69 = vector.extract_strided_slice %28 {offsets = [0, 16], sizes = [32, 8], strides = [1, 1]} : vector<32x96xf32> to vector<32x8xf32>
    %70 = vector.extract_strided_slice %28 {offsets = [0, 48], sizes = [32, 8], strides = [1, 1]} : vector<32x96xf32> to vector<32x8xf32>
    %71 = vector.extract_strided_slice %28 {offsets = [0, 80], sizes = [32, 8], strides = [1, 1]} : vector<32x96xf32> to vector<32x8xf32>
    %72 = arith.truncf %69 : vector<32x8xf32> to vector<32x8xbf16>
    %73 = arith.truncf %70 : vector<32x8xf32> to vector<32x8xbf16>
    %cst_42 = arith.constant dense<0.000000e+00> : vector<32x32xf32>
    %74 = tpu.matmul %72, %73, %cst_42 {dimension_numbers = #tpu.dot_dimension_numbers<[1], [1], [0], [0], [0, 0, 1, 0], [], []>} : vector<32x8xbf16>, vector<32x8xbf16>, vector<32x32xf32> -> vector<32x32xf32>
    %cst_43 = arith.constant 0.353553385 : f32
    %75 = vector.broadcast %cst_43 : f32 to vector<32x32xf32>
    %76 = arith.mulf %74, %75 : vector<32x32xf32>
    %cst_44 = arith.constant dense<0xFF800000> : vector<32xf32>
    %77 = vector.multi_reduction <maximumf>, %76, %cst_44 [1] : vector<32x32xf32> to vector<32xf32>
    %78 = vector.shape_cast %77 : vector<32xf32> to vector<32x1xf32>
    %79 = vector.broadcast %78 : vector<32x1xf32> to vector<32x32xf32>
    %80 = arith.subf %76, %79 : vector<32x32xf32>
    %81 = math.exp %80 : vector<32x32xf32>
    %cst_45 = arith.constant dense<0.000000e+00> : vector<32xf32>
    %82 = vector.multi_reduction <add>, %81, %cst_45 [1] : vector<32x32xf32> to vector<32xf32>
    %83 = vector.shape_cast %82 : vector<32xf32> to vector<32x1xf32>
    %84 = vector.broadcast %83 : vector<32x1xf32> to vector<32x32xf32>
    %85 = arith.divf %81, %84 : vector<32x32xf32>
    %86 = arith.truncf %85 : vector<32x32xf32> to vector<32x32xbf16>
    %87 = arith.truncf %71 : vector<32x8xf32> to vector<32x8xbf16>
    %cst_46 = arith.constant dense<0.000000e+00> : vector<32x8xf32>
    %88 = tpu.matmul %86, %87, %cst_46 {dimension_numbers = #tpu.dot_dimension_numbers<[1], [0], [0], [1], [0, 0, 1, 1], [], []>} : vector<32x32xbf16>, vector<32x8xbf16>, vector<32x8xf32> -> vector<32x8xf32>
    %89 = vector.extract_strided_slice %28 {offsets = [0, 24], sizes = [32, 8], strides = [1, 1]} : vector<32x96xf32> to vector<32x8xf32>
    %90 = vector.extract_strided_slice %28 {offsets = [0, 56], sizes = [32, 8], strides = [1, 1]} : vector<32x96xf32> to vector<32x8xf32>
    %91 = vector.extract_strided_slice %28 {offsets = [0, 88], sizes = [32, 8], strides = [1, 1]} : vector<32x96xf32> to vector<32x8xf32>
    %92 = arith.truncf %89 : vector<32x8xf32> to vector<32x8xbf16>
    %93 = arith.truncf %90 : vector<32x8xf32> to vector<32x8xbf16>
    %cst_47 = arith.constant dense<0.000000e+00> : vector<32x32xf32>
    %94 = tpu.matmul %92, %93, %cst_47 {dimension_numbers = #tpu.dot_dimension_numbers<[1], [1], [0], [0], [0, 0, 1, 0], [], []>} : vector<32x8xbf16>, vector<32x8xbf16>, vector<32x32xf32> -> vector<32x32xf32>
    %cst_48 = arith.constant 0.353553385 : f32
    %95 = vector.broadcast %cst_48 : f32 to vector<32x32xf32>
    %96 = arith.mulf %94, %95 : vector<32x32xf32>
    %cst_49 = arith.constant dense<0xFF800000> : vector<32xf32>
    %97 = vector.multi_reduction <maximumf>, %96, %cst_49 [1] : vector<32x32xf32> to vector<32xf32>
    %98 = vector.shape_cast %97 : vector<32xf32> to vector<32x1xf32>
    %99 = vector.broadcast %98 : vector<32x1xf32> to vector<32x32xf32>
    %100 = arith.subf %96, %99 : vector<32x32xf32>
    %101 = math.exp %100 : vector<32x32xf32>
    %cst_50 = arith.constant dense<0.000000e+00> : vector<32xf32>
    %102 = vector.multi_reduction <add>, %101, %cst_50 [1] : vector<32x32xf32> to vector<32xf32>
    %103 = vector.shape_cast %102 : vector<32xf32> to vector<32x1xf32>
    %104 = vector.broadcast %103 : vector<32x1xf32> to vector<32x32xf32>
    %105 = arith.divf %101, %104 : vector<32x32xf32>
    %106 = arith.truncf %105 : vector<32x32xf32> to vector<32x32xbf16>
    %107 = arith.truncf %91 : vector<32x8xf32> to vector<32x8xbf16>
    %cst_51 = arith.constant dense<0.000000e+00> : vector<32x8xf32>
    %108 = tpu.matmul %106, %107, %cst_51 {dimension_numbers = #tpu.dot_dimension_numbers<[1], [0], [0], [1], [0, 0, 1, 1], [], []>} : vector<32x32xbf16>, vector<32x8xbf16>, vector<32x8xf32> -> vector<32x8xf32>
    %109 = tpu.concatenate %48, %68, %88, %108 in 1 : vector<32x8xf32>, vector<32x8xf32>, vector<32x8xf32>, vector<32x8xf32> -> vector<32x32xf32>
    %110 = vector.extract_strided_slice %27 {offsets = [32, 0], sizes = [32, 96], strides = [1, 1]} : vector<64x96xf32> to vector<32x96xf32>
    %111 = vector.extract_strided_slice %110 {offsets = [0, 0], sizes = [32, 8], strides = [1, 1]} : vector<32x96xf32> to vector<32x8xf32>
    %112 = vector.extract_strided_slice %110 {offsets = [0, 32], sizes = [32, 8], strides = [1, 1]} : vector<32x96xf32> to vector<32x8xf32>
    %113 = vector.extract_strided_slice %110 {offsets = [0, 64], sizes = [32, 8], strides = [1, 1]} : vector<32x96xf32> to vector<32x8xf32>
    %114 = arith.truncf %111 : vector<32x8xf32> to vector<32x8xbf16>
    %115 = arith.truncf %112 : vector<32x8xf32> to vector<32x8xbf16>
    %cst_52 = arith.constant dense<0.000000e+00> : vector<32x32xf32>
    %116 = tpu.matmul %114, %115, %cst_52 {dimension_numbers = #tpu.dot_dimension_numbers<[1], [1], [0], [0], [0, 0, 1, 0], [], []>} : vector<32x8xbf16>, vector<32x8xbf16>, vector<32x32xf32> -> vector<32x32xf32>
    %cst_53 = arith.constant 0.353553385 : f32
    %117 = vector.broadcast %cst_53 : f32 to vector<32x32xf32>
    %118 = arith.mulf %116, %117 : vector<32x32xf32>
    %cst_54 = arith.constant dense<0xFF800000> : vector<32xf32>
    %119 = vector.multi_reduction <maximumf>, %118, %cst_54 [1] : vector<32x32xf32> to vector<32xf32>
    %120 = vector.shape_cast %119 : vector<32xf32> to vector<32x1xf32>
    %121 = vector.broadcast %120 : vector<32x1xf32> to vector<32x32xf32>
    %122 = arith.subf %118, %121 : vector<32x32xf32>
    %123 = math.exp %122 : vector<32x32xf32>
    %cst_55 = arith.constant dense<0.000000e+00> : vector<32xf32>
    %124 = vector.multi_reduction <add>, %123, %cst_55 [1] : vector<32x32xf32> to vector<32xf32>
    %125 = vector.shape_cast %124 : vector<32xf32> to vector<32x1xf32>
    %126 = vector.broadcast %125 : vector<32x1xf32> to vector<32x32xf32>
    %127 = arith.divf %123, %126 : vector<32x32xf32>
    %128 = arith.truncf %127 : vector<32x32xf32> to vector<32x32xbf16>
    %129 = arith.truncf %113 : vector<32x8xf32> to vector<32x8xbf16>
    %cst_56 = arith.constant dense<0.000000e+00> : vector<32x8xf32>
    %130 = tpu.matmul %128, %129, %cst_56 {dimension_numbers = #tpu.dot_dimension_numbers<[1], [0], [0], [1], [0, 0, 1, 1], [], []>} : vector<32x32xbf16>, vector<32x8xbf16>, vector<32x8xf32> -> vector<32x8xf32>
    %131 = vector.extract_strided_slice %110 {offsets = [0, 8], sizes = [32, 8], strides = [1, 1]} : vector<32x96xf32> to vector<32x8xf32>
    %132 = vector.extract_strided_slice %110 {offsets = [0, 40], sizes = [32, 8], strides = [1, 1]} : vector<32x96xf32> to vector<32x8xf32>
    %133 = vector.extract_strided_slice %110 {offsets = [0, 72], sizes = [32, 8], strides = [1, 1]} : vector<32x96xf32> to vector<32x8xf32>
    %134 = arith.truncf %131 : vector<32x8xf32> to vector<32x8xbf16>
    %135 = arith.truncf %132 : vector<32x8xf32> to vector<32x8xbf16>
    %cst_57 = arith.constant dense<0.000000e+00> : vector<32x32xf32>
    %136 = tpu.matmul %134, %135, %cst_57 {dimension_numbers = #tpu.dot_dimension_numbers<[1], [1], [0], [0], [0, 0, 1, 0], [], []>} : vector<32x8xbf16>, vector<32x8xbf16>, vector<32x32xf32> -> vector<32x32xf32>
    %cst_58 = arith.constant 0.353553385 : f32
    %137 = vector.broadcast %cst_58 : f32 to vector<32x32xf32>
    %138 = arith.mulf %136, %137 : vector<32x32xf32>
    %cst_59 = arith.constant dense<0xFF800000> : vector<32xf32>
    %139 = vector.multi_reduction <maximumf>, %138, %cst_59 [1] : vector<32x32xf32> to vector<32xf32>
    %140 = vector.shape_cast %139 : vector<32xf32> to vector<32x1xf32>
    %141 = vector.broadcast %140 : vector<32x1xf32> to vector<32x32xf32>
    %142 = arith.subf %138, %141 : vector<32x32xf32>
    %143 = math.exp %142 : vector<32x32xf32>
    %cst_60 = arith.constant dense<0.000000e+00> : vector<32xf32>
    %144 = vector.multi_reduction <add>, %143, %cst_60 [1] : vector<32x32xf32> to vector<32xf32>
    %145 = vector.shape_cast %144 : vector<32xf32> to vector<32x1xf32>
    %146 = vector.broadcast %145 : vector<32x1xf32> to vector<32x32xf32>
    %147 = arith.divf %143, %146 : vector<32x32xf32>
    %148 = arith.truncf %147 : vector<32x32xf32> to vector<32x32xbf16>
    %149 = arith.truncf %133 : vector<32x8xf32> to vector<32x8xbf16>
    %cst_61 = arith.constant dense<0.000000e+00> : vector<32x8xf32>
    %150 = tpu.matmul %148, %149, %cst_61 {dimension_numbers = #tpu.dot_dimension_numbers<[1], [0], [0], [1], [0, 0, 1, 1], [], []>} : vector<32x32xbf16>, vector<32x8xbf16>, vector<32x8xf32> -> vector<32x8xf32>
    %151 = vector.extract_strided_slice %110 {offsets = [0, 16], sizes = [32, 8], strides = [1, 1]} : vector<32x96xf32> to vector<32x8xf32>
    %152 = vector.extract_strided_slice %110 {offsets = [0, 48], sizes = [32, 8], strides = [1, 1]} : vector<32x96xf32> to vector<32x8xf32>
    %153 = vector.extract_strided_slice %110 {offsets = [0, 80], sizes = [32, 8], strides = [1, 1]} : vector<32x96xf32> to vector<32x8xf32>
    %154 = arith.truncf %151 : vector<32x8xf32> to vector<32x8xbf16>
    %155 = arith.truncf %152 : vector<32x8xf32> to vector<32x8xbf16>
    %cst_62 = arith.constant dense<0.000000e+00> : vector<32x32xf32>
    %156 = tpu.matmul %154, %155, %cst_62 {dimension_numbers = #tpu.dot_dimension_numbers<[1], [1], [0], [0], [0, 0, 1, 0], [], []>} : vector<32x8xbf16>, vector<32x8xbf16>, vector<32x32xf32> -> vector<32x32xf32>
    %cst_63 = arith.constant 0.353553385 : f32
    %157 = vector.broadcast %cst_63 : f32 to vector<32x32xf32>
    %158 = arith.mulf %156, %157 : vector<32x32xf32>
    %cst_64 = arith.constant dense<0xFF800000> : vector<32xf32>
    %159 = vector.multi_reduction <maximumf>, %158, %cst_64 [1] : vector<32x32xf32> to vector<32xf32>
    %160 = vector.shape_cast %159 : vector<32xf32> to vector<32x1xf32>
    %161 = vector.broadcast %160 : vector<32x1xf32> to vector<32x32xf32>
    %162 = arith.subf %158, %161 : vector<32x32xf32>
    %163 = math.exp %162 : vector<32x32xf32>
    %cst_65 = arith.constant dense<0.000000e+00> : vector<32xf32>
    %164 = vector.multi_reduction <add>, %163, %cst_65 [1] : vector<32x32xf32> to vector<32xf32>
    %165 = vector.shape_cast %164 : vector<32xf32> to vector<32x1xf32>
    %166 = vector.broadcast %165 : vector<32x1xf32> to vector<32x32xf32>
    %167 = arith.divf %163, %166 : vector<32x32xf32>
    %168 = arith.truncf %167 : vector<32x32xf32> to vector<32x32xbf16>
    %169 = arith.truncf %153 : vector<32x8xf32> to vector<32x8xbf16>
    %cst_66 = arith.constant dense<0.000000e+00> : vector<32x8xf32>
    %170 = tpu.matmul %168, %169, %cst_66 {dimension_numbers = #tpu.dot_dimension_numbers<[1], [0], [0], [1], [0, 0, 1, 1], [], []>} : vector<32x32xbf16>, vector<32x8xbf16>, vector<32x8xf32> -> vector<32x8xf32>
    %171 = vector.extract_strided_slice %110 {offsets = [0, 24], sizes = [32, 8], strides = [1, 1]} : vector<32x96xf32> to vector<32x8xf32>
    %172 = vector.extract_strided_slice %110 {offsets = [0, 56], sizes = [32, 8], strides = [1, 1]} : vector<32x96xf32> to vector<32x8xf32>
    %173 = vector.extract_strided_slice %110 {offsets = [0, 88], sizes = [32, 8], strides = [1, 1]} : vector<32x96xf32> to vector<32x8xf32>
    %174 = arith.truncf %171 : vector<32x8xf32> to vector<32x8xbf16>
    %175 = arith.truncf %172 : vector<32x8xf32> to vector<32x8xbf16>
    %cst_67 = arith.constant dense<0.000000e+00> : vector<32x32xf32>
    %176 = tpu.matmul %174, %175, %cst_67 {dimension_numbers = #tpu.dot_dimension_numbers<[1], [1], [0], [0], [0, 0, 1, 0], [], []>} : vector<32x8xbf16>, vector<32x8xbf16>, vector<32x32xf32> -> vector<32x32xf32>
    %cst_68 = arith.constant 0.353553385 : f32
    %177 = vector.broadcast %cst_68 : f32 to vector<32x32xf32>
    %178 = arith.mulf %176, %177 : vector<32x32xf32>
    %cst_69 = arith.constant dense<0xFF800000> : vector<32xf32>
    %179 = vector.multi_reduction <maximumf>, %178, %cst_69 [1] : vector<32x32xf32> to vector<32xf32>
    %180 = vector.shape_cast %179 : vector<32xf32> to vector<32x1xf32>
    %181 = vector.broadcast %180 : vector<32x1xf32> to vector<32x32xf32>
    %182 = arith.subf %178, %181 : vector<32x32xf32>
    %183 = math.exp %182 : vector<32x32xf32>
    %cst_70 = arith.constant dense<0.000000e+00> : vector<32xf32>
    %184 = vector.multi_reduction <add>, %183, %cst_70 [1] : vector<32x32xf32> to vector<32xf32>
    %185 = vector.shape_cast %184 : vector<32xf32> to vector<32x1xf32>
    %186 = vector.broadcast %185 : vector<32x1xf32> to vector<32x32xf32>
    %187 = arith.divf %183, %186 : vector<32x32xf32>
    %188 = arith.truncf %187 : vector<32x32xf32> to vector<32x32xbf16>
    %189 = arith.truncf %173 : vector<32x8xf32> to vector<32x8xbf16>
    %cst_71 = arith.constant dense<0.000000e+00> : vector<32x8xf32>
    %190 = tpu.matmul %188, %189, %cst_71 {dimension_numbers = #tpu.dot_dimension_numbers<[1], [0], [0], [1], [0, 0, 1, 1], [], []>} : vector<32x32xbf16>, vector<32x8xbf16>, vector<32x8xf32> -> vector<32x8xf32>
    %191 = tpu.concatenate %130, %150, %170, %190 in 1 : vector<32x8xf32>, vector<32x8xf32>, vector<32x8xf32>, vector<32x8xf32> -> vector<32x32xf32>
    %192 = tpu.concatenate %109, %191 in 0 : vector<32x32xf32>, vector<32x32xf32> -> vector<64x32xf32>
    %193 = arith.truncf %192 : vector<64x32xf32> to vector<64x32xbf16>
    %194 = arith.truncf %13 : vector<32x32xf32> to vector<32x32xbf16>
    %cst_72 = arith.constant dense<0.000000e+00> : vector<64x32xf32>
    %195 = tpu.matmul %193, %194, %cst_72 {dimension_numbers = #tpu.dot_dimension_numbers<[1], [0], [0], [1], [0, 0, 1, 1], [], []>} : vector<64x32xbf16>, vector<32x32xbf16>, vector<64x32xf32> -> vector<64x32xf32>
    %196 = vector.broadcast %14 : vector<1x32xf32> to vector<64x32xf32>
    %197 = arith.addf %195, %196 : vector<64x32xf32>
    %198 = arith.addf %10, %197 : vector<64x32xf32>
    %cst_73 = arith.constant dense<0.000000e+00> : vector<64xf32>
    %199 = vector.multi_reduction <add>, %198, %cst_73 [1] : vector<64x32xf32> to vector<64xf32>
    %200 = vector.shape_cast %199 : vector<64xf32> to vector<64x1xf32>
    %cst_74 = arith.constant 3.200000e+01 : f32
    %201 = vector.broadcast %cst_74 : f32 to vector<64x1xf32>
    %202 = arith.divf %200, %201 : vector<64x1xf32>
    %203 = vector.broadcast %202 : vector<64x1xf32> to vector<64x32xf32>
    %204 = arith.subf %198, %203 : vector<64x32xf32>
    %205 = arith.mulf %204, %204 : vector<64x32xf32>
    %cst_75 = arith.constant dense<0.000000e+00> : vector<64xf32>
    %206 = vector.multi_reduction <add>, %205, %cst_75 [1] : vector<64x32xf32> to vector<64xf32>
    %207 = vector.shape_cast %206 : vector<64xf32> to vector<64x1xf32>
    %cst_76 = arith.constant 3.200000e+01 : f32
    %208 = vector.broadcast %cst_76 : f32 to vector<64x1xf32>
    %209 = arith.divf %207, %208 : vector<64x1xf32>
    %cst_77 = arith.constant 9.99999974E-6 : f32
    %210 = vector.broadcast %cst_77 : f32 to vector<64x1xf32>
    %211 = arith.addf %209, %210 : vector<64x1xf32>
    %212 = math.rsqrt %211 : vector<64x1xf32>
    %213 = vector.broadcast %212 : vector<64x1xf32> to vector<64x32xf32>
    %214 = arith.mulf %204, %213 : vector<64x32xf32>
    %215 = vector.broadcast %19 : vector<1x32xf32> to vector<64x32xf32>
    %216 = arith.mulf %214, %215 : vector<64x32xf32>
    %217 = vector.broadcast %20 : vector<1x32xf32> to vector<64x32xf32>
    %218 = arith.addf %216, %217 : vector<64x32xf32>
    %219 = arith.truncf %218 : vector<64x32xf32> to vector<64x32xbf16>
    %220 = arith.truncf %15 : vector<32x128xf32> to vector<32x128xbf16>
    %cst_78 = arith.constant dense<0.000000e+00> : vector<64x128xf32>
    %221 = tpu.matmul %219, %220, %cst_78 {dimension_numbers = #tpu.dot_dimension_numbers<[1], [0], [0], [1], [0, 0, 1, 1], [], []>} : vector<64x32xbf16>, vector<32x128xbf16>, vector<64x128xf32> -> vector<64x128xf32>
    %222 = vector.broadcast %16 : vector<1x128xf32> to vector<64x128xf32>
    %223 = arith.addf %221, %222 : vector<64x128xf32>
    %cst_79 = arith.constant 0.000000e+00 : f32
    %224 = vector.broadcast %cst_79 : f32 to vector<64x128xf32>
    %225 = arith.maximumf %223, %224 : vector<64x128xf32>
    %226 = arith.truncf %225 : vector<64x128xf32> to vector<64x128xbf16>
    %227 = arith.truncf %17 : vector<128x32xf32> to vector<128x32xbf16>
    %cst_80 = arith.constant dense<0.000000e+00> : vector<64x32xf32>
    %228 = tpu.matmul %226, %227, %cst_80 {dimension_numbers = #tpu.dot_dimension_numbers<[1], [0], [0], [1], [0, 0, 1, 1], [], []>} : vector<64x128xbf16>, vector<128x32xbf16>, vector<64x32xf32> -> vector<64x32xf32>
    %229 = vector.broadcast %18 : vector<1x32xf32> to vector<64x32xf32>
    %230 = arith.addf %228, %229 : vector<64x32xf32>
    %231 = arith.addf %218, %230 : vector<64x32xf32>
    %cst_81 = arith.constant dense<0.000000e+00> : vector<64xf32>
    %232 = vector.multi_reduction <add>, %231, %cst_81 [1] : vector<64x32xf32> to vector<64xf32>
    %233 = vector.shape_cast %232 : vector<64xf32> to vector<64x1xf32>
    %cst_82 = arith.constant 3.200000e+01 : f32
    %234 = vector.broadcast %cst_82 : f32 to vector<64x1xf32>
    %235 = arith.divf %233, %234 : vector<64x1xf32>
    %236 = vector.broadcast %235 : vector<64x1xf32> to vector<64x32xf32>
    %237 = arith.subf %231, %236 : vector<64x32xf32>
    %238 = arith.mulf %237, %237 : vector<64x32xf32>
    %cst_83 = arith.constant dense<0.000000e+00> : vector<64xf32>
    %239 = vector.multi_reduction <add>, %238, %cst_83 [1] : vector<64x32xf32> to vector<64xf32>
    %240 = vector.shape_cast %239 : vector<64xf32> to vector<64x1xf32>
    %cst_84 = arith.constant 3.200000e+01 : f32
    %241 = vector.broadcast %cst_84 : f32 to vector<64x1xf32>
    %242 = arith.divf %240, %241 : vector<64x1xf32>
    %cst_85 = arith.constant 9.99999974E-6 : f32
    %243 = vector.broadcast %cst_85 : f32 to vector<64x1xf32>
    %244 = arith.addf %242, %243 : vector<64x1xf32>
    %245 = math.rsqrt %244 : vector<64x1xf32>
    %246 = vector.broadcast %245 : vector<64x1xf32> to vector<64x32xf32>
    %247 = arith.mulf %237, %246 : vector<64x32xf32>
    %248 = vector.broadcast %21 : vector<1x32xf32> to vector<64x32xf32>
    %249 = arith.mulf %247, %248 : vector<64x32xf32>
    %250 = vector.broadcast %22 : vector<1x32xf32> to vector<64x32xf32>
    %251 = arith.addf %249, %250 : vector<64x32xf32>
    %c0_86 = arith.constant 0 : index
    %c0_87 = arith.constant 0 : index
    %252 = vector.load %arg16[%c0_86, %c0_87] : memref<32x96xf32, #tpu.memory_space<vmem>>, vector<32x96xf32>
    %c0_88 = arith.constant 0 : index
    %c0_89 = arith.constant 0 : index
    %253 = vector.load %arg17[%c0_88, %c0_89] : memref<1x96xf32, #tpu.memory_space<vmem>>, vector<1x96xf32>
    %c0_90 = arith.constant 0 : index
    %c0_91 = arith.constant 0 : index
    %254 = vector.load %arg18[%c0_90, %c0_91] : memref<32x32xf32, #tpu.memory_space<vmem>>, vector<32x32xf32>
    %c0_92 = arith.constant 0 : index
    %c0_93 = arith.constant 0 : index
    %255 = vector.load %arg19[%c0_92, %c0_93] : memref<1x32xf32, #tpu.memory_space<vmem>>, vector<1x32xf32>
    %c0_94 = arith.constant 0 : index
    %c0_95 = arith.constant 0 : index
    %256 = vector.load %arg20[%c0_94, %c0_95] : memref<32x128xf32, #tpu.memory_space<vmem>>, vector<32x128xf32>
    %c0_96 = arith.constant 0 : index
    %c0_97 = arith.constant 0 : index
    %257 = vector.load %arg21[%c0_96, %c0_97] : memref<1x128xf32, #tpu.memory_space<vmem>>, vector<1x128xf32>
    %c0_98 = arith.constant 0 : index
    %c0_99 = arith.constant 0 : index
    %258 = vector.load %arg22[%c0_98, %c0_99] : memref<128x32xf32, #tpu.memory_space<vmem>>, vector<128x32xf32>
    %c0_100 = arith.constant 0 : index
    %c0_101 = arith.constant 0 : index
    %259 = vector.load %arg23[%c0_100, %c0_101] : memref<1x32xf32, #tpu.memory_space<vmem>>, vector<1x32xf32>
    %c0_102 = arith.constant 0 : index
    %c0_103 = arith.constant 0 : index
    %260 = vector.load %arg24[%c0_102, %c0_103] : memref<1x32xf32, #tpu.memory_space<vmem>>, vector<1x32xf32>
    %c0_104 = arith.constant 0 : index
    %c0_105 = arith.constant 0 : index
    %261 = vector.load %arg25[%c0_104, %c0_105] : memref<1x32xf32, #tpu.memory_space<vmem>>, vector<1x32xf32>
    %c0_106 = arith.constant 0 : index
    %c0_107 = arith.constant 0 : index
    %262 = vector.load %arg26[%c0_106, %c0_107] : memref<1x32xf32, #tpu.memory_space<vmem>>, vector<1x32xf32>
    %c0_108 = arith.constant 0 : index
    %c0_109 = arith.constant 0 : index
    %263 = vector.load %arg27[%c0_108, %c0_109] : memref<1x32xf32, #tpu.memory_space<vmem>>, vector<1x32xf32>
    %264 = arith.truncf %251 : vector<64x32xf32> to vector<64x32xbf16>
    %265 = arith.truncf %252 : vector<32x96xf32> to vector<32x96xbf16>
    %cst_110 = arith.constant dense<0.000000e+00> : vector<64x96xf32>
    %266 = tpu.matmul %264, %265, %cst_110 {dimension_numbers = #tpu.dot_dimension_numbers<[1], [0], [0], [1], [0, 0, 1, 1], [], []>} : vector<64x32xbf16>, vector<32x96xbf16>, vector<64x96xf32> -> vector<64x96xf32>
    %267 = vector.broadcast %253 : vector<1x96xf32> to vector<64x96xf32>
    %268 = arith.addf %266, %267 : vector<64x96xf32>
    %269 = vector.extract_strided_slice %268 {offsets = [0, 0], sizes = [32, 96], strides = [1, 1]} : vector<64x96xf32> to vector<32x96xf32>
    %270 = vector.extract_strided_slice %269 {offsets = [0, 0], sizes = [32, 8], strides = [1, 1]} : vector<32x96xf32> to vector<32x8xf32>
    %271 = vector.extract_strided_slice %269 {offsets = [0, 32], sizes = [32, 8], strides = [1, 1]} : vector<32x96xf32> to vector<32x8xf32>
    %272 = vector.extract_strided_slice %269 {offsets = [0, 64], sizes = [32, 8], strides = [1, 1]} : vector<32x96xf32> to vector<32x8xf32>
    %273 = arith.truncf %270 : vector<32x8xf32> to vector<32x8xbf16>
    %274 = arith.truncf %271 : vector<32x8xf32> to vector<32x8xbf16>
    %cst_111 = arith.constant dense<0.000000e+00> : vector<32x32xf32>
    %275 = tpu.matmul %273, %274, %cst_111 {dimension_numbers = #tpu.dot_dimension_numbers<[1], [1], [0], [0], [0, 0, 1, 0], [], []>} : vector<32x8xbf16>, vector<32x8xbf16>, vector<32x32xf32> -> vector<32x32xf32>
    %cst_112 = arith.constant 0.353553385 : f32
    %276 = vector.broadcast %cst_112 : f32 to vector<32x32xf32>
    %277 = arith.mulf %275, %276 : vector<32x32xf32>
    %cst_113 = arith.constant dense<0xFF800000> : vector<32xf32>
    %278 = vector.multi_reduction <maximumf>, %277, %cst_113 [1] : vector<32x32xf32> to vector<32xf32>
    %279 = vector.shape_cast %278 : vector<32xf32> to vector<32x1xf32>
    %280 = vector.broadcast %279 : vector<32x1xf32> to vector<32x32xf32>
    %281 = arith.subf %277, %280 : vector<32x32xf32>
    %282 = math.exp %281 : vector<32x32xf32>
    %cst_114 = arith.constant dense<0.000000e+00> : vector<32xf32>
    %283 = vector.multi_reduction <add>, %282, %cst_114 [1] : vector<32x32xf32> to vector<32xf32>
    %284 = vector.shape_cast %283 : vector<32xf32> to vector<32x1xf32>
    %285 = vector.broadcast %284 : vector<32x1xf32> to vector<32x32xf32>
    %286 = arith.divf %282, %285 : vector<32x32xf32>
    %287 = arith.truncf %286 : vector<32x32xf32> to vector<32x32xbf16>
    %288 = arith.truncf %272 : vector<32x8xf32> to vector<32x8xbf16>
    %cst_115 = arith.constant dense<0.000000e+00> : vector<32x8xf32>
    %289 = tpu.matmul %287, %288, %cst_115 {dimension_numbers = #tpu.dot_dimension_numbers<[1], [0], [0], [1], [0, 0, 1, 1], [], []>} : vector<32x32xbf16>, vector<32x8xbf16>, vector<32x8xf32> -> vector<32x8xf32>
    %290 = vector.extract_strided_slice %269 {offsets = [0, 8], sizes = [32, 8], strides = [1, 1]} : vector<32x96xf32> to vector<32x8xf32>
    %291 = vector.extract_strided_slice %269 {offsets = [0, 40], sizes = [32, 8], strides = [1, 1]} : vector<32x96xf32> to vector<32x8xf32>
    %292 = vector.extract_strided_slice %269 {offsets = [0, 72], sizes = [32, 8], strides = [1, 1]} : vector<32x96xf32> to vector<32x8xf32>
    %293 = arith.truncf %290 : vector<32x8xf32> to vector<32x8xbf16>
    %294 = arith.truncf %291 : vector<32x8xf32> to vector<32x8xbf16>
    %cst_116 = arith.constant dense<0.000000e+00> : vector<32x32xf32>
    %295 = tpu.matmul %293, %294, %cst_116 {dimension_numbers = #tpu.dot_dimension_numbers<[1], [1], [0], [0], [0, 0, 1, 0], [], []>} : vector<32x8xbf16>, vector<32x8xbf16>, vector<32x32xf32> -> vector<32x32xf32>
    %cst_117 = arith.constant 0.353553385 : f32
    %296 = vector.broadcast %cst_117 : f32 to vector<32x32xf32>
    %297 = arith.mulf %295, %296 : vector<32x32xf32>
    %cst_118 = arith.constant dense<0xFF800000> : vector<32xf32>
    %298 = vector.multi_reduction <maximumf>, %297, %cst_118 [1] : vector<32x32xf32> to vector<32xf32>
    %299 = vector.shape_cast %298 : vector<32xf32> to vector<32x1xf32>
    %300 = vector.broadcast %299 : vector<32x1xf32> to vector<32x32xf32>
    %301 = arith.subf %297, %300 : vector<32x32xf32>
    %302 = math.exp %301 : vector<32x32xf32>
    %cst_119 = arith.constant dense<0.000000e+00> : vector<32xf32>
    %303 = vector.multi_reduction <add>, %302, %cst_119 [1] : vector<32x32xf32> to vector<32xf32>
    %304 = vector.shape_cast %303 : vector<32xf32> to vector<32x1xf32>
    %305 = vector.broadcast %304 : vector<32x1xf32> to vector<32x32xf32>
    %306 = arith.divf %302, %305 : vector<32x32xf32>
    %307 = arith.truncf %306 : vector<32x32xf32> to vector<32x32xbf16>
    %308 = arith.truncf %292 : vector<32x8xf32> to vector<32x8xbf16>
    %cst_120 = arith.constant dense<0.000000e+00> : vector<32x8xf32>
    %309 = tpu.matmul %307, %308, %cst_120 {dimension_numbers = #tpu.dot_dimension_numbers<[1], [0], [0], [1], [0, 0, 1, 1], [], []>} : vector<32x32xbf16>, vector<32x8xbf16>, vector<32x8xf32> -> vector<32x8xf32>
    %310 = vector.extract_strided_slice %269 {offsets = [0, 16], sizes = [32, 8], strides = [1, 1]} : vector<32x96xf32> to vector<32x8xf32>
    %311 = vector.extract_strided_slice %269 {offsets = [0, 48], sizes = [32, 8], strides = [1, 1]} : vector<32x96xf32> to vector<32x8xf32>
    %312 = vector.extract_strided_slice %269 {offsets = [0, 80], sizes = [32, 8], strides = [1, 1]} : vector<32x96xf32> to vector<32x8xf32>
    %313 = arith.truncf %310 : vector<32x8xf32> to vector<32x8xbf16>
    %314 = arith.truncf %311 : vector<32x8xf32> to vector<32x8xbf16>
    %cst_121 = arith.constant dense<0.000000e+00> : vector<32x32xf32>
    %315 = tpu.matmul %313, %314, %cst_121 {dimension_numbers = #tpu.dot_dimension_numbers<[1], [1], [0], [0], [0, 0, 1, 0], [], []>} : vector<32x8xbf16>, vector<32x8xbf16>, vector<32x32xf32> -> vector<32x32xf32>
    %cst_122 = arith.constant 0.353553385 : f32
    %316 = vector.broadcast %cst_122 : f32 to vector<32x32xf32>
    %317 = arith.mulf %315, %316 : vector<32x32xf32>
    %cst_123 = arith.constant dense<0xFF800000> : vector<32xf32>
    %318 = vector.multi_reduction <maximumf>, %317, %cst_123 [1] : vector<32x32xf32> to vector<32xf32>
    %319 = vector.shape_cast %318 : vector<32xf32> to vector<32x1xf32>
    %320 = vector.broadcast %319 : vector<32x1xf32> to vector<32x32xf32>
    %321 = arith.subf %317, %320 : vector<32x32xf32>
    %322 = math.exp %321 : vector<32x32xf32>
    %cst_124 = arith.constant dense<0.000000e+00> : vector<32xf32>
    %323 = vector.multi_reduction <add>, %322, %cst_124 [1] : vector<32x32xf32> to vector<32xf32>
    %324 = vector.shape_cast %323 : vector<32xf32> to vector<32x1xf32>
    %325 = vector.broadcast %324 : vector<32x1xf32> to vector<32x32xf32>
    %326 = arith.divf %322, %325 : vector<32x32xf32>
    %327 = arith.truncf %326 : vector<32x32xf32> to vector<32x32xbf16>
    %328 = arith.truncf %312 : vector<32x8xf32> to vector<32x8xbf16>
    %cst_125 = arith.constant dense<0.000000e+00> : vector<32x8xf32>
    %329 = tpu.matmul %327, %328, %cst_125 {dimension_numbers = #tpu.dot_dimension_numbers<[1], [0], [0], [1], [0, 0, 1, 1], [], []>} : vector<32x32xbf16>, vector<32x8xbf16>, vector<32x8xf32> -> vector<32x8xf32>
    %330 = vector.extract_strided_slice %269 {offsets = [0, 24], sizes = [32, 8], strides = [1, 1]} : vector<32x96xf32> to vector<32x8xf32>
    %331 = vector.extract_strided_slice %269 {offsets = [0, 56], sizes = [32, 8], strides = [1, 1]} : vector<32x96xf32> to vector<32x8xf32>
    %332 = vector.extract_strided_slice %269 {offsets = [0, 88], sizes = [32, 8], strides = [1, 1]} : vector<32x96xf32> to vector<32x8xf32>
    %333 = arith.truncf %330 : vector<32x8xf32> to vector<32x8xbf16>
    %334 = arith.truncf %331 : vector<32x8xf32> to vector<32x8xbf16>
    %cst_126 = arith.constant dense<0.000000e+00> : vector<32x32xf32>
    %335 = tpu.matmul %333, %334, %cst_126 {dimension_numbers = #tpu.dot_dimension_numbers<[1], [1], [0], [0], [0, 0, 1, 0], [], []>} : vector<32x8xbf16>, vector<32x8xbf16>, vector<32x32xf32> -> vector<32x32xf32>
    %cst_127 = arith.constant 0.353553385 : f32
    %336 = vector.broadcast %cst_127 : f32 to vector<32x32xf32>
    %337 = arith.mulf %335, %336 : vector<32x32xf32>
    %cst_128 = arith.constant dense<0xFF800000> : vector<32xf32>
    %338 = vector.multi_reduction <maximumf>, %337, %cst_128 [1] : vector<32x32xf32> to vector<32xf32>
    %339 = vector.shape_cast %338 : vector<32xf32> to vector<32x1xf32>
    %340 = vector.broadcast %339 : vector<32x1xf32> to vector<32x32xf32>
    %341 = arith.subf %337, %340 : vector<32x32xf32>
    %342 = math.exp %341 : vector<32x32xf32>
    %cst_129 = arith.constant dense<0.000000e+00> : vector<32xf32>
    %343 = vector.multi_reduction <add>, %342, %cst_129 [1] : vector<32x32xf32> to vector<32xf32>
    %344 = vector.shape_cast %343 : vector<32xf32> to vector<32x1xf32>
    %345 = vector.broadcast %344 : vector<32x1xf32> to vector<32x32xf32>
    %346 = arith.divf %342, %345 : vector<32x32xf32>
    %347 = arith.truncf %346 : vector<32x32xf32> to vector<32x32xbf16>
    %348 = arith.truncf %332 : vector<32x8xf32> to vector<32x8xbf16>
    %cst_130 = arith.constant dense<0.000000e+00> : vector<32x8xf32>
    %349 = tpu.matmul %347, %348, %cst_130 {dimension_numbers = #tpu.dot_dimension_numbers<[1], [0], [0], [1], [0, 0, 1, 1], [], []>} : vector<32x32xbf16>, vector<32x8xbf16>, vector<32x8xf32> -> vector<32x8xf32>
    %350 = tpu.concatenate %289, %309, %329, %349 in 1 : vector<32x8xf32>, vector<32x8xf32>, vector<32x8xf32>, vector<32x8xf32> -> vector<32x32xf32>
    %351 = vector.extract_strided_slice %268 {offsets = [32, 0], sizes = [32, 96], strides = [1, 1]} : vector<64x96xf32> to vector<32x96xf32>
    %352 = vector.extract_strided_slice %351 {offsets = [0, 0], sizes = [32, 8], strides = [1, 1]} : vector<32x96xf32> to vector<32x8xf32>
    %353 = vector.extract_strided_slice %351 {offsets = [0, 32], sizes = [32, 8], strides = [1, 1]} : vector<32x96xf32> to vector<32x8xf32>
    %354 = vector.extract_strided_slice %351 {offsets = [0, 64], sizes = [32, 8], strides = [1, 1]} : vector<32x96xf32> to vector<32x8xf32>
    %355 = arith.truncf %352 : vector<32x8xf32> to vector<32x8xbf16>
    %356 = arith.truncf %353 : vector<32x8xf32> to vector<32x8xbf16>
    %cst_131 = arith.constant dense<0.000000e+00> : vector<32x32xf32>
    %357 = tpu.matmul %355, %356, %cst_131 {dimension_numbers = #tpu.dot_dimension_numbers<[1], [1], [0], [0], [0, 0, 1, 0], [], []>} : vector<32x8xbf16>, vector<32x8xbf16>, vector<32x32xf32> -> vector<32x32xf32>
    %cst_132 = arith.constant 0.353553385 : f32
    %358 = vector.broadcast %cst_132 : f32 to vector<32x32xf32>
    %359 = arith.mulf %357, %358 : vector<32x32xf32>
    %cst_133 = arith.constant dense<0xFF800000> : vector<32xf32>
    %360 = vector.multi_reduction <maximumf>, %359, %cst_133 [1] : vector<32x32xf32> to vector<32xf32>
    %361 = vector.shape_cast %360 : vector<32xf32> to vector<32x1xf32>
    %362 = vector.broadcast %361 : vector<32x1xf32> to vector<32x32xf32>
    %363 = arith.subf %359, %362 : vector<32x32xf32>
    %364 = math.exp %363 : vector<32x32xf32>
    %cst_134 = arith.constant dense<0.000000e+00> : vector<32xf32>
    %365 = vector.multi_reduction <add>, %364, %cst_134 [1] : vector<32x32xf32> to vector<32xf32>
    %366 = vector.shape_cast %365 : vector<32xf32> to vector<32x1xf32>
    %367 = vector.broadcast %366 : vector<32x1xf32> to vector<32x32xf32>
    %368 = arith.divf %364, %367 : vector<32x32xf32>
    %369 = arith.truncf %368 : vector<32x32xf32> to vector<32x32xbf16>
    %370 = arith.truncf %354 : vector<32x8xf32> to vector<32x8xbf16>
    %cst_135 = arith.constant dense<0.000000e+00> : vector<32x8xf32>
    %371 = tpu.matmul %369, %370, %cst_135 {dimension_numbers = #tpu.dot_dimension_numbers<[1], [0], [0], [1], [0, 0, 1, 1], [], []>} : vector<32x32xbf16>, vector<32x8xbf16>, vector<32x8xf32> -> vector<32x8xf32>
    %372 = vector.extract_strided_slice %351 {offsets = [0, 8], sizes = [32, 8], strides = [1, 1]} : vector<32x96xf32> to vector<32x8xf32>
    %373 = vector.extract_strided_slice %351 {offsets = [0, 40], sizes = [32, 8], strides = [1, 1]} : vector<32x96xf32> to vector<32x8xf32>
    %374 = vector.extract_strided_slice %351 {offsets = [0, 72], sizes = [32, 8], strides = [1, 1]} : vector<32x96xf32> to vector<32x8xf32>
    %375 = arith.truncf %372 : vector<32x8xf32> to vector<32x8xbf16>
    %376 = arith.truncf %373 : vector<32x8xf32> to vector<32x8xbf16>
    %cst_136 = arith.constant dense<0.000000e+00> : vector<32x32xf32>
    %377 = tpu.matmul %375, %376, %cst_136 {dimension_numbers = #tpu.dot_dimension_numbers<[1], [1], [0], [0], [0, 0, 1, 0], [], []>} : vector<32x8xbf16>, vector<32x8xbf16>, vector<32x32xf32> -> vector<32x32xf32>
    %cst_137 = arith.constant 0.353553385 : f32
    %378 = vector.broadcast %cst_137 : f32 to vector<32x32xf32>
    %379 = arith.mulf %377, %378 : vector<32x32xf32>
    %cst_138 = arith.constant dense<0xFF800000> : vector<32xf32>
    %380 = vector.multi_reduction <maximumf>, %379, %cst_138 [1] : vector<32x32xf32> to vector<32xf32>
    %381 = vector.shape_cast %380 : vector<32xf32> to vector<32x1xf32>
    %382 = vector.broadcast %381 : vector<32x1xf32> to vector<32x32xf32>
    %383 = arith.subf %379, %382 : vector<32x32xf32>
    %384 = math.exp %383 : vector<32x32xf32>
    %cst_139 = arith.constant dense<0.000000e+00> : vector<32xf32>
    %385 = vector.multi_reduction <add>, %384, %cst_139 [1] : vector<32x32xf32> to vector<32xf32>
    %386 = vector.shape_cast %385 : vector<32xf32> to vector<32x1xf32>
    %387 = vector.broadcast %386 : vector<32x1xf32> to vector<32x32xf32>
    %388 = arith.divf %384, %387 : vector<32x32xf32>
    %389 = arith.truncf %388 : vector<32x32xf32> to vector<32x32xbf16>
    %390 = arith.truncf %374 : vector<32x8xf32> to vector<32x8xbf16>
    %cst_140 = arith.constant dense<0.000000e+00> : vector<32x8xf32>
    %391 = tpu.matmul %389, %390, %cst_140 {dimension_numbers = #tpu.dot_dimension_numbers<[1], [0], [0], [1], [0, 0, 1, 1], [], []>} : vector<32x32xbf16>, vector<32x8xbf16>, vector<32x8xf32> -> vector<32x8xf32>
    %392 = vector.extract_strided_slice %351 {offsets = [0, 16], sizes = [32, 8], strides = [1, 1]} : vector<32x96xf32> to vector<32x8xf32>
    %393 = vector.extract_strided_slice %351 {offsets = [0, 48], sizes = [32, 8], strides = [1, 1]} : vector<32x96xf32> to vector<32x8xf32>
    %394 = vector.extract_strided_slice %351 {offsets = [0, 80], sizes = [32, 8], strides = [1, 1]} : vector<32x96xf32> to vector<32x8xf32>
    %395 = arith.truncf %392 : vector<32x8xf32> to vector<32x8xbf16>
    %396 = arith.truncf %393 : vector<32x8xf32> to vector<32x8xbf16>
    %cst_141 = arith.constant dense<0.000000e+00> : vector<32x32xf32>
    %397 = tpu.matmul %395, %396, %cst_141 {dimension_numbers = #tpu.dot_dimension_numbers<[1], [1], [0], [0], [0, 0, 1, 0], [], []>} : vector<32x8xbf16>, vector<32x8xbf16>, vector<32x32xf32> -> vector<32x32xf32>
    %cst_142 = arith.constant 0.353553385 : f32
    %398 = vector.broadcast %cst_142 : f32 to vector<32x32xf32>
    %399 = arith.mulf %397, %398 : vector<32x32xf32>
    %cst_143 = arith.constant dense<0xFF800000> : vector<32xf32>
    %400 = vector.multi_reduction <maximumf>, %399, %cst_143 [1] : vector<32x32xf32> to vector<32xf32>
    %401 = vector.shape_cast %400 : vector<32xf32> to vector<32x1xf32>
    %402 = vector.broadcast %401 : vector<32x1xf32> to vector<32x32xf32>
    %403 = arith.subf %399, %402 : vector<32x32xf32>
    %404 = math.exp %403 : vector<32x32xf32>
    %cst_144 = arith.constant dense<0.000000e+00> : vector<32xf32>
    %405 = vector.multi_reduction <add>, %404, %cst_144 [1] : vector<32x32xf32> to vector<32xf32>
    %406 = vector.shape_cast %405 : vector<32xf32> to vector<32x1xf32>
    %407 = vector.broadcast %406 : vector<32x1xf32> to vector<32x32xf32>
    %408 = arith.divf %404, %407 : vector<32x32xf32>
    %409 = arith.truncf %408 : vector<32x32xf32> to vector<32x32xbf16>
    %410 = arith.truncf %394 : vector<32x8xf32> to vector<32x8xbf16>
    %cst_145 = arith.constant dense<0.000000e+00> : vector<32x8xf32>
    %411 = tpu.matmul %409, %410, %cst_145 {dimension_numbers = #tpu.dot_dimension_numbers<[1], [0], [0], [1], [0, 0, 1, 1], [], []>} : vector<32x32xbf16>, vector<32x8xbf16>, vector<32x8xf32> -> vector<32x8xf32>
    %412 = vector.extract_strided_slice %351 {offsets = [0, 24], sizes = [32, 8], strides = [1, 1]} : vector<32x96xf32> to vector<32x8xf32>
    %413 = vector.extract_strided_slice %351 {offsets = [0, 56], sizes = [32, 8], strides = [1, 1]} : vector<32x96xf32> to vector<32x8xf32>
    %414 = vector.extract_strided_slice %351 {offsets = [0, 88], sizes = [32, 8], strides = [1, 1]} : vector<32x96xf32> to vector<32x8xf32>
    %415 = arith.truncf %412 : vector<32x8xf32> to vector<32x8xbf16>
    %416 = arith.truncf %413 : vector<32x8xf32> to vector<32x8xbf16>
    %cst_146 = arith.constant dense<0.000000e+00> : vector<32x32xf32>
    %417 = tpu.matmul %415, %416, %cst_146 {dimension_numbers = #tpu.dot_dimension_numbers<[1], [1], [0], [0], [0, 0, 1, 0], [], []>} : vector<32x8xbf16>, vector<32x8xbf16>, vector<32x32xf32> -> vector<32x32xf32>
    %cst_147 = arith.constant 0.353553385 : f32
    %418 = vector.broadcast %cst_147 : f32 to vector<32x32xf32>
    %419 = arith.mulf %417, %418 : vector<32x32xf32>
    %cst_148 = arith.constant dense<0xFF800000> : vector<32xf32>
    %420 = vector.multi_reduction <maximumf>, %419, %cst_148 [1] : vector<32x32xf32> to vector<32xf32>
    %421 = vector.shape_cast %420 : vector<32xf32> to vector<32x1xf32>
    %422 = vector.broadcast %421 : vector<32x1xf32> to vector<32x32xf32>
    %423 = arith.subf %419, %422 : vector<32x32xf32>
    %424 = math.exp %423 : vector<32x32xf32>
    %cst_149 = arith.constant dense<0.000000e+00> : vector<32xf32>
    %425 = vector.multi_reduction <add>, %424, %cst_149 [1] : vector<32x32xf32> to vector<32xf32>
    %426 = vector.shape_cast %425 : vector<32xf32> to vector<32x1xf32>
    %427 = vector.broadcast %426 : vector<32x1xf32> to vector<32x32xf32>
    %428 = arith.divf %424, %427 : vector<32x32xf32>
    %429 = arith.truncf %428 : vector<32x32xf32> to vector<32x32xbf16>
    %430 = arith.truncf %414 : vector<32x8xf32> to vector<32x8xbf16>
    %cst_150 = arith.constant dense<0.000000e+00> : vector<32x8xf32>
    %431 = tpu.matmul %429, %430, %cst_150 {dimension_numbers = #tpu.dot_dimension_numbers<[1], [0], [0], [1], [0, 0, 1, 1], [], []>} : vector<32x32xbf16>, vector<32x8xbf16>, vector<32x8xf32> -> vector<32x8xf32>
    %432 = tpu.concatenate %371, %391, %411, %431 in 1 : vector<32x8xf32>, vector<32x8xf32>, vector<32x8xf32>, vector<32x8xf32> -> vector<32x32xf32>
    %433 = tpu.concatenate %350, %432 in 0 : vector<32x32xf32>, vector<32x32xf32> -> vector<64x32xf32>
    %434 = arith.truncf %433 : vector<64x32xf32> to vector<64x32xbf16>
    %435 = arith.truncf %254 : vector<32x32xf32> to vector<32x32xbf16>
    %cst_151 = arith.constant dense<0.000000e+00> : vector<64x32xf32>
    %436 = tpu.matmul %434, %435, %cst_151 {dimension_numbers = #tpu.dot_dimension_numbers<[1], [0], [0], [1], [0, 0, 1, 1], [], []>} : vector<64x32xbf16>, vector<32x32xbf16>, vector<64x32xf32> -> vector<64x32xf32>
    %437 = vector.broadcast %255 : vector<1x32xf32> to vector<64x32xf32>
    %438 = arith.addf %436, %437 : vector<64x32xf32>
    %439 = arith.addf %251, %438 : vector<64x32xf32>
    %cst_152 = arith.constant dense<0.000000e+00> : vector<64xf32>
    %440 = vector.multi_reduction <add>, %439, %cst_152 [1] : vector<64x32xf32> to vector<64xf32>
    %441 = vector.shape_cast %440 : vector<64xf32> to vector<64x1xf32>
    %cst_153 = arith.constant 3.200000e+01 : f32
    %442 = vector.broadcast %cst_153 : f32 to vector<64x1xf32>
    %443 = arith.divf %441, %442 : vector<64x1xf32>
    %444 = vector.broadcast %443 : vector<64x1xf32> to vector<64x32xf32>
    %445 = arith.subf %439, %444 : vector<64x32xf32>
    %446 = arith.mulf %445, %445 : vector<64x32xf32>
    %cst_154 = arith.constant dense<0.000000e+00> : vector<64xf32>
    %447 = vector.multi_reduction <add>, %446, %cst_154 [1] : vector<64x32xf32> to vector<64xf32>
    %448 = vector.shape_cast %447 : vector<64xf32> to vector<64x1xf32>
    %cst_155 = arith.constant 3.200000e+01 : f32
    %449 = vector.broadcast %cst_155 : f32 to vector<64x1xf32>
    %450 = arith.divf %448, %449 : vector<64x1xf32>
    %cst_156 = arith.constant 9.99999974E-6 : f32
    %451 = vector.broadcast %cst_156 : f32 to vector<64x1xf32>
    %452 = arith.addf %450, %451 : vector<64x1xf32>
    %453 = math.rsqrt %452 : vector<64x1xf32>
    %454 = vector.broadcast %453 : vector<64x1xf32> to vector<64x32xf32>
    %455 = arith.mulf %445, %454 : vector<64x32xf32>
    %456 = vector.broadcast %260 : vector<1x32xf32> to vector<64x32xf32>
    %457 = arith.mulf %455, %456 : vector<64x32xf32>
    %458 = vector.broadcast %261 : vector<1x32xf32> to vector<64x32xf32>
    %459 = arith.addf %457, %458 : vector<64x32xf32>
    %460 = arith.truncf %459 : vector<64x32xf32> to vector<64x32xbf16>
    %461 = arith.truncf %256 : vector<32x128xf32> to vector<32x128xbf16>
    %cst_157 = arith.constant dense<0.000000e+00> : vector<64x128xf32>
    %462 = tpu.matmul %460, %461, %cst_157 {dimension_numbers = #tpu.dot_dimension_numbers<[1], [0], [0], [1], [0, 0, 1, 1], [], []>} : vector<64x32xbf16>, vector<32x128xbf16>, vector<64x128xf32> -> vector<64x128xf32>
    %463 = vector.broadcast %257 : vector<1x128xf32> to vector<64x128xf32>
    %464 = arith.addf %462, %463 : vector<64x128xf32>
    %cst_158 = arith.constant 0.000000e+00 : f32
    %465 = vector.broadcast %cst_158 : f32 to vector<64x128xf32>
    %466 = arith.maximumf %464, %465 : vector<64x128xf32>
    %467 = arith.truncf %466 : vector<64x128xf32> to vector<64x128xbf16>
    %468 = arith.truncf %258 : vector<128x32xf32> to vector<128x32xbf16>
    %cst_159 = arith.constant dense<0.000000e+00> : vector<64x32xf32>
    %469 = tpu.matmul %467, %468, %cst_159 {dimension_numbers = #tpu.dot_dimension_numbers<[1], [0], [0], [1], [0, 0, 1, 1], [], []>} : vector<64x128xbf16>, vector<128x32xbf16>, vector<64x32xf32> -> vector<64x32xf32>
    %470 = vector.broadcast %259 : vector<1x32xf32> to vector<64x32xf32>
    %471 = arith.addf %469, %470 : vector<64x32xf32>
    %472 = arith.addf %459, %471 : vector<64x32xf32>
    %cst_160 = arith.constant dense<0.000000e+00> : vector<64xf32>
    %473 = vector.multi_reduction <add>, %472, %cst_160 [1] : vector<64x32xf32> to vector<64xf32>
    %474 = vector.shape_cast %473 : vector<64xf32> to vector<64x1xf32>
    %cst_161 = arith.constant 3.200000e+01 : f32
    %475 = vector.broadcast %cst_161 : f32 to vector<64x1xf32>
    %476 = arith.divf %474, %475 : vector<64x1xf32>
    %477 = vector.broadcast %476 : vector<64x1xf32> to vector<64x32xf32>
    %478 = arith.subf %472, %477 : vector<64x32xf32>
    %479 = arith.mulf %478, %478 : vector<64x32xf32>
    %cst_162 = arith.constant dense<0.000000e+00> : vector<64xf32>
    %480 = vector.multi_reduction <add>, %479, %cst_162 [1] : vector<64x32xf32> to vector<64xf32>
    %481 = vector.shape_cast %480 : vector<64xf32> to vector<64x1xf32>
    %cst_163 = arith.constant 3.200000e+01 : f32
    %482 = vector.broadcast %cst_163 : f32 to vector<64x1xf32>
    %483 = arith.divf %481, %482 : vector<64x1xf32>
    %cst_164 = arith.constant 9.99999974E-6 : f32
    %484 = vector.broadcast %cst_164 : f32 to vector<64x1xf32>
    %485 = arith.addf %483, %484 : vector<64x1xf32>
    %486 = math.rsqrt %485 : vector<64x1xf32>
    %487 = vector.broadcast %486 : vector<64x1xf32> to vector<64x32xf32>
    %488 = arith.mulf %478, %487 : vector<64x32xf32>
    %489 = vector.broadcast %262 : vector<1x32xf32> to vector<64x32xf32>
    %490 = arith.mulf %488, %489 : vector<64x32xf32>
    %491 = vector.broadcast %263 : vector<1x32xf32> to vector<64x32xf32>
    %492 = arith.addf %490, %491 : vector<64x32xf32>
    %c0_165 = arith.constant 0 : index
    %c0_166 = arith.constant 0 : index
    %493 = vector.load %arg28[%c0_165, %c0_166] : memref<64x32xf32, #tpu.memory_space<vmem>>, vector<64x32xf32>
    tpu.vector_store %arg28[%c0_165, %c0_166], %492 {strides = array<i32>} : memref<64x32xf32, #tpu.memory_space<vmem>>, vector<64x32xf32>,
    return
  }
}

module attributes {stable_mosaic.version = 11 : i64} {
  func.func @_decoder_kernel(%arg0: memref<64x32xf32, #tpu.memory_space<vmem>>, %arg1: memref<32x32xf32, #tpu.memory_space<vmem>>, %arg2: memref<32x96xf32, #tpu.memory_space<vmem>>, %arg3: memref<1x96xf32, #tpu.memory_space<vmem>>, %arg4: memref<32x32xf32, #tpu.memory_space<vmem>>, %arg5: memref<1x32xf32, #tpu.memory_space<vmem>>, %arg6: memref<32x128xf32, #tpu.memory_space<vmem>>, %arg7: memref<1x128xf32, #tpu.memory_space<vmem>>, %arg8: memref<128x32xf32, #tpu.memory_space<vmem>>, %arg9: memref<1x32xf32, #tpu.memory_space<vmem>>, %arg10: memref<1x32xf32, #tpu.memory_space<vmem>>, %arg11: memref<1x32xf32, #tpu.memory_space<vmem>>, %arg12: memref<1x32xf32, #tpu.memory_space<vmem>>, %arg13: memref<1x32xf32, #tpu.memory_space<vmem>>, %arg14: memref<32x96xf32, #tpu.memory_space<vmem>>, %arg15: memref<1x96xf32, #tpu.memory_space<vmem>>, %arg16: memref<32x32xf32, #tpu.memory_space<vmem>>, %arg17: memref<1x32xf32, #tpu.memory_space<vmem>>, %arg18: memref<32x128xf32, #tpu.memory_space<vmem>>, %arg19: memref<1x128xf32, #tpu.memory_space<vmem>>, %arg20: memref<128x32xf32, #tpu.memory_space<vmem>>, %arg21: memref<1x32xf32, #tpu.memory_space<vmem>>, %arg22: memref<1x32xf32, #tpu.memory_space<vmem>>, %arg23: memref<1x32xf32, #tpu.memory_space<vmem>>, %arg24: memref<1x32xf32, #tpu.memory_space<vmem>>, %arg25: memref<1x32xf32, #tpu.memory_space<vmem>>, %arg26: memref<32x16xf32, #tpu.memory_space<vmem>>, %arg27: memref<1x16xf32, #tpu.memory_space<vmem>>, %arg28: memref<64x16xf32, #tpu.memory_space<vmem>>) attributes {dimension_semantics = [], scalar_prefetch = 0 : i64, scratch_operands = 0 : i64, tpu.core_type = #tpu.core_type<tc>} {
    %c0 = arith.constant 0 : index
    %c0_0 = arith.constant 0 : index
    %0 = vector.load %arg0[%c0, %c0_0] : memref<64x32xf32, #tpu.memory_space<vmem>>, vector<64x32xf32>
    %c0_1 = arith.constant 0 : index
    %c0_2 = arith.constant 0 : index
    %1 = vector.load %arg1[%c0_1, %c0_2] : memref<32x32xf32, #tpu.memory_space<vmem>>, vector<32x32xf32>
    %2 = tpu.concatenate %1, %1 in 0 : vector<32x32xf32>, vector<32x32xf32> -> vector<64x32xf32>
    %3 = arith.addf %0, %2 : vector<64x32xf32>
    %c0_3 = arith.constant 0 : index
    %c0_4 = arith.constant 0 : index
    %4 = vector.load %arg2[%c0_3, %c0_4] : memref<32x96xf32, #tpu.memory_space<vmem>>, vector<32x96xf32>
    %c0_5 = arith.constant 0 : index
    %c0_6 = arith.constant 0 : index
    %5 = vector.load %arg3[%c0_5, %c0_6] : memref<1x96xf32, #tpu.memory_space<vmem>>, vector<1x96xf32>
    %c0_7 = arith.constant 0 : index
    %c0_8 = arith.constant 0 : index
    %6 = vector.load %arg4[%c0_7, %c0_8] : memref<32x32xf32, #tpu.memory_space<vmem>>, vector<32x32xf32>
    %c0_9 = arith.constant 0 : index
    %c0_10 = arith.constant 0 : index
    %7 = vector.load %arg5[%c0_9, %c0_10] : memref<1x32xf32, #tpu.memory_space<vmem>>, vector<1x32xf32>
    %c0_11 = arith.constant 0 : index
    %c0_12 = arith.constant 0 : index
    %8 = vector.load %arg6[%c0_11, %c0_12] : memref<32x128xf32, #tpu.memory_space<vmem>>, vector<32x128xf32>
    %c0_13 = arith.constant 0 : index
    %c0_14 = arith.constant 0 : index
    %9 = vector.load %arg7[%c0_13, %c0_14] : memref<1x128xf32, #tpu.memory_space<vmem>>, vector<1x128xf32>
    %c0_15 = arith.constant 0 : index
    %c0_16 = arith.constant 0 : index
    %10 = vector.load %arg8[%c0_15, %c0_16] : memref<128x32xf32, #tpu.memory_space<vmem>>, vector<128x32xf32>
    %c0_17 = arith.constant 0 : index
    %c0_18 = arith.constant 0 : index
    %11 = vector.load %arg9[%c0_17, %c0_18] : memref<1x32xf32, #tpu.memory_space<vmem>>, vector<1x32xf32>
    %c0_19 = arith.constant 0 : index
    %c0_20 = arith.constant 0 : index
    %12 = vector.load %arg10[%c0_19, %c0_20] : memref<1x32xf32, #tpu.memory_space<vmem>>, vector<1x32xf32>
    %c0_21 = arith.constant 0 : index
    %c0_22 = arith.constant 0 : index
    %13 = vector.load %arg11[%c0_21, %c0_22] : memref<1x32xf32, #tpu.memory_space<vmem>>, vector<1x32xf32>
    %c0_23 = arith.constant 0 : index
    %c0_24 = arith.constant 0 : index
    %14 = vector.load %arg12[%c0_23, %c0_24] : memref<1x32xf32, #tpu.memory_space<vmem>>, vector<1x32xf32>
    %c0_25 = arith.constant 0 : index
    %c0_26 = arith.constant 0 : index
    %15 = vector.load %arg13[%c0_25, %c0_26] : memref<1x32xf32, #tpu.memory_space<vmem>>, vector<1x32xf32>
    %16 = arith.truncf %3 : vector<64x32xf32> to vector<64x32xbf16>
    %17 = arith.truncf %4 : vector<32x96xf32> to vector<32x96xbf16>
    %cst = arith.constant dense<0.000000e+00> : vector<64x96xf32>
    %18 = tpu.matmul %16, %17, %cst {dimension_numbers = #tpu.dot_dimension_numbers<[1], [0], [0], [1], [0, 0, 1, 1], [], []>} : vector<64x32xbf16>, vector<32x96xbf16>, vector<64x96xf32> -> vector<64x96xf32>
    %19 = vector.broadcast %5 : vector<1x96xf32> to vector<64x96xf32>
    %20 = arith.addf %18, %19 : vector<64x96xf32>
    %21 = vector.extract_strided_slice %20 {offsets = [0, 0], sizes = [32, 96], strides = [1, 1]} : vector<64x96xf32> to vector<32x96xf32>
    %22 = vector.extract_strided_slice %21 {offsets = [0, 0], sizes = [32, 8], strides = [1, 1]} : vector<32x96xf32> to vector<32x8xf32>
    %23 = vector.extract_strided_slice %21 {offsets = [0, 32], sizes = [32, 8], strides = [1, 1]} : vector<32x96xf32> to vector<32x8xf32>
    %24 = vector.extract_strided_slice %21 {offsets = [0, 64], sizes = [32, 8], strides = [1, 1]} : vector<32x96xf32> to vector<32x8xf32>
    %25 = arith.truncf %22 : vector<32x8xf32> to vector<32x8xbf16>
    %26 = arith.truncf %23 : vector<32x8xf32> to vector<32x8xbf16>
    %cst_27 = arith.constant dense<0.000000e+00> : vector<32x32xf32>
    %27 = tpu.matmul %25, %26, %cst_27 {dimension_numbers = #tpu.dot_dimension_numbers<[1], [1], [0], [0], [0, 0, 1, 0], [], []>} : vector<32x8xbf16>, vector<32x8xbf16>, vector<32x32xf32> -> vector<32x32xf32>
    %cst_28 = arith.constant 0.353553385 : f32
    %28 = vector.broadcast %cst_28 : f32 to vector<32x32xf32>
    %29 = arith.mulf %27, %28 : vector<32x32xf32>
    %cst_29 = arith.constant dense<0xFF800000> : vector<32xf32>
    %30 = vector.multi_reduction <maximumf>, %29, %cst_29 [1] : vector<32x32xf32> to vector<32xf32>
    %31 = vector.shape_cast %30 : vector<32xf32> to vector<32x1xf32>
    %32 = vector.broadcast %31 : vector<32x1xf32> to vector<32x32xf32>
    %33 = arith.subf %29, %32 : vector<32x32xf32>
    %34 = math.exp %33 : vector<32x32xf32>
    %cst_30 = arith.constant dense<0.000000e+00> : vector<32xf32>
    %35 = vector.multi_reduction <add>, %34, %cst_30 [1] : vector<32x32xf32> to vector<32xf32>
    %36 = vector.shape_cast %35 : vector<32xf32> to vector<32x1xf32>
    %37 = vector.broadcast %36 : vector<32x1xf32> to vector<32x32xf32>
    %38 = arith.divf %34, %37 : vector<32x32xf32>
    %39 = arith.truncf %38 : vector<32x32xf32> to vector<32x32xbf16>
    %40 = arith.truncf %24 : vector<32x8xf32> to vector<32x8xbf16>
    %cst_31 = arith.constant dense<0.000000e+00> : vector<32x8xf32>
    %41 = tpu.matmul %39, %40, %cst_31 {dimension_numbers = #tpu.dot_dimension_numbers<[1], [0], [0], [1], [0, 0, 1, 1], [], []>} : vector<32x32xbf16>, vector<32x8xbf16>, vector<32x8xf32> -> vector<32x8xf32>
    %42 = vector.extract_strided_slice %21 {offsets = [0, 8], sizes = [32, 8], strides = [1, 1]} : vector<32x96xf32> to vector<32x8xf32>
    %43 = vector.extract_strided_slice %21 {offsets = [0, 40], sizes = [32, 8], strides = [1, 1]} : vector<32x96xf32> to vector<32x8xf32>
    %44 = vector.extract_strided_slice %21 {offsets = [0, 72], sizes = [32, 8], strides = [1, 1]} : vector<32x96xf32> to vector<32x8xf32>
    %45 = arith.truncf %42 : vector<32x8xf32> to vector<32x8xbf16>
    %46 = arith.truncf %43 : vector<32x8xf32> to vector<32x8xbf16>
    %cst_32 = arith.constant dense<0.000000e+00> : vector<32x32xf32>
    %47 = tpu.matmul %45, %46, %cst_32 {dimension_numbers = #tpu.dot_dimension_numbers<[1], [1], [0], [0], [0, 0, 1, 0], [], []>} : vector<32x8xbf16>, vector<32x8xbf16>, vector<32x32xf32> -> vector<32x32xf32>
    %cst_33 = arith.constant 0.353553385 : f32
    %48 = vector.broadcast %cst_33 : f32 to vector<32x32xf32>
    %49 = arith.mulf %47, %48 : vector<32x32xf32>
    %cst_34 = arith.constant dense<0xFF800000> : vector<32xf32>
    %50 = vector.multi_reduction <maximumf>, %49, %cst_34 [1] : vector<32x32xf32> to vector<32xf32>
    %51 = vector.shape_cast %50 : vector<32xf32> to vector<32x1xf32>
    %52 = vector.broadcast %51 : vector<32x1xf32> to vector<32x32xf32>
    %53 = arith.subf %49, %52 : vector<32x32xf32>
    %54 = math.exp %53 : vector<32x32xf32>
    %cst_35 = arith.constant dense<0.000000e+00> : vector<32xf32>
    %55 = vector.multi_reduction <add>, %54, %cst_35 [1] : vector<32x32xf32> to vector<32xf32>
    %56 = vector.shape_cast %55 : vector<32xf32> to vector<32x1xf32>
    %57 = vector.broadcast %56 : vector<32x1xf32> to vector<32x32xf32>
    %58 = arith.divf %54, %57 : vector<32x32xf32>
    %59 = arith.truncf %58 : vector<32x32xf32> to vector<32x32xbf16>
    %60 = arith.truncf %44 : vector<32x8xf32> to vector<32x8xbf16>
    %cst_36 = arith.constant dense<0.000000e+00> : vector<32x8xf32>
    %61 = tpu.matmul %59, %60, %cst_36 {dimension_numbers = #tpu.dot_dimension_numbers<[1], [0], [0], [1], [0, 0, 1, 1], [], []>} : vector<32x32xbf16>, vector<32x8xbf16>, vector<32x8xf32> -> vector<32x8xf32>
    %62 = vector.extract_strided_slice %21 {offsets = [0, 16], sizes = [32, 8], strides = [1, 1]} : vector<32x96xf32> to vector<32x8xf32>
    %63 = vector.extract_strided_slice %21 {offsets = [0, 48], sizes = [32, 8], strides = [1, 1]} : vector<32x96xf32> to vector<32x8xf32>
    %64 = vector.extract_strided_slice %21 {offsets = [0, 80], sizes = [32, 8], strides = [1, 1]} : vector<32x96xf32> to vector<32x8xf32>
    %65 = arith.truncf %62 : vector<32x8xf32> to vector<32x8xbf16>
    %66 = arith.truncf %63 : vector<32x8xf32> to vector<32x8xbf16>
    %cst_37 = arith.constant dense<0.000000e+00> : vector<32x32xf32>
    %67 = tpu.matmul %65, %66, %cst_37 {dimension_numbers = #tpu.dot_dimension_numbers<[1], [1], [0], [0], [0, 0, 1, 0], [], []>} : vector<32x8xbf16>, vector<32x8xbf16>, vector<32x32xf32> -> vector<32x32xf32>
    %cst_38 = arith.constant 0.353553385 : f32
    %68 = vector.broadcast %cst_38 : f32 to vector<32x32xf32>
    %69 = arith.mulf %67, %68 : vector<32x32xf32>
    %cst_39 = arith.constant dense<0xFF800000> : vector<32xf32>
    %70 = vector.multi_reduction <maximumf>, %69, %cst_39 [1] : vector<32x32xf32> to vector<32xf32>
    %71 = vector.shape_cast %70 : vector<32xf32> to vector<32x1xf32>
    %72 = vector.broadcast %71 : vector<32x1xf32> to vector<32x32xf32>
    %73 = arith.subf %69, %72 : vector<32x32xf32>
    %74 = math.exp %73 : vector<32x32xf32>
    %cst_40 = arith.constant dense<0.000000e+00> : vector<32xf32>
    %75 = vector.multi_reduction <add>, %74, %cst_40 [1] : vector<32x32xf32> to vector<32xf32>
    %76 = vector.shape_cast %75 : vector<32xf32> to vector<32x1xf32>
    %77 = vector.broadcast %76 : vector<32x1xf32> to vector<32x32xf32>
    %78 = arith.divf %74, %77 : vector<32x32xf32>
    %79 = arith.truncf %78 : vector<32x32xf32> to vector<32x32xbf16>
    %80 = arith.truncf %64 : vector<32x8xf32> to vector<32x8xbf16>
    %cst_41 = arith.constant dense<0.000000e+00> : vector<32x8xf32>
    %81 = tpu.matmul %79, %80, %cst_41 {dimension_numbers = #tpu.dot_dimension_numbers<[1], [0], [0], [1], [0, 0, 1, 1], [], []>} : vector<32x32xbf16>, vector<32x8xbf16>, vector<32x8xf32> -> vector<32x8xf32>
    %82 = vector.extract_strided_slice %21 {offsets = [0, 24], sizes = [32, 8], strides = [1, 1]} : vector<32x96xf32> to vector<32x8xf32>
    %83 = vector.extract_strided_slice %21 {offsets = [0, 56], sizes = [32, 8], strides = [1, 1]} : vector<32x96xf32> to vector<32x8xf32>
    %84 = vector.extract_strided_slice %21 {offsets = [0, 88], sizes = [32, 8], strides = [1, 1]} : vector<32x96xf32> to vector<32x8xf32>
    %85 = arith.truncf %82 : vector<32x8xf32> to vector<32x8xbf16>
    %86 = arith.truncf %83 : vector<32x8xf32> to vector<32x8xbf16>
    %cst_42 = arith.constant dense<0.000000e+00> : vector<32x32xf32>
    %87 = tpu.matmul %85, %86, %cst_42 {dimension_numbers = #tpu.dot_dimension_numbers<[1], [1], [0], [0], [0, 0, 1, 0], [], []>} : vector<32x8xbf16>, vector<32x8xbf16>, vector<32x32xf32> -> vector<32x32xf32>
    %cst_43 = arith.constant 0.353553385 : f32
    %88 = vector.broadcast %cst_43 : f32 to vector<32x32xf32>
    %89 = arith.mulf %87, %88 : vector<32x32xf32>
    %cst_44 = arith.constant dense<0xFF800000> : vector<32xf32>
    %90 = vector.multi_reduction <maximumf>, %89, %cst_44 [1] : vector<32x32xf32> to vector<32xf32>
    %91 = vector.shape_cast %90 : vector<32xf32> to vector<32x1xf32>
    %92 = vector.broadcast %91 : vector<32x1xf32> to vector<32x32xf32>
    %93 = arith.subf %89, %92 : vector<32x32xf32>
    %94 = math.exp %93 : vector<32x32xf32>
    %cst_45 = arith.constant dense<0.000000e+00> : vector<32xf32>
    %95 = vector.multi_reduction <add>, %94, %cst_45 [1] : vector<32x32xf32> to vector<32xf32>
    %96 = vector.shape_cast %95 : vector<32xf32> to vector<32x1xf32>
    %97 = vector.broadcast %96 : vector<32x1xf32> to vector<32x32xf32>
    %98 = arith.divf %94, %97 : vector<32x32xf32>
    %99 = arith.truncf %98 : vector<32x32xf32> to vector<32x32xbf16>
    %100 = arith.truncf %84 : vector<32x8xf32> to vector<32x8xbf16>
    %cst_46 = arith.constant dense<0.000000e+00> : vector<32x8xf32>
    %101 = tpu.matmul %99, %100, %cst_46 {dimension_numbers = #tpu.dot_dimension_numbers<[1], [0], [0], [1], [0, 0, 1, 1], [], []>} : vector<32x32xbf16>, vector<32x8xbf16>, vector<32x8xf32> -> vector<32x8xf32>
    %102 = tpu.concatenate %41, %61, %81, %101 in 1 : vector<32x8xf32>, vector<32x8xf32>, vector<32x8xf32>, vector<32x8xf32> -> vector<32x32xf32>
    %103 = vector.extract_strided_slice %20 {offsets = [32, 0], sizes = [32, 96], strides = [1, 1]} : vector<64x96xf32> to vector<32x96xf32>
    %104 = vector.extract_strided_slice %103 {offsets = [0, 0], sizes = [32, 8], strides = [1, 1]} : vector<32x96xf32> to vector<32x8xf32>
    %105 = vector.extract_strided_slice %103 {offsets = [0, 32], sizes = [32, 8], strides = [1, 1]} : vector<32x96xf32> to vector<32x8xf32>
    %106 = vector.extract_strided_slice %103 {offsets = [0, 64], sizes = [32, 8], strides = [1, 1]} : vector<32x96xf32> to vector<32x8xf32>
    %107 = arith.truncf %104 : vector<32x8xf32> to vector<32x8xbf16>
    %108 = arith.truncf %105 : vector<32x8xf32> to vector<32x8xbf16>
    %cst_47 = arith.constant dense<0.000000e+00> : vector<32x32xf32>
    %109 = tpu.matmul %107, %108, %cst_47 {dimension_numbers = #tpu.dot_dimension_numbers<[1], [1], [0], [0], [0, 0, 1, 0], [], []>} : vector<32x8xbf16>, vector<32x8xbf16>, vector<32x32xf32> -> vector<32x32xf32>
    %cst_48 = arith.constant 0.353553385 : f32
    %110 = vector.broadcast %cst_48 : f32 to vector<32x32xf32>
    %111 = arith.mulf %109, %110 : vector<32x32xf32>
    %cst_49 = arith.constant dense<0xFF800000> : vector<32xf32>
    %112 = vector.multi_reduction <maximumf>, %111, %cst_49 [1] : vector<32x32xf32> to vector<32xf32>
    %113 = vector.shape_cast %112 : vector<32xf32> to vector<32x1xf32>
    %114 = vector.broadcast %113 : vector<32x1xf32> to vector<32x32xf32>
    %115 = arith.subf %111, %114 : vector<32x32xf32>
    %116 = math.exp %115 : vector<32x32xf32>
    %cst_50 = arith.constant dense<0.000000e+00> : vector<32xf32>
    %117 = vector.multi_reduction <add>, %116, %cst_50 [1] : vector<32x32xf32> to vector<32xf32>
    %118 = vector.shape_cast %117 : vector<32xf32> to vector<32x1xf32>
    %119 = vector.broadcast %118 : vector<32x1xf32> to vector<32x32xf32>
    %120 = arith.divf %116, %119 : vector<32x32xf32>
    %121 = arith.truncf %120 : vector<32x32xf32> to vector<32x32xbf16>
    %122 = arith.truncf %106 : vector<32x8xf32> to vector<32x8xbf16>
    %cst_51 = arith.constant dense<0.000000e+00> : vector<32x8xf32>
    %123 = tpu.matmul %121, %122, %cst_51 {dimension_numbers = #tpu.dot_dimension_numbers<[1], [0], [0], [1], [0, 0, 1, 1], [], []>} : vector<32x32xbf16>, vector<32x8xbf16>, vector<32x8xf32> -> vector<32x8xf32>
    %124 = vector.extract_strided_slice %103 {offsets = [0, 8], sizes = [32, 8], strides = [1, 1]} : vector<32x96xf32> to vector<32x8xf32>
    %125 = vector.extract_strided_slice %103 {offsets = [0, 40], sizes = [32, 8], strides = [1, 1]} : vector<32x96xf32> to vector<32x8xf32>
    %126 = vector.extract_strided_slice %103 {offsets = [0, 72], sizes = [32, 8], strides = [1, 1]} : vector<32x96xf32> to vector<32x8xf32>
    %127 = arith.truncf %124 : vector<32x8xf32> to vector<32x8xbf16>
    %128 = arith.truncf %125 : vector<32x8xf32> to vector<32x8xbf16>
    %cst_52 = arith.constant dense<0.000000e+00> : vector<32x32xf32>
    %129 = tpu.matmul %127, %128, %cst_52 {dimension_numbers = #tpu.dot_dimension_numbers<[1], [1], [0], [0], [0, 0, 1, 0], [], []>} : vector<32x8xbf16>, vector<32x8xbf16>, vector<32x32xf32> -> vector<32x32xf32>
    %cst_53 = arith.constant 0.353553385 : f32
    %130 = vector.broadcast %cst_53 : f32 to vector<32x32xf32>
    %131 = arith.mulf %129, %130 : vector<32x32xf32>
    %cst_54 = arith.constant dense<0xFF800000> : vector<32xf32>
    %132 = vector.multi_reduction <maximumf>, %131, %cst_54 [1] : vector<32x32xf32> to vector<32xf32>
    %133 = vector.shape_cast %132 : vector<32xf32> to vector<32x1xf32>
    %134 = vector.broadcast %133 : vector<32x1xf32> to vector<32x32xf32>
    %135 = arith.subf %131, %134 : vector<32x32xf32>
    %136 = math.exp %135 : vector<32x32xf32>
    %cst_55 = arith.constant dense<0.000000e+00> : vector<32xf32>
    %137 = vector.multi_reduction <add>, %136, %cst_55 [1] : vector<32x32xf32> to vector<32xf32>
    %138 = vector.shape_cast %137 : vector<32xf32> to vector<32x1xf32>
    %139 = vector.broadcast %138 : vector<32x1xf32> to vector<32x32xf32>
    %140 = arith.divf %136, %139 : vector<32x32xf32>
    %141 = arith.truncf %140 : vector<32x32xf32> to vector<32x32xbf16>
    %142 = arith.truncf %126 : vector<32x8xf32> to vector<32x8xbf16>
    %cst_56 = arith.constant dense<0.000000e+00> : vector<32x8xf32>
    %143 = tpu.matmul %141, %142, %cst_56 {dimension_numbers = #tpu.dot_dimension_numbers<[1], [0], [0], [1], [0, 0, 1, 1], [], []>} : vector<32x32xbf16>, vector<32x8xbf16>, vector<32x8xf32> -> vector<32x8xf32>
    %144 = vector.extract_strided_slice %103 {offsets = [0, 16], sizes = [32, 8], strides = [1, 1]} : vector<32x96xf32> to vector<32x8xf32>
    %145 = vector.extract_strided_slice %103 {offsets = [0, 48], sizes = [32, 8], strides = [1, 1]} : vector<32x96xf32> to vector<32x8xf32>
    %146 = vector.extract_strided_slice %103 {offsets = [0, 80], sizes = [32, 8], strides = [1, 1]} : vector<32x96xf32> to vector<32x8xf32>
    %147 = arith.truncf %144 : vector<32x8xf32> to vector<32x8xbf16>
    %148 = arith.truncf %145 : vector<32x8xf32> to vector<32x8xbf16>
    %cst_57 = arith.constant dense<0.000000e+00> : vector<32x32xf32>
    %149 = tpu.matmul %147, %148, %cst_57 {dimension_numbers = #tpu.dot_dimension_numbers<[1], [1], [0], [0], [0, 0, 1, 0], [], []>} : vector<32x8xbf16>, vector<32x8xbf16>, vector<32x32xf32> -> vector<32x32xf32>
    %cst_58 = arith.constant 0.353553385 : f32
    %150 = vector.broadcast %cst_58 : f32 to vector<32x32xf32>
    %151 = arith.mulf %149, %150 : vector<32x32xf32>
    %cst_59 = arith.constant dense<0xFF800000> : vector<32xf32>
    %152 = vector.multi_reduction <maximumf>, %151, %cst_59 [1] : vector<32x32xf32> to vector<32xf32>
    %153 = vector.shape_cast %152 : vector<32xf32> to vector<32x1xf32>
    %154 = vector.broadcast %153 : vector<32x1xf32> to vector<32x32xf32>
    %155 = arith.subf %151, %154 : vector<32x32xf32>
    %156 = math.exp %155 : vector<32x32xf32>
    %cst_60 = arith.constant dense<0.000000e+00> : vector<32xf32>
    %157 = vector.multi_reduction <add>, %156, %cst_60 [1] : vector<32x32xf32> to vector<32xf32>
    %158 = vector.shape_cast %157 : vector<32xf32> to vector<32x1xf32>
    %159 = vector.broadcast %158 : vector<32x1xf32> to vector<32x32xf32>
    %160 = arith.divf %156, %159 : vector<32x32xf32>
    %161 = arith.truncf %160 : vector<32x32xf32> to vector<32x32xbf16>
    %162 = arith.truncf %146 : vector<32x8xf32> to vector<32x8xbf16>
    %cst_61 = arith.constant dense<0.000000e+00> : vector<32x8xf32>
    %163 = tpu.matmul %161, %162, %cst_61 {dimension_numbers = #tpu.dot_dimension_numbers<[1], [0], [0], [1], [0, 0, 1, 1], [], []>} : vector<32x32xbf16>, vector<32x8xbf16>, vector<32x8xf32> -> vector<32x8xf32>
    %164 = vector.extract_strided_slice %103 {offsets = [0, 24], sizes = [32, 8], strides = [1, 1]} : vector<32x96xf32> to vector<32x8xf32>
    %165 = vector.extract_strided_slice %103 {offsets = [0, 56], sizes = [32, 8], strides = [1, 1]} : vector<32x96xf32> to vector<32x8xf32>
    %166 = vector.extract_strided_slice %103 {offsets = [0, 88], sizes = [32, 8], strides = [1, 1]} : vector<32x96xf32> to vector<32x8xf32>
    %167 = arith.truncf %164 : vector<32x8xf32> to vector<32x8xbf16>
    %168 = arith.truncf %165 : vector<32x8xf32> to vector<32x8xbf16>
    %cst_62 = arith.constant dense<0.000000e+00> : vector<32x32xf32>
    %169 = tpu.matmul %167, %168, %cst_62 {dimension_numbers = #tpu.dot_dimension_numbers<[1], [1], [0], [0], [0, 0, 1, 0], [], []>} : vector<32x8xbf16>, vector<32x8xbf16>, vector<32x32xf32> -> vector<32x32xf32>
    %cst_63 = arith.constant 0.353553385 : f32
    %170 = vector.broadcast %cst_63 : f32 to vector<32x32xf32>
    %171 = arith.mulf %169, %170 : vector<32x32xf32>
    %cst_64 = arith.constant dense<0xFF800000> : vector<32xf32>
    %172 = vector.multi_reduction <maximumf>, %171, %cst_64 [1] : vector<32x32xf32> to vector<32xf32>
    %173 = vector.shape_cast %172 : vector<32xf32> to vector<32x1xf32>
    %174 = vector.broadcast %173 : vector<32x1xf32> to vector<32x32xf32>
    %175 = arith.subf %171, %174 : vector<32x32xf32>
    %176 = math.exp %175 : vector<32x32xf32>
    %cst_65 = arith.constant dense<0.000000e+00> : vector<32xf32>
    %177 = vector.multi_reduction <add>, %176, %cst_65 [1] : vector<32x32xf32> to vector<32xf32>
    %178 = vector.shape_cast %177 : vector<32xf32> to vector<32x1xf32>
    %179 = vector.broadcast %178 : vector<32x1xf32> to vector<32x32xf32>
    %180 = arith.divf %176, %179 : vector<32x32xf32>
    %181 = arith.truncf %180 : vector<32x32xf32> to vector<32x32xbf16>
    %182 = arith.truncf %166 : vector<32x8xf32> to vector<32x8xbf16>
    %cst_66 = arith.constant dense<0.000000e+00> : vector<32x8xf32>
    %183 = tpu.matmul %181, %182, %cst_66 {dimension_numbers = #tpu.dot_dimension_numbers<[1], [0], [0], [1], [0, 0, 1, 1], [], []>} : vector<32x32xbf16>, vector<32x8xbf16>, vector<32x8xf32> -> vector<32x8xf32>
    %184 = tpu.concatenate %123, %143, %163, %183 in 1 : vector<32x8xf32>, vector<32x8xf32>, vector<32x8xf32>, vector<32x8xf32> -> vector<32x32xf32>
    %185 = tpu.concatenate %102, %184 in 0 : vector<32x32xf32>, vector<32x32xf32> -> vector<64x32xf32>
    %186 = arith.truncf %185 : vector<64x32xf32> to vector<64x32xbf16>
    %187 = arith.truncf %6 : vector<32x32xf32> to vector<32x32xbf16>
    %cst_67 = arith.constant dense<0.000000e+00> : vector<64x32xf32>
    %188 = tpu.matmul %186, %187, %cst_67 {dimension_numbers = #tpu.dot_dimension_numbers<[1], [0], [0], [1], [0, 0, 1, 1], [], []>} : vector<64x32xbf16>, vector<32x32xbf16>, vector<64x32xf32> -> vector<64x32xf32>
    %189 = vector.broadcast %7 : vector<1x32xf32> to vector<64x32xf32>
    %190 = arith.addf %188, %189 : vector<64x32xf32>
    %191 = arith.addf %3, %190 : vector<64x32xf32>
    %cst_68 = arith.constant dense<0.000000e+00> : vector<64xf32>
    %192 = vector.multi_reduction <add>, %191, %cst_68 [1] : vector<64x32xf32> to vector<64xf32>
    %193 = vector.shape_cast %192 : vector<64xf32> to vector<64x1xf32>
    %cst_69 = arith.constant 3.200000e+01 : f32
    %194 = vector.broadcast %cst_69 : f32 to vector<64x1xf32>
    %195 = arith.divf %193, %194 : vector<64x1xf32>
    %196 = vector.broadcast %195 : vector<64x1xf32> to vector<64x32xf32>
    %197 = arith.subf %191, %196 : vector<64x32xf32>
    %198 = arith.mulf %197, %197 : vector<64x32xf32>
    %cst_70 = arith.constant dense<0.000000e+00> : vector<64xf32>
    %199 = vector.multi_reduction <add>, %198, %cst_70 [1] : vector<64x32xf32> to vector<64xf32>
    %200 = vector.shape_cast %199 : vector<64xf32> to vector<64x1xf32>
    %cst_71 = arith.constant 3.200000e+01 : f32
    %201 = vector.broadcast %cst_71 : f32 to vector<64x1xf32>
    %202 = arith.divf %200, %201 : vector<64x1xf32>
    %cst_72 = arith.constant 9.99999974E-6 : f32
    %203 = vector.broadcast %cst_72 : f32 to vector<64x1xf32>
    %204 = arith.addf %202, %203 : vector<64x1xf32>
    %205 = math.rsqrt %204 : vector<64x1xf32>
    %206 = vector.broadcast %205 : vector<64x1xf32> to vector<64x32xf32>
    %207 = arith.mulf %197, %206 : vector<64x32xf32>
    %208 = vector.broadcast %12 : vector<1x32xf32> to vector<64x32xf32>
    %209 = arith.mulf %207, %208 : vector<64x32xf32>
    %210 = vector.broadcast %13 : vector<1x32xf32> to vector<64x32xf32>
    %211 = arith.addf %209, %210 : vector<64x32xf32>
    %212 = arith.truncf %211 : vector<64x32xf32> to vector<64x32xbf16>
    %213 = arith.truncf %8 : vector<32x128xf32> to vector<32x128xbf16>
    %cst_73 = arith.constant dense<0.000000e+00> : vector<64x128xf32>
    %214 = tpu.matmul %212, %213, %cst_73 {dimension_numbers = #tpu.dot_dimension_numbers<[1], [0], [0], [1], [0, 0, 1, 1], [], []>} : vector<64x32xbf16>, vector<32x128xbf16>, vector<64x128xf32> -> vector<64x128xf32>
    %215 = vector.broadcast %9 : vector<1x128xf32> to vector<64x128xf32>
    %216 = arith.addf %214, %215 : vector<64x128xf32>
    %cst_74 = arith.constant 0.000000e+00 : f32
    %217 = vector.broadcast %cst_74 : f32 to vector<64x128xf32>
    %218 = arith.maximumf %216, %217 : vector<64x128xf32>
    %219 = arith.truncf %218 : vector<64x128xf32> to vector<64x128xbf16>
    %220 = arith.truncf %10 : vector<128x32xf32> to vector<128x32xbf16>
    %cst_75 = arith.constant dense<0.000000e+00> : vector<64x32xf32>
    %221 = tpu.matmul %219, %220, %cst_75 {dimension_numbers = #tpu.dot_dimension_numbers<[1], [0], [0], [1], [0, 0, 1, 1], [], []>} : vector<64x128xbf16>, vector<128x32xbf16>, vector<64x32xf32> -> vector<64x32xf32>
    %222 = vector.broadcast %11 : vector<1x32xf32> to vector<64x32xf32>
    %223 = arith.addf %221, %222 : vector<64x32xf32>
    %224 = arith.addf %211, %223 : vector<64x32xf32>
    %cst_76 = arith.constant dense<0.000000e+00> : vector<64xf32>
    %225 = vector.multi_reduction <add>, %224, %cst_76 [1] : vector<64x32xf32> to vector<64xf32>
    %226 = vector.shape_cast %225 : vector<64xf32> to vector<64x1xf32>
    %cst_77 = arith.constant 3.200000e+01 : f32
    %227 = vector.broadcast %cst_77 : f32 to vector<64x1xf32>
    %228 = arith.divf %226, %227 : vector<64x1xf32>
    %229 = vector.broadcast %228 : vector<64x1xf32> to vector<64x32xf32>
    %230 = arith.subf %224, %229 : vector<64x32xf32>
    %231 = arith.mulf %230, %230 : vector<64x32xf32>
    %cst_78 = arith.constant dense<0.000000e+00> : vector<64xf32>
    %232 = vector.multi_reduction <add>, %231, %cst_78 [1] : vector<64x32xf32> to vector<64xf32>
    %233 = vector.shape_cast %232 : vector<64xf32> to vector<64x1xf32>
    %cst_79 = arith.constant 3.200000e+01 : f32
    %234 = vector.broadcast %cst_79 : f32 to vector<64x1xf32>
    %235 = arith.divf %233, %234 : vector<64x1xf32>
    %cst_80 = arith.constant 9.99999974E-6 : f32
    %236 = vector.broadcast %cst_80 : f32 to vector<64x1xf32>
    %237 = arith.addf %235, %236 : vector<64x1xf32>
    %238 = math.rsqrt %237 : vector<64x1xf32>
    %239 = vector.broadcast %238 : vector<64x1xf32> to vector<64x32xf32>
    %240 = arith.mulf %230, %239 : vector<64x32xf32>
    %241 = vector.broadcast %14 : vector<1x32xf32> to vector<64x32xf32>
    %242 = arith.mulf %240, %241 : vector<64x32xf32>
    %243 = vector.broadcast %15 : vector<1x32xf32> to vector<64x32xf32>
    %244 = arith.addf %242, %243 : vector<64x32xf32>
    %c0_81 = arith.constant 0 : index
    %c0_82 = arith.constant 0 : index
    %245 = vector.load %arg14[%c0_81, %c0_82] : memref<32x96xf32, #tpu.memory_space<vmem>>, vector<32x96xf32>
    %c0_83 = arith.constant 0 : index
    %c0_84 = arith.constant 0 : index
    %246 = vector.load %arg15[%c0_83, %c0_84] : memref<1x96xf32, #tpu.memory_space<vmem>>, vector<1x96xf32>
    %c0_85 = arith.constant 0 : index
    %c0_86 = arith.constant 0 : index
    %247 = vector.load %arg16[%c0_85, %c0_86] : memref<32x32xf32, #tpu.memory_space<vmem>>, vector<32x32xf32>
    %c0_87 = arith.constant 0 : index
    %c0_88 = arith.constant 0 : index
    %248 = vector.load %arg17[%c0_87, %c0_88] : memref<1x32xf32, #tpu.memory_space<vmem>>, vector<1x32xf32>
    %c0_89 = arith.constant 0 : index
    %c0_90 = arith.constant 0 : index
    %249 = vector.load %arg18[%c0_89, %c0_90] : memref<32x128xf32, #tpu.memory_space<vmem>>, vector<32x128xf32>
    %c0_91 = arith.constant 0 : index
    %c0_92 = arith.constant 0 : index
    %250 = vector.load %arg19[%c0_91, %c0_92] : memref<1x128xf32, #tpu.memory_space<vmem>>, vector<1x128xf32>
    %c0_93 = arith.constant 0 : index
    %c0_94 = arith.constant 0 : index
    %251 = vector.load %arg20[%c0_93, %c0_94] : memref<128x32xf32, #tpu.memory_space<vmem>>, vector<128x32xf32>
    %c0_95 = arith.constant 0 : index
    %c0_96 = arith.constant 0 : index
    %252 = vector.load %arg21[%c0_95, %c0_96] : memref<1x32xf32, #tpu.memory_space<vmem>>, vector<1x32xf32>
    %c0_97 = arith.constant 0 : index
    %c0_98 = arith.constant 0 : index
    %253 = vector.load %arg22[%c0_97, %c0_98] : memref<1x32xf32, #tpu.memory_space<vmem>>, vector<1x32xf32>
    %c0_99 = arith.constant 0 : index
    %c0_100 = arith.constant 0 : index
    %254 = vector.load %arg23[%c0_99, %c0_100] : memref<1x32xf32, #tpu.memory_space<vmem>>, vector<1x32xf32>
    %c0_101 = arith.constant 0 : index
    %c0_102 = arith.constant 0 : index
    %255 = vector.load %arg24[%c0_101, %c0_102] : memref<1x32xf32, #tpu.memory_space<vmem>>, vector<1x32xf32>
    %c0_103 = arith.constant 0 : index
    %c0_104 = arith.constant 0 : index
    %256 = vector.load %arg25[%c0_103, %c0_104] : memref<1x32xf32, #tpu.memory_space<vmem>>, vector<1x32xf32>
    %257 = arith.truncf %244 : vector<64x32xf32> to vector<64x32xbf16>
    %258 = arith.truncf %245 : vector<32x96xf32> to vector<32x96xbf16>
    %cst_105 = arith.constant dense<0.000000e+00> : vector<64x96xf32>
    %259 = tpu.matmul %257, %258, %cst_105 {dimension_numbers = #tpu.dot_dimension_numbers<[1], [0], [0], [1], [0, 0, 1, 1], [], []>} : vector<64x32xbf16>, vector<32x96xbf16>, vector<64x96xf32> -> vector<64x96xf32>
    %260 = vector.broadcast %246 : vector<1x96xf32> to vector<64x96xf32>
    %261 = arith.addf %259, %260 : vector<64x96xf32>
    %262 = vector.extract_strided_slice %261 {offsets = [0, 0], sizes = [32, 96], strides = [1, 1]} : vector<64x96xf32> to vector<32x96xf32>
    %263 = vector.extract_strided_slice %262 {offsets = [0, 0], sizes = [32, 8], strides = [1, 1]} : vector<32x96xf32> to vector<32x8xf32>
    %264 = vector.extract_strided_slice %262 {offsets = [0, 32], sizes = [32, 8], strides = [1, 1]} : vector<32x96xf32> to vector<32x8xf32>
    %265 = vector.extract_strided_slice %262 {offsets = [0, 64], sizes = [32, 8], strides = [1, 1]} : vector<32x96xf32> to vector<32x8xf32>
    %266 = arith.truncf %263 : vector<32x8xf32> to vector<32x8xbf16>
    %267 = arith.truncf %264 : vector<32x8xf32> to vector<32x8xbf16>
    %cst_106 = arith.constant dense<0.000000e+00> : vector<32x32xf32>
    %268 = tpu.matmul %266, %267, %cst_106 {dimension_numbers = #tpu.dot_dimension_numbers<[1], [1], [0], [0], [0, 0, 1, 0], [], []>} : vector<32x8xbf16>, vector<32x8xbf16>, vector<32x32xf32> -> vector<32x32xf32>
    %cst_107 = arith.constant 0.353553385 : f32
    %269 = vector.broadcast %cst_107 : f32 to vector<32x32xf32>
    %270 = arith.mulf %268, %269 : vector<32x32xf32>
    %cst_108 = arith.constant dense<0xFF800000> : vector<32xf32>
    %271 = vector.multi_reduction <maximumf>, %270, %cst_108 [1] : vector<32x32xf32> to vector<32xf32>
    %272 = vector.shape_cast %271 : vector<32xf32> to vector<32x1xf32>
    %273 = vector.broadcast %272 : vector<32x1xf32> to vector<32x32xf32>
    %274 = arith.subf %270, %273 : vector<32x32xf32>
    %275 = math.exp %274 : vector<32x32xf32>
    %cst_109 = arith.constant dense<0.000000e+00> : vector<32xf32>
    %276 = vector.multi_reduction <add>, %275, %cst_109 [1] : vector<32x32xf32> to vector<32xf32>
    %277 = vector.shape_cast %276 : vector<32xf32> to vector<32x1xf32>
    %278 = vector.broadcast %277 : vector<32x1xf32> to vector<32x32xf32>
    %279 = arith.divf %275, %278 : vector<32x32xf32>
    %280 = arith.truncf %279 : vector<32x32xf32> to vector<32x32xbf16>
    %281 = arith.truncf %265 : vector<32x8xf32> to vector<32x8xbf16>
    %cst_110 = arith.constant dense<0.000000e+00> : vector<32x8xf32>
    %282 = tpu.matmul %280, %281, %cst_110 {dimension_numbers = #tpu.dot_dimension_numbers<[1], [0], [0], [1], [0, 0, 1, 1], [], []>} : vector<32x32xbf16>, vector<32x8xbf16>, vector<32x8xf32> -> vector<32x8xf32>
    %283 = vector.extract_strided_slice %262 {offsets = [0, 8], sizes = [32, 8], strides = [1, 1]} : vector<32x96xf32> to vector<32x8xf32>
    %284 = vector.extract_strided_slice %262 {offsets = [0, 40], sizes = [32, 8], strides = [1, 1]} : vector<32x96xf32> to vector<32x8xf32>
    %285 = vector.extract_strided_slice %262 {offsets = [0, 72], sizes = [32, 8], strides = [1, 1]} : vector<32x96xf32> to vector<32x8xf32>
    %286 = arith.truncf %283 : vector<32x8xf32> to vector<32x8xbf16>
    %287 = arith.truncf %284 : vector<32x8xf32> to vector<32x8xbf16>
    %cst_111 = arith.constant dense<0.000000e+00> : vector<32x32xf32>
    %288 = tpu.matmul %286, %287, %cst_111 {dimension_numbers = #tpu.dot_dimension_numbers<[1], [1], [0], [0], [0, 0, 1, 0], [], []>} : vector<32x8xbf16>, vector<32x8xbf16>, vector<32x32xf32> -> vector<32x32xf32>
    %cst_112 = arith.constant 0.353553385 : f32
    %289 = vector.broadcast %cst_112 : f32 to vector<32x32xf32>
    %290 = arith.mulf %288, %289 : vector<32x32xf32>
    %cst_113 = arith.constant dense<0xFF800000> : vector<32xf32>
    %291 = vector.multi_reduction <maximumf>, %290, %cst_113 [1] : vector<32x32xf32> to vector<32xf32>
    %292 = vector.shape_cast %291 : vector<32xf32> to vector<32x1xf32>
    %293 = vector.broadcast %292 : vector<32x1xf32> to vector<32x32xf32>
    %294 = arith.subf %290, %293 : vector<32x32xf32>
    %295 = math.exp %294 : vector<32x32xf32>
    %cst_114 = arith.constant dense<0.000000e+00> : vector<32xf32>
    %296 = vector.multi_reduction <add>, %295, %cst_114 [1] : vector<32x32xf32> to vector<32xf32>
    %297 = vector.shape_cast %296 : vector<32xf32> to vector<32x1xf32>
    %298 = vector.broadcast %297 : vector<32x1xf32> to vector<32x32xf32>
    %299 = arith.divf %295, %298 : vector<32x32xf32>
    %300 = arith.truncf %299 : vector<32x32xf32> to vector<32x32xbf16>
    %301 = arith.truncf %285 : vector<32x8xf32> to vector<32x8xbf16>
    %cst_115 = arith.constant dense<0.000000e+00> : vector<32x8xf32>
    %302 = tpu.matmul %300, %301, %cst_115 {dimension_numbers = #tpu.dot_dimension_numbers<[1], [0], [0], [1], [0, 0, 1, 1], [], []>} : vector<32x32xbf16>, vector<32x8xbf16>, vector<32x8xf32> -> vector<32x8xf32>
    %303 = vector.extract_strided_slice %262 {offsets = [0, 16], sizes = [32, 8], strides = [1, 1]} : vector<32x96xf32> to vector<32x8xf32>
    %304 = vector.extract_strided_slice %262 {offsets = [0, 48], sizes = [32, 8], strides = [1, 1]} : vector<32x96xf32> to vector<32x8xf32>
    %305 = vector.extract_strided_slice %262 {offsets = [0, 80], sizes = [32, 8], strides = [1, 1]} : vector<32x96xf32> to vector<32x8xf32>
    %306 = arith.truncf %303 : vector<32x8xf32> to vector<32x8xbf16>
    %307 = arith.truncf %304 : vector<32x8xf32> to vector<32x8xbf16>
    %cst_116 = arith.constant dense<0.000000e+00> : vector<32x32xf32>
    %308 = tpu.matmul %306, %307, %cst_116 {dimension_numbers = #tpu.dot_dimension_numbers<[1], [1], [0], [0], [0, 0, 1, 0], [], []>} : vector<32x8xbf16>, vector<32x8xbf16>, vector<32x32xf32> -> vector<32x32xf32>
    %cst_117 = arith.constant 0.353553385 : f32
    %309 = vector.broadcast %cst_117 : f32 to vector<32x32xf32>
    %310 = arith.mulf %308, %309 : vector<32x32xf32>
    %cst_118 = arith.constant dense<0xFF800000> : vector<32xf32>
    %311 = vector.multi_reduction <maximumf>, %310, %cst_118 [1] : vector<32x32xf32> to vector<32xf32>
    %312 = vector.shape_cast %311 : vector<32xf32> to vector<32x1xf32>
    %313 = vector.broadcast %312 : vector<32x1xf32> to vector<32x32xf32>
    %314 = arith.subf %310, %313 : vector<32x32xf32>
    %315 = math.exp %314 : vector<32x32xf32>
    %cst_119 = arith.constant dense<0.000000e+00> : vector<32xf32>
    %316 = vector.multi_reduction <add>, %315, %cst_119 [1] : vector<32x32xf32> to vector<32xf32>
    %317 = vector.shape_cast %316 : vector<32xf32> to vector<32x1xf32>
    %318 = vector.broadcast %317 : vector<32x1xf32> to vector<32x32xf32>
    %319 = arith.divf %315, %318 : vector<32x32xf32>
    %320 = arith.truncf %319 : vector<32x32xf32> to vector<32x32xbf16>
    %321 = arith.truncf %305 : vector<32x8xf32> to vector<32x8xbf16>
    %cst_120 = arith.constant dense<0.000000e+00> : vector<32x8xf32>
    %322 = tpu.matmul %320, %321, %cst_120 {dimension_numbers = #tpu.dot_dimension_numbers<[1], [0], [0], [1], [0, 0, 1, 1], [], []>} : vector<32x32xbf16>, vector<32x8xbf16>, vector<32x8xf32> -> vector<32x8xf32>
    %323 = vector.extract_strided_slice %262 {offsets = [0, 24], sizes = [32, 8], strides = [1, 1]} : vector<32x96xf32> to vector<32x8xf32>
    %324 = vector.extract_strided_slice %262 {offsets = [0, 56], sizes = [32, 8], strides = [1, 1]} : vector<32x96xf32> to vector<32x8xf32>
    %325 = vector.extract_strided_slice %262 {offsets = [0, 88], sizes = [32, 8], strides = [1, 1]} : vector<32x96xf32> to vector<32x8xf32>
    %326 = arith.truncf %323 : vector<32x8xf32> to vector<32x8xbf16>
    %327 = arith.truncf %324 : vector<32x8xf32> to vector<32x8xbf16>
    %cst_121 = arith.constant dense<0.000000e+00> : vector<32x32xf32>
    %328 = tpu.matmul %326, %327, %cst_121 {dimension_numbers = #tpu.dot_dimension_numbers<[1], [1], [0], [0], [0, 0, 1, 0], [], []>} : vector<32x8xbf16>, vector<32x8xbf16>, vector<32x32xf32> -> vector<32x32xf32>
    %cst_122 = arith.constant 0.353553385 : f32
    %329 = vector.broadcast %cst_122 : f32 to vector<32x32xf32>
    %330 = arith.mulf %328, %329 : vector<32x32xf32>
    %cst_123 = arith.constant dense<0xFF800000> : vector<32xf32>
    %331 = vector.multi_reduction <maximumf>, %330, %cst_123 [1] : vector<32x32xf32> to vector<32xf32>
    %332 = vector.shape_cast %331 : vector<32xf32> to vector<32x1xf32>
    %333 = vector.broadcast %332 : vector<32x1xf32> to vector<32x32xf32>
    %334 = arith.subf %330, %333 : vector<32x32xf32>
    %335 = math.exp %334 : vector<32x32xf32>
    %cst_124 = arith.constant dense<0.000000e+00> : vector<32xf32>
    %336 = vector.multi_reduction <add>, %335, %cst_124 [1] : vector<32x32xf32> to vector<32xf32>
    %337 = vector.shape_cast %336 : vector<32xf32> to vector<32x1xf32>
    %338 = vector.broadcast %337 : vector<32x1xf32> to vector<32x32xf32>
    %339 = arith.divf %335, %338 : vector<32x32xf32>
    %340 = arith.truncf %339 : vector<32x32xf32> to vector<32x32xbf16>
    %341 = arith.truncf %325 : vector<32x8xf32> to vector<32x8xbf16>
    %cst_125 = arith.constant dense<0.000000e+00> : vector<32x8xf32>
    %342 = tpu.matmul %340, %341, %cst_125 {dimension_numbers = #tpu.dot_dimension_numbers<[1], [0], [0], [1], [0, 0, 1, 1], [], []>} : vector<32x32xbf16>, vector<32x8xbf16>, vector<32x8xf32> -> vector<32x8xf32>
    %343 = tpu.concatenate %282, %302, %322, %342 in 1 : vector<32x8xf32>, vector<32x8xf32>, vector<32x8xf32>, vector<32x8xf32> -> vector<32x32xf32>
    %344 = vector.extract_strided_slice %261 {offsets = [32, 0], sizes = [32, 96], strides = [1, 1]} : vector<64x96xf32> to vector<32x96xf32>
    %345 = vector.extract_strided_slice %344 {offsets = [0, 0], sizes = [32, 8], strides = [1, 1]} : vector<32x96xf32> to vector<32x8xf32>
    %346 = vector.extract_strided_slice %344 {offsets = [0, 32], sizes = [32, 8], strides = [1, 1]} : vector<32x96xf32> to vector<32x8xf32>
    %347 = vector.extract_strided_slice %344 {offsets = [0, 64], sizes = [32, 8], strides = [1, 1]} : vector<32x96xf32> to vector<32x8xf32>
    %348 = arith.truncf %345 : vector<32x8xf32> to vector<32x8xbf16>
    %349 = arith.truncf %346 : vector<32x8xf32> to vector<32x8xbf16>
    %cst_126 = arith.constant dense<0.000000e+00> : vector<32x32xf32>
    %350 = tpu.matmul %348, %349, %cst_126 {dimension_numbers = #tpu.dot_dimension_numbers<[1], [1], [0], [0], [0, 0, 1, 0], [], []>} : vector<32x8xbf16>, vector<32x8xbf16>, vector<32x32xf32> -> vector<32x32xf32>
    %cst_127 = arith.constant 0.353553385 : f32
    %351 = vector.broadcast %cst_127 : f32 to vector<32x32xf32>
    %352 = arith.mulf %350, %351 : vector<32x32xf32>
    %cst_128 = arith.constant dense<0xFF800000> : vector<32xf32>
    %353 = vector.multi_reduction <maximumf>, %352, %cst_128 [1] : vector<32x32xf32> to vector<32xf32>
    %354 = vector.shape_cast %353 : vector<32xf32> to vector<32x1xf32>
    %355 = vector.broadcast %354 : vector<32x1xf32> to vector<32x32xf32>
    %356 = arith.subf %352, %355 : vector<32x32xf32>
    %357 = math.exp %356 : vector<32x32xf32>
    %cst_129 = arith.constant dense<0.000000e+00> : vector<32xf32>
    %358 = vector.multi_reduction <add>, %357, %cst_129 [1] : vector<32x32xf32> to vector<32xf32>
    %359 = vector.shape_cast %358 : vector<32xf32> to vector<32x1xf32>
    %360 = vector.broadcast %359 : vector<32x1xf32> to vector<32x32xf32>
    %361 = arith.divf %357, %360 : vector<32x32xf32>
    %362 = arith.truncf %361 : vector<32x32xf32> to vector<32x32xbf16>
    %363 = arith.truncf %347 : vector<32x8xf32> to vector<32x8xbf16>
    %cst_130 = arith.constant dense<0.000000e+00> : vector<32x8xf32>
    %364 = tpu.matmul %362, %363, %cst_130 {dimension_numbers = #tpu.dot_dimension_numbers<[1], [0], [0], [1], [0, 0, 1, 1], [], []>} : vector<32x32xbf16>, vector<32x8xbf16>, vector<32x8xf32> -> vector<32x8xf32>
    %365 = vector.extract_strided_slice %344 {offsets = [0, 8], sizes = [32, 8], strides = [1, 1]} : vector<32x96xf32> to vector<32x8xf32>
    %366 = vector.extract_strided_slice %344 {offsets = [0, 40], sizes = [32, 8], strides = [1, 1]} : vector<32x96xf32> to vector<32x8xf32>
    %367 = vector.extract_strided_slice %344 {offsets = [0, 72], sizes = [32, 8], strides = [1, 1]} : vector<32x96xf32> to vector<32x8xf32>
    %368 = arith.truncf %365 : vector<32x8xf32> to vector<32x8xbf16>
    %369 = arith.truncf %366 : vector<32x8xf32> to vector<32x8xbf16>
    %cst_131 = arith.constant dense<0.000000e+00> : vector<32x32xf32>
    %370 = tpu.matmul %368, %369, %cst_131 {dimension_numbers = #tpu.dot_dimension_numbers<[1], [1], [0], [0], [0, 0, 1, 0], [], []>} : vector<32x8xbf16>, vector<32x8xbf16>, vector<32x32xf32> -> vector<32x32xf32>
    %cst_132 = arith.constant 0.353553385 : f32
    %371 = vector.broadcast %cst_132 : f32 to vector<32x32xf32>
    %372 = arith.mulf %370, %371 : vector<32x32xf32>
    %cst_133 = arith.constant dense<0xFF800000> : vector<32xf32>
    %373 = vector.multi_reduction <maximumf>, %372, %cst_133 [1] : vector<32x32xf32> to vector<32xf32>
    %374 = vector.shape_cast %373 : vector<32xf32> to vector<32x1xf32>
    %375 = vector.broadcast %374 : vector<32x1xf32> to vector<32x32xf32>
    %376 = arith.subf %372, %375 : vector<32x32xf32>
    %377 = math.exp %376 : vector<32x32xf32>
    %cst_134 = arith.constant dense<0.000000e+00> : vector<32xf32>
    %378 = vector.multi_reduction <add>, %377, %cst_134 [1] : vector<32x32xf32> to vector<32xf32>
    %379 = vector.shape_cast %378 : vector<32xf32> to vector<32x1xf32>
    %380 = vector.broadcast %379 : vector<32x1xf32> to vector<32x32xf32>
    %381 = arith.divf %377, %380 : vector<32x32xf32>
    %382 = arith.truncf %381 : vector<32x32xf32> to vector<32x32xbf16>
    %383 = arith.truncf %367 : vector<32x8xf32> to vector<32x8xbf16>
    %cst_135 = arith.constant dense<0.000000e+00> : vector<32x8xf32>
    %384 = tpu.matmul %382, %383, %cst_135 {dimension_numbers = #tpu.dot_dimension_numbers<[1], [0], [0], [1], [0, 0, 1, 1], [], []>} : vector<32x32xbf16>, vector<32x8xbf16>, vector<32x8xf32> -> vector<32x8xf32>
    %385 = vector.extract_strided_slice %344 {offsets = [0, 16], sizes = [32, 8], strides = [1, 1]} : vector<32x96xf32> to vector<32x8xf32>
    %386 = vector.extract_strided_slice %344 {offsets = [0, 48], sizes = [32, 8], strides = [1, 1]} : vector<32x96xf32> to vector<32x8xf32>
    %387 = vector.extract_strided_slice %344 {offsets = [0, 80], sizes = [32, 8], strides = [1, 1]} : vector<32x96xf32> to vector<32x8xf32>
    %388 = arith.truncf %385 : vector<32x8xf32> to vector<32x8xbf16>
    %389 = arith.truncf %386 : vector<32x8xf32> to vector<32x8xbf16>
    %cst_136 = arith.constant dense<0.000000e+00> : vector<32x32xf32>
    %390 = tpu.matmul %388, %389, %cst_136 {dimension_numbers = #tpu.dot_dimension_numbers<[1], [1], [0], [0], [0, 0, 1, 0], [], []>} : vector<32x8xbf16>, vector<32x8xbf16>, vector<32x32xf32> -> vector<32x32xf32>
    %cst_137 = arith.constant 0.353553385 : f32
    %391 = vector.broadcast %cst_137 : f32 to vector<32x32xf32>
    %392 = arith.mulf %390, %391 : vector<32x32xf32>
    %cst_138 = arith.constant dense<0xFF800000> : vector<32xf32>
    %393 = vector.multi_reduction <maximumf>, %392, %cst_138 [1] : vector<32x32xf32> to vector<32xf32>
    %394 = vector.shape_cast %393 : vector<32xf32> to vector<32x1xf32>
    %395 = vector.broadcast %394 : vector<32x1xf32> to vector<32x32xf32>
    %396 = arith.subf %392, %395 : vector<32x32xf32>
    %397 = math.exp %396 : vector<32x32xf32>
    %cst_139 = arith.constant dense<0.000000e+00> : vector<32xf32>
    %398 = vector.multi_reduction <add>, %397, %cst_139 [1] : vector<32x32xf32> to vector<32xf32>
    %399 = vector.shape_cast %398 : vector<32xf32> to vector<32x1xf32>
    %400 = vector.broadcast %399 : vector<32x1xf32> to vector<32x32xf32>
    %401 = arith.divf %397, %400 : vector<32x32xf32>
    %402 = arith.truncf %401 : vector<32x32xf32> to vector<32x32xbf16>
    %403 = arith.truncf %387 : vector<32x8xf32> to vector<32x8xbf16>
    %cst_140 = arith.constant dense<0.000000e+00> : vector<32x8xf32>
    %404 = tpu.matmul %402, %403, %cst_140 {dimension_numbers = #tpu.dot_dimension_numbers<[1], [0], [0], [1], [0, 0, 1, 1], [], []>} : vector<32x32xbf16>, vector<32x8xbf16>, vector<32x8xf32> -> vector<32x8xf32>
    %405 = vector.extract_strided_slice %344 {offsets = [0, 24], sizes = [32, 8], strides = [1, 1]} : vector<32x96xf32> to vector<32x8xf32>
    %406 = vector.extract_strided_slice %344 {offsets = [0, 56], sizes = [32, 8], strides = [1, 1]} : vector<32x96xf32> to vector<32x8xf32>
    %407 = vector.extract_strided_slice %344 {offsets = [0, 88], sizes = [32, 8], strides = [1, 1]} : vector<32x96xf32> to vector<32x8xf32>
    %408 = arith.truncf %405 : vector<32x8xf32> to vector<32x8xbf16>
    %409 = arith.truncf %406 : vector<32x8xf32> to vector<32x8xbf16>
    %cst_141 = arith.constant dense<0.000000e+00> : vector<32x32xf32>
    %410 = tpu.matmul %408, %409, %cst_141 {dimension_numbers = #tpu.dot_dimension_numbers<[1], [1], [0], [0], [0, 0, 1, 0], [], []>} : vector<32x8xbf16>, vector<32x8xbf16>, vector<32x32xf32> -> vector<32x32xf32>
    %cst_142 = arith.constant 0.353553385 : f32
    %411 = vector.broadcast %cst_142 : f32 to vector<32x32xf32>
    %412 = arith.mulf %410, %411 : vector<32x32xf32>
    %cst_143 = arith.constant dense<0xFF800000> : vector<32xf32>
    %413 = vector.multi_reduction <maximumf>, %412, %cst_143 [1] : vector<32x32xf32> to vector<32xf32>
    %414 = vector.shape_cast %413 : vector<32xf32> to vector<32x1xf32>
    %415 = vector.broadcast %414 : vector<32x1xf32> to vector<32x32xf32>
    %416 = arith.subf %412, %415 : vector<32x32xf32>
    %417 = math.exp %416 : vector<32x32xf32>
    %cst_144 = arith.constant dense<0.000000e+00> : vector<32xf32>
    %418 = vector.multi_reduction <add>, %417, %cst_144 [1] : vector<32x32xf32> to vector<32xf32>
    %419 = vector.shape_cast %418 : vector<32xf32> to vector<32x1xf32>
    %420 = vector.broadcast %419 : vector<32x1xf32> to vector<32x32xf32>
    %421 = arith.divf %417, %420 : vector<32x32xf32>
    %422 = arith.truncf %421 : vector<32x32xf32> to vector<32x32xbf16>
    %423 = arith.truncf %407 : vector<32x8xf32> to vector<32x8xbf16>
    %cst_145 = arith.constant dense<0.000000e+00> : vector<32x8xf32>
    %424 = tpu.matmul %422, %423, %cst_145 {dimension_numbers = #tpu.dot_dimension_numbers<[1], [0], [0], [1], [0, 0, 1, 1], [], []>} : vector<32x32xbf16>, vector<32x8xbf16>, vector<32x8xf32> -> vector<32x8xf32>
    %425 = tpu.concatenate %364, %384, %404, %424 in 1 : vector<32x8xf32>, vector<32x8xf32>, vector<32x8xf32>, vector<32x8xf32> -> vector<32x32xf32>
    %426 = tpu.concatenate %343, %425 in 0 : vector<32x32xf32>, vector<32x32xf32> -> vector<64x32xf32>
    %427 = arith.truncf %426 : vector<64x32xf32> to vector<64x32xbf16>
    %428 = arith.truncf %247 : vector<32x32xf32> to vector<32x32xbf16>
    %cst_146 = arith.constant dense<0.000000e+00> : vector<64x32xf32>
    %429 = tpu.matmul %427, %428, %cst_146 {dimension_numbers = #tpu.dot_dimension_numbers<[1], [0], [0], [1], [0, 0, 1, 1], [], []>} : vector<64x32xbf16>, vector<32x32xbf16>, vector<64x32xf32> -> vector<64x32xf32>
    %430 = vector.broadcast %248 : vector<1x32xf32> to vector<64x32xf32>
    %431 = arith.addf %429, %430 : vector<64x32xf32>
    %432 = arith.addf %244, %431 : vector<64x32xf32>
    %cst_147 = arith.constant dense<0.000000e+00> : vector<64xf32>
    %433 = vector.multi_reduction <add>, %432, %cst_147 [1] : vector<64x32xf32> to vector<64xf32>
    %434 = vector.shape_cast %433 : vector<64xf32> to vector<64x1xf32>
    %cst_148 = arith.constant 3.200000e+01 : f32
    %435 = vector.broadcast %cst_148 : f32 to vector<64x1xf32>
    %436 = arith.divf %434, %435 : vector<64x1xf32>
    %437 = vector.broadcast %436 : vector<64x1xf32> to vector<64x32xf32>
    %438 = arith.subf %432, %437 : vector<64x32xf32>
    %439 = arith.mulf %438, %438 : vector<64x32xf32>
    %cst_149 = arith.constant dense<0.000000e+00> : vector<64xf32>
    %440 = vector.multi_reduction <add>, %439, %cst_149 [1] : vector<64x32xf32> to vector<64xf32>
    %441 = vector.shape_cast %440 : vector<64xf32> to vector<64x1xf32>
    %cst_150 = arith.constant 3.200000e+01 : f32
    %442 = vector.broadcast %cst_150 : f32 to vector<64x1xf32>
    %443 = arith.divf %441, %442 : vector<64x1xf32>
    %cst_151 = arith.constant 9.99999974E-6 : f32
    %444 = vector.broadcast %cst_151 : f32 to vector<64x1xf32>
    %445 = arith.addf %443, %444 : vector<64x1xf32>
    %446 = math.rsqrt %445 : vector<64x1xf32>
    %447 = vector.broadcast %446 : vector<64x1xf32> to vector<64x32xf32>
    %448 = arith.mulf %438, %447 : vector<64x32xf32>
    %449 = vector.broadcast %253 : vector<1x32xf32> to vector<64x32xf32>
    %450 = arith.mulf %448, %449 : vector<64x32xf32>
    %451 = vector.broadcast %254 : vector<1x32xf32> to vector<64x32xf32>
    %452 = arith.addf %450, %451 : vector<64x32xf32>
    %453 = arith.truncf %452 : vector<64x32xf32> to vector<64x32xbf16>
    %454 = arith.truncf %249 : vector<32x128xf32> to vector<32x128xbf16>
    %cst_152 = arith.constant dense<0.000000e+00> : vector<64x128xf32>
    %455 = tpu.matmul %453, %454, %cst_152 {dimension_numbers = #tpu.dot_dimension_numbers<[1], [0], [0], [1], [0, 0, 1, 1], [], []>} : vector<64x32xbf16>, vector<32x128xbf16>, vector<64x128xf32> -> vector<64x128xf32>
    %456 = vector.broadcast %250 : vector<1x128xf32> to vector<64x128xf32>
    %457 = arith.addf %455, %456 : vector<64x128xf32>
    %cst_153 = arith.constant 0.000000e+00 : f32
    %458 = vector.broadcast %cst_153 : f32 to vector<64x128xf32>
    %459 = arith.maximumf %457, %458 : vector<64x128xf32>
    %460 = arith.truncf %459 : vector<64x128xf32> to vector<64x128xbf16>
    %461 = arith.truncf %251 : vector<128x32xf32> to vector<128x32xbf16>
    %cst_154 = arith.constant dense<0.000000e+00> : vector<64x32xf32>
    %462 = tpu.matmul %460, %461, %cst_154 {dimension_numbers = #tpu.dot_dimension_numbers<[1], [0], [0], [1], [0, 0, 1, 1], [], []>} : vector<64x128xbf16>, vector<128x32xbf16>, vector<64x32xf32> -> vector<64x32xf32>
    %463 = vector.broadcast %252 : vector<1x32xf32> to vector<64x32xf32>
    %464 = arith.addf %462, %463 : vector<64x32xf32>
    %465 = arith.addf %452, %464 : vector<64x32xf32>
    %cst_155 = arith.constant dense<0.000000e+00> : vector<64xf32>
    %466 = vector.multi_reduction <add>, %465, %cst_155 [1] : vector<64x32xf32> to vector<64xf32>
    %467 = vector.shape_cast %466 : vector<64xf32> to vector<64x1xf32>
    %cst_156 = arith.constant 3.200000e+01 : f32
    %468 = vector.broadcast %cst_156 : f32 to vector<64x1xf32>
    %469 = arith.divf %467, %468 : vector<64x1xf32>
    %470 = vector.broadcast %469 : vector<64x1xf32> to vector<64x32xf32>
    %471 = arith.subf %465, %470 : vector<64x32xf32>
    %472 = arith.mulf %471, %471 : vector<64x32xf32>
    %cst_157 = arith.constant dense<0.000000e+00> : vector<64xf32>
    %473 = vector.multi_reduction <add>, %472, %cst_157 [1] : vector<64x32xf32> to vector<64xf32>
    %474 = vector.shape_cast %473 : vector<64xf32> to vector<64x1xf32>
    %cst_158 = arith.constant 3.200000e+01 : f32
    %475 = vector.broadcast %cst_158 : f32 to vector<64x1xf32>
    %476 = arith.divf %474, %475 : vector<64x1xf32>
    %cst_159 = arith.constant 9.99999974E-6 : f32
    %477 = vector.broadcast %cst_159 : f32 to vector<64x1xf32>
    %478 = arith.addf %476, %477 : vector<64x1xf32>
    %479 = math.rsqrt %478 : vector<64x1xf32>
    %480 = vector.broadcast %479 : vector<64x1xf32> to vector<64x32xf32>
    %481 = arith.mulf %471, %480 : vector<64x32xf32>
    %482 = vector.broadcast %255 : vector<1x32xf32> to vector<64x32xf32>
    %483 = arith.mulf %481, %482 : vector<64x32xf32>
    %484 = vector.broadcast %256 : vector<1x32xf32> to vector<64x32xf32>
    %485 = arith.addf %483, %484 : vector<64x32xf32>
    %c0_160 = arith.constant 0 : index
    %c0_161 = arith.constant 0 : index
    %486 = vector.load %arg26[%c0_160, %c0_161] : memref<32x16xf32, #tpu.memory_space<vmem>>, vector<32x16xf32>
    %487 = arith.truncf %485 : vector<64x32xf32> to vector<64x32xbf16>
    %488 = arith.truncf %486 : vector<32x16xf32> to vector<32x16xbf16>
    %cst_162 = arith.constant dense<0.000000e+00> : vector<64x16xf32>
    %489 = tpu.matmul %487, %488, %cst_162 {dimension_numbers = #tpu.dot_dimension_numbers<[1], [0], [0], [1], [0, 0, 1, 1], [], []>} : vector<64x32xbf16>, vector<32x16xbf16>, vector<64x16xf32> -> vector<64x16xf32>
    %c0_163 = arith.constant 0 : index
    %c0_164 = arith.constant 0 : index
    %490 = vector.load %arg27[%c0_163, %c0_164] : memref<1x16xf32, #tpu.memory_space<vmem>>, vector<1x16xf32>
    %491 = vector.broadcast %490 : vector<1x16xf32> to vector<64x16xf32>
    %492 = arith.addf %489, %491 : vector<64x16xf32>
    %493 = arith.negf %492 : vector<64x16xf32>
    %494 = math.exp %493 : vector<64x16xf32>
    %cst_165 = arith.constant 1.000000e+00 : f32
    %495 = vector.broadcast %cst_165 : f32 to vector<64x16xf32>
    %496 = arith.addf %495, %494 : vector<64x16xf32>
    %497 = arith.divf %495, %496 : vector<64x16xf32>
    %c0_166 = arith.constant 0 : index
    %c0_167 = arith.constant 0 : index
    %498 = vector.load %arg28[%c0_166, %c0_167] : memref<64x16xf32, #tpu.memory_space<vmem>>, vector<64x16xf32>
    tpu.vector_store %arg28[%c0_166, %c0_167], %497 {strides = array<i32>} : memref<64x16xf32, #tpu.memory_space<vmem>>, vector<64x16xf32>,
    return
  }
}

</mosaic_0001>

<llo_original>
// kernel: vitvae_forward.4
$region0: #{vitvae_forward.4}
  #allocation0 [shape = 'u32[]', space=smem, size = 0x4, offset = 0x4, fixed_abs, tag = 'smem constant byte address 0x4 - core index']
  #allocation1 [shape = 'u32[144,128]{1,0:T(1,128)}', space=vmem, size = 0x12000, scoped, tag = 'internal scratch']
  %s0 = inlined_call_operand.vmem [shape: f32[2,1024], index: 0, kind: input, shape index: {}]
  %s1 = inlined_call_operand.vmem [shape: f32[2,4], index: 1, kind: input, shape index: {}]
  %s2 = inlined_call_operand.vmem [shape: f32[1024,8], index: 2, kind: input, shape index: {}]
  %s3 = inlined_call_operand.vmem [shape: f32[1,8], index: 3, kind: input, shape index: {}]
  %s4 = inlined_call_operand.vmem [shape: f32[4,1024], index: 4, kind: input, shape index: {}]
  %s5 = inlined_call_operand.vmem [shape: f32[1,1024], index: 5, kind: input, shape index: {}]
  %s6 = inlined_call_operand.hbm [shape: f32[2,4], index: 6, kind: output, shape index: {0}]
  %s7 = inlined_call_operand.hbm [shape: f32[2,4], index: 7, kind: output, shape index: {1}]
  %s8 = inlined_call_operand.vmem [shape: f32[2,1024], index: 8, kind: output, shape index: {2}]
  %9 = xla_tuple %s6, %s7, %s8
  %s10 = sld [smem:[#allocation0]]
  $region50: #{vitvae_forward.4} parent=0
    _
  %s12 = ssub.s32 1, %s10
  %s13 = scalar_select 0, %s12, %s10
  $region1: #{vitvae_forward.4} parent=0
    #allocation2 [shape = 'u8[1024]{0}', space=vmem, size = 0x400, scoped, tag = 'output window, operand 0, single buffered']
    #allocation3 [shape = 's32[1]{0}', space=sflag, size = 0x4, scoped, tag = 'scoped memory for vitvae_forward.4']
    #allocation4 [shape = 'u8[1024]{0}', space=vmem, size = 0x400, scoped, tag = 'output window, operand 1, single buffered']
    #allocation5 [shape = 's32[1]{0}', space=sflag, size = 0x4, scoped, tag = 'scoped memory for vitvae_forward.4']
    %14 = vsyncpa [#allocation3], 0
    %15 = vsyncpa [#allocation5], 0
    // Predicated region
    $region2: #{vitvae_forward.4} parent=1 // pred_check
      _
    $region3: #{vitvae_forward.4} parent=1 // pred_check_branch
      %17 = sbr.rel (0) target = $region5
    $region4: #{vitvae_forward.4} parent=1 // pred_region
      _
    $region5: #{vitvae_forward.4} parent=1 // pred_fallthru
      _
    // Predicated region
    $region6: #{vitvae_forward.4} parent=1 // pred_check
      _
    $region7: #{vitvae_forward.4} parent=1 // pred_check_branch
      %19 = sbr.rel (0) target = $region9
    $region8: #{vitvae_forward.4} parent=1 // pred_region
      _
    $region9: #{vitvae_forward.4} parent=1 // pred_fallthru
      _
    // Predicated region
    $region10: #{vitvae_forward.4} parent=1 // pred_check
      _
    $region11: #{vitvae_forward.4} parent=1 // pred_check_branch
      %21 = sbr.rel (0) target = $region13
    $region12: #{vitvae_forward.4} parent=1 // pred_region
      _
    $region13: #{vitvae_forward.4} parent=1 // pred_fallthru
      _
    // Predicated region
    $region14: #{vitvae_forward.4} parent=1 // pred_check
      _
    $region15: #{vitvae_forward.4} parent=1 // pred_check_branch
      %23 = sbr.rel (0) target = $region17
    $region16: #{vitvae_forward.4} parent=1 // pred_region
      _
    $region17: #{vitvae_forward.4} parent=1 // pred_fallthru
      _
    // Predicated region
    $region18: #{vitvae_forward.4} parent=1 // pred_check
      _
    $region19: #{vitvae_forward.4} parent=1 // pred_check_branch
      %25 = sbr.rel (0) target = $region21
    $region20: #{vitvae_forward.4} parent=1 // pred_region
      _
    $region21: #{vitvae_forward.4} parent=1 // pred_fallthru
      _
    // Predicated region
    $region22: #{vitvae_forward.4} parent=1 // pred_check
      _
    $region23: #{vitvae_forward.4} parent=1 // pred_check_branch
      %27 = sbr.rel (0) target = $region25
    $region24: #{vitvae_forward.4} parent=1 // pred_region
      _
    $region25: #{vitvae_forward.4} parent=1 // pred_fallthru
      _
    %v29 = vld [vmem:[%s0] sm:$0xff]
    %v30 = vld [vmem:[%s0 + $0x8] sm:$0xff]
    %v31 = vld [vmem:[%s2] sm:$0xff]
    %v32 = vld [vmem:[%s2 + $0x8] sm:$0xff]
    %v33 = vld [vmem:[%s2 + $0x10] sm:$0xff]
    %v34 = vld [vmem:[%s2 + $0x18] sm:$0xff]
    %v35 = vld [vmem:[%s2 + $0x20] sm:$0xff]
    %v36 = vld [vmem:[%s2 + $0x28] sm:$0xff]
    %v37 = vld [vmem:[%s2 + $0x30] sm:$0xff]
    %v38 = vld [vmem:[%s2 + $0x38] sm:$0xff]
    %v39 = vld [vmem:[%s2 + $0x40] sm:$0xff]
    %v40 = vld [vmem:[%s2 + $0x48] sm:$0xff]
    %v41 = vld [vmem:[%s2 + $0x50] sm:$0xff]
    %v42 = vld [vmem:[%s2 + $0x58] sm:$0xff]
    %v43 = vld [vmem:[%s2 + $0x60] sm:$0xff]
    %v44 = vld [vmem:[%s2 + $0x68] sm:$0xff]
    %v45 = vld [vmem:[%s2 + $0x70] sm:$0xff]
    %v46 = vld [vmem:[%s2 + $0x78] sm:$0xff]
    %v47 = vld [vmem:[%s2 + $0x80] sm:$0xff]
    %v48 = vld [vmem:[%s2 + $0x88] sm:$0xff]
    %v49 = vld [vmem:[%s2 + $0x90] sm:$0xff]
    %v50 = vld [vmem:[%s2 + $0x98] sm:$0xff]
    %v51 = vld [vmem:[%s2 + $0xa0] sm:$0xff]
    %v52 = vld [vmem:[%s2 + $0xa8] sm:$0xff]
    %v53 = vld [vmem:[%s2 + $0xb0] sm:$0xff]
    %v54 = vld [vmem:[%s2 + $0xb8] sm:$0xff]
    %v55 = vld [vmem:[%s2 + $0xc0] sm:$0xff]
    %v56 = vld [vmem:[%s2 + $0xc8] sm:$0xff]
    %v57 = vld [vmem:[%s2 + $0xd0] sm:$0xff]
    %v58 = vld [vmem:[%s2 + $0xd8] sm:$0xff]
    %v59 = vld [vmem:[%s2 + $0xe0] sm:$0xff]
    %v60 = vld [vmem:[%s2 + $0xe8] sm:$0xff]
    %v61 = vld [vmem:[%s2 + $0xf0] sm:$0xff]
    %v62 = vld [vmem:[%s2 + $0xf8] sm:$0xff]
    %v63 = vld [vmem:[%s2 + $0x100] sm:$0xff]
    %v64 = vld [vmem:[%s2 + $0x108] sm:$0xff]
    %v65 = vld [vmem:[%s2 + $0x110] sm:$0xff]
    %v66 = vld [vmem:[%s2 + $0x118] sm:$0xff]
    %v67 = vld [vmem:[%s2 + $0x120] sm:$0xff]
    %v68 = vld [vmem:[%s2 + $0x128] sm:$0xff]
    %v69 = vld [vmem:[%s2 + $0x130] sm:$0xff]
    %v70 = vld [vmem:[%s2 + $0x138] sm:$0xff]
    %v71 = vld [vmem:[%s2 + $0x140] sm:$0xff]
    %v72 = vld [vmem:[%s2 + $0x148] sm:$0xff]
    %v73 = vld [vmem:[%s2 + $0x150] sm:$0xff]
    %v74 = vld [vmem:[%s2 + $0x158] sm:$0xff]
    %v75 = vld [vmem:[%s2 + $0x160] sm:$0xff]
    %v76 = vld [vmem:[%s2 + $0x168] sm:$0xff]
    %v77 = vld [vmem:[%s2 + $0x170] sm:$0xff]
    %v78 = vld [vmem:[%s2 + $0x178] sm:$0xff]
    %v79 = vld [vmem:[%s2 + $0x180] sm:$0xff]
    %v80 = vld [vmem:[%s2 + $0x188] sm:$0xff]
    %v81 = vld [vmem:[%s2 + $0x190] sm:$0xff]
    %v82 = vld [vmem:[%s2 + $0x198] sm:$0xff]
    %v83 = vld [vmem:[%s2 + $0x1a0] sm:$0xff]
    %v84 = vld [vmem:[%s2 + $0x1a8] sm:$0xff]
    %v85 = vld [vmem:[%s2 + $0x1b0] sm:$0xff]
    %v86 = vld [vmem:[%s2 + $0x1b8] sm:$0xff]
    %v87 = vld [vmem:[%s2 + $0x1c0] sm:$0xff]
    %v88 = vld [vmem:[%s2 + $0x1c8] sm:$0xff]
    %v89 = vld [vmem:[%s2 + $0x1d0] sm:$0xff]
    %v90 = vld [vmem:[%s2 + $0x1d8] sm:$0xff]
    %v91 = vld [vmem:[%s2 + $0x1e0] sm:$0xff]
    %v92 = vld [vmem:[%s2 + $0x1e8] sm:$0xff]
    %v93 = vld [vmem:[%s2 + $0x1f0] sm:$0xff]
    %v94 = vld [vmem:[%s2 + $0x1f8] sm:$0xff]
    %v95 = vld [vmem:[%s2 + $0x200] sm:$0xff]
    %v96 = vld [vmem:[%s2 + $0x208] sm:$0xff]
    %v97 = vld [vmem:[%s2 + $0x210] sm:$0xff]
    %v98 = vld [vmem:[%s2 + $0x218] sm:$0xff]
    %v99 = vld [vmem:[%s2 + $0x220] sm:$0xff]
    %v100 = vld [vmem:[%s2 + $0x228] sm:$0xff]
    %v101 = vld [vmem:[%s2 + $0x230] sm:$0xff]
    %v102 = vld [vmem:[%s2 + $0x238] sm:$0xff]
    %v103 = vld [vmem:[%s2 + $0x240] sm:$0xff]
    %v104 = vld [vmem:[%s2 + $0x248] sm:$0xff]
    %v105 = vld [vmem:[%s2 + $0x250] sm:$0xff]
    %v106 = vld [vmem:[%s2 + $0x258] sm:$0xff]
    %v107 = vld [vmem:[%s2 + $0x260] sm:$0xff]
    %v108 = vld [vmem:[%s2 + $0x268] sm:$0xff]
    %v109 = vld [vmem:[%s2 + $0x270] sm:$0xff]
    %v110 = vld [vmem:[%s2 + $0x278] sm:$0xff]
    %v111 = vld [vmem:[%s2 + $0x280] sm:$0xff]
    %v112 = vld [vmem:[%s2 + $0x288] sm:$0xff]
    %v113 = vld [vmem:[%s2 + $0x290] sm:$0xff]
    %v114 = vld [vmem:[%s2 + $0x298] sm:$0xff]
    %v115 = vld [vmem:[%s2 + $0x2a0] sm:$0xff]
    %v116 = vld [vmem:[%s2 + $0x2a8] sm:$0xff]
    %v117 = vld [vmem:[%s2 + $0x2b0] sm:$0xff]
    %v118 = vld [vmem:[%s2 + $0x2b8] sm:$0xff]
    %v119 = vld [vmem:[%s2 + $0x2c0] sm:$0xff]
    %v120 = vld [vmem:[%s2 + $0x2c8] sm:$0xff]
    %v121 = vld [vmem:[%s2 + $0x2d0] sm:$0xff]
    %v122 = vld [vmem:[%s2 + $0x2d8] sm:$0xff]
    %v123 = vld [vmem:[%s2 + $0x2e0] sm:$0xff]
    %v124 = vld [vmem:[%s2 + $0x2e8] sm:$0xff]
    %v125 = vld [vmem:[%s2 + $0x2f0] sm:$0xff]
    %v126 = vld [vmem:[%s2 + $0x2f8] sm:$0xff]
    %v127 = vld [vmem:[%s2 + $0x300] sm:$0xff]
    %v128 = vld [vmem:[%s2 + $0x308] sm:$0xff]
    %v129 = vld [vmem:[%s2 + $0x310] sm:$0xff]
    %v130 = vld [vmem:[%s2 + $0x318] sm:$0xff]
    %v131 = vld [vmem:[%s2 + $0x320] sm:$0xff]
    %v132 = vld [vmem:[%s2 + $0x328] sm:$0xff]
    %v133 = vld [vmem:[%s2 + $0x330] sm:$0xff]
    %v134 = vld [vmem:[%s2 + $0x338] sm:$0xff]
    %v135 = vld [vmem:[%s2 + $0x340] sm:$0xff]
    %v136 = vld [vmem:[%s2 + $0x348] sm:$0xff]
    %v137 = vld [vmem:[%s2 + $0x350] sm:$0xff]
    %v138 = vld [vmem:[%s2 + $0x358] sm:$0xff]
    %v139 = vld [vmem:[%s2 + $0x360] sm:$0xff]
    %v140 = vld [vmem:[%s2 + $0x368] sm:$0xff]
    %v141 = vld [vmem:[%s2 + $0x370] sm:$0xff]
    %v142 = vld [vmem:[%s2 + $0x378] sm:$0xff]
    %v143 = vld [vmem:[%s2 + $0x380] sm:$0xff]
    %v144 = vld [vmem:[%s2 + $0x388] sm:$0xff]
    %v145 = vld [vmem:[%s2 + $0x390] sm:$0xff]
    %v146 = vld [vmem:[%s2 + $0x398] sm:$0xff]
    %v147 = vld [vmem:[%s2 + $0x3a0] sm:$0xff]
    %v148 = vld [vmem:[%s2 + $0x3a8] sm:$0xff]
    %v149 = vld [vmem:[%s2 + $0x3b0] sm:$0xff]
    %v150 = vld [vmem:[%s2 + $0x3b8] sm:$0xff]
    %v151 = vld [vmem:[%s2 + $0x3c0] sm:$0xff]
    %v152 = vld [vmem:[%s2 + $0x3c8] sm:$0xff]
    %v153 = vld [vmem:[%s2 + $0x3d0] sm:$0xff]
    %v154 = vld [vmem:[%s2 + $0x3d8] sm:$0xff]
    %v155 = vld [vmem:[%s2 + $0x3e0] sm:$0xff]
    %v156 = vld [vmem:[%s2 + $0x3e8] sm:$0xff]
    %v157 = vld [vmem:[%s2 + $0x3f0] sm:$0xff]
    %v158 = vld [vmem:[%s2 + $0x3f8] sm:$0xff]
    %v161 = vcombine.high %v29, %v29
    %v163 = vunpack.c.l.s4 1983009808
    %v164 = vunpack.c.0.s8 %v163
    %v165 = vlaneseq
    %v166 = vshrl.u32 %v165, 7
    %v167 = vsub.s32 %v164, %v166
    %v168 = vrot.slane %v29, %v167
    %v170 = vunpack.c.l.s4 1983009808
    %v171 = vunpack.c.0.s8 %v170
    %v172 = vlaneseq
    %v173 = vshrl.u32 %v172, 7
    %v174 = vsub.s32 %v171, %v173
    %v175 = vrot.slane %v161, %v174
    %v176 = vcombine.high %v168, %v168
    %v177 = vcombine.high %v175, %v175
    %v178 = vcombine.high %v30, %v30
    %v180 = vunpack.c.l.s4 1983009808
    %v181 = vunpack.c.0.s8 %v180
    %v182 = vlaneseq
    %v183 = vshrl.u32 %v182, 7
    %v184 = vsub.s32 %v181, %v183
    %v185 = vrot.slane %v30, %v184
    %v187 = vunpack.c.l.s4 1983009808
    %v188 = vunpack.c.0.s8 %v187
    %v189 = vlaneseq
    %v190 = vshrl.u32 %v189, 7
    %v191 = vsub.s32 %v188, %v190
    %v192 = vrot.slane %v178, %v191
    %v193 = vcombine.high %v185, %v185
    %v194 = vcombine.high %v192, %v192
    %v203 = vpack.c.bf16 %v168, %v168
    %v204 = vpack.c.bf16 %v176, %v176
    %v205 = vpack.c.bf16 %v175, %v175
    %v206 = vpack.c.bf16 %v177, %v177
    %v207 = vpack.c.bf16 %v185, %v185
    %v208 = vpack.c.bf16 %v193, %v193
    %v209 = vpack.c.bf16 %v192, %v192
    %v210 = vpack.c.bf16 %v194, %v194
    %v211 = vpack.c.bf16 %v32, %v31
    %v212 = vpack.c.bf16 %v34, %v33
    %v213 = vpack.c.bf16 %v36, %v35
    %v214 = vpack.c.bf16 %v38, %v37
    %v215 = vpack.c.bf16 %v40, %v39
    %v216 = vpack.c.bf16 %v42, %v41
    %v217 = vpack.c.bf16 %v44, %v43
    %v218 = vpack.c.bf16 %v46, %v45
    %v219 = vpack.c.bf16 %v48, %v47
    %v220 = vpack.c.bf16 %v50, %v49
    %v221 = vpack.c.bf16 %v52, %v51
    %v222 = vpack.c.bf16 %v54, %v53
    %v223 = vpack.c.bf16 %v56, %v55
    %v224 = vpack.c.bf16 %v58, %v57
    %v225 = vpack.c.bf16 %v60, %v59
    %v226 = vpack.c.bf16 %v62, %v61
    %v227 = vpack.c.bf16 %v64, %v63
    %v228 = vpack.c.bf16 %v66, %v65
    %v229 = vpack.c.bf16 %v68, %v67
    %v230 = vpack.c.bf16 %v70, %v69
    %v231 = vpack.c.bf16 %v72, %v71
    %v232 = vpack.c.bf16 %v74, %v73
    %v233 = vpack.c.bf16 %v76, %v75
    %v234 = vpack.c.bf16 %v78, %v77
    %v235 = vpack.c.bf16 %v80, %v79
    %v236 = vpack.c.bf16 %v82, %v81
    %v237 = vpack.c.bf16 %v84, %v83
    %v238 = vpack.c.bf16 %v86, %v85
    %v239 = vpack.c.bf16 %v88, %v87
    %v240 = vpack.c.bf16 %v90, %v89
    %v241 = vpack.c.bf16 %v92, %v91
    %v242 = vpack.c.bf16 %v94, %v93
    %v243 = vpack.c.bf16 %v96, %v95
    %v244 = vpack.c.bf16 %v98, %v97
    %v245 = vpack.c.bf16 %v100, %v99
    %v246 = vpack.c.bf16 %v102, %v101
    %v247 = vpack.c.bf16 %v104, %v103
    %v248 = vpack.c.bf16 %v106, %v105
    %v249 = vpack.c.bf16 %v108, %v107
    %v250 = vpack.c.bf16 %v110, %v109
    %v251 = vpack.c.bf16 %v112, %v111
    %v252 = vpack.c.bf16 %v114, %v113
    %v253 = vpack.c.bf16 %v116, %v115
    %v254 = vpack.c.bf16 %v118, %v117
    %v255 = vpack.c.bf16 %v120, %v119
    %v256 = vpack.c.bf16 %v122, %v121
    %v257 = vpack.c.bf16 %v124, %v123
    %v258 = vpack.c.bf16 %v126, %v125
    %v259 = vpack.c.bf16 %v128, %v127
    %v260 = vpack.c.bf16 %v130, %v129
    %v261 = vpack.c.bf16 %v132, %v131
    %v262 = vpack.c.bf16 %v134, %v133
    %v263 = vpack.c.bf16 %v136, %v135
    %v264 = vpack.c.bf16 %v138, %v137
    %v265 = vpack.c.bf16 %v140, %v139
    %v266 = vpack.c.bf16 %v142, %v141
    %v267 = vpack.c.bf16 %v144, %v143
    %v268 = vpack.c.bf16 %v146, %v145
    %v269 = vpack.c.bf16 %v148, %v147
    %v270 = vpack.c.bf16 %v150, %v149
    %v271 = vpack.c.bf16 %v152, %v151
    %v272 = vpack.c.bf16 %v154, %v153
    %v273 = vpack.c.bf16 %v156, %v155
    %v274 = vpack.c.bf16 %v158, %v157
    %v275 = vld [vmem:[%s3] sm:$0x1]
    %v277 = vlaneseq
    %v278 = vshrl.u32 %v277, 7
    %v279 = vsub.s32 0, %v278
    %v280 = vrot.slane %v275, %v279
    %282 = vmatprep.subr.bf16.mxu0 0
    %283 = vmatpush1.bf16.msra.mxu0 %v211
    %284 = vmatprep.subr.bf16.mxu0 0
    %285 = vmatpush1.bf16.msra.mxu0 %v212
    %286 = vmatprep.subr.bf16.mxu0 0
    %287 = vmatpush1.bf16.msra.mxu0 %v213
    %288 = vmatprep.subr.bf16.mxu0 0
    %289 = vmatpush1.bf16.msra.mxu0 %v214
    %290 = vmatprep.subr.bf16.mxu0 0
    %291 = vmatpush1.bf16.msra.mxu0 %v215
    %292 = vmatprep.subr.bf16.mxu0 0
    %293 = vmatpush1.bf16.msra.mxu0 %v216
    %294 = vmatprep.subr.bf16.mxu0 0
    %295 = vmatpush1.bf16.msra.mxu0 %v217
    %296 = vmatprep.subr.bf16.mxu0 0
    %297 = vmatpush1.bf16.msra.mxu0 %v218
    %298 = vmatprep.subr.bf16.mxu0 0
    %299 = vmatpush1.bf16.msra.mxu0 %v219
    %300 = vmatprep.subr.bf16.mxu0 0
    %301 = vmatpush1.bf16.msra.mxu0 %v220
    %302 = vmatprep.subr.bf16.mxu0 0
    %303 = vmatpush1.bf16.msra.mxu0 %v221
    %304 = vmatprep.subr.bf16.mxu0 0
    %305 = vmatpush1.bf16.msra.mxu0 %v222
    %306 = vmatprep.subr.bf16.mxu0 0
    %307 = vmatpush1.bf16.msra.mxu0 %v223
    %308 = vmatprep.subr.bf16.mxu0 0
    %309 = vmatpush1.bf16.msra.mxu0 %v224
    %310 = vmatprep.subr.bf16.mxu0 0
    %311 = vmatpush1.bf16.msra.mxu0 %v225
    %312 = vmatprep.subr.bf16.mxu0 0
    %313 = vmatpush1.bf16.msra.mxu0 %v226
    %314 = vmatprep.mubr.bf16.mxu0 %v204
    %315 = vmatmul.mubr.bf16.gmra.mrb[0].mxu0 %v203
    %v316 = vpop.f32.mrb[0].mxu0
    %v317 = vadd.f32 %v280, %v316
    %v318 = vpop.f32.mrb[0].mxu0
    %v319 = vpop.f32.mrb[0].mxu0
    %v320 = vpop.f32.mrb[0].mxu0
    %321 = vdwg.mxu0
    %322 = vmatprep.subr.bf16.mxu0 0
    %323 = vmatpush1.bf16.msra.mxu0 %v227
    %324 = vmatprep.subr.bf16.mxu0 0
    %325 = vmatpush1.bf16.msra.mxu0 %v228
    %326 = vmatprep.subr.bf16.mxu0 0
    %327 = vmatpush1.bf16.msra.mxu0 %v229
    %328 = vmatprep.subr.bf16.mxu0 0
    %329 = vmatpush1.bf16.msra.mxu0 %v230
    %330 = vmatprep.subr.bf16.mxu0 0
    %331 = vmatpush1.bf16.msra.mxu0 %v231
    %332 = vmatprep.subr.bf16.mxu0 0
    %333 = vmatpush1.bf16.msra.mxu0 %v232
    %334 = vmatprep.subr.bf16.mxu0 0
    %335 = vmatpush1.bf16.msra.mxu0 %v233
    %336 = vmatprep.subr.bf16.mxu0 0
    %337 = vmatpush1.bf16.msra.mxu0 %v234
    %338 = vmatprep.subr.bf16.mxu0 0
    %339 = vmatpush1.bf16.msra.mxu0 %v235
    %340 = vmatprep.subr.bf16.mxu0 0
    %341 = vmatpush1.bf16.msra.mxu0 %v236
    %342 = vmatprep.subr.bf16.mxu0 0
    %343 = vmatpush1.bf16.msra.mxu0 %v237
    %344 = vmatprep.subr.bf16.mxu0 0
    %345 = vmatpush1.bf16.msra.mxu0 %v238
    %346 = vmatprep.subr.bf16.mxu0 0
    %347 = vmatpush1.bf16.msra.mxu0 %v239
    %348 = vmatprep.subr.bf16.mxu0 0
    %349 = vmatpush1.bf16.msra.mxu0 %v240
    %350 = vmatprep.subr.bf16.mxu0 0
    %351 = vmatpush1.bf16.msra.mxu0 %v241
    %352 = vmatprep.subr.bf16.mxu0 0
    %353 = vmatpush1.bf16.msra.mxu0 %v242
    %354 = vmatprep.mubr.bf16.mxu0 %v206
    %355 = vmatmul.mubr.bf16.gmra.mrb[0].mxu0 %v205
    %v356 = vpop.f32.mrb[0].mxu0
    %v357 = vadd.f32 %v317, %v356
    %v358 = vpop.f32.mrb[0].mxu0
    %v359 = vpop.f32.mrb[0].mxu0
    %v360 = vpop.f32.mrb[0].mxu0
    %361 = vdwg.mxu0
    %362 = vmatprep.subr.bf16.mxu0 0
    %363 = vmatpush1.bf16.msra.mxu0 %v243
    %364 = vmatprep.subr.bf16.mxu0 0
    %365 = vmatpush1.bf16.msra.mxu0 %v244
    %366 = vmatprep.subr.bf16.mxu0 0
    %367 = vmatpush1.bf16.msra.mxu0 %v245
    %368 = vmatprep.subr.bf16.mxu0 0
    %369 = vmatpush1.bf16.msra.mxu0 %v246
    %370 = vmatprep.subr.bf16.mxu0 0
    %371 = vmatpush1.bf16.msra.mxu0 %v247
    %372 = vmatprep.subr.bf16.mxu0 0
    %373 = vmatpush1.bf16.msra.mxu0 %v248
    %374 = vmatprep.subr.bf16.mxu0 0
    %375 = vmatpush1.bf16.msra.mxu0 %v249
    %376 = vmatprep.subr.bf16.mxu0 0
    %377 = vmatpush1.bf16.msra.mxu0 %v250
    %378 = vmatprep.subr.bf16.mxu0 0
    %379 = vmatpush1.bf16.msra.mxu0 %v251
    %380 = vmatprep.subr.bf16.mxu0 0
    %381 = vmatpush1.bf16.msra.mxu0 %v252
    %382 = vmatprep.subr.bf16.mxu0 0
    %383 = vmatpush1.bf16.msra.mxu0 %v253
    %384 = vmatprep.subr.bf16.mxu0 0
    %385 = vmatpush1.bf16.msra.mxu0 %v254
    %386 = vmatprep.subr.bf16.mxu0 0
    %387 = vmatpush1.bf16.msra.mxu0 %v255
    %388 = vmatprep.subr.bf16.mxu0 0
    %389 = vmatpush1.bf16.msra.mxu0 %v256
    %390 = vmatprep.subr.bf16.mxu0 0
    %391 = vmatpush1.bf16.msra.mxu0 %v257
    %392 = vmatprep.subr.bf16.mxu0 0
    %393 = vmatpush1.bf16.msra.mxu0 %v258
    %394 = vmatprep.mubr.bf16.mxu0 %v208
    %395 = vmatmul.mubr.bf16.gmra.mrb[0].mxu0 %v207
    %v396 = vpop.f32.mrb[0].mxu0
    %v397 = vadd.f32 %v357, %v396
    %v398 = vpop.f32.mrb[0].mxu0
    %v399 = vpop.f32.mrb[0].mxu0
    %v400 = vpop.f32.mrb[0].mxu0
    %401 = vdwg.mxu0
    %402 = vmatprep.subr.bf16.mxu0 0
    %403 = vmatpush1.bf16.msra.mxu0 %v259
    %404 = vmatprep.subr.bf16.mxu0 0
    %405 = vmatpush1.bf16.msra.mxu0 %v260
    %406 = vmatprep.subr.bf16.mxu0 0
    %407 = vmatpush1.bf16.msra.mxu0 %v261
    %408 = vmatprep.subr.bf16.mxu0 0
    %409 = vmatpush1.bf16.msra.mxu0 %v262
    %410 = vmatprep.subr.bf16.mxu0 0
    %411 = vmatpush1.bf16.msra.mxu0 %v263
    %412 = vmatprep.subr.bf16.mxu0 0
    %413 = vmatpush1.bf16.msra.mxu0 %v264
    %414 = vmatprep.subr.bf16.mxu0 0
    %415 = vmatpush1.bf16.msra.mxu0 %v265
    %416 = vmatprep.subr.bf16.mxu0 0
    %417 = vmatpush1.bf16.msra.mxu0 %v266
    %418 = vmatprep.subr.bf16.mxu0 0
    %419 = vmatpush1.bf16.msra.mxu0 %v267
    %420 = vmatprep.subr.bf16.mxu0 0
    %421 = vmatpush1.bf16.msra.mxu0 %v268
    %422 = vmatprep.subr.bf16.mxu0 0
    %423 = vmatpush1.bf16.msra.mxu0 %v269
    %424 = vmatprep.subr.bf16.mxu0 0
    %425 = vmatpush1.bf16.msra.mxu0 %v270
    %426 = vmatprep.subr.bf16.mxu0 0
    %427 = vmatpush1.bf16.msra.mxu0 %v271
    %428 = vmatprep.subr.bf16.mxu0 0
    %429 = vmatpush1.bf16.msra.mxu0 %v272
    %430 = vmatprep.subr.bf16.mxu0 0
    %431 = vmatpush1.bf16.msra.mxu0 %v273
    %432 = vmatprep.subr.bf16.mxu0 0
    %433 = vmatpush1.bf16.msra.mxu0 %v274
    %434 = vmatprep.mubr.bf16.mxu0 %v210
    %435 = vmatmul.mubr.bf16.gmra.mrb[0].mxu0 %v209
    %v436 = vpop.f32.mrb[0].mxu0
    %v437 = vadd.f32 %v397, %v436
    %v438 = vpop.f32.mrb[0].mxu0
    %v439 = vpop.f32.mrb[0].mxu0
    %v440 = vpop.f32.mrb[0].mxu0
    %441 = vdwg.mxu0
    %v442 = vmul.f32 %v437, 0.5
    %v443 = vmul.f32 %v442, 1.442695
    %v444 = vpow.pop %v443
    %v445 = vld [vmem:[%s1] sm:$0x3]
    %447 = vrot.lane.b32.xlu0 %v444, 124
    %v448 = vpop.permute.xlu0 %447
    %v450 = vmul.f32 %v445, %v448
    %v451 = vadd.f32 %v437, %v450
    %v452 = vld [vmem:[%s4] sm:$0xff]
    %v453 = vld [vmem:[%s4 + $0x8] sm:$0xff]
    %v454 = vld [vmem:[%s4 + $0x10] sm:$0xff]
    %v455 = vld [vmem:[%s4 + $0x18] sm:$0xff]
    %v456 = vpack.c.bf16 %v451, %v451
    %v461 = vcombine.high %v452, %v452
    %v462 = vcombine.high %v453, %v453
    %v463 = vcombine.high %v454, %v454
    %v464 = vcombine.high %v455, %v455
    %v469 = vpack.c.bf16 %v452, %v452
    %v470 = vpack.c.bf16 %v461, %v461
    %v471 = vpack.c.bf16 %v453, %v453
    %v472 = vpack.c.bf16 %v462, %v462
    %v473 = vpack.c.bf16 %v454, %v454
    %v474 = vpack.c.bf16 %v463, %v463
    %v475 = vpack.c.bf16 %v455, %v455
    %v476 = vpack.c.bf16 %v464, %v464
    %v477 = vld [vmem:[%s5] sm:$0xff]
    %v479 = vlaneseq
    %v480 = vshrl.u32 %v479, 7
    %v481 = vsub.s32 0, %v480
    %v482 = vrot.slane %v477, %v481
    %v483 = vlaneseq
    %v484 = vshrl.u32 %v483, 7
    %v485 = vsub.s32 1, %v484
    %v486 = vrot.slane %v477, %v485
    %v487 = vlaneseq
    %v488 = vshrl.u32 %v487, 7
    %v489 = vsub.s32 2, %v488
    %v490 = vrot.slane %v477, %v489
    %v491 = vlaneseq
    %v492 = vshrl.u32 %v491, 7
    %v493 = vsub.s32 3, %v492
    %v494 = vrot.slane %v477, %v493
    %v495 = vlaneseq
    %v496 = vshrl.u32 %v495, 7
    %v497 = vsub.s32 4, %v496
    %v498 = vrot.slane %v477, %v497
    %v499 = vlaneseq
    %v500 = vshrl.u32 %v499, 7
    %v501 = vsub.s32 5, %v500
    %v502 = vrot.slane %v477, %v501
    %v503 = vlaneseq
    %v504 = vshrl.u32 %v503, 7
    %v505 = vsub.s32 6, %v504
    %v506 = vrot.slane %v477, %v505
    %v507 = vlaneseq
    %v508 = vshrl.u32 %v507, 7
    %v509 = vsub.s32 7, %v508
    %v510 = vrot.slane %v477, %v509
    %vm519 = vcmask 31744
    %v521 = vsel %vm519, %v456, 0
    %vm523 = vcmask 1041408
    %v525 = vsel %vm523, %v469, 0
    %v528 = vsel %vm523, %v470, 0
    %v531 = vsel %vm523, %v471, 0
    %v534 = vsel %vm523, %v472, 0
    %v537 = vsel %vm523, %v473, 0
    %v540 = vsel %vm523, %v474, 0
    %v543 = vsel %vm523, %v475, 0
    %v546 = vsel %vm523, %v476, 0
    %548 = vmatprep.subr.bf16.mxu0 %v528
    %549 = vmatpush1.bf16.msra.mxu0 %v525
    %550 = vmatprep.subr.bf16.mxu0 0
    %551 = vmatpush1.bf16.msra.mxu0 0
    %552 = vmatprep.subr.bf16.mxu0 0
    %553 = vmatpush1.bf16.msra.mxu0 0
    %554 = vmatprep.subr.bf16.mxu0 0
    %555 = vmatpush1.bf16.msra.mxu0 0
    %556 = vmatprep.subr.bf16.mxu0 0
    %557 = vmatpush1.bf16.msra.mxu0 0
    %558 = vmatprep.subr.bf16.mxu0 0
    %559 = vmatpush1.bf16.msra.mxu0 0
    %560 = vmatprep.subr.bf16.mxu0 0
    %561 = vmatpush1.bf16.msra.mxu0 0
    %562 = vmatprep.subr.bf16.mxu0 0
    %563 = vmatpush1.bf16.msra.mxu0 0
    %564 = vmatprep.subr.bf16.mxu0 0
    %565 = vmatpush1.bf16.msra.mxu0 0
    %566 = vmatprep.subr.bf16.mxu0 0
    %567 = vmatpush1.bf16.msra.mxu0 0
    %568 = vmatprep.subr.bf16.mxu0 0
    %569 = vmatpush1.bf16.msra.mxu0 0
    %570 = vmatprep.subr.bf16.mxu0 0
    %571 = vmatpush1.bf16.msra.mxu0 0
    %572 = vmatprep.subr.bf16.mxu0 0
    %573 = vmatpush1.bf16.msra.mxu0 0
    %574 = vmatprep.subr.bf16.mxu0 0
    %575 = vmatpush1.bf16.msra.mxu0 0
    %576 = vmatprep.subr.bf16.mxu0 0
    %577 = vmatpush1.bf16.msra.mxu0 0
    %578 = vmatprep.subr.bf16.mxu0 0
    %579 = vmatpush1.bf16.msra.mxu0 0
    %580 = vmatprep.mubr.bf16.mxu0 0
    %581 = vmatmul.mubr.bf16.gmra.mrb[0].mxu0 %v521
    %v582 = vpop.f32.mrb[0].mxu0
    %v583 = vadd.f32 %v482, %v582
    %v584 = vpop.f32.mrb[0].mxu0
    %v585 = vadd.f32 %v486, %v584
    %v586 = vpop.f32.mrb[0].mxu0
    %v587 = vpop.f32.mrb[0].mxu0
    %588 = vdwg.mxu0
    %589 = vmatprep.subr.bf16.mxu0 %v534
    %590 = vmatpush1.bf16.msra.mxu0 %v531
    %591 = vmatprep.subr.bf16.mxu0 0
    %592 = vmatpush1.bf16.msra.mxu0 0
    %593 = vmatprep.subr.bf16.mxu0 0
    %594 = vmatpush1.bf16.msra.mxu0 0
    %595 = vmatprep.subr.bf16.mxu0 0
    %596 = vmatpush1.bf16.msra.mxu0 0
    %597 = vmatprep.subr.bf16.mxu0 0
    %598 = vmatpush1.bf16.msra.mxu0 0
    %599 = vmatprep.subr.bf16.mxu0 0
    %600 = vmatpush1.bf16.msra.mxu0 0
    %601 = vmatprep.subr.bf16.mxu0 0
    %602 = vmatpush1.bf16.msra.mxu0 0
    %603 = vmatprep.subr.bf16.mxu0 0
    %604 = vmatpush1.bf16.msra.mxu0 0
    %605 = vmatprep.subr.bf16.mxu0 0
    %606 = vmatpush1.bf16.msra.mxu0 0
    %607 = vmatprep.subr.bf16.mxu0 0
    %608 = vmatpush1.bf16.msra.mxu0 0
    %609 = vmatprep.subr.bf16.mxu0 0
    %610 = vmatpush1.bf16.msra.mxu0 0
    %611 = vmatprep.subr.bf16.mxu0 0
    %612 = vmatpush1.bf16.msra.mxu0 0
    %613 = vmatprep.subr.bf16.mxu0 0
    %614 = vmatpush1.bf16.msra.mxu0 0
    %615 = vmatprep.subr.bf16.mxu0 0
    %616 = vmatpush1.bf16.msra.mxu0 0
    %617 = vmatprep.subr.bf16.mxu0 0
    %618 = vmatpush1.bf16.msra.mxu0 0
    %619 = vmatprep.subr.bf16.mxu0 0
    %620 = vmatpush1.bf16.msra.mxu0 0
    %621 = vmatprep.mubr.bf16.mxu0 0
    %622 = vmatmul.mubr.bf16.gmra.mrb[0].mxu0 %v521
    %v623 = vpop.f32.mrb[0].mxu0
    %v624 = vadd.f32 %v490, %v623
    %v625 = vpop.f32.mrb[0].mxu0
    %v626 = vadd.f32 %v494, %v625
    %v627 = vpop.f32.mrb[0].mxu0
    %v628 = vpop.f32.mrb[0].mxu0
    %629 = vdwg.mxu0
    %630 = vmatprep.subr.bf16.mxu0 %v540
    %631 = vmatpush1.bf16.msra.mxu0 %v537
    %632 = vmatprep.subr.bf16.mxu0 0
    %633 = vmatpush1.bf16.msra.mxu0 0
    %634 = vmatprep.subr.bf16.mxu0 0
    %635 = vmatpush1.bf16.msra.mxu0 0
    %636 = vmatprep.subr.bf16.mxu0 0
    %637 = vmatpush1.bf16.msra.mxu0 0
    %638 = vmatprep.subr.bf16.mxu0 0
    %639 = vmatpush1.bf16.msra.mxu0 0
    %640 = vmatprep.subr.bf16.mxu0 0
    %641 = vmatpush1.bf16.msra.mxu0 0
    %642 = vmatprep.subr.bf16.mxu0 0
    %643 = vmatpush1.bf16.msra.mxu0 0
    %644 = vmatprep.subr.bf16.mxu0 0
    %645 = vmatpush1.bf16.msra.mxu0 0
    %646 = vmatprep.subr.bf16.mxu0 0
    %647 = vmatpush1.bf16.msra.mxu0 0
    %648 = vmatprep.subr.bf16.mxu0 0
    %649 = vmatpush1.bf16.msra.mxu0 0
    %650 = vmatprep.subr.bf16.mxu0 0
    %651 = vmatpush1.bf16.msra.mxu0 0
    %652 = vmatprep.subr.bf16.mxu0 0
    %653 = vmatpush1.bf16.msra.mxu0 0
    %654 = vmatprep.subr.bf16.mxu0 0
    %655 = vmatpush1.bf16.msra.mxu0 0
    %656 = vmatprep.subr.bf16.mxu0 0
    %657 = vmatpush1.bf16.msra.mxu0 0
    %658 = vmatprep.subr.bf16.mxu0 0
    %659 = vmatpush1.bf16.msra.mxu0 0
    %660 = vmatprep.subr.bf16.mxu0 0
    %661 = vmatpush1.bf16.msra.mxu0 0
    %662 = vmatprep.mubr.bf16.mxu0 0
    %663 = vmatmul.mubr.bf16.gmra.mrb[0].mxu0 %v521
    %v664 = vpop.f32.mrb[0].mxu0
    %v665 = vadd.f32 %v498, %v664
    %v666 = vpop.f32.mrb[0].mxu0
    %v667 = vadd.f32 %v502, %v666
    %v668 = vpop.f32.mrb[0].mxu0
    %v669 = vpop.f32.mrb[0].mxu0
    %670 = vdwg.mxu0
    %671 = vmatprep.subr.bf16.mxu0 %v546
    %672 = vmatpush1.bf16.msra.mxu0 %v543
    %673 = vmatprep.subr.bf16.mxu0 0
    %674 = vmatpush1.bf16.msra.mxu0 0
    %675 = vmatprep.subr.bf16.mxu0 0
    %676 = vmatpush1.bf16.msra.mxu0 0
    %677 = vmatprep.subr.bf16.mxu0 0
    %678 = vmatpush1.bf16.msra.mxu0 0
    %679 = vmatprep.subr.bf16.mxu0 0
    %680 = vmatpush1.bf16.msra.mxu0 0
    %681 = vmatprep.subr.bf16.mxu0 0
    %682 = vmatpush1.bf16.msra.mxu0 0
    %683 = vmatprep.subr.bf16.mxu0 0
    %684 = vmatpush1.bf16.msra.mxu0 0
    %685 = vmatprep.subr.bf16.mxu0 0
    %686 = vmatpush1.bf16.msra.mxu0 0
    %687 = vmatprep.subr.bf16.mxu0 0
    %688 = vmatpush1.bf16.msra.mxu0 0
    %689 = vmatprep.subr.bf16.mxu0 0
    %690 = vmatpush1.bf16.msra.mxu0 0
    %691 = vmatprep.subr.bf16.mxu0 0
    %692 = vmatpush1.bf16.msra.mxu0 0
    %693 = vmatprep.subr.bf16.mxu0 0
    %694 = vmatpush1.bf16.msra.mxu0 0
    %695 = vmatprep.subr.bf16.mxu0 0
    %696 = vmatpush1.bf16.msra.mxu0 0
    %697 = vmatprep.subr.bf16.mxu0 0
    %698 = vmatpush1.bf16.msra.mxu0 0
    %699 = vmatprep.subr.bf16.mxu0 0
    %700 = vmatpush1.bf16.msra.mxu0 0
    %701 = vmatprep.subr.bf16.mxu0 0
    %702 = vmatpush1.bf16.msra.mxu0 0
    %703 = vmatprep.mubr.bf16.mxu0 0
    %704 = vmatmul.mubr.bf16.gmra.mrb[0].mxu0 %v521
    %v705 = vpop.f32.mrb[0].mxu0
    %v706 = vadd.f32 %v506, %v705
    %v707 = vpop.f32.mrb[0].mxu0
    %v708 = vadd.f32 %v510, %v707
    %v709 = vpop.f32.mrb[0].mxu0
    %v710 = vpop.f32.mrb[0].mxu0
    %711 = vdwg.mxu0
    %v720 = vcombine.low %v583, %v585
    %v721 = vcombine.low %v624, %v626
    %v723 = vunpack.c.l.s4 1983009808
    %v724 = vunpack.c.0.s8 %v723
    %v725 = vlaneseq
    %v726 = vshrl.u32 %v725, 7
    %v727 = vsub.s32 %v724, %v726
    %v728 = vrot.slane %v720, %v727
    %v730 = vunpack.c.l.s4 1983009808
    %v731 = vunpack.c.0.s8 %v730
    %v732 = vlaneseq
    %v733 = vshrl.u32 %v732, 7
    %v734 = vsub.s32 %v731, %v733
    %v735 = vrot.slane %v721, %v734
    %v736 = vcombine.low %v728, %v735
    %v737 = vcombine.low %v665, %v667
    %v738 = vcombine.low %v706, %v708
    %v740 = vunpack.c.l.s4 1983009808
    %v741 = vunpack.c.0.s8 %v740
    %v742 = vlaneseq
    %v743 = vshrl.u32 %v742, 7
    %v744 = vsub.s32 %v741, %v743
    %v745 = vrot.slane %v737, %v744
    %v747 = vunpack.c.l.s4 1983009808
    %v748 = vunpack.c.0.s8 %v747
    %v749 = vlaneseq
    %v750 = vshrl.u32 %v749, 7
    %v751 = vsub.s32 %v748, %v750
    %v752 = vrot.slane %v738, %v751
    %v753 = vcombine.low %v745, %v752
    %756 = vst [vmem:[%s8] sm:$0xff] %v736
    %757 = vst [vmem:[%s8 + $0x8] sm:$0xff] %v753
    %vm758 = vcmask 25600
    %759 = vst.msk [vmem:[#allocation2] sm:$0x3] %vm758, %v437
    %761 = vrot.lane.b32.xlu0 %v437, 124
    %v762 = vpop.permute.xlu0 %761
    %764 = vst.msk [vmem:[#allocation4] sm:$0x3] %vm758, %v762
    // Predicated region
    $region26: #{vitvae_forward.4} parent=1 // pred_check
      _
    $region27: #{vitvae_forward.4} parent=1 // pred_check_branch
      %766 = sbr.rel (0) target = $region29
    $region28: #{vitvae_forward.4} parent=1 // pred_region
      %s768 = ssub.s32 32, 32
      %769 = vsyncadd [#allocation3], %s768
      %s771 = sshll.u32 [#allocation2], 4
      %s772 = int_to_ptr.vmem [resolvable:$true] %s771
      %774 = dma.vmem_to_hbm [thread:$0]  %s772, 32, %s6, [#allocation3]
    $region29: #{vitvae_forward.4} parent=1 // pred_fallthru
      _
    // Predicated region
    $region30: #{vitvae_forward.4} parent=1 // pred_check
      _
    $region31: #{vitvae_forward.4} parent=1 // pred_check_branch
      %776 = sbr.rel (0) target = $region33
    $region32: #{vitvae_forward.4} parent=1 // pred_region
      %s778 = ssub.s32 32, 32
      %779 = vsyncadd [#allocation5], %s778
      %s781 = sshll.u32 [#allocation4], 4
      %s782 = int_to_ptr.vmem [resolvable:$true] %s781
      %784 = dma.vmem_to_hbm [thread:$0]  %s782, 32, %s7, [#allocation5]
    $region33: #{vitvae_forward.4} parent=1 // pred_fallthru
      _
    // Predicated region
    $region34: #{vitvae_forward.4} parent=1 // pred_check
      _
    $region35: #{vitvae_forward.4} parent=1 // pred_check_branch
      %786 = sbr.rel (0) target = $region37
    $region36: #{vitvae_forward.4} parent=1 // pred_region
      _
    $region37: #{vitvae_forward.4} parent=1 // pred_fallthru
      _
    // Predicated region
    $region38: #{vitvae_forward.4} parent=1 // pred_check
      _
    $region39: #{vitvae_forward.4} parent=1 // pred_check_branch
      %788 = sbr.rel (0) target = $region41
    $region40: #{vitvae_forward.4} parent=1 // pred_region
      %789 = dma.done [#allocation3], 32
    $region41: #{vitvae_forward.4} parent=1 // pred_fallthru
      _
    // Predicated region
    $region42: #{vitvae_forward.4} parent=1 // pred_check
      _
    $region43: #{vitvae_forward.4} parent=1 // pred_check_branch
      %791 = sbr.rel (0) target = $region45
    $region44: #{vitvae_forward.4} parent=1 // pred_region
      %792 = dma.done [#allocation5], 32
    $region45: #{vitvae_forward.4} parent=1 // pred_fallthru
      _
    // Predicated region
    $region46: #{vitvae_forward.4} parent=1 // pred_check
      _
    $region47: #{vitvae_forward.4} parent=1 // pred_check_branch
      %794 = sbr.rel (0) target = $region49
    $region48: #{vitvae_forward.4} parent=1 // pred_region
      _
    $region49: #{vitvae_forward.4} parent=1 // pred_fallthru
      _
    %795 = vsyncpa [#allocation3], 1
    %796 = vsyncpa [#allocation5], 1

// kernel: vitvae_forward.5
$region0: #{vitvae_forward.5}
  #allocation0 [shape = 'u32[]', space=smem, size = 0x4, offset = 0x4, fixed_abs, tag = 'smem constant byte address 0x4 - core index']
  #allocation1 [shape = 'u32[144,128]{1,0:T(1,128)}', space=vmem, size = 0x12000, scoped, tag = 'internal scratch']
  %s0 = inlined_call_operand.vmem [shape: f32[64,32], index: 0, kind: input, shape index: {}]
  %s1 = inlined_call_operand.vmem [shape: f32[32,32], index: 1, kind: input, shape index: {}]
  %s2 = inlined_call_operand.vmem [shape: f32[32,96], index: 2, kind: input, shape index: {}]
  %s3 = inlined_call_operand.vmem [shape: f32[1,96], index: 3, kind: input, shape index: {}]
  %s4 = inlined_call_operand.vmem [shape: f32[32,32], index: 4, kind: input, shape index: {}]
  %s5 = inlined_call_operand.vmem [shape: f32[1,32], index: 5, kind: input, shape index: {}]
  %s6 = inlined_call_operand.vmem [shape: f32[32,128], index: 6, kind: input, shape index: {}]
  %s7 = inlined_call_operand.vmem [shape: f32[1,128], index: 7, kind: input, shape index: {}]
  %s8 = inlined_call_operand.vmem [shape: f32[128,32], index: 8, kind: input, shape index: {}]
  %s9 = inlined_call_operand.vmem [shape: f32[1,32], index: 9, kind: input, shape index: {}]
  %s10 = inlined_call_operand.vmem [shape: f32[1,32], index: 10, kind: input, shape index: {}]
  %s11 = inlined_call_operand.vmem [shape: f32[1,32], index: 11, kind: input, shape index: {}]
  %s12 = inlined_call_operand.vmem [shape: f32[1,32], index: 12, kind: input, shape index: {}]
  %s13 = inlined_call_operand.vmem [shape: f32[1,32], index: 13, kind: input, shape index: {}]
  %s14 = inlined_call_operand.vmem [shape: f32[32,96], index: 14, kind: input, shape index: {}]
  %s15 = inlined_call_operand.vmem [shape: f32[1,96], index: 15, kind: input, shape index: {}]
  %s16 = inlined_call_operand.vmem [shape: f32[32,32], index: 16, kind: input, shape index: {}]
  %s17 = inlined_call_operand.vmem [shape: f32[1,32], index: 17, kind: input, shape index: {}]
  %s18 = inlined_call_operand.vmem [shape: f32[32,128], index: 18, kind: input, shape index: {}]
  %s19 = inlined_call_operand.vmem [shape: f32[1,128], index: 19, kind: input, shape index: {}]
  %s20 = inlined_call_operand.vmem [shape: f32[128,32], index: 20, kind: input, shape index: {}]
  %s21 = inlined_call_operand.vmem [shape: f32[1,32], index: 21, kind: input, shape index: {}]
  %s22 = inlined_call_operand.vmem [shape: f32[1,32], index: 22, kind: input, shape index: {}]
  %s23 = inlined_call_operand.vmem [shape: f32[1,32], index: 23, kind: input, shape index: {}]
  %s24 = inlined_call_operand.vmem [shape: f32[1,32], index: 24, kind: input, shape index: {}]
  %s25 = inlined_call_operand.vmem [shape: f32[1,32], index: 25, kind: input, shape index: {}]
  %s26 = inlined_call_operand.vmem [shape: f32[32,16], index: 26, kind: input, shape index: {}]
  %s27 = inlined_call_operand.vmem [shape: f32[1,16], index: 27, kind: input, shape index: {}]
  %s28 = inlined_call_operand.vmem [shape: f32[64,16], index: 28, kind: output, shape index: {}]
  %s29 = sld [smem:[#allocation0]]
  $region122: #{vitvae_forward.5} parent=0
    _
  %s31 = ssub.s32 1, %s29
  %s32 = scalar_select 0, %s31, %s29
  // Predicated region
  $region2: #{vitvae_forward.5} parent=0 // pred_check
    _
  $region3: #{vitvae_forward.5} parent=0 // pred_check_branch
    %34 = sbr.rel (0) target = $region5
  $region4: #{vitvae_forward.5} parent=0 // pred_region
    _
  $region5: #{vitvae_forward.5} parent=0 // pred_fallthru
    _
  // Predicated region
  $region6: #{vitvae_forward.5} parent=0 // pred_check
    _
  $region7: #{vitvae_forward.5} parent=0 // pred_check_branch
    %36 = sbr.rel (0) target = $region9
  $region8: #{vitvae_forward.5} parent=0 // pred_region
    _
  $region9: #{vitvae_forward.5} parent=0 // pred_fallthru
    _
  // Predicated region
  $region10: #{vitvae_forward.5} parent=0 // pred_check
    _
  $region11: #{vitvae_forward.5} parent=0 // pred_check_branch
    %38 = sbr.rel (0) target = $region13
  $region12: #{vitvae_forward.5} parent=0 // pred_region
    _
  $region13: #{vitvae_forward.5} parent=0 // pred_fallthru
    _
  // Predicated region
  $region14: #{vitvae_forward.5} parent=0 // pred_check
    _
  $region15: #{vitvae_forward.5} parent=0 // pred_check_branch
    %40 = sbr.rel (0) target = $region17
  $region16: #{vitvae_forward.5} parent=0 // pred_region
    _
  $region17: #{vitvae_forward.5} parent=0 // pred_fallthru
    _
  // Predicated region
  $region18: #{vitvae_forward.5} parent=0 // pred_check
    _
  $region19: #{vitvae_forward.5} parent=0 // pred_check_branch
    %42 = sbr.rel (0) target = $region21
  $region20: #{vitvae_forward.5} parent=0 // pred_region
    _
  $region21: #{vitvae_forward.5} parent=0 // pred_fallthru
    _
  // Predicated region
  $region22: #{vitvae_forward.5} parent=0 // pred_check
    _
  $region23: #{vitvae_forward.5} parent=0 // pred_check_branch
    %44 = sbr.rel (0) target = $region25
  $region24: #{vitvae_forward.5} parent=0 // pred_region
    _
  $region25: #{vitvae_forward.5} parent=0 // pred_fallthru
    _
  // Predicated region
  $region26: #{vitvae_forward.5} parent=0 // pred_check
    _
  $region27: #{vitvae_forward.5} parent=0 // pred_check_branch
    %46 = sbr.rel (0) target = $region29
  $region28: #{vitvae_forward.5} parent=0 // pred_region
    _
  $region29: #{vitvae_forward.5} parent=0 // pred_fallthru
    _
  // Predicated region
  $region30: #{vitvae_forward.5} parent=0 // pred_check
    _
  $region31: #{vitvae_forward.5} parent=0 // pred_check_branch
    %48 = sbr.rel (0) target = $region33
  $region32: #{vitvae_forward.5} parent=0 // pred_region
    _
  $region33: #{vitvae_forward.5} parent=0 // pred_fallthru
    _
  // Predicated region
  $region34: #{vitvae_forward.5} parent=0 // pred_check
    _
  $region35: #{vitvae_forward.5} parent=0 // pred_check_branch
    %50 = sbr.rel (0) target = $region37
  $region36: #{vitvae_forward.5} parent=0 // pred_region
    _
  $region37: #{vitvae_forward.5} parent=0 // pred_fallthru
    _
  // Predicated region
  $region38: #{vitvae_forward.5} parent=0 // pred_check
    _
  $region39: #{vitvae_forward.5} parent=0 // pred_check_branch
    %52 = sbr.rel (0) target = $region41
  $region40: #{vitvae_forward.5} parent=0 // pred_region
    _
  $region41: #{vitvae_forward.5} parent=0 // pred_fallthru
    _
  // Predicated region
  $region42: #{vitvae_forward.5} parent=0 // pred_check
    _
  $region43: #{vitvae_forward.5} parent=0 // pred_check_branch
    %54 = sbr.rel (0) target = $region45
  $region44: #{vitvae_forward.5} parent=0 // pred_region
    _
  $region45: #{vitvae_forward.5} parent=0 // pred_fallthru
    _
  // Predicated region
  $region46: #{vitvae_forward.5} parent=0 // pred_check
    _
  $region47: #{vitvae_forward.5} parent=0 // pred_check_branch
    %56 = sbr.rel (0) target = $region49
  $region48: #{vitvae_forward.5} parent=0 // pred_region
    _
  $region49: #{vitvae_forward.5} parent=0 // pred_fallthru
    _
  // Predicated region
  $region50: #{vitvae_forward.5} parent=0 // pred_check
    _
  $region51: #{vitvae_forward.5} parent=0 // pred_check_branch
    %58 = sbr.rel (0) target = $region53
  $region52: #{vitvae_forward.5} parent=0 // pred_region
    _
  $region53: #{vitvae_forward.5} parent=0 // pred_fallthru
    _
  // Predicated region
  $region54: #{vitvae_forward.5} parent=0 // pred_check
    _
  $region55: #{vitvae_forward.5} parent=0 // pred_check_branch
    %60 = sbr.rel (0) target = $region57
  $region56: #{vitvae_forward.5} parent=0 // pred_region
    _
  $region57: #{vitvae_forward.5} parent=0 // pred_fallthru
    _
  // Predicated region
  $region58: #{vitvae_forward.5} parent=0 // pred_check
    _
  $region59: #{vitvae_forward.5} parent=0 // pred_check_branch
    %62 = sbr.rel (0) target = $region61
  $region60: #{vitvae_forward.5} parent=0 // pred_region
    _
  $region61: #{vitvae_forward.5} parent=0 // pred_fallthru
    _
  // Predicated region
  $region62: #{vitvae_forward.5} parent=0 // pred_check
    _
  $region63: #{vitvae_forward.5} parent=0 // pred_check_branch
    %64 = sbr.rel (0) target = $region65
  $region64: #{vitvae_forward.5} parent=0 // pred_region
    _
  $region65: #{vitvae_forward.5} parent=0 // pred_fallthru
    _
  // Predicated region
  $region66: #{vitvae_forward.5} parent=0 // pred_check
    _
  $region67: #{vitvae_forward.5} parent=0 // pred_check_branch
    %66 = sbr.rel (0) target = $region69
  $region68: #{vitvae_forward.5} parent=0 // pred_region
    _
  $region69: #{vitvae_forward.5} parent=0 // pred_fallthru
    _
  // Predicated region
  $region70: #{vitvae_forward.5} parent=0 // pred_check
    _
  $region71: #{vitvae_forward.5} parent=0 // pred_check_branch
    %68 = sbr.rel (0) target = $region73
  $region72: #{vitvae_forward.5} parent=0 // pred_region
    _
  $region73: #{vitvae_forward.5} parent=0 // pred_fallthru
    _
  // Predicated region
  $region74: #{vitvae_forward.5} parent=0 // pred_check
    _
  $region75: #{vitvae_forward.5} parent=0 // pred_check_branch
    %70 = sbr.rel (0) target = $region77
  $region76: #{vitvae_forward.5} parent=0 // pred_region
    _
  $region77: #{vitvae_forward.5} parent=0 // pred_fallthru
    _
  // Predicated region
  $region78: #{vitvae_forward.5} parent=0 // pred_check
    _
  $region79: #{vitvae_forward.5} parent=0 // pred_check_branch
    %72 = sbr.rel (0) target = $region81
  $region80: #{vitvae_forward.5} parent=0 // pred_region
    _
  $region81: #{vitvae_forward.5} parent=0 // pred_fallthru
    _
  // Predicated region
  $region82: #{vitvae_forward.5} parent=0 // pred_check
    _
  $region83: #{vitvae_forward.5} parent=0 // pred_check_branch
    %74 = sbr.rel (0) target = $region85
  $region84: #{vitvae_forward.5} parent=0 // pred_region
    _
  $region85: #{vitvae_forward.5} parent=0 // pred_fallthru
    _
  // Predicated region
  $region86: #{vitvae_forward.5} parent=0 // pred_check
    _
  $region87: #{vitvae_forward.5} parent=0 // pred_check_branch
    %76 = sbr.rel (0) target = $region89
  $region88: #{vitvae_forward.5} parent=0 // pred_region
    _
  $region89: #{vitvae_forward.5} parent=0 // pred_fallthru
    _
  // Predicated region
  $region90: #{vitvae_forward.5} parent=0 // pred_check
    _
  $region91: #{vitvae_forward.5} parent=0 // pred_check_branch
    %78 = sbr.rel (0) target = $region93
  $region92: #{vitvae_forward.5} parent=0 // pred_region
    _
  $region93: #{vitvae_forward.5} parent=0 // pred_fallthru
    _
  // Predicated region
  $region94: #{vitvae_forward.5} parent=0 // pred_check
    _
  $region95: #{vitvae_forward.5} parent=0 // pred_check_branch
    %80 = sbr.rel (0) target = $region97
  $region96: #{vitvae_forward.5} parent=0 // pred_region
    _
  $region97: #{vitvae_forward.5} parent=0 // pred_fallthru
    _
  // Predicated region
  $region98: #{vitvae_forward.5} parent=0 // pred_check
    _
  $region99: #{vitvae_forward.5} parent=0 // pred_check_branch
    %82 = sbr.rel (0) target = $region101
  $region100: #{vitvae_forward.5} parent=0 // pred_region
    _
  $region101: #{vitvae_forward.5} parent=0 // pred_fallthru
    _
  // Predicated region
  $region102: #{vitvae_forward.5} parent=0 // pred_check
    _
  $region103: #{vitvae_forward.5} parent=0 // pred_check_branch
    %84 = sbr.rel (0) target = $region105
  $region104: #{vitvae_forward.5} parent=0 // pred_region
    _
  $region105: #{vitvae_forward.5} parent=0 // pred_fallthru
    _
  // Predicated region
  $region106: #{vitvae_forward.5} parent=0 // pred_check
    _
  $region107: #{vitvae_forward.5} parent=0 // pred_check_branch
    %86 = sbr.rel (0) target = $region109
  $region108: #{vitvae_forward.5} parent=0 // pred_region
    _
  $region109: #{vitvae_forward.5} parent=0 // pred_fallthru
    _
  // Predicated region
  $region110: #{vitvae_forward.5} parent=0 // pred_check
    _
  $region111: #{vitvae_forward.5} parent=0 // pred_check_branch
    %88 = sbr.rel (0) target = $region113
  $region112: #{vitvae_forward.5} parent=0 // pred_region
    _
  $region113: #{vitvae_forward.5} parent=0 // pred_fallthru
    _
  %v90 = vld [vmem:[%s0] sm:$0xff]
  %v91 = vld [vmem:[%s0 + $0x8] sm:$0xff]
  %v92 = vld [vmem:[%s0 + $0x10] sm:$0xff]
  %v93 = vld [vmem:[%s0 + $0x18] sm:$0xff]
  %v94 = vld [vmem:[%s0 + $0x20] sm:$0xff]
  %v95 = vld [vmem:[%s0 + $0x28] sm:$0xff]
  %v96 = vld [vmem:[%s0 + $0x30] sm:$0xff]
  %v97 = vld [vmem:[%s0 + $0x38] sm:$0xff]
  %v98 = vld [vmem:[%s1] sm:$0xff]
  %v99 = vld [vmem:[%s1 + $0x8] sm:$0xff]
  %v100 = vld [vmem:[%s1 + $0x10] sm:$0xff]
  %v101 = vld [vmem:[%s1 + $0x18] sm:$0xff]
  %v102 = vadd.f32 %v90, %v98
  %v103 = vadd.f32 %v91, %v99
  %v104 = vadd.f32 %v92, %v100
  %v105 = vadd.f32 %v93, %v101
  %v106 = vadd.f32 %v94, %v98
  %v107 = vadd.f32 %v95, %v99
  %v108 = vadd.f32 %v96, %v100
  %v109 = vadd.f32 %v97, %v101
  %v110 = vld [vmem:[%s2] sm:$0xff]
  %v111 = vld [vmem:[%s2 + $0x8] sm:$0xff]
  %v112 = vld [vmem:[%s2 + $0x10] sm:$0xff]
  %v113 = vld [vmem:[%s2 + $0x18] sm:$0xff]
  %v114 = vld [vmem:[%s3] sm:$0x1]
  %v115 = vld [vmem:[%s4] sm:$0xff]
  %v116 = vld [vmem:[%s4 + $0x8] sm:$0xff]
  %v117 = vld [vmem:[%s4 + $0x10] sm:$0xff]
  %v118 = vld [vmem:[%s4 + $0x18] sm:$0xff]
  %v119 = vld [vmem:[%s5] sm:$0x1]
  %v120 = vld [vmem:[%s6] sm:$0xff]
  %v121 = vld [vmem:[%s6 + $0x8] sm:$0xff]
  %v122 = vld [vmem:[%s6 + $0x10] sm:$0xff]
  %v123 = vld [vmem:[%s6 + $0x18] sm:$0xff]
  %v124 = vld [vmem:[%s7] sm:$0x1]
  %v125 = vld [vmem:[%s8] sm:$0xff]
  %v126 = vld [vmem:[%s8 + $0x8] sm:$0xff]
  %v127 = vld [vmem:[%s8 + $0x10] sm:$0xff]
  %v128 = vld [vmem:[%s8 + $0x18] sm:$0xff]
  %v129 = vld [vmem:[%s8 + $0x20] sm:$0xff]
  %v130 = vld [vmem:[%s8 + $0x28] sm:$0xff]
  %v131 = vld [vmem:[%s8 + $0x30] sm:$0xff]
  %v132 = vld [vmem:[%s8 + $0x38] sm:$0xff]
  %v133 = vld [vmem:[%s8 + $0x40] sm:$0xff]
  %v134 = vld [vmem:[%s8 + $0x48] sm:$0xff]
  %v135 = vld [vmem:[%s8 + $0x50] sm:$0xff]
  %v136 = vld [vmem:[%s8 + $0x58] sm:$0xff]
  %v137 = vld [vmem:[%s8 + $0x60] sm:$0xff]
  %v138 = vld [vmem:[%s8 + $0x68] sm:$0xff]
  %v139 = vld [vmem:[%s8 + $0x70] sm:$0xff]
  %v140 = vld [vmem:[%s8 + $0x78] sm:$0xff]
  %v141 = vld [vmem:[%s9] sm:$0x1]
  %v142 = vld [vmem:[%s10] sm:$0x1]
  %v143 = vld [vmem:[%s11] sm:$0x1]
  %v144 = vld [vmem:[%s12] sm:$0x1]
  %v145 = vld [vmem:[%s13] sm:$0x1]
  %v146 = vpack.c.bf16 %v103, %v102
  %v147 = vpack.c.bf16 %v105, %v104
  %v148 = vpack.c.bf16 %v107, %v106
  %v149 = vpack.c.bf16 %v109, %v108
  %v150 = vpack.c.bf16 %v111, %v110
  %v151 = vpack.c.bf16 %v113, %v112
  %v153 = vlaneseq
  %v154 = vshrl.u32 %v153, 7
  %v155 = vsub.s32 0, %v154
  %v156 = vrot.slane %v114, %v155
  %vm158 = vcmask 261120
  %v160 = vsel %vm158, %v146, 0
  %v163 = vsel %vm158, %v147, 0
  %v166 = vsel %vm158, %v148, 0
  %v169 = vsel %vm158, %v149, 0
  %171 = vmatprep.subr.bf16.mxu0 0
  %172 = vmatpush1.bf16.msra.mxu0 %v150
  %173 = vmatprep.subr.bf16.mxu0 0
  %174 = vmatpush1.bf16.msra.mxu0 %v151
  %175 = vmatprep.subr.bf16.mxu0 0
  %176 = vmatpush1.bf16.msra.mxu0 0
  %177 = vmatprep.subr.bf16.mxu0 0
  %178 = vmatpush1.bf16.msra.mxu0 0
  %179 = vmatprep.subr.bf16.mxu0 0
  %180 = vmatpush1.bf16.msra.mxu0 0
  %181 = vmatprep.subr.bf16.mxu0 0
  %182 = vmatpush1.bf16.msra.mxu0 0
  %183 = vmatprep.subr.bf16.mxu0 0
  %184 = vmatpush1.bf16.msra.mxu0 0
  %185 = vmatprep.subr.bf16.mxu0 0
  %186 = vmatpush1.bf16.msra.mxu0 0
  %187 = vmatprep.subr.bf16.mxu0 0
  %188 = vmatpush1.bf16.msra.mxu0 0
  %189 = vmatprep.subr.bf16.mxu0 0
  %190 = vmatpush1.bf16.msra.mxu0 0
  %191 = vmatprep.subr.bf16.mxu0 0
  %192 = vmatpush1.bf16.msra.mxu0 0
  %193 = vmatprep.subr.bf16.mxu0 0
  %194 = vmatpush1.bf16.msra.mxu0 0
  %195 = vmatprep.subr.bf16.mxu0 0
  %196 = vmatpush1.bf16.msra.mxu0 0
  %197 = vmatprep.subr.bf16.mxu0 0
  %198 = vmatpush1.bf16.msra.mxu0 0
  %199 = vmatprep.subr.bf16.mxu0 0
  %200 = vmatpush1.bf16.msra.mxu0 0
  %201 = vmatprep.subr.bf16.mxu0 0
  %202 = vmatpush1.bf16.msra.mxu0 0
  %203 = vmatprep.mubr.bf16.mxu0 0
  %204 = vmatmul.mubr.bf16.gmra.mrb[0].mxu0 %v160
  %v205 = vpop.f32.mrb[0].mxu0
  %v206 = vadd.f32 %v156, %v205
  %v207 = vpop.f32.mrb[0].mxu0
  %v208 = vpop.f32.mrb[0].mxu0
  %v209 = vadd.f32 %v156, %v208
  %v210 = vpop.f32.mrb[0].mxu0
  %211 = vmatprep.mubr.bf16.mxu0 0
  %212 = vmatmul.mubr.bf16.gmra.mrb[0].mxu0 %v163
  %v213 = vpop.f32.mrb[0].mxu0
  %v214 = vadd.f32 %v156, %v213
  %v215 = vpop.f32.mrb[0].mxu0
  %v216 = vpop.f32.mrb[0].mxu0
  %v217 = vadd.f32 %v156, %v216
  %v218 = vpop.f32.mrb[0].mxu0
  %219 = vmatprep.mubr.bf16.mxu0 0
  %220 = vmatmul.mubr.bf16.gmra.mrb[0].mxu0 %v166
  %v221 = vpop.f32.mrb[0].mxu0
  %v222 = vadd.f32 %v156, %v221
  %v223 = vpop.f32.mrb[0].mxu0
  %v224 = vpop.f32.mrb[0].mxu0
  %v225 = vadd.f32 %v156, %v224
  %v226 = vpop.f32.mrb[0].mxu0
  %227 = vmatprep.mubr.bf16.mxu0 0
  %228 = vmatmul.mubr.bf16.gmra.mrb[0].mxu0 %v169
  %v229 = vpop.f32.mrb[0].mxu0
  %v230 = vadd.f32 %v156, %v229
  %v231 = vpop.f32.mrb[0].mxu0
  %v232 = vpop.f32.mrb[0].mxu0
  %v233 = vadd.f32 %v156, %v232
  %v234 = vpop.f32.mrb[0].mxu0
  %235 = vdwg.mxu0
  %v236 = vpack.c.bf16 %v209, %v206
  %v237 = vpack.c.bf16 %v217, %v214
  %240 = vrot.lane.b32.xlu0 %v236, 96
  %v241 = vpop.permute.xlu0 %240
  %242 = vrot.lane.b32.xlu0 %v237, 96
  %v243 = vpop.permute.xlu0 %242
  %vm244 = vcmask 64512
  %v246 = vsel %vm244, %v236, 0
  %v249 = vsel %vm244, %v237, 0
  %v252 = vsel %vm244, %v241, 0
  %v255 = vsel %vm244, %v243, 0
  %257 = vmatprep.subr.bf16.mxu0 0
  %258 = vmatpush1.bf16.xpose.msra.mxu0 %v252
  %259 = vmatprep.subr.bf16.mxu0 0
  %260 = vmatpush1.bf16.xpose.msra.mxu0 %v255
  %261 = vmatprep.subr.bf16.mxu0 0
  %262 = vmatpush1.bf16.xpose.msra.mxu0 0
  %263 = vmatprep.subr.bf16.mxu0 0
  %264 = vmatpush1.bf16.xpose.msra.mxu0 0
  %265 = vmatprep.subr.bf16.mxu0 0
  %266 = vmatpush1.bf16.xpose.msra.mxu0 0
  %267 = vmatprep.subr.bf16.mxu0 0
  %268 = vmatpush1.bf16.xpose.msra.mxu0 0
  %269 = vmatprep.subr.bf16.mxu0 0
  %270 = vmatpush1.bf16.xpose.msra.mxu0 0
  %271 = vmatprep.subr.bf16.mxu0 0
  %272 = vmatpush1.bf16.xpose.msra.mxu0 0
  %273 = vmatprep.subr.bf16.mxu0 0
  %274 = vmatpush1.bf16.xpose.msra.mxu0 0
  %275 = vmatprep.subr.bf16.mxu0 0
  %276 = vmatpush1.bf16.xpose.msra.mxu0 0
  %277 = vmatprep.subr.bf16.mxu0 0
  %278 = vmatpush1.bf16.xpose.msra.mxu0 0
  %279 = vmatprep.subr.bf16.mxu0 0
  %280 = vmatpush1.bf16.xpose.msra.mxu0 0
  %281 = vmatprep.subr.bf16.mxu0 0
  %282 = vmatpush1.bf16.xpose.msra.mxu0 0
  %283 = vmatprep.subr.bf16.mxu0 0
  %284 = vmatpush1.bf16.xpose.msra.mxu0 0
  %285 = vmatprep.subr.bf16.mxu0 0
  %286 = vmatpush1.bf16.xpose.msra.mxu0 0
  %287 = vmatprep.subr.bf16.mxu0 0
  %288 = vmatpush1.bf16.xpose.msra.mxu0 0
  %289 = vmatprep.mubr.bf16.mxu0 0
  %290 = vmatmul.mubr.bf16.gmra.mrb[0].mxu0 %v246
  %v291 = vpop.f32.mrb[0].mxu0
  %v292 = vadd.f32 0.0, %v291
  %v293 = vpop.f32.mrb[0].mxu0
  %v294 = vpop.f32.mrb[0].mxu0
  %v295 = vadd.f32 0.0, %v294
  %v296 = vpop.f32.mrb[0].mxu0
  %297 = vmatprep.mubr.bf16.mxu0 0
  %298 = vmatmul.mubr.bf16.gmra.mrb[0].mxu0 %v249
  %v299 = vpop.f32.mrb[0].mxu0
  %v300 = vadd.f32 0.0, %v299
  %v301 = vpop.f32.mrb[0].mxu0
  %v302 = vpop.f32.mrb[0].mxu0
  %v303 = vadd.f32 0.0, %v302
  %v304 = vpop.f32.mrb[0].mxu0
  %305 = vdwg.mxu0
  %v306 = vmul.f32 %v292, 0.35355338
  %v307 = vmul.f32 %v295, 0.35355338
  %v308 = vmul.f32 %v300, 0.35355338
  %v309 = vmul.f32 %v303, 0.35355338
  %v310 = vsel %vm158, %v306, -inf
  %311 = vmax.xlane.f32.xlu0 %v310
  %v312 = vpop.xlane.xlu0 %311
  %v313 = vsel %vm158, %v307, -inf
  %314 = vmax.xlane.f32.xlu0 %v313
  %v315 = vpop.xlane.xlu0 %314
  %v316 = vsel %vm158, %v308, -inf
  %317 = vmax.xlane.f32.xlu0 %v316
  %v318 = vpop.xlane.xlu0 %317
  %v319 = vsel %vm158, %v309, -inf
  %320 = vmax.xlane.f32.xlu0 %v319
  %v321 = vpop.xlane.xlu0 %320
  %v322 = vsub.f32 %v306, %v312
  %v323 = vsub.f32 %v307, %v315
  %v324 = vsub.f32 %v308, %v318
  %v325 = vsub.f32 %v309, %v321
  %v326 = vmul.f32 %v322, 1.442695
  %v327 = vpow.pop %v326
  %v328 = vmul.f32 %v323, 1.442695
  %v329 = vpow.pop %v328
  %v330 = vmul.f32 %v324, 1.442695
  %v331 = vpow.pop %v330
  %v332 = vmul.f32 %v325, 1.442695
  %v333 = vpow.pop %v332
  %v334 = vsel %vm158, %v327, 0.0
  %335 = vadd.xlane.f32.xlu0 %v334
  %v336 = vpop.xlane.xlu0 %335
  %v337 = vsel %vm158, %v329, 0.0
  %338 = vadd.xlane.f32.xlu0 %v337
  %v339 = vpop.xlane.xlu0 %338
  %v340 = vsel %vm158, %v331, 0.0
  %341 = vadd.xlane.f32.xlu0 %v340
  %v342 = vpop.xlane.xlu0 %341
  %v343 = vsel %vm158, %v333, 0.0
  %344 = vadd.xlane.f32.xlu0 %v343
  %v345 = vpop.xlane.xlu0 %344
  %v346 = vrcp.pop %v336
  %v347 = vmul.f32 %v327, %v346
  %v348 = vrcp.pop %v339
  %v349 = vmul.f32 %v329, %v348
  %v350 = vrcp.pop %v342
  %v351 = vmul.f32 %v331, %v350
  %v352 = vrcp.pop %v345
  %v353 = vmul.f32 %v333, %v352
  %v354 = vpack.c.bf16 %v349, %v347
  %v355 = vpack.c.bf16 %v353, %v351
  %356 = vrot.lane.b32.xlu0 %v236, 64
  %v357 = vpop.permute.xlu0 %356
  %358 = vrot.lane.b32.xlu0 %v237, 64
  %v359 = vpop.permute.xlu0 %358
  %v363 = vsel %vm158, %v354, 0
  %v366 = vsel %vm158, %v355, 0
  %368 = vmatprep.subr.bf16.mxu0 0
  %369 = vmatpush1.bf16.msra.mxu0 %v357
  %370 = vmatprep.subr.bf16.mxu0 0
  %371 = vmatpush1.bf16.msra.mxu0 %v359
  %372 = vmatprep.subr.bf16.mxu0 0
  %373 = vmatpush1.bf16.msra.mxu0 0
  %374 = vmatprep.subr.bf16.mxu0 0
  %375 = vmatpush1.bf16.msra.mxu0 0
  %376 = vmatprep.subr.bf16.mxu0 0
  %377 = vmatpush1.bf16.msra.mxu0 0
  %378 = vmatprep.subr.bf16.mxu0 0
  %379 = vmatpush1.bf16.msra.mxu0 0
  %380 = vmatprep.subr.bf16.mxu0 0
  %381 = vmatpush1.bf16.msra.mxu0 0
  %382 = vmatprep.subr.bf16.mxu0 0
  %383 = vmatpush1.bf16.msra.mxu0 0
  %384 = vmatprep.subr.bf16.mxu0 0
  %385 = vmatpush1.bf16.msra.mxu0 0
  %386 = vmatprep.subr.bf16.mxu0 0
  %387 = vmatpush1.bf16.msra.mxu0 0
  %388 = vmatprep.subr.bf16.mxu0 0
  %389 = vmatpush1.bf16.msra.mxu0 0
  %390 = vmatprep.subr.bf16.mxu0 0
  %391 = vmatpush1.bf16.msra.mxu0 0
  %392 = vmatprep.subr.bf16.mxu0 0
  %393 = vmatpush1.bf16.msra.mxu0 0
  %394 = vmatprep.subr.bf16.mxu0 0
  %395 = vmatpush1.bf16.msra.mxu0 0
  %396 = vmatprep.subr.bf16.mxu0 0
  %397 = vmatpush1.bf16.msra.mxu0 0
  %398 = vmatprep.subr.bf16.mxu0 0
  %399 = vmatpush1.bf16.msra.mxu0 0
  %400 = vmatprep.mubr.bf16.mxu0 0
  %401 = vmatmul.mubr.bf16.gmra.mrb[0].mxu0 %v363
  %v402 = vpop.f32.mrb[0].mxu0
  %v403 = vadd.f32 0.0, %v402
  %v404 = vpop.f32.mrb[0].mxu0
  %v405 = vpop.f32.mrb[0].mxu0
  %v406 = vadd.f32 0.0, %v405
  %v407 = vpop.f32.mrb[0].mxu0
  %408 = vmatprep.mubr.bf16.mxu0 0
  %409 = vmatmul.mubr.bf16.gmra.mrb[0].mxu0 %v366
  %v410 = vpop.f32.mrb[0].mxu0
  %v411 = vadd.f32 0.0, %v410
  %v412 = vpop.f32.mrb[0].mxu0
  %v413 = vpop.f32.mrb[0].mxu0
  %v414 = vadd.f32 0.0, %v413
  %v415 = vpop.f32.mrb[0].mxu0
  %416 = vdwg.mxu0
  %417 = vrot.lane.b32.xlu0 %v236, 120
  %v418 = vpop.permute.xlu0 %417
  %419 = vrot.lane.b32.xlu0 %v237, 120
  %v420 = vpop.permute.xlu0 %419
  %421 = vrot.lane.b32.xlu0 %v236, 88
  %v422 = vpop.permute.xlu0 %421
  %423 = vrot.lane.b32.xlu0 %v237, 88
  %v424 = vpop.permute.xlu0 %423
  %v426 = vsel %vm244, %v418, 0
  %v429 = vsel %vm244, %v420, 0
  %v432 = vsel %vm244, %v422, 0
  %v435 = vsel %vm244, %v424, 0
  %437 = vmatprep.subr.bf16.mxu0 0
  %438 = vmatpush1.bf16.xpose.msra.mxu0 %v432
  %439 = vmatprep.subr.bf16.mxu0 0
  %440 = vmatpush1.bf16.xpose.msra.mxu0 %v435
  %441 = vmatprep.subr.bf16.mxu0 0
  %442 = vmatpush1.bf16.xpose.msra.mxu0 0
  %443 = vmatprep.subr.bf16.mxu0 0
  %444 = vmatpush1.bf16.xpose.msra.mxu0 0
  %445 = vmatprep.subr.bf16.mxu0 0
  %446 = vmatpush1.bf16.xpose.msra.mxu0 0
  %447 = vmatprep.subr.bf16.mxu0 0
  %448 = vmatpush1.bf16.xpose.msra.mxu0 0
  %449 = vmatprep.subr.bf16.mxu0 0
  %450 = vmatpush1.bf16.xpose.msra.mxu0 0
  %451 = vmatprep.subr.bf16.mxu0 0
  %452 = vmatpush1.bf16.xpose.msra.mxu0 0
  %453 = vmatprep.subr.bf16.mxu0 0
  %454 = vmatpush1.bf16.xpose.msra.mxu0 0
  %455 = vmatprep.subr.bf16.mxu0 0
  %456 = vmatpush1.bf16.xpose.msra.mxu0 0
  %457 = vmatprep.subr.bf16.mxu0 0
  %458 = vmatpush1.bf16.xpose.msra.mxu0 0
  %459 = vmatprep.subr.bf16.mxu0 0
  %460 = vmatpush1.bf16.xpose.msra.mxu0 0
  %461 = vmatprep.subr.bf16.mxu0 0
  %462 = vmatpush1.bf16.xpose.msra.mxu0 0
  %463 = vmatprep.subr.bf16.mxu0 0
  %464 = vmatpush1.bf16.xpose.msra.mxu0 0
  %465 = vmatprep.subr.bf16.mxu0 0
  %466 = vmatpush1.bf16.xpose.msra.mxu0 0
  %467 = vmatprep.subr.bf16.mxu0 0
  %468 = vmatpush1.bf16.xpose.msra.mxu0 0
  %469 = vmatprep.mubr.bf16.mxu0 0
  %470 = vmatmul.mubr.bf16.gmra.mrb[0].mxu0 %v426
  %v471 = vpop.f32.mrb[0].mxu0
  %v472 = vadd.f32 0.0, %v471
  %v473 = vpop.f32.mrb[0].mxu0
  %v474 = vpop.f32.mrb[0].mxu0
  %v475 = vadd.f32 0.0, %v474
  %v476 = vpop.f32.mrb[0].mxu0
  %477 = vmatprep.mubr.bf16.mxu0 0
  %478 = vmatmul.mubr.bf16.gmra.mrb[0].mxu0 %v429
  %v479 = vpop.f32.mrb[0].mxu0
  %v480 = vadd.f32 0.0, %v479
  %v481 = vpop.f32.mrb[0].mxu0
  %v482 = vpop.f32.mrb[0].mxu0
  %v483 = vadd.f32 0.0, %v482
  %v484 = vpop.f32.mrb[0].mxu0
  %485 = vdwg.mxu0
  %v486 = vmul.f32 %v472, 0.35355338
  %v487 = vmul.f32 %v475, 0.35355338
  %v488 = vmul.f32 %v480, 0.35355338
  %v489 = vmul.f32 %v483, 0.35355338
  %v490 = vsel %vm158, %v486, -inf
  %491 = vmax.xlane.f32.xlu0 %v490
  %v492 = vpop.xlane.xlu0 %491
  %v493 = vsel %vm158, %v487, -inf
  %494 = vmax.xlane.f32.xlu0 %v493
  %v495 = vpop.xlane.xlu0 %494
  %v496 = vsel %vm158, %v488, -inf
  %497 = vmax.xlane.f32.xlu0 %v496
  %v498 = vpop.xlane.xlu0 %497
  %v499 = vsel %vm158, %v489, -inf
  %500 = vmax.xlane.f32.xlu0 %v499
  %v501 = vpop.xlane.xlu0 %500
  %v502 = vsub.f32 %v486, %v492
  %v503 = vsub.f32 %v487, %v495
  %v504 = vsub.f32 %v488, %v498
  %v505 = vsub.f32 %v489, %v501
  %v506 = vmul.f32 %v502, 1.442695
  %v507 = vpow.pop %v506
  %v508 = vmul.f32 %v503, 1.442695
  %v509 = vpow.pop %v508
  %v510 = vmul.f32 %v504, 1.442695
  %v511 = vpow.pop %v510
  %v512 = vmul.f32 %v505, 1.442695
  %v513 = vpow.pop %v512
  %v514 = vsel %vm158, %v507, 0.0
  %515 = vadd.xlane.f32.xlu0 %v514
  %v516 = vpop.xlane.xlu0 %515
  %v517 = vsel %vm158, %v509, 0.0
  %518 = vadd.xlane.f32.xlu0 %v517
  %v519 = vpop.xlane.xlu0 %518
  %v520 = vsel %vm158, %v511, 0.0
  %521 = vadd.xlane.f32.xlu0 %v520
  %v522 = vpop.xlane.xlu0 %521
  %v523 = vsel %vm158, %v513, 0.0
  %524 = vadd.xlane.f32.xlu0 %v523
  %v525 = vpop.xlane.xlu0 %524
  %v526 = vrcp.pop %v516
  %v527 = vmul.f32 %v507, %v526
  %v528 = vrcp.pop %v519
  %v529 = vmul.f32 %v509, %v528
  %v530 = vrcp.pop %v522
  %v531 = vmul.f32 %v511, %v530
  %v532 = vrcp.pop %v525
  %v533 = vmul.f32 %v513, %v532
  %v534 = vpack.c.bf16 %v529, %v527
  %v535 = vpack.c.bf16 %v533, %v531
  %536 = vrot.lane.b32.xlu0 %v236, 56
  %v537 = vpop.permute.xlu0 %536
  %538 = vrot.lane.b32.xlu0 %v237, 56
  %v539 = vpop.permute.xlu0 %538
  %v543 = vsel %vm158, %v534, 0
  %v546 = vsel %vm158, %v535, 0
  %548 = vmatprep.subr.bf16.mxu0 0
  %549 = vmatpush1.bf16.msra.mxu0 %v537
  %550 = vmatprep.subr.bf16.mxu0 0
  %551 = vmatpush1.bf16.msra.mxu0 %v539
  %552 = vmatprep.subr.bf16.mxu0 0
  %553 = vmatpush1.bf16.msra.mxu0 0
  %554 = vmatprep.subr.bf16.mxu0 0
  %555 = vmatpush1.bf16.msra.mxu0 0
  %556 = vmatprep.subr.bf16.mxu0 0
  %557 = vmatpush1.bf16.msra.mxu0 0
  %558 = vmatprep.subr.bf16.mxu0 0
  %559 = vmatpush1.bf16.msra.mxu0 0
  %560 = vmatprep.subr.bf16.mxu0 0
  %561 = vmatpush1.bf16.msra.mxu0 0
  %562 = vmatprep.subr.bf16.mxu0 0
  %563 = vmatpush1.bf16.msra.mxu0 0
  %564 = vmatprep.subr.bf16.mxu0 0
  %565 = vmatpush1.bf16.msra.mxu0 0
  %566 = vmatprep.subr.bf16.mxu0 0
  %567 = vmatpush1.bf16.msra.mxu0 0
  %568 = vmatprep.subr.bf16.mxu0 0
  %569 = vmatpush1.bf16.msra.mxu0 0
  %570 = vmatprep.subr.bf16.mxu0 0
  %571 = vmatpush1.bf16.msra.mxu0 0
  %572 = vmatprep.subr.bf16.mxu0 0
  %573 = vmatpush1.bf16.msra.mxu0 0
  %574 = vmatprep.subr.bf16.mxu0 0
  %575 = vmatpush1.bf16.msra.mxu0 0
  %576 = vmatprep.subr.bf16.mxu0 0
  %577 = vmatpush1.bf16.msra.mxu0 0
  %578 = vmatprep.subr.bf16.mxu0 0
  %579 = vmatpush1.bf16.msra.mxu0 0
  %580 = vmatprep.mubr.bf16.mxu0 0
  %581 = vmatmul.mubr.bf16.gmra.mrb[0].mxu0 %v543
  %v582 = vpop.f32.mrb[0].mxu0
  %v583 = vadd.f32 0.0, %v582
  %v584 = vpop.f32.mrb[0].mxu0
  %v585 = vpop.f32.mrb[0].mxu0
  %v586 = vadd.f32 0.0, %v585
  %v587 = vpop.f32.mrb[0].mxu0
  %588 = vmatprep.mubr.bf16.mxu0 0
  %589 = vmatmul.mubr.bf16.gmra.mrb[0].mxu0 %v546
  %v590 = vpop.f32.mrb[0].mxu0
  %v591 = vadd.f32 0.0, %v590
  %v592 = vpop.f32.mrb[0].mxu0
  %v593 = vpop.f32.mrb[0].mxu0
  %v594 = vadd.f32 0.0, %v593
  %v595 = vpop.f32.mrb[0].mxu0
  %596 = vdwg.mxu0
  %597 = vrot.lane.b32.xlu0 %v236, 112
  %v598 = vpop.permute.xlu0 %597
  %599 = vrot.lane.b32.xlu0 %v237, 112
  %v600 = vpop.permute.xlu0 %599
  %601 = vrot.lane.b32.xlu0 %v236, 80
  %v602 = vpop.permute.xlu0 %601
  %603 = vrot.lane.b32.xlu0 %v237, 80
  %v604 = vpop.permute.xlu0 %603
  %v606 = vsel %vm244, %v598, 0
  %v609 = vsel %vm244, %v600, 0
  %v612 = vsel %vm244, %v602, 0
  %v615 = vsel %vm244, %v604, 0
  %617 = vmatprep.subr.bf16.mxu0 0
  %618 = vmatpush1.bf16.xpose.msra.mxu0 %v612
  %619 = vmatprep.subr.bf16.mxu0 0
  %620 = vmatpush1.bf16.xpose.msra.mxu0 %v615
  %621 = vmatprep.subr.bf16.mxu0 0
  %622 = vmatpush1.bf16.xpose.msra.mxu0 0
  %623 = vmatprep.subr.bf16.mxu0 0
  %624 = vmatpush1.bf16.xpose.msra.mxu0 0
  %625 = vmatprep.subr.bf16.mxu0 0
  %626 = vmatpush1.bf16.xpose.msra.mxu0 0
  %627 = vmatprep.subr.bf16.mxu0 0
  %628 = vmatpush1.bf16.xpose.msra.mxu0 0
  %629 = vmatprep.subr.bf16.mxu0 0
  %630 = vmatpush1.bf16.xpose.msra.mxu0 0
  %631 = vmatprep.subr.bf16.mxu0 0
  %632 = vmatpush1.bf16.xpose.msra.mxu0 0
  %633 = vmatprep.subr.bf16.mxu0 0
  %634 = vmatpush1.bf16.xpose.msra.mxu0 0
  %635 = vmatprep.subr.bf16.mxu0 0
  %636 = vmatpush1.bf16.xpose.msra.mxu0 0
  %637 = vmatprep.subr.bf16.mxu0 0
  %638 = vmatpush1.bf16.xpose.msra.mxu0 0
  %639 = vmatprep.subr.bf16.mxu0 0
  %640 = vmatpush1.bf16.xpose.msra.mxu0 0
  %641 = vmatprep.subr.bf16.mxu0 0
  %642 = vmatpush1.bf16.xpose.msra.mxu0 0
  %643 = vmatprep.subr.bf16.mxu0 0
  %644 = vmatpush1.bf16.xpose.msra.mxu0 0
  %645 = vmatprep.subr.bf16.mxu0 0
  %646 = vmatpush1.bf16.xpose.msra.mxu0 0
  %647 = vmatprep.subr.bf16.mxu0 0
  %648 = vmatpush1.bf16.xpose.msra.mxu0 0
  %649 = vmatprep.mubr.bf16.mxu0 0
  %650 = vmatmul.mubr.bf16.gmra.mrb[0].mxu0 %v606
  %v651 = vpop.f32.mrb[0].mxu0
  %v652 = vadd.f32 0.0, %v651
  %v653 = vpop.f32.mrb[0].mxu0
  %v654 = vpop.f32.mrb[0].mxu0
  %v655 = vadd.f32 0.0, %v654
  %v656 = vpop.f32.mrb[0].mxu0
  %657 = vmatprep.mubr.bf16.mxu0 0
  %658 = vmatmul.mubr.bf16.gmra.mrb[0].mxu0 %v609
  %v659 = vpop.f32.mrb[0].mxu0
  %v660 = vadd.f32 0.0, %v659
  %v661 = vpop.f32.mrb[0].mxu0
  %v662 = vpop.f32.mrb[0].mxu0
  %v663 = vadd.f32 0.0, %v662
  %v664 = vpop.f32.mrb[0].mxu0
  %665 = vdwg.mxu0
  %v666 = vmul.f32 %v652, 0.35355338
  %v667 = vmul.f32 %v655, 0.35355338
  %v668 = vmul.f32 %v660, 0.35355338
  %v669 = vmul.f32 %v663, 0.35355338
  %v670 = vsel %vm158, %v666, -inf
  %671 = vmax.xlane.f32.xlu0 %v670
  %v672 = vpop.xlane.xlu0 %671
  %v673 = vsel %vm158, %v667, -inf
  %674 = vmax.xlane.f32.xlu0 %v673
  %v675 = vpop.xlane.xlu0 %674
  %v676 = vsel %vm158, %v668, -inf
  %677 = vmax.xlane.f32.xlu0 %v676
  %v678 = vpop.xlane.xlu0 %677
  %v679 = vsel %vm158, %v669, -inf
  %680 = vmax.xlane.f32.xlu0 %v679
  %v681 = vpop.xlane.xlu0 %680
  %v682 = vsub.f32 %v666, %v672
  %v683 = vsub.f32 %v667, %v675
  %v684 = vsub.f32 %v668, %v678
  %v685 = vsub.f32 %v669, %v681
  %v686 = vmul.f32 %v682, 1.442695
  %v687 = vpow.pop %v686
  %v688 = vmul.f32 %v683, 1.442695
  %v689 = vpow.pop %v688
  %v690 = vmul.f32 %v684, 1.442695
  %v691 = vpow.pop %v690
  %v692 = vmul.f32 %v685, 1.442695
  %v693 = vpow.pop %v692
  %v694 = vsel %vm158, %v687, 0.0
  %695 = vadd.xlane.f32.xlu0 %v694
  %v696 = vpop.xlane.xlu0 %695
  %v697 = vsel %vm158, %v689, 0.0
  %698 = vadd.xlane.f32.xlu0 %v697
  %v699 = vpop.xlane.xlu0 %698
  %v700 = vsel %vm158, %v691, 0.0
  %701 = vadd.xlane.f32.xlu0 %v700
  %v702 = vpop.xlane.xlu0 %701
  %v703 = vsel %vm158, %v693, 0.0
  %704 = vadd.xlane.f32.xlu0 %v703
  %v705 = vpop.xlane.xlu0 %704
  %v706 = vrcp.pop %v696
  %v707 = vmul.f32 %v687, %v706
  %v708 = vrcp.pop %v699
  %v709 = vmul.f32 %v689, %v708
  %v710 = vrcp.pop %v702
  %v711 = vmul.f32 %v691, %v710
  %v712 = vrcp.pop %v705
  %v713 = vmul.f32 %v693, %v712
  %v714 = vpack.c.bf16 %v709, %v707
  %v715 = vpack.c.bf16 %v713, %v711
  %716 = vrot.lane.b32.xlu0 %v236, 48
  %v717 = vpop.permute.xlu0 %716
  %718 = vrot.lane.b32.xlu0 %v237, 48
  %v719 = vpop.permute.xlu0 %718
  %v723 = vsel %vm158, %v714, 0
  %v726 = vsel %vm158, %v715, 0
  %728 = vmatprep.subr.bf16.mxu0 0
  %729 = vmatpush1.bf16.msra.mxu0 %v717
  %730 = vmatprep.subr.bf16.mxu0 0
  %731 = vmatpush1.bf16.msra.mxu0 %v719
  %732 = vmatprep.subr.bf16.mxu0 0
  %733 = vmatpush1.bf16.msra.mxu0 0
  %734 = vmatprep.subr.bf16.mxu0 0
  %735 = vmatpush1.bf16.msra.mxu0 0
  %736 = vmatprep.subr.bf16.mxu0 0
  %737 = vmatpush1.bf16.msra.mxu0 0
  %738 = vmatprep.subr.bf16.mxu0 0
  %739 = vmatpush1.bf16.msra.mxu0 0
  %740 = vmatprep.subr.bf16.mxu0 0
  %741 = vmatpush1.bf16.msra.mxu0 0
  %742 = vmatprep.subr.bf16.mxu0 0
  %743 = vmatpush1.bf16.msra.mxu0 0
  %744 = vmatprep.subr.bf16.mxu0 0
  %745 = vmatpush1.bf16.msra.mxu0 0
  %746 = vmatprep.subr.bf16.mxu0 0
  %747 = vmatpush1.bf16.msra.mxu0 0
  %748 = vmatprep.subr.bf16.mxu0 0
  %749 = vmatpush1.bf16.msra.mxu0 0
  %750 = vmatprep.subr.bf16.mxu0 0
  %751 = vmatpush1.bf16.msra.mxu0 0
  %752 = vmatprep.subr.bf16.mxu0 0
  %753 = vmatpush1.bf16.msra.mxu0 0
  %754 = vmatprep.subr.bf16.mxu0 0
  %755 = vmatpush1.bf16.msra.mxu0 0
  %756 = vmatprep.subr.bf16.mxu0 0
  %757 = vmatpush1.bf16.msra.mxu0 0
  %758 = vmatprep.subr.bf16.mxu0 0
  %759 = vmatpush1.bf16.msra.mxu0 0
  %760 = vmatprep.mubr.bf16.mxu0 0
  %761 = vmatmul.mubr.bf16.gmra.mrb[0].mxu0 %v723
  %v762 = vpop.f32.mrb[0].mxu0
  %v763 = vadd.f32 0.0, %v762
  %v764 = vpop.f32.mrb[0].mxu0
  %v765 = vpop.f32.mrb[0].mxu0
  %v766 = vadd.f32 0.0, %v765
  %v767 = vpop.f32.mrb[0].mxu0
  %768 = vmatprep.mubr.bf16.mxu0 0
  %769 = vmatmul.mubr.bf16.gmra.mrb[0].mxu0 %v726
  %v770 = vpop.f32.mrb[0].mxu0
  %v771 = vadd.f32 0.0, %v770
  %v772 = vpop.f32.mrb[0].mxu0
  %v773 = vpop.f32.mrb[0].mxu0
  %v774 = vadd.f32 0.0, %v773
  %v775 = vpop.f32.mrb[0].mxu0
  %776 = vdwg.mxu0
  %777 = vrot.lane.b32.xlu0 %v236, 104
  %v778 = vpop.permute.xlu0 %777
  %779 = vrot.lane.b32.xlu0 %v237, 104
  %v780 = vpop.permute.xlu0 %779
  %781 = vrot.lane.b32.xlu0 %v236, 72
  %v782 = vpop.permute.xlu0 %781
  %783 = vrot.lane.b32.xlu0 %v237, 72
  %v784 = vpop.permute.xlu0 %783
  %v786 = vsel %vm244, %v778, 0
  %v789 = vsel %vm244, %v780, 0
  %v792 = vsel %vm244, %v782, 0
  %v795 = vsel %vm244, %v784, 0
  %797 = vmatprep.subr.bf16.mxu0 0
  %798 = vmatpush1.bf16.xpose.msra.mxu0 %v792
  %799 = vmatprep.subr.bf16.mxu0 0
  %800 = vmatpush1.bf16.xpose.msra.mxu0 %v795
  %801 = vmatprep.subr.bf16.mxu0 0
  %802 = vmatpush1.bf16.xpose.msra.mxu0 0
  %803 = vmatprep.subr.bf16.mxu0 0
  %804 = vmatpush1.bf16.xpose.msra.mxu0 0
  %805 = vmatprep.subr.bf16.mxu0 0
  %806 = vmatpush1.bf16.xpose.msra.mxu0 0
  %807 = vmatprep.subr.bf16.mxu0 0
  %808 = vmatpush1.bf16.xpose.msra.mxu0 0
  %809 = vmatprep.subr.bf16.mxu0 0
  %810 = vmatpush1.bf16.xpose.msra.mxu0 0
  %811 = vmatprep.subr.bf16.mxu0 0
  %812 = vmatpush1.bf16.xpose.msra.mxu0 0
  %813 = vmatprep.subr.bf16.mxu0 0
  %814 = vmatpush1.bf16.xpose.msra.mxu0 0
  %815 = vmatprep.subr.bf16.mxu0 0
  %816 = vmatpush1.bf16.xpose.msra.mxu0 0
  %817 = vmatprep.subr.bf16.mxu0 0
  %818 = vmatpush1.bf16.xpose.msra.mxu0 0
  %819 = vmatprep.subr.bf16.mxu0 0
  %820 = vmatpush1.bf16.xpose.msra.mxu0 0
  %821 = vmatprep.subr.bf16.mxu0 0
  %822 = vmatpush1.bf16.xpose.msra.mxu0 0
  %823 = vmatprep.subr.bf16.mxu0 0
  %824 = vmatpush1.bf16.xpose.msra.mxu0 0
  %825 = vmatprep.subr.bf16.mxu0 0
  %826 = vmatpush1.bf16.xpose.msra.mxu0 0
  %827 = vmatprep.subr.bf16.mxu0 0
  %828 = vmatpush1.bf16.xpose.msra.mxu0 0
  %829 = vmatprep.mubr.bf16.mxu0 0
  %830 = vmatmul.mubr.bf16.gmra.mrb[0].mxu0 %v786
  %v831 = vpop.f32.mrb[0].mxu0
  %v832 = vadd.f32 0.0, %v831
  %v833 = vpop.f32.mrb[0].mxu0
  %v834 = vpop.f32.mrb[0].mxu0
  %v835 = vadd.f32 0.0, %v834
  %v836 = vpop.f32.mrb[0].mxu0
  %837 = vmatprep.mubr.bf16.mxu0 0
  %838 = vmatmul.mubr.bf16.gmra.mrb[0].mxu0 %v789
  %v839 = vpop.f32.mrb[0].mxu0
  %v840 = vadd.f32 0.0, %v839
  %v841 = vpop.f32.mrb[0].mxu0
  %v842 = vpop.f32.mrb[0].mxu0
  %v843 = vadd.f32 0.0, %v842
  %v844 = vpop.f32.mrb[0].mxu0
  %845 = vdwg.mxu0
  %v846 = vmul.f32 %v832, 0.35355338
  %v847 = vmul.f32 %v835, 0.35355338
  %v848 = vmul.f32 %v840, 0.35355338
  %v849 = vmul.f32 %v843, 0.35355338
  %v850 = vsel %vm158, %v846, -inf
  %851 = vmax.xlane.f32.xlu0 %v850
  %v852 = vpop.xlane.xlu0 %851
  %v853 = vsel %vm158, %v847, -inf
  %854 = vmax.xlane.f32.xlu0 %v853
  %v855 = vpop.xlane.xlu0 %854
  %v856 = vsel %vm158, %v848, -inf
  %857 = vmax.xlane.f32.xlu0 %v856
  %v858 = vpop.xlane.xlu0 %857
  %v859 = vsel %vm158, %v849, -inf
  %860 = vmax.xlane.f32.xlu0 %v859
  %v861 = vpop.xlane.xlu0 %860
  %v862 = vsub.f32 %v846, %v852
  %v863 = vsub.f32 %v847, %v855
  %v864 = vsub.f32 %v848, %v858
  %v865 = vsub.f32 %v849, %v861
  %v866 = vmul.f32 %v862, 1.442695
  %v867 = vpow.pop %v866
  %v868 = vmul.f32 %v863, 1.442695
  %v869 = vpow.pop %v868
  %v870 = vmul.f32 %v864, 1.442695
  %v871 = vpow.pop %v870
  %v872 = vmul.f32 %v865, 1.442695
  %v873 = vpow.pop %v872
  %v874 = vsel %vm158, %v867, 0.0
  %875 = vadd.xlane.f32.xlu0 %v874
  %v876 = vpop.xlane.xlu0 %875
  %v877 = vsel %vm158, %v869, 0.0
  %878 = vadd.xlane.f32.xlu0 %v877
  %v879 = vpop.xlane.xlu0 %878
  %v880 = vsel %vm158, %v871, 0.0
  %881 = vadd.xlane.f32.xlu0 %v880
  %v882 = vpop.xlane.xlu0 %881
  %v883 = vsel %vm158, %v873, 0.0
  %884 = vadd.xlane.f32.xlu0 %v883
  %v885 = vpop.xlane.xlu0 %884
  %v886 = vrcp.pop %v876
  %v887 = vmul.f32 %v867, %v886
  %v888 = vrcp.pop %v879
  %v889 = vmul.f32 %v869, %v888
  %v890 = vrcp.pop %v882
  %v891 = vmul.f32 %v871, %v890
  %v892 = vrcp.pop %v885
  %v893 = vmul.f32 %v873, %v892
  %v894 = vpack.c.bf16 %v889, %v887
  %v895 = vpack.c.bf16 %v893, %v891
  %896 = vrot.lane.b32.xlu0 %v236, 40
  %v897 = vpop.permute.xlu0 %896
  %898 = vrot.lane.b32.xlu0 %v237, 40
  %v899 = vpop.permute.xlu0 %898
  %v903 = vsel %vm158, %v894, 0
  %v906 = vsel %vm158, %v895, 0
  %908 = vmatprep.subr.bf16.mxu0 0
  %909 = vmatpush1.bf16.msra.mxu0 %v897
  %910 = vmatprep.subr.bf16.mxu0 0
  %911 = vmatpush1.bf16.msra.mxu0 %v899
  %912 = vmatprep.subr.bf16.mxu0 0
  %913 = vmatpush1.bf16.msra.mxu0 0
  %914 = vmatprep.subr.bf16.mxu0 0
  %915 = vmatpush1.bf16.msra.mxu0 0
  %916 = vmatprep.subr.bf16.mxu0 0
  %917 = vmatpush1.bf16.msra.mxu0 0
  %918 = vmatprep.subr.bf16.mxu0 0
  %919 = vmatpush1.bf16.msra.mxu0 0
  %920 = vmatprep.subr.bf16.mxu0 0
  %921 = vmatpush1.bf16.msra.mxu0 0
  %922 = vmatprep.subr.bf16.mxu0 0
  %923 = vmatpush1.bf16.msra.mxu0 0
  %924 = vmatprep.subr.bf16.mxu0 0
  %925 = vmatpush1.bf16.msra.mxu0 0
  %926 = vmatprep.subr.bf16.mxu0 0
  %927 = vmatpush1.bf16.msra.mxu0 0
  %928 = vmatprep.subr.bf16.mxu0 0
  %929 = vmatpush1.bf16.msra.mxu0 0
  %930 = vmatprep.subr.bf16.mxu0 0
  %931 = vmatpush1.bf16.msra.mxu0 0
  %932 = vmatprep.subr.bf16.mxu0 0
  %933 = vmatpush1.bf16.msra.mxu0 0
  %934 = vmatprep.subr.bf16.mxu0 0
  %935 = vmatpush1.bf16.msra.mxu0 0
  %936 = vmatprep.subr.bf16.mxu0 0
  %937 = vmatpush1.bf16.msra.mxu0 0
  %938 = vmatprep.subr.bf16.mxu0 0
  %939 = vmatpush1.bf16.msra.mxu0 0
  %940 = vmatprep.mubr.bf16.mxu0 0
  %941 = vmatmul.mubr.bf16.gmra.mrb[0].mxu0 %v903
  %v942 = vpop.f32.mrb[0].mxu0
  %v943 = vadd.f32 0.0, %v942
  %v944 = vpop.f32.mrb[0].mxu0
  %v945 = vpop.f32.mrb[0].mxu0
  %v946 = vadd.f32 0.0, %v945
  %v947 = vpop.f32.mrb[0].mxu0
  %948 = vmatprep.mubr.bf16.mxu0 0
  %949 = vmatmul.mubr.bf16.gmra.mrb[0].mxu0 %v906
  %v950 = vpop.f32.mrb[0].mxu0
  %v951 = vadd.f32 0.0, %v950
  %v952 = vpop.f32.mrb[0].mxu0
  %v953 = vpop.f32.mrb[0].mxu0
  %v954 = vadd.f32 0.0, %v953
  %v955 = vpop.f32.mrb[0].mxu0
  %956 = vdwg.mxu0
  %961 = vrot.lane.b32.xlu0 %v583, 8
  %v962 = vpop.permute.xlu0 %961
  %963 = vrot.lane.b32.xlu0 %v586, 8
  %v964 = vpop.permute.xlu0 %963
  %965 = vrot.lane.b32.xlu0 %v591, 8
  %v966 = vpop.permute.xlu0 %965
  %967 = vrot.lane.b32.xlu0 %v594, 8
  %v968 = vpop.permute.xlu0 %967
  %977 = vrot.lane.b32.xlu0 %v763, 16
  %v978 = vpop.permute.xlu0 %977
  %979 = vrot.lane.b32.xlu0 %v766, 16
  %v980 = vpop.permute.xlu0 %979
  %981 = vrot.lane.b32.xlu0 %v771, 16
  %v982 = vpop.permute.xlu0 %981
  %983 = vrot.lane.b32.xlu0 %v774, 16
  %v984 = vpop.permute.xlu0 %983
  %993 = vrot.lane.b32.xlu0 %v943, 24
  %v994 = vpop.permute.xlu0 %993
  %995 = vrot.lane.b32.xlu0 %v946, 24
  %v996 = vpop.permute.xlu0 %995
  %997 = vrot.lane.b32.xlu0 %v951, 24
  %v998 = vpop.permute.xlu0 %997
  %999 = vrot.lane.b32.xlu0 %v954, 24
  %v1000 = vpop.permute.xlu0 %999
  %v1005 = vsel %vm244, %v403, %v962
  %v1006 = vsel %vm244, %v406, %v964
  %v1007 = vsel %vm244, %v411, %v966
  %v1008 = vsel %vm244, %v414, %v968
  %vm1009 = vcmask 130048
  %v1010 = vsel %vm1009, %v1005, %v978
  %v1011 = vsel %vm1009, %v1006, %v980
  %v1012 = vsel %vm1009, %v1007, %v982
  %v1013 = vsel %vm1009, %v1008, %v984
  %vm1014 = vcmask 195584
  %v1015 = vsel %vm1014, %v1010, %v994
  %v1016 = vsel %vm1014, %v1011, %v996
  %v1017 = vsel %vm1014, %v1012, %v998
  %v1018 = vsel %vm1014, %v1013, %v1000
  %v1019 = vpack.c.bf16 %v225, %v222
  %v1020 = vpack.c.bf16 %v233, %v230
  %1023 = vrot.lane.b32.xlu0 %v1019, 96
  %v1024 = vpop.permute.xlu0 %1023
  %1025 = vrot.lane.b32.xlu0 %v1020, 96
  %v1026 = vpop.permute.xlu0 %1025
  %v1028 = vsel %vm244, %v1019, 0
  %v1031 = vsel %vm244, %v1020, 0
  %v1034 = vsel %vm244, %v1024, 0
  %v1037 = vsel %vm244, %v1026, 0
  %1039 = vmatprep.subr.bf16.mxu0 0
  %1040 = vmatpush1.bf16.xpose.msra.mxu0 %v1034
  %1041 = vmatprep.subr.bf16.mxu0 0
  %1042 = vmatpush1.bf16.xpose.msra.mxu0 %v1037
  %1043 = vmatprep.subr.bf16.mxu0 0
  %1044 = vmatpush1.bf16.xpose.msra.mxu0 0
  %1045 = vmatprep.subr.bf16.mxu0 0
  %1046 = vmatpush1.bf16.xpose.msra.mxu0 0
  %1047 = vmatprep.subr.bf16.mxu0 0
  %1048 = vmatpush1.bf16.xpose.msra.mxu0 0
  %1049 = vmatprep.subr.bf16.mxu0 0
  %1050 = vmatpush1.bf16.xpose.msra.mxu0 0
  %1051 = vmatprep.subr.bf16.mxu0 0
  %1052 = vmatpush1.bf16.xpose.msra.mxu0 0
  %1053 = vmatprep.subr.bf16.mxu0 0
  %1054 = vmatpush1.bf16.xpose.msra.mxu0 0
  %1055 = vmatprep.subr.bf16.mxu0 0
  %1056 = vmatpush1.bf16.xpose.msra.mxu0 0
  %1057 = vmatprep.subr.bf16.mxu0 0
  %1058 = vmatpush1.bf16.xpose.msra.mxu0 0
  %1059 = vmatprep.subr.bf16.mxu0 0
  %1060 = vmatpush1.bf16.xpose.msra.mxu0 0
  %1061 = vmatprep.subr.bf16.mxu0 0
  %1062 = vmatpush1.bf16.xpose.msra.mxu0 0
  %1063 = vmatprep.subr.bf16.mxu0 0
  %1064 = vmatpush1.bf16.xpose.msra.mxu0 0
  %1065 = vmatprep.subr.bf16.mxu0 0
  %1066 = vmatpush1.bf16.xpose.msra.mxu0 0
  %1067 = vmatprep.subr.bf16.mxu0 0
  %1068 = vmatpush1.bf16.xpose.msra.mxu0 0
  %1069 = vmatprep.subr.bf16.mxu0 0
  %1070 = vmatpush1.bf16.xpose.msra.mxu0 0
  %1071 = vmatprep.mubr.bf16.mxu0 0
  %1072 = vmatmul.mubr.bf16.gmra.mrb[0].mxu0 %v1028
  %v1073 = vpop.f32.mrb[0].mxu0
  %v1074 = vadd.f32 0.0, %v1073
  %v1075 = vpop.f32.mrb[0].mxu0
  %v1076 = vpop.f32.mrb[0].mxu0
  %v1077 = vadd.f32 0.0, %v1076
  %v1078 = vpop.f32.mrb[0].mxu0
  %1079 = vmatprep.mubr.bf16.mxu0 0
  %1080 = vmatmul.mubr.bf16.gmra.mrb[0].mxu0 %v1031
  %v1081 = vpop.f32.mrb[0].mxu0
  %v1082 = vadd.f32 0.0, %v1081
  %v1083 = vpop.f32.mrb[0].mxu0
  %v1084 = vpop.f32.mrb[0].mxu0
  %v1085 = vadd.f32 0.0, %v1084
  %v1086 = vpop.f32.mrb[0].mxu0
  %1087 = vdwg.mxu0
  %v1088 = vmul.f32 %v1074, 0.35355338
  %v1089 = vmul.f32 %v1077, 0.35355338
  %v1090 = vmul.f32 %v1082, 0.35355338
  %v1091 = vmul.f32 %v1085, 0.35355338
  %v1092 = vsel %vm158, %v1088, -inf
  %1093 = vmax.xlane.f32.xlu0 %v1092
  %v1094 = vpop.xlane.xlu0 %1093
  %v1095 = vsel %vm158, %v1089, -inf
  %1096 = vmax.xlane.f32.xlu0 %v1095
  %v1097 = vpop.xlane.xlu0 %1096
  %v1098 = vsel %vm158, %v1090, -inf
  %1099 = vmax.xlane.f32.xlu0 %v1098
  %v1100 = vpop.xlane.xlu0 %1099
  %v1101 = vsel %vm158, %v1091, -inf
  %1102 = vmax.xlane.f32.xlu0 %v1101
  %v1103 = vpop.xlane.xlu0 %1102
  %v1104 = vsub.f32 %v1088, %v1094
  %v1105 = vsub.f32 %v1089, %v1097
  %v1106 = vsub.f32 %v1090, %v1100
  %v1107 = vsub.f32 %v1091, %v1103
  %v1108 = vmul.f32 %v1104, 1.442695
  %v1109 = vpow.pop %v1108
  %v1110 = vmul.f32 %v1105, 1.442695
  %v1111 = vpow.pop %v1110
  %v1112 = vmul.f32 %v1106, 1.442695
  %v1113 = vpow.pop %v1112
  %v1114 = vmul.f32 %v1107, 1.442695
  %v1115 = vpow.pop %v1114
  %v1116 = vsel %vm158, %v1109, 0.0
  %1117 = vadd.xlane.f32.xlu0 %v1116
  %v1118 = vpop.xlane.xlu0 %1117
  %v1119 = vsel %vm158, %v1111, 0.0
  %1120 = vadd.xlane.f32.xlu0 %v1119
  %v1121 = vpop.xlane.xlu0 %1120
  %v1122 = vsel %vm158, %v1113, 0.0
  %1123 = vadd.xlane.f32.xlu0 %v1122
  %v1124 = vpop.xlane.xlu0 %1123
  %v1125 = vsel %vm158, %v1115, 0.0
  %1126 = vadd.xlane.f32.xlu0 %v1125
  %v1127 = vpop.xlane.xlu0 %1126
  %v1128 = vrcp.pop %v1118
  %v1129 = vmul.f32 %v1109, %v1128
  %v1130 = vrcp.pop %v1121
  %v1131 = vmul.f32 %v1111, %v1130
  %v1132 = vrcp.pop %v1124
  %v1133 = vmul.f32 %v1113, %v1132
  %v1134 = vrcp.pop %v1127
  %v1135 = vmul.f32 %v1115, %v1134
  %v1136 = vpack.c.bf16 %v1131, %v1129
  %v1137 = vpack.c.bf16 %v1135, %v1133
  %1138 = vrot.lane.b32.xlu0 %v1019, 64
  %v1139 = vpop.permute.xlu0 %1138
  %1140 = vrot.lane.b32.xlu0 %v1020, 64
  %v1141 = vpop.permute.xlu0 %1140
  %v1145 = vsel %vm158, %v1136, 0
  %v1148 = vsel %vm158, %v1137, 0
  %1150 = vmatprep.subr.bf16.mxu0 0
  %1151 = vmatpush1.bf16.msra.mxu0 %v1139
  %1152 = vmatprep.subr.bf16.mxu0 0
  %1153 = vmatpush1.bf16.msra.mxu0 %v1141
  %1154 = vmatprep.subr.bf16.mxu0 0
  %1155 = vmatpush1.bf16.msra.mxu0 0
  %1156 = vmatprep.subr.bf16.mxu0 0
  %1157 = vmatpush1.bf16.msra.mxu0 0
  %1158 = vmatprep.subr.bf16.mxu0 0
  %1159 = vmatpush1.bf16.msra.mxu0 0
  %1160 = vmatprep.subr.bf16.mxu0 0
  %1161 = vmatpush1.bf16.msra.mxu0 0
  %1162 = vmatprep.subr.bf16.mxu0 0
  %1163 = vmatpush1.bf16.msra.mxu0 0
  %1164 = vmatprep.subr.bf16.mxu0 0
  %1165 = vmatpush1.bf16.msra.mxu0 0
  %1166 = vmatprep.subr.bf16.mxu0 0
  %1167 = vmatpush1.bf16.msra.mxu0 0
  %1168 = vmatprep.subr.bf16.mxu0 0
  %1169 = vmatpush1.bf16.msra.mxu0 0
  %1170 = vmatprep.subr.bf16.mxu0 0
  %1171 = vmatpush1.bf16.msra.mxu0 0
  %1172 = vmatprep.subr.bf16.mxu0 0
  %1173 = vmatpush1.bf16.msra.mxu0 0
  %1174 = vmatprep.subr.bf16.mxu0 0
  %1175 = vmatpush1.bf16.msra.mxu0 0
  %1176 = vmatprep.subr.bf16.mxu0 0
  %1177 = vmatpush1.bf16.msra.mxu0 0
  %1178 = vmatprep.subr.bf16.mxu0 0
  %1179 = vmatpush1.bf16.msra.mxu0 0
  %1180 = vmatprep.subr.bf16.mxu0 0
  %1181 = vmatpush1.bf16.msra.mxu0 0
  %1182 = vmatprep.mubr.bf16.mxu0 0
  %1183 = vmatmul.mubr.bf16.gmra.mrb[0].mxu0 %v1145
  %v1184 = vpop.f32.mrb[0].mxu0
  %v1185 = vadd.f32 0.0, %v1184
  %v1186 = vpop.f32.mrb[0].mxu0
  %v1187 = vpop.f32.mrb[0].mxu0
  %v1188 = vadd.f32 0.0, %v1187
  %v1189 = vpop.f32.mrb[0].mxu0
  %1190 = vmatprep.mubr.bf16.mxu0 0
  %1191 = vmatmul.mubr.bf16.gmra.mrb[0].mxu0 %v1148
  %v1192 = vpop.f32.mrb[0].mxu0
  %v1193 = vadd.f32 0.0, %v1192
  %v1194 = vpop.f32.mrb[0].mxu0
  %v1195 = vpop.f32.mrb[0].mxu0
  %v1196 = vadd.f32 0.0, %v1195
  %v1197 = vpop.f32.mrb[0].mxu0
  %1198 = vdwg.mxu0
  %1199 = vrot.lane.b32.xlu0 %v1019, 120
  %v1200 = vpop.permute.xlu0 %1199
  %1201 = vrot.lane.b32.xlu0 %v1020, 120
  %v1202 = vpop.permute.xlu0 %1201
  %1203 = vrot.lane.b32.xlu0 %v1019, 88
  %v1204 = vpop.permute.xlu0 %1203
  %1205 = vrot.lane.b32.xlu0 %v1020, 88
  %v1206 = vpop.permute.xlu0 %1205
  %v1208 = vsel %vm244, %v1200, 0
  %v1211 = vsel %vm244, %v1202, 0
  %v1214 = vsel %vm244, %v1204, 0
  %v1217 = vsel %vm244, %v1206, 0
  %1219 = vmatprep.subr.bf16.mxu0 0
  %1220 = vmatpush1.bf16.xpose.msra.mxu0 %v1214
  %1221 = vmatprep.subr.bf16.mxu0 0
  %1222 = vmatpush1.bf16.xpose.msra.mxu0 %v1217
  %1223 = vmatprep.subr.bf16.mxu0 0
  %1224 = vmatpush1.bf16.xpose.msra.mxu0 0
  %1225 = vmatprep.subr.bf16.mxu0 0
  %1226 = vmatpush1.bf16.xpose.msra.mxu0 0
  %1227 = vmatprep.subr.bf16.mxu0 0
  %1228 = vmatpush1.bf16.xpose.msra.mxu0 0
  %1229 = vmatprep.subr.bf16.mxu0 0
  %1230 = vmatpush1.bf16.xpose.msra.mxu0 0
  %1231 = vmatprep.subr.bf16.mxu0 0
  %1232 = vmatpush1.bf16.xpose.msra.mxu0 0
  %1233 = vmatprep.subr.bf16.mxu0 0
  %1234 = vmatpush1.bf16.xpose.msra.mxu0 0
  %1235 = vmatprep.subr.bf16.mxu0 0
  %1236 = vmatpush1.bf16.xpose.msra.mxu0 0
  %1237 = vmatprep.subr.bf16.mxu0 0
  %1238 = vmatpush1.bf16.xpose.msra.mxu0 0
  %1239 = vmatprep.subr.bf16.mxu0 0
  %1240 = vmatpush1.bf16.xpose.msra.mxu0 0
  %1241 = vmatprep.subr.bf16.mxu0 0
  %1242 = vmatpush1.bf16.xpose.msra.mxu0 0
  %1243 = vmatprep.subr.bf16.mxu0 0
  %1244 = vmatpush1.bf16.xpose.msra.mxu0 0
  %1245 = vmatprep.subr.bf16.mxu0 0
  %1246 = vmatpush1.bf16.xpose.msra.mxu0 0
  %1247 = vmatprep.subr.bf16.mxu0 0
  %1248 = vmatpush1.bf16.xpose.msra.mxu0 0
  %1249 = vmatprep.subr.bf16.mxu0 0
  %1250 = vmatpush1.bf16.xpose.msra.mxu0 0
  %1251 = vmatprep.mubr.bf16.mxu0 0
  %1252 = vmatmul.mubr.bf16.gmra.mrb[0].mxu0 %v1208
  %v1253 = vpop.f32.mrb[0].mxu0
  %v1254 = vadd.f32 0.0, %v1253
  %v1255 = vpop.f32.mrb[0].mxu0
  %v1256 = vpop.f32.mrb[0].mxu0
  %v1257 = vadd.f32 0.0, %v1256
  %v1258 = vpop.f32.mrb[0].mxu0
  %1259 = vmatprep.mubr.bf16.mxu0 0
  %1260 = vmatmul.mubr.bf16.gmra.mrb[0].mxu0 %v1211
  %v1261 = vpop.f32.mrb[0].mxu0
  %v1262 = vadd.f32 0.0, %v1261
  %v1263 = vpop.f32.mrb[0].mxu0
  %v1264 = vpop.f32.mrb[0].mxu0
  %v1265 = vadd.f32 0.0, %v1264
  %v1266 = vpop.f32.mrb[0].mxu0
  %1267 = vdwg.mxu0
  %v1268 = vmul.f32 %v1254, 0.35355338
  %v1269 = vmul.f32 %v1257, 0.35355338
  %v1270 = vmul.f32 %v1262, 0.35355338
  %v1271 = vmul.f32 %v1265, 0.35355338
  %v1272 = vsel %vm158, %v1268, -inf
  %1273 = vmax.xlane.f32.xlu0 %v1272
  %v1274 = vpop.xlane.xlu0 %1273
  %v1275 = vsel %vm158, %v1269, -inf
  %1276 = vmax.xlane.f32.xlu0 %v1275
  %v1277 = vpop.xlane.xlu0 %1276
  %v1278 = vsel %vm158, %v1270, -inf
  %1279 = vmax.xlane.f32.xlu0 %v1278
  %v1280 = vpop.xlane.xlu0 %1279
  %v1281 = vsel %vm158, %v1271, -inf
  %1282 = vmax.xlane.f32.xlu0 %v1281
  %v1283 = vpop.xlane.xlu0 %1282
  %v1284 = vsub.f32 %v1268, %v1274
  %v1285 = vsub.f32 %v1269, %v1277
  %v1286 = vsub.f32 %v1270, %v1280
  %v1287 = vsub.f32 %v1271, %v1283
  %v1288 = vmul.f32 %v1284, 1.442695
  %v1289 = vpow.pop %v1288
  %v1290 = vmul.f32 %v1285, 1.442695
  %v1291 = vpow.pop %v1290
  %v1292 = vmul.f32 %v1286, 1.442695
  %v1293 = vpow.pop %v1292
  %v1294 = vmul.f32 %v1287, 1.442695
  %v1295 = vpow.pop %v1294
  %v1296 = vsel %vm158, %v1289, 0.0
  %1297 = vadd.xlane.f32.xlu0 %v1296
  %v1298 = vpop.xlane.xlu0 %1297
  %v1299 = vsel %vm158, %v1291, 0.0
  %1300 = vadd.xlane.f32.xlu0 %v1299
  %v1301 = vpop.xlane.xlu0 %1300
  %v1302 = vsel %vm158, %v1293, 0.0
  %1303 = vadd.xlane.f32.xlu0 %v1302
  %v1304 = vpop.xlane.xlu0 %1303
  %v1305 = vsel %vm158, %v1295, 0.0
  %1306 = vadd.xlane.f32.xlu0 %v1305
  %v1307 = vpop.xlane.xlu0 %1306
  %v1308 = vrcp.pop %v1298
  %v1309 = vmul.f32 %v1289, %v1308
  %v1310 = vrcp.pop %v1301
  %v1311 = vmul.f32 %v1291, %v1310
  %v1312 = vrcp.pop %v1304
  %v1313 = vmul.f32 %v1293, %v1312
  %v1314 = vrcp.pop %v1307
  %v1315 = vmul.f32 %v1295, %v1314
  %v1316 = vpack.c.bf16 %v1311, %v1309
  %v1317 = vpack.c.bf16 %v1315, %v1313
  %1318 = vrot.lane.b32.xlu0 %v1019, 56
  %v1319 = vpop.permute.xlu0 %1318
  %1320 = vrot.lane.b32.xlu0 %v1020, 56
  %v1321 = vpop.permute.xlu0 %1320
  %v1325 = vsel %vm158, %v1316, 0
  %v1328 = vsel %vm158, %v1317, 0
  %1330 = vmatprep.subr.bf16.mxu0 0
  %1331 = vmatpush1.bf16.msra.mxu0 %v1319
  %1332 = vmatprep.subr.bf16.mxu0 0
  %1333 = vmatpush1.bf16.msra.mxu0 %v1321
  %1334 = vmatprep.subr.bf16.mxu0 0
  %1335 = vmatpush1.bf16.msra.mxu0 0
  %1336 = vmatprep.subr.bf16.mxu0 0
  %1337 = vmatpush1.bf16.msra.mxu0 0
  %1338 = vmatprep.subr.bf16.mxu0 0
  %1339 = vmatpush1.bf16.msra.mxu0 0
  %1340 = vmatprep.subr.bf16.mxu0 0
  %1341 = vmatpush1.bf16.msra.mxu0 0
  %1342 = vmatprep.subr.bf16.mxu0 0
  %1343 = vmatpush1.bf16.msra.mxu0 0
  %1344 = vmatprep.subr.bf16.mxu0 0
  %1345 = vmatpush1.bf16.msra.mxu0 0
  %1346 = vmatprep.subr.bf16.mxu0 0
  %1347 = vmatpush1.bf16.msra.mxu0 0
  %1348 = vmatprep.subr.bf16.mxu0 0
  %1349 = vmatpush1.bf16.msra.mxu0 0
  %1350 = vmatprep.subr.bf16.mxu0 0
  %1351 = vmatpush1.bf16.msra.mxu0 0
  %1352 = vmatprep.subr.bf16.mxu0 0
  %1353 = vmatpush1.bf16.msra.mxu0 0
  %1354 = vmatprep.subr.bf16.mxu0 0
  %1355 = vmatpush1.bf16.msra.mxu0 0
  %1356 = vmatprep.subr.bf16.mxu0 0
  %1357 = vmatpush1.bf16.msra.mxu0 0
  %1358 = vmatprep.subr.bf16.mxu0 0
  %1359 = vmatpush1.bf16.msra.mxu0 0
  %1360 = vmatprep.subr.bf16.mxu0 0
  %1361 = vmatpush1.bf16.msra.mxu0 0
  %1362 = vmatprep.mubr.bf16.mxu0 0
  %1363 = vmatmul.mubr.bf16.gmra.mrb[0].mxu0 %v1325
  %v1364 = vpop.f32.mrb[0].mxu0
  %v1365 = vadd.f32 0.0, %v1364
  %v1366 = vpop.f32.mrb[0].mxu0
  %v1367 = vpop.f32.mrb[0].mxu0
  %v1368 = vadd.f32 0.0, %v1367
  %v1369 = vpop.f32.mrb[0].mxu0
  %1370 = vmatprep.mubr.bf16.mxu0 0
  %1371 = vmatmul.mubr.bf16.gmra.mrb[0].mxu0 %v1328
  %v1372 = vpop.f32.mrb[0].mxu0
  %v1373 = vadd.f32 0.0, %v1372
  %v1374 = vpop.f32.mrb[0].mxu0
  %v1375 = vpop.f32.mrb[0].mxu0
  %v1376 = vadd.f32 0.0, %v1375
  %v1377 = vpop.f32.mrb[0].mxu0
  %1378 = vdwg.mxu0
  %1379 = vrot.lane.b32.xlu0 %v1019, 112
  %v1380 = vpop.permute.xlu0 %1379
  %1381 = vrot.lane.b32.xlu0 %v1020, 112
  %v1382 = vpop.permute.xlu0 %1381
  %1383 = vrot.lane.b32.xlu0 %v1019, 80
  %v1384 = vpop.permute.xlu0 %1383
  %1385 = vrot.lane.b32.xlu0 %v1020, 80
  %v1386 = vpop.permute.xlu0 %1385
  %v1388 = vsel %vm244, %v1380, 0
  %v1391 = vsel %vm244, %v1382, 0
  %v1394 = vsel %vm244, %v1384, 0
  %v1397 = vsel %vm244, %v1386, 0
  %1399 = vmatprep.subr.bf16.mxu0 0
  %1400 = vmatpush1.bf16.xpose.msra.mxu0 %v1394
  %1401 = vmatprep.subr.bf16.mxu0 0
  %1402 = vmatpush1.bf16.xpose.msra.mxu0 %v1397
  %1403 = vmatprep.subr.bf16.mxu0 0
  %1404 = vmatpush1.bf16.xpose.msra.mxu0 0
  %1405 = vmatprep.subr.bf16.mxu0 0
  %1406 = vmatpush1.bf16.xpose.msra.mxu0 0
  %1407 = vmatprep.subr.bf16.mxu0 0
  %1408 = vmatpush1.bf16.xpose.msra.mxu0 0
  %1409 = vmatprep.subr.bf16.mxu0 0
  %1410 = vmatpush1.bf16.xpose.msra.mxu0 0
  %1411 = vmatprep.subr.bf16.mxu0 0
  %1412 = vmatpush1.bf16.xpose.msra.mxu0 0
  %1413 = vmatprep.subr.bf16.mxu0 0
  %1414 = vmatpush1.bf16.xpose.msra.mxu0 0
  %1415 = vmatprep.subr.bf16.mxu0 0
  %1416 = vmatpush1.bf16.xpose.msra.mxu0 0
  %1417 = vmatprep.subr.bf16.mxu0 0
  %1418 = vmatpush1.bf16.xpose.msra.mxu0 0
  %1419 = vmatprep.subr.bf16.mxu0 0
  %1420 = vmatpush1.bf16.xpose.msra.mxu0 0
  %1421 = vmatprep.subr.bf16.mxu0 0
  %1422 = vmatpush1.bf16.xpose.msra.mxu0 0
  %1423 = vmatprep.subr.bf16.mxu0 0
  %1424 = vmatpush1.bf16.xpose.msra.mxu0 0
  %1425 = vmatprep.subr.bf16.mxu0 0
  %1426 = vmatpush1.bf16.xpose.msra.mxu0 0
  %1427 = vmatprep.subr.bf16.mxu0 0
  %1428 = vmatpush1.bf16.xpose.msra.mxu0 0
  %1429 = vmatprep.subr.bf16.mxu0 0
  %1430 = vmatpush1.bf16.xpose.msra.mxu0 0
  %1431 = vmatprep.mubr.bf16.mxu0 0
  %1432 = vmatmul.mubr.bf16.gmra.mrb[0].mxu0 %v1388
  %v1433 = vpop.f32.mrb[0].mxu0
  %v1434 = vadd.f32 0.0, %v1433
  %v1435 = vpop.f32.mrb[0].mxu0
  %v1436 = vpop.f32.mrb[0].mxu0
  %v1437 = vadd.f32 0.0, %v1436
  %v1438 = vpop.f32.mrb[0].mxu0
  %1439 = vmatprep.mubr.bf16.mxu0 0
  %1440 = vmatmul.mubr.bf16.gmra.mrb[0].mxu0 %v1391
  %v1441 = vpop.f32.mrb[0].mxu0
  %v1442 = vadd.f32 0.0, %v1441
  %v1443 = vpop.f32.mrb[0].mxu0
  %v1444 = vpop.f32.mrb[0].mxu0
  %v1445 = vadd.f32 0.0, %v1444
  %v1446 = vpop.f32.mrb[0].mxu0
  %1447 = vdwg.mxu0
  %v1448 = vmul.f32 %v1434, 0.35355338
  %v1449 = vmul.f32 %v1437, 0.35355338
  %v1450 = vmul.f32 %v1442, 0.35355338
  %v1451 = vmul.f32 %v1445, 0.35355338
  %v1452 = vsel %vm158, %v1448, -inf
  %1453 = vmax.xlane.f32.xlu0 %v1452
  %v1454 = vpop.xlane.xlu0 %1453
  %v1455 = vsel %vm158, %v1449, -inf
  %1456 = vmax.xlane.f32.xlu0 %v1455
  %v1457 = vpop.xlane.xlu0 %1456
  %v1458 = vsel %vm158, %v1450, -inf
  %1459 = vmax.xlane.f32.xlu0 %v1458
  %v1460 = vpop.xlane.xlu0 %1459
  %v1461 = vsel %vm158, %v1451, -inf
  %1462 = vmax.xlane.f32.xlu0 %v1461
  %v1463 = vpop.xlane.xlu0 %1462
  %v1464 = vsub.f32 %v1448, %v1454
  %v1465 = vsub.f32 %v1449, %v1457
  %v1466 = vsub.f32 %v1450, %v1460
  %v1467 = vsub.f32 %v1451, %v1463
  %v1468 = vmul.f32 %v1464, 1.442695
  %v1469 = vpow.pop %v1468
  %v1470 = vmul.f32 %v1465, 1.442695
  %v1471 = vpow.pop %v1470
  %v1472 = vmul.f32 %v1466, 1.442695
  %v1473 = vpow.pop %v1472
  %v1474 = vmul.f32 %v1467, 1.442695
  %v1475 = vpow.pop %v1474
  %v1476 = vsel %vm158, %v1469, 0.0
  %1477 = vadd.xlane.f32.xlu0 %v1476
  %v1478 = vpop.xlane.xlu0 %1477
  %v1479 = vsel %vm158, %v1471, 0.0
  %1480 = vadd.xlane.f32.xlu0 %v1479
  %v1481 = vpop.xlane.xlu0 %1480
  %v1482 = vsel %vm158, %v1473, 0.0
  %1483 = vadd.xlane.f32.xlu0 %v1482
  %v1484 = vpop.xlane.xlu0 %1483
  %v1485 = vsel %vm158, %v1475, 0.0
  %1486 = vadd.xlane.f32.xlu0 %v1485
  %v1487 = vpop.xlane.xlu0 %1486
  %v1488 = vrcp.pop %v1478
  %v1489 = vmul.f32 %v1469, %v1488
  %v1490 = vrcp.pop %v1481
  %v1491 = vmul.f32 %v1471, %v1490
  %v1492 = vrcp.pop %v1484
  %v1493 = vmul.f32 %v1473, %v1492
  %v1494 = vrcp.pop %v1487
  %v1495 = vmul.f32 %v1475, %v1494
  %v1496 = vpack.c.bf16 %v1491, %v1489
  %v1497 = vpack.c.bf16 %v1495, %v1493
  %1498 = vrot.lane.b32.xlu0 %v1019, 48
  %v1499 = vpop.permute.xlu0 %1498
  %1500 = vrot.lane.b32.xlu0 %v1020, 48
  %v1501 = vpop.permute.xlu0 %1500
  %v1505 = vsel %vm158, %v1496, 0
  %v1508 = vsel %vm158, %v1497, 0
  %1510 = vmatprep.subr.bf16.mxu0 0
  %1511 = vmatpush1.bf16.msra.mxu0 %v1499
  %1512 = vmatprep.subr.bf16.mxu0 0
  %1513 = vmatpush1.bf16.msra.mxu0 %v1501
  %1514 = vmatprep.subr.bf16.mxu0 0
  %1515 = vmatpush1.bf16.msra.mxu0 0
  %1516 = vmatprep.subr.bf16.mxu0 0
  %1517 = vmatpush1.bf16.msra.mxu0 0
  %1518 = vmatprep.subr.bf16.mxu0 0
  %1519 = vmatpush1.bf16.msra.mxu0 0
  %1520 = vmatprep.subr.bf16.mxu0 0
  %1521 = vmatpush1.bf16.msra.mxu0 0
  %1522 = vmatprep.subr.bf16.mxu0 0
  %1523 = vmatpush1.bf16.msra.mxu0 0
  %1524 = vmatprep.subr.bf16.mxu0 0
  %1525 = vmatpush1.bf16.msra.mxu0 0
  %1526 = vmatprep.subr.bf16.mxu0 0
  %1527 = vmatpush1.bf16.msra.mxu0 0
  %1528 = vmatprep.subr.bf16.mxu0 0
  %1529 = vmatpush1.bf16.msra.mxu0 0
  %1530 = vmatprep.subr.bf16.mxu0 0
  %1531 = vmatpush1.bf16.msra.mxu0 0
  %1532 = vmatprep.subr.bf16.mxu0 0
  %1533 = vmatpush1.bf16.msra.mxu0 0
  %1534 = vmatprep.subr.bf16.mxu0 0
  %1535 = vmatpush1.bf16.msra.mxu0 0
  %1536 = vmatprep.subr.bf16.mxu0 0
  %1537 = vmatpush1.bf16.msra.mxu0 0
  %1538 = vmatprep.subr.bf16.mxu0 0
  %1539 = vmatpush1.bf16.msra.mxu0 0
  %1540 = vmatprep.subr.bf16.mxu0 0
  %1541 = vmatpush1.bf16.msra.mxu0 0
  %1542 = vmatprep.mubr.bf16.mxu0 0
  %1543 = vmatmul.mubr.bf16.gmra.mrb[0].mxu0 %v1505
  %v1544 = vpop.f32.mrb[0].mxu0
  %v1545 = vadd.f32 0.0, %v1544
  %v1546 = vpop.f32.mrb[0].mxu0
  %v1547 = vpop.f32.mrb[0].mxu0
  %v1548 = vadd.f32 0.0, %v1547
  %v1549 = vpop.f32.mrb[0].mxu0
  %1550 = vmatprep.mubr.bf16.mxu0 0
  %1551 = vmatmul.mubr.bf16.gmra.mrb[0].mxu0 %v1508
  %v1552 = vpop.f32.mrb[0].mxu0
  %v1553 = vadd.f32 0.0, %v1552
  %v1554 = vpop.f32.mrb[0].mxu0
  %v1555 = vpop.f32.mrb[0].mxu0
  %v1556 = vadd.f32 0.0, %v1555
  %v1557 = vpop.f32.mrb[0].mxu0
  %1558 = vdwg.mxu0
  %1559 = vrot.lane.b32.xlu0 %v1019, 104
  %v1560 = vpop.permute.xlu0 %1559
  %1561 = vrot.lane.b32.xlu0 %v1020, 104
  %v1562 = vpop.permute.xlu0 %1561
  %1563 = vrot.lane.b32.xlu0 %v1019, 72
  %v1564 = vpop.permute.xlu0 %1563
  %1565 = vrot.lane.b32.xlu0 %v1020, 72
  %v1566 = vpop.permute.xlu0 %1565
  %v1568 = vsel %vm244, %v1560, 0
  %v1571 = vsel %vm244, %v1562, 0
  %v1574 = vsel %vm244, %v1564, 0
  %v1577 = vsel %vm244, %v1566, 0
  %1579 = vmatprep.subr.bf16.mxu0 0
  %1580 = vmatpush1.bf16.xpose.msra.mxu0 %v1574
  %1581 = vmatprep.subr.bf16.mxu0 0
  %1582 = vmatpush1.bf16.xpose.msra.mxu0 %v1577
  %1583 = vmatprep.subr.bf16.mxu0 0
  %1584 = vmatpush1.bf16.xpose.msra.mxu0 0
  %1585 = vmatprep.subr.bf16.mxu0 0
  %1586 = vmatpush1.bf16.xpose.msra.mxu0 0
  %1587 = vmatprep.subr.bf16.mxu0 0
  %1588 = vmatpush1.bf16.xpose.msra.mxu0 0
  %1589 = vmatprep.subr.bf16.mxu0 0
  %1590 = vmatpush1.bf16.xpose.msra.mxu0 0
  %1591 = vmatprep.subr.bf16.mxu0 0
  %1592 = vmatpush1.bf16.xpose.msra.mxu0 0
  %1593 = vmatprep.subr.bf16.mxu0 0
  %1594 = vmatpush1.bf16.xpose.msra.mxu0 0
  %1595 = vmatprep.subr.bf16.mxu0 0
  %1596 = vmatpush1.bf16.xpose.msra.mxu0 0
  %1597 = vmatprep.subr.bf16.mxu0 0
  %1598 = vmatpush1.bf16.xpose.msra.mxu0 0
  %1599 = vmatprep.subr.bf16.mxu0 0
  %1600 = vmatpush1.bf16.xpose.msra.mxu0 0
  %1601 = vmatprep.subr.bf16.mxu0 0
  %1602 = vmatpush1.bf16.xpose.msra.mxu0 0
  %1603 = vmatprep.subr.bf16.mxu0 0
  %1604 = vmatpush1.bf16.xpose.msra.mxu0 0
  %1605 = vmatprep.subr.bf16.mxu0 0
  %1606 = vmatpush1.bf16.xpose.msra.mxu0 0
  %1607 = vmatprep.subr.bf16.mxu0 0
  %1608 = vmatpush1.bf16.xpose.msra.mxu0 0
  %1609 = vmatprep.subr.bf16.mxu0 0
  %1610 = vmatpush1.bf16.xpose.msra.mxu0 0
  %1611 = vmatprep.mubr.bf16.mxu0 0
  %1612 = vmatmul.mubr.bf16.gmra.mrb[0].mxu0 %v1568
  %v1613 = vpop.f32.mrb[0].mxu0
  %v1614 = vadd.f32 0.0, %v1613
  %v1615 = vpop.f32.mrb[0].mxu0
  %v1616 = vpop.f32.mrb[0].mxu0
  %v1617 = vadd.f32 0.0, %v1616
  %v1618 = vpop.f32.mrb[0].mxu0
  %1619 = vmatprep.mubr.bf16.mxu0 0
  %1620 = vmatmul.mubr.bf16.gmra.mrb[0].mxu0 %v1571
  %v1621 = vpop.f32.mrb[0].mxu0
  %v1622 = vadd.f32 0.0, %v1621
  %v1623 = vpop.f32.mrb[0].mxu0
  %v1624 = vpop.f32.mrb[0].mxu0
  %v1625 = vadd.f32 0.0, %v1624
  %v1626 = vpop.f32.mrb[0].mxu0
  %1627 = vdwg.mxu0
  %v1628 = vmul.f32 %v1614, 0.35355338
  %v1629 = vmul.f32 %v1617, 0.35355338
  %v1630 = vmul.f32 %v1622, 0.35355338
  %v1631 = vmul.f32 %v1625, 0.35355338
  %v1632 = vsel %vm158, %v1628, -inf
  %1633 = vmax.xlane.f32.xlu0 %v1632
  %v1634 = vpop.xlane.xlu0 %1633
  %v1635 = vsel %vm158, %v1629, -inf
  %1636 = vmax.xlane.f32.xlu0 %v1635
  %v1637 = vpop.xlane.xlu0 %1636
  %v1638 = vsel %vm158, %v1630, -inf
  %1639 = vmax.xlane.f32.xlu0 %v1638
  %v1640 = vpop.xlane.xlu0 %1639
  %v1641 = vsel %vm158, %v1631, -inf
  %1642 = vmax.xlane.f32.xlu0 %v1641
  %v1643 = vpop.xlane.xlu0 %1642
  %v1644 = vsub.f32 %v1628, %v1634
  %v1645 = vsub.f32 %v1629, %v1637
  %v1646 = vsub.f32 %v1630, %v1640
  %v1647 = vsub.f32 %v1631, %v1643
  %v1648 = vmul.f32 %v1644, 1.442695
  %v1649 = vpow.pop %v1648
  %v1650 = vmul.f32 %v1645, 1.442695
  %v1651 = vpow.pop %v1650
  %v1652 = vmul.f32 %v1646, 1.442695
  %v1653 = vpow.pop %v1652
  %v1654 = vmul.f32 %v1647, 1.442695
  %v1655 = vpow.pop %v1654
  %v1656 = vsel %vm158, %v1649, 0.0
  %1657 = vadd.xlane.f32.xlu0 %v1656
  %v1658 = vpop.xlane.xlu0 %1657
  %v1659 = vsel %vm158, %v1651, 0.0
  %1660 = vadd.xlane.f32.xlu0 %v1659
  %v1661 = vpop.xlane.xlu0 %1660
  %v1662 = vsel %vm158, %v1653, 0.0
  %1663 = vadd.xlane.f32.xlu0 %v1662
  %v1664 = vpop.xlane.xlu0 %1663
  %v1665 = vsel %vm158, %v1655, 0.0
  %1666 = vadd.xlane.f32.xlu0 %v1665
  %v1667 = vpop.xlane.xlu0 %1666
  %v1668 = vrcp.pop %v1658
  %v1669 = vmul.f32 %v1649, %v1668
  %v1670 = vrcp.pop %v1661
  %v1671 = vmul.f32 %v1651, %v1670
  %v1672 = vrcp.pop %v1664
  %v1673 = vmul.f32 %v1653, %v1672
  %v1674 = vrcp.pop %v1667
  %v1675 = vmul.f32 %v1655, %v1674
  %v1676 = vpack.c.bf16 %v1671, %v1669
  %v1677 = vpack.c.bf16 %v1675, %v1673
  %1678 = vrot.lane.b32.xlu0 %v1019, 40
  %v1679 = vpop.permute.xlu0 %1678
  %1680 = vrot.lane.b32.xlu0 %v1020, 40
  %v1681 = vpop.permute.xlu0 %1680
  %v1685 = vsel %vm158, %v1676, 0
  %v1688 = vsel %vm158, %v1677, 0
  %1690 = vmatprep.subr.bf16.mxu0 0
  %1691 = vmatpush1.bf16.msra.mxu0 %v1679
  %1692 = vmatprep.subr.bf16.mxu0 0
  %1693 = vmatpush1.bf16.msra.mxu0 %v1681
  %1694 = vmatprep.subr.bf16.mxu0 0
  %1695 = vmatpush1.bf16.msra.mxu0 0
  %1696 = vmatprep.subr.bf16.mxu0 0
  %1697 = vmatpush1.bf16.msra.mxu0 0
  %1698 = vmatprep.subr.bf16.mxu0 0
  %1699 = vmatpush1.bf16.msra.mxu0 0
  %1700 = vmatprep.subr.bf16.mxu0 0
  %1701 = vmatpush1.bf16.msra.mxu0 0
  %1702 = vmatprep.subr.bf16.mxu0 0
  %1703 = vmatpush1.bf16.msra.mxu0 0
  %1704 = vmatprep.subr.bf16.mxu0 0
  %1705 = vmatpush1.bf16.msra.mxu0 0
  %1706 = vmatprep.subr.bf16.mxu0 0
  %1707 = vmatpush1.bf16.msra.mxu0 0
  %1708 = vmatprep.subr.bf16.mxu0 0
  %1709 = vmatpush1.bf16.msra.mxu0 0
  %1710 = vmatprep.subr.bf16.mxu0 0
  %1711 = vmatpush1.bf16.msra.mxu0 0
  %1712 = vmatprep.subr.bf16.mxu0 0
  %1713 = vmatpush1.bf16.msra.mxu0 0
  %1714 = vmatprep.subr.bf16.mxu0 0
  %1715 = vmatpush1.bf16.msra.mxu0 0
  %1716 = vmatprep.subr.bf16.mxu0 0
  %1717 = vmatpush1.bf16.msra.mxu0 0
  %1718 = vmatprep.subr.bf16.mxu0 0
  %1719 = vmatpush1.bf16.msra.mxu0 0
  %1720 = vmatprep.subr.bf16.mxu0 0
  %1721 = vmatpush1.bf16.msra.mxu0 0
  %1722 = vmatprep.mubr.bf16.mxu0 0
  %1723 = vmatmul.mubr.bf16.gmra.mrb[0].mxu0 %v1685
  %v1724 = vpop.f32.mrb[0].mxu0
  %v1725 = vadd.f32 0.0, %v1724
  %v1726 = vpop.f32.mrb[0].mxu0
  %v1727 = vpop.f32.mrb[0].mxu0
  %v1728 = vadd.f32 0.0, %v1727
  %v1729 = vpop.f32.mrb[0].mxu0
  %1730 = vmatprep.mubr.bf16.mxu0 0
  %1731 = vmatmul.mubr.bf16.gmra.mrb[0].mxu0 %v1688
  %v1732 = vpop.f32.mrb[0].mxu0
  %v1733 = vadd.f32 0.0, %v1732
  %v1734 = vpop.f32.mrb[0].mxu0
  %v1735 = vpop.f32.mrb[0].mxu0
  %v1736 = vadd.f32 0.0, %v1735
  %v1737 = vpop.f32.mrb[0].mxu0
  %1738 = vdwg.mxu0
  %1743 = vrot.lane.b32.xlu0 %v1365, 8
  %v1744 = vpop.permute.xlu0 %1743
  %1745 = vrot.lane.b32.xlu0 %v1368, 8
  %v1746 = vpop.permute.xlu0 %1745
  %1747 = vrot.lane.b32.xlu0 %v1373, 8
  %v1748 = vpop.permute.xlu0 %1747
  %1749 = vrot.lane.b32.xlu0 %v1376, 8
  %v1750 = vpop.permute.xlu0 %1749
  %1759 = vrot.lane.b32.xlu0 %v1545, 16
  %v1760 = vpop.permute.xlu0 %1759
  %1761 = vrot.lane.b32.xlu0 %v1548, 16
  %v1762 = vpop.permute.xlu0 %1761
  %1763 = vrot.lane.b32.xlu0 %v1553, 16
  %v1764 = vpop.permute.xlu0 %1763
  %1765 = vrot.lane.b32.xlu0 %v1556, 16
  %v1766 = vpop.permute.xlu0 %1765
  %1775 = vrot.lane.b32.xlu0 %v1725, 24
  %v1776 = vpop.permute.xlu0 %1775
  %1777 = vrot.lane.b32.xlu0 %v1728, 24
  %v1778 = vpop.permute.xlu0 %1777
  %1779 = vrot.lane.b32.xlu0 %v1733, 24
  %v1780 = vpop.permute.xlu0 %1779
  %1781 = vrot.lane.b32.xlu0 %v1736, 24
  %v1782 = vpop.permute.xlu0 %1781
  %v1787 = vsel %vm244, %v1185, %v1744
  %v1788 = vsel %vm244, %v1188, %v1746
  %v1789 = vsel %vm244, %v1193, %v1748
  %v1790 = vsel %vm244, %v1196, %v1750
  %v1791 = vsel %vm1009, %v1787, %v1760
  %v1792 = vsel %vm1009, %v1788, %v1762
  %v1793 = vsel %vm1009, %v1789, %v1764
  %v1794 = vsel %vm1009, %v1790, %v1766
  %v1795 = vsel %vm1014, %v1791, %v1776
  %v1796 = vsel %vm1014, %v1792, %v1778
  %v1797 = vsel %vm1014, %v1793, %v1780
  %v1798 = vsel %vm1014, %v1794, %v1782
  %v1799 = vpack.c.bf16 %v1016, %v1015
  %v1800 = vpack.c.bf16 %v1018, %v1017
  %v1801 = vpack.c.bf16 %v1796, %v1795
  %v1802 = vpack.c.bf16 %v1798, %v1797
  %v1803 = vpack.c.bf16 %v116, %v115
  %v1804 = vpack.c.bf16 %v118, %v117
  %v1806 = vlaneseq
  %v1807 = vshrl.u32 %v1806, 7
  %v1808 = vsub.s32 0, %v1807
  %v1809 = vrot.slane %v119, %v1808
  %v1812 = vsel %vm158, %v1799, 0
  %v1815 = vsel %vm158, %v1800, 0
  %v1818 = vsel %vm158, %v1801, 0
  %v1821 = vsel %vm158, %v1802, 0
  %1823 = vmatprep.subr.bf16.mxu0 0
  %1824 = vmatpush1.bf16.msra.mxu0 %v1803
  %1825 = vmatprep.subr.bf16.mxu0 0
  %1826 = vmatpush1.bf16.msra.mxu0 %v1804
  %1827 = vmatprep.subr.bf16.mxu0 0
  %1828 = vmatpush1.bf16.msra.mxu0 0
  %1829 = vmatprep.subr.bf16.mxu0 0
  %1830 = vmatpush1.bf16.msra.mxu0 0
  %1831 = vmatprep.subr.bf16.mxu0 0
  %1832 = vmatpush1.bf16.msra.mxu0 0
  %1833 = vmatprep.subr.bf16.mxu0 0
  %1834 = vmatpush1.bf16.msra.mxu0 0
  %1835 = vmatprep.subr.bf16.mxu0 0
  %1836 = vmatpush1.bf16.msra.mxu0 0
  %1837 = vmatprep.subr.bf16.mxu0 0
  %1838 = vmatpush1.bf16.msra.mxu0 0
  %1839 = vmatprep.subr.bf16.mxu0 0
  %1840 = vmatpush1.bf16.msra.mxu0 0
  %1841 = vmatprep.subr.bf16.mxu0 0
  %1842 = vmatpush1.bf16.msra.mxu0 0
  %1843 = vmatprep.subr.bf16.mxu0 0
  %1844 = vmatpush1.bf16.msra.mxu0 0
  %1845 = vmatprep.subr.bf16.mxu0 0
  %1846 = vmatpush1.bf16.msra.mxu0 0
  %1847 = vmatprep.subr.bf16.mxu0 0
  %1848 = vmatpush1.bf16.msra.mxu0 0
  %1849 = vmatprep.subr.bf16.mxu0 0
  %1850 = vmatpush1.bf16.msra.mxu0 0
  %1851 = vmatprep.subr.bf16.mxu0 0
  %1852 = vmatpush1.bf16.msra.mxu0 0
  %1853 = vmatprep.subr.bf16.mxu0 0
  %1854 = vmatpush1.bf16.msra.mxu0 0
  %1855 = vmatprep.mubr.bf16.mxu0 0
  %1856 = vmatmul.mubr.bf16.gmra.mrb[0].mxu0 %v1812
  %v1857 = vpop.f32.mrb[0].mxu0
  %v1858 = vadd.f32 %v1809, %v1857
  %v1859 = vpop.f32.mrb[0].mxu0
  %v1860 = vpop.f32.mrb[0].mxu0
  %v1861 = vadd.f32 %v1809, %v1860
  %v1862 = vpop.f32.mrb[0].mxu0
  %1863 = vmatprep.mubr.bf16.mxu0 0
  %1864 = vmatmul.mubr.bf16.gmra.mrb[0].mxu0 %v1815
  %v1865 = vpop.f32.mrb[0].mxu0
  %v1866 = vadd.f32 %v1809, %v1865
  %v1867 = vpop.f32.mrb[0].mxu0
  %v1868 = vpop.f32.mrb[0].mxu0
  %v1869 = vadd.f32 %v1809, %v1868
  %v1870 = vpop.f32.mrb[0].mxu0
  %1871 = vmatprep.mubr.bf16.mxu0 0
  %1872 = vmatmul.mubr.bf16.gmra.mrb[0].mxu0 %v1818
  %v1873 = vpop.f32.mrb[0].mxu0
  %v1874 = vadd.f32 %v1809, %v1873
  %v1875 = vpop.f32.mrb[0].mxu0
  %v1876 = vpop.f32.mrb[0].mxu0
  %v1877 = vadd.f32 %v1809, %v1876
  %v1878 = vpop.f32.mrb[0].mxu0
  %1879 = vmatprep.mubr.bf16.mxu0 0
  %1880 = vmatmul.mubr.bf16.gmra.mrb[0].mxu0 %v1821
  %v1881 = vpop.f32.mrb[0].mxu0
  %v1882 = vadd.f32 %v1809, %v1881
  %v1883 = vpop.f32.mrb[0].mxu0
  %v1884 = vpop.f32.mrb[0].mxu0
  %v1885 = vadd.f32 %v1809, %v1884
  %v1886 = vpop.f32.mrb[0].mxu0
  %1887 = vdwg.mxu0
  %v1888 = vadd.f32 %v102, %v1858
  %v1889 = vadd.f32 %v103, %v1861
  %v1890 = vadd.f32 %v104, %v1866
  %v1891 = vadd.f32 %v105, %v1869
  %v1892 = vadd.f32 %v106, %v1874
  %v1893 = vadd.f32 %v107, %v1877
  %v1894 = vadd.f32 %v108, %v1882
  %v1895 = vadd.f32 %v109, %v1885
  %v1896 = vsel %vm158, %v1888, 0.0
  %1897 = vadd.xlane.f32.xlu0 %v1896
  %v1898 = vpop.xlane.xlu0 %1897
  %v1899 = vsel %vm158, %v1889, 0.0
  %1900 = vadd.xlane.f32.xlu0 %v1899
  %v1901 = vpop.xlane.xlu0 %1900
  %v1902 = vsel %vm158, %v1890, 0.0
  %1903 = vadd.xlane.f32.xlu0 %v1902
  %v1904 = vpop.xlane.xlu0 %1903
  %v1905 = vsel %vm158, %v1891, 0.0
  %1906 = vadd.xlane.f32.xlu0 %v1905
  %v1907 = vpop.xlane.xlu0 %1906
  %v1908 = vsel %vm158, %v1892, 0.0
  %1909 = vadd.xlane.f32.xlu0 %v1908
  %v1910 = vpop.xlane.xlu0 %1909
  %v1911 = vsel %vm158, %v1893, 0.0
  %1912 = vadd.xlane.f32.xlu0 %v1911
  %v1913 = vpop.xlane.xlu0 %1912
  %v1914 = vsel %vm158, %v1894, 0.0
  %1915 = vadd.xlane.f32.xlu0 %v1914
  %v1916 = vpop.xlane.xlu0 %1915
  %v1917 = vsel %vm158, %v1895, 0.0
  %1918 = vadd.xlane.f32.xlu0 %v1917
  %v1919 = vpop.xlane.xlu0 %1918
  %v1920 = vrcp.pop 32.0
  %v1921 = vmul.f32 %v1898, %v1920
  %v1922 = vmul.f32 %v1901, %v1920
  %v1923 = vmul.f32 %v1904, %v1920
  %v1924 = vmul.f32 %v1907, %v1920
  %v1925 = vmul.f32 %v1910, %v1920
  %v1926 = vmul.f32 %v1913, %v1920
  %v1927 = vmul.f32 %v1916, %v1920
  %v1928 = vmul.f32 %v1919, %v1920
  %v1929 = vsub.f32 %v1888, %v1921
  %v1930 = vsub.f32 %v1889, %v1922
  %v1931 = vsub.f32 %v1890, %v1923
  %v1932 = vsub.f32 %v1891, %v1924
  %v1933 = vsub.f32 %v1892, %v1925
  %v1934 = vsub.f32 %v1893, %v1926
  %v1935 = vsub.f32 %v1894, %v1927
  %v1936 = vsub.f32 %v1895, %v1928
  %v1937 = vmul.f32 %v1929, %v1929
  %v1938 = vmul.f32 %v1930, %v1930
  %v1939 = vmul.f32 %v1931, %v1931
  %v1940 = vmul.f32 %v1932, %v1932
  %v1941 = vmul.f32 %v1933, %v1933
  %v1942 = vmul.f32 %v1934, %v1934
  %v1943 = vmul.f32 %v1935, %v1935
  %v1944 = vmul.f32 %v1936, %v1936
  %v1945 = vsel %vm158, %v1937, 0.0
  %1946 = vadd.xlane.f32.xlu0 %v1945
  %v1947 = vpop.xlane.xlu0 %1946
  %v1948 = vsel %vm158, %v1938, 0.0
  %1949 = vadd.xlane.f32.xlu0 %v1948
  %v1950 = vpop.xlane.xlu0 %1949
  %v1951 = vsel %vm158, %v1939, 0.0
  %1952 = vadd.xlane.f32.xlu0 %v1951
  %v1953 = vpop.xlane.xlu0 %1952
  %v1954 = vsel %vm158, %v1940, 0.0
  %1955 = vadd.xlane.f32.xlu0 %v1954
  %v1956 = vpop.xlane.xlu0 %1955
  %v1957 = vsel %vm158, %v1941, 0.0
  %1958 = vadd.xlane.f32.xlu0 %v1957
  %v1959 = vpop.xlane.xlu0 %1958
  %v1960 = vsel %vm158, %v1942, 0.0
  %1961 = vadd.xlane.f32.xlu0 %v1960
  %v1962 = vpop.xlane.xlu0 %1961
  %v1963 = vsel %vm158, %v1943, 0.0
  %1964 = vadd.xlane.f32.xlu0 %v1963
  %v1965 = vpop.xlane.xlu0 %1964
  %v1966 = vsel %vm158, %v1944, 0.0
  %1967 = vadd.xlane.f32.xlu0 %v1966
  %v1968 = vpop.xlane.xlu0 %1967
  %v1969 = vmul.f32 %v1947, %v1920
  %v1970 = vmul.f32 %v1950, %v1920
  %v1971 = vmul.f32 %v1953, %v1920
  %v1972 = vmul.f32 %v1956, %v1920
  %v1973 = vmul.f32 %v1959, %v1920
  %v1974 = vmul.f32 %v1962, %v1920
  %v1975 = vmul.f32 %v1965, %v1920
  %v1976 = vmul.f32 %v1968, %v1920
  %v1977 = vadd.f32 %v1969, 1e-05
  %v1978 = vadd.f32 %v1970, 1e-05
  %v1979 = vadd.f32 %v1971, 1e-05
  %v1980 = vadd.f32 %v1972, 1e-05
  %v1981 = vadd.f32 %v1973, 1e-05
  %v1982 = vadd.f32 %v1974, 1e-05
  %v1983 = vadd.f32 %v1975, 1e-05
  %v1984 = vadd.f32 %v1976, 1e-05
  %v1985 = vrsqrt.pop %v1977
  %v1986 = vrsqrt.pop %v1978
  %v1987 = vrsqrt.pop %v1979
  %v1988 = vrsqrt.pop %v1980
  %v1989 = vrsqrt.pop %v1981
  %v1990 = vrsqrt.pop %v1982
  %v1991 = vrsqrt.pop %v1983
  %v1992 = vrsqrt.pop %v1984
  %v1993 = vmul.f32 %v1929, %v1985
  %v1994 = vmul.f32 %v1930, %v1986
  %v1995 = vmul.f32 %v1931, %v1987
  %v1996 = vmul.f32 %v1932, %v1988
  %v1997 = vmul.f32 %v1933, %v1989
  %v1998 = vmul.f32 %v1934, %v1990
  %v1999 = vmul.f32 %v1935, %v1991
  %v2000 = vmul.f32 %v1936, %v1992
  %v2002 = vlaneseq
  %v2003 = vshrl.u32 %v2002, 7
  %v2004 = vsub.s32 0, %v2003
  %v2005 = vrot.slane %v142, %v2004
  %v2007 = vmul.f32 %v1993, %v2005
  %v2008 = vmul.f32 %v1994, %v2005
  %v2009 = vmul.f32 %v1995, %v2005
  %v2010 = vmul.f32 %v1996, %v2005
  %v2011 = vmul.f32 %v1997, %v2005
  %v2012 = vmul.f32 %v1998, %v2005
  %v2013 = vmul.f32 %v1999, %v2005
  %v2014 = vmul.f32 %v2000, %v2005
  %v2016 = vlaneseq
  %v2017 = vshrl.u32 %v2016, 7
  %v2018 = vsub.s32 0, %v2017
  %v2019 = vrot.slane %v143, %v2018
  %v2021 = vadd.f32 %v2007, %v2019
  %v2022 = vadd.f32 %v2008, %v2019
  %v2023 = vadd.f32 %v2009, %v2019
  %v2024 = vadd.f32 %v2010, %v2019
  %v2025 = vadd.f32 %v2011, %v2019
  %v2026 = vadd.f32 %v2012, %v2019
  %v2027 = vadd.f32 %v2013, %v2019
  %v2028 = vadd.f32 %v2014, %v2019
  %v2029 = vpack.c.bf16 %v2022, %v2021
  %v2030 = vpack.c.bf16 %v2024, %v2023
  %v2031 = vpack.c.bf16 %v2026, %v2025
  %v2032 = vpack.c.bf16 %v2028, %v2027
  %v2033 = vpack.c.bf16 %v121, %v120
  %v2034 = vpack.c.bf16 %v123, %v122
  %v2036 = vlaneseq
  %v2037 = vshrl.u32 %v2036, 7
  %v2038 = vsub.s32 0, %v2037
  %v2039 = vrot.slane %v124, %v2038
  %v2042 = vsel %vm158, %v2029, 0
  %v2045 = vsel %vm158, %v2030, 0
  %v2048 = vsel %vm158, %v2031, 0
  %v2051 = vsel %vm158, %v2032, 0
  %2053 = vmatprep.subr.bf16.mxu0 0
  %2054 = vmatpush1.bf16.msra.mxu0 %v2033
  %2055 = vmatprep.subr.bf16.mxu0 0
  %2056 = vmatpush1.bf16.msra.mxu0 %v2034
  %2057 = vmatprep.subr.bf16.mxu0 0
  %2058 = vmatpush1.bf16.msra.mxu0 0
  %2059 = vmatprep.subr.bf16.mxu0 0
  %2060 = vmatpush1.bf16.msra.mxu0 0
  %2061 = vmatprep.subr.bf16.mxu0 0
  %2062 = vmatpush1.bf16.msra.mxu0 0
  %2063 = vmatprep.subr.bf16.mxu0 0
  %2064 = vmatpush1.bf16.msra.mxu0 0
  %2065 = vmatprep.subr.bf16.mxu0 0
  %2066 = vmatpush1.bf16.msra.mxu0 0
  %2067 = vmatprep.subr.bf16.mxu0 0
  %2068 = vmatpush1.bf16.msra.mxu0 0
  %2069 = vmatprep.subr.bf16.mxu0 0
  %2070 = vmatpush1.bf16.msra.mxu0 0
  %2071 = vmatprep.subr.bf16.mxu0 0
  %2072 = vmatpush1.bf16.msra.mxu0 0
  %2073 = vmatprep.subr.bf16.mxu0 0
  %2074 = vmatpush1.bf16.msra.mxu0 0
  %2075 = vmatprep.subr.bf16.mxu0 0
  %2076 = vmatpush1.bf16.msra.mxu0 0
  %2077 = vmatprep.subr.bf16.mxu0 0
  %2078 = vmatpush1.bf16.msra.mxu0 0
  %2079 = vmatprep.subr.bf16.mxu0 0
  %2080 = vmatpush1.bf16.msra.mxu0 0
  %2081 = vmatprep.subr.bf16.mxu0 0
  %2082 = vmatpush1.bf16.msra.mxu0 0
  %2083 = vmatprep.subr.bf16.mxu0 0
  %2084 = vmatpush1.bf16.msra.mxu0 0
  %2085 = vmatprep.mubr.bf16.mxu0 0
  %2086 = vmatmul.mubr.bf16.gmra.mrb[0].mxu0 %v2042
  %v2087 = vpop.f32.mrb[0].mxu0
  %v2088 = vadd.f32 %v2039, %v2087
  %v2089 = vpop.f32.mrb[0].mxu0
  %v2090 = vpop.f32.mrb[0].mxu0
  %v2091 = vadd.f32 %v2039, %v2090
  %v2092 = vpop.f32.mrb[0].mxu0
  %2093 = vmatprep.mubr.bf16.mxu0 0
  %2094 = vmatmul.mubr.bf16.gmra.mrb[0].mxu0 %v2045
  %v2095 = vpop.f32.mrb[0].mxu0
  %v2096 = vadd.f32 %v2039, %v2095
  %v2097 = vpop.f32.mrb[0].mxu0
  %v2098 = vpop.f32.mrb[0].mxu0
  %v2099 = vadd.f32 %v2039, %v2098
  %v2100 = vpop.f32.mrb[0].mxu0
  %2101 = vmatprep.mubr.bf16.mxu0 0
  %2102 = vmatmul.mubr.bf16.gmra.mrb[0].mxu0 %v2048
  %v2103 = vpop.f32.mrb[0].mxu0
  %v2104 = vadd.f32 %v2039, %v2103
  %v2105 = vpop.f32.mrb[0].mxu0
  %v2106 = vpop.f32.mrb[0].mxu0
  %v2107 = vadd.f32 %v2039, %v2106
  %v2108 = vpop.f32.mrb[0].mxu0
  %2109 = vmatprep.mubr.bf16.mxu0 0
  %2110 = vmatmul.mubr.bf16.gmra.mrb[0].mxu0 %v2051
  %v2111 = vpop.f32.mrb[0].mxu0
  %v2112 = vadd.f32 %v2039, %v2111
  %v2113 = vpop.f32.mrb[0].mxu0
  %v2114 = vpop.f32.mrb[0].mxu0
  %v2115 = vadd.f32 %v2039, %v2114
  %v2116 = vpop.f32.mrb[0].mxu0
  %2117 = vdwg.mxu0
  %v2118 = vmax.f32 %v2088, 0.0
  %v2119 = vmax.f32 %v2091, 0.0
  %v2120 = vmax.f32 %v2096, 0.0
  %v2121 = vmax.f32 %v2099, 0.0
  %v2122 = vmax.f32 %v2104, 0.0
  %v2123 = vmax.f32 %v2107, 0.0
  %v2124 = vmax.f32 %v2112, 0.0
  %v2125 = vmax.f32 %v2115, 0.0
  %v2126 = vpack.c.bf16 %v2119, %v2118
  %v2127 = vpack.c.bf16 %v2121, %v2120
  %v2128 = vpack.c.bf16 %v2123, %v2122
  %v2129 = vpack.c.bf16 %v2125, %v2124
  %v2130 = vpack.c.bf16 %v126, %v125
  %v2131 = vpack.c.bf16 %v128, %v127
  %v2132 = vpack.c.bf16 %v130, %v129
  %v2133 = vpack.c.bf16 %v132, %v131
  %v2134 = vpack.c.bf16 %v134, %v133
  %v2135 = vpack.c.bf16 %v136, %v135
  %v2136 = vpack.c.bf16 %v138, %v137
  %v2137 = vpack.c.bf16 %v140, %v139
  %v2139 = vlaneseq
  %v2140 = vshrl.u32 %v2139, 7
  %v2141 = vsub.s32 0, %v2140
  %v2142 = vrot.slane %v141, %v2141
  %2144 = vmatprep.subr.bf16.mxu0 0
  %2145 = vmatpush1.bf16.msra.mxu0 %v2130
  %2146 = vmatprep.subr.bf16.mxu0 0
  %2147 = vmatpush1.bf16.msra.mxu0 %v2131
  %2148 = vmatprep.subr.bf16.mxu0 0
  %2149 = vmatpush1.bf16.msra.mxu0 %v2132
  %2150 = vmatprep.subr.bf16.mxu0 0
  %2151 = vmatpush1.bf16.msra.mxu0 %v2133
  %2152 = vmatprep.subr.bf16.mxu0 0
  %2153 = vmatpush1.bf16.msra.mxu0 %v2134
  %2154 = vmatprep.subr.bf16.mxu0 0
  %2155 = vmatpush1.bf16.msra.mxu0 %v2135
  %2156 = vmatprep.subr.bf16.mxu0 0
  %2157 = vmatpush1.bf16.msra.mxu0 %v2136
  %2158 = vmatprep.subr.bf16.mxu0 0
  %2159 = vmatpush1.bf16.msra.mxu0 %v2137
  %2160 = vmatprep.subr.bf16.mxu0 0
  %2161 = vmatpush1.bf16.msra.mxu0 0
  %2162 = vmatprep.subr.bf16.mxu0 0
  %2163 = vmatpush1.bf16.msra.mxu0 0
  %2164 = vmatprep.subr.bf16.mxu0 0
  %2165 = vmatpush1.bf16.msra.mxu0 0
  %2166 = vmatprep.subr.bf16.mxu0 0
  %2167 = vmatpush1.bf16.msra.mxu0 0
  %2168 = vmatprep.subr.bf16.mxu0 0
  %2169 = vmatpush1.bf16.msra.mxu0 0
  %2170 = vmatprep.subr.bf16.mxu0 0
  %2171 = vmatpush1.bf16.msra.mxu0 0
  %2172 = vmatprep.subr.bf16.mxu0 0
  %2173 = vmatpush1.bf16.msra.mxu0 0
  %2174 = vmatprep.subr.bf16.mxu0 0
  %2175 = vmatpush1.bf16.msra.mxu0 0
  %2176 = vmatprep.mubr.bf16.mxu0 0
  %2177 = vmatmul.mubr.bf16.gmra.mrb[0].mxu0 %v2126
  %v2178 = vpop.f32.mrb[0].mxu0
  %v2179 = vadd.f32 %v2142, %v2178
  %v2180 = vpop.f32.mrb[0].mxu0
  %v2181 = vpop.f32.mrb[0].mxu0
  %v2182 = vadd.f32 %v2142, %v2181
  %v2183 = vpop.f32.mrb[0].mxu0
  %2184 = vmatprep.mubr.bf16.mxu0 0
  %2185 = vmatmul.mubr.bf16.gmra.mrb[0].mxu0 %v2127
  %v2186 = vpop.f32.mrb[0].mxu0
  %v2187 = vadd.f32 %v2142, %v2186
  %v2188 = vpop.f32.mrb[0].mxu0
  %v2189 = vpop.f32.mrb[0].mxu0
  %v2190 = vadd.f32 %v2142, %v2189
  %v2191 = vpop.f32.mrb[0].mxu0
  %2192 = vmatprep.mubr.bf16.mxu0 0
  %2193 = vmatmul.mubr.bf16.gmra.mrb[0].mxu0 %v2128
  %v2194 = vpop.f32.mrb[0].mxu0
  %v2195 = vadd.f32 %v2142, %v2194
  %v2196 = vpop.f32.mrb[0].mxu0
  %v2197 = vpop.f32.mrb[0].mxu0
  %v2198 = vadd.f32 %v2142, %v2197
  %v2199 = vpop.f32.mrb[0].mxu0
  %2200 = vmatprep.mubr.bf16.mxu0 0
  %2201 = vmatmul.mubr.bf16.gmra.mrb[0].mxu0 %v2129
  %v2202 = vpop.f32.mrb[0].mxu0
  %v2203 = vadd.f32 %v2142, %v2202
  %v2204 = vpop.f32.mrb[0].mxu0
  %v2205 = vpop.f32.mrb[0].mxu0
  %v2206 = vadd.f32 %v2142, %v2205
  %v2207 = vpop.f32.mrb[0].mxu0
  %2208 = vdwg.mxu0
  %v2209 = vadd.f32 %v2021, %v2179
  %v2210 = vadd.f32 %v2022, %v2182
  %v2211 = vadd.f32 %v2023, %v2187
  %v2212 = vadd.f32 %v2024, %v2190
  %v2213 = vadd.f32 %v2025, %v2195
  %v2214 = vadd.f32 %v2026, %v2198
  %v2215 = vadd.f32 %v2027, %v2203
  %v2216 = vadd.f32 %v2028, %v2206
  %v2217 = vsel %vm158, %v2209, 0.0
  %2218 = vadd.xlane.f32.xlu0 %v2217
  %v2219 = vpop.xlane.xlu0 %2218
  %v2220 = vsel %vm158, %v2210, 0.0
  %2221 = vadd.xlane.f32.xlu0 %v2220
  %v2222 = vpop.xlane.xlu0 %2221
  %v2223 = vsel %vm158, %v2211, 0.0
  %2224 = vadd.xlane.f32.xlu0 %v2223
  %v2225 = vpop.xlane.xlu0 %2224
  %v2226 = vsel %vm158, %v2212, 0.0
  %2227 = vadd.xlane.f32.xlu0 %v2226
  %v2228 = vpop.xlane.xlu0 %2227
  %v2229 = vsel %vm158, %v2213, 0.0
  %2230 = vadd.xlane.f32.xlu0 %v2229
  %v2231 = vpop.xlane.xlu0 %2230
  %v2232 = vsel %vm158, %v2214, 0.0
  %2233 = vadd.xlane.f32.xlu0 %v2232
  %v2234 = vpop.xlane.xlu0 %2233
  %v2235 = vsel %vm158, %v2215, 0.0
  %2236 = vadd.xlane.f32.xlu0 %v2235
  %v2237 = vpop.xlane.xlu0 %2236
  %v2238 = vsel %vm158, %v2216, 0.0
  %2239 = vadd.xlane.f32.xlu0 %v2238
  %v2240 = vpop.xlane.xlu0 %2239
  %v2241 = vmul.f32 %v2219, %v1920
  %v2242 = vmul.f32 %v2222, %v1920
  %v2243 = vmul.f32 %v2225, %v1920
  %v2244 = vmul.f32 %v2228, %v1920
  %v2245 = vmul.f32 %v2231, %v1920
  %v2246 = vmul.f32 %v2234, %v1920
  %v2247 = vmul.f32 %v2237, %v1920
  %v2248 = vmul.f32 %v2240, %v1920
  %v2249 = vsub.f32 %v2209, %v2241
  %v2250 = vsub.f32 %v2210, %v2242
  %v2251 = vsub.f32 %v2211, %v2243
  %v2252 = vsub.f32 %v2212, %v2244
  %v2253 = vsub.f32 %v2213, %v2245
  %v2254 = vsub.f32 %v2214, %v2246
  %v2255 = vsub.f32 %v2215, %v2247
  %v2256 = vsub.f32 %v2216, %v2248
  %v2257 = vmul.f32 %v2249, %v2249
  %v2258 = vmul.f32 %v2250, %v2250
  %v2259 = vmul.f32 %v2251, %v2251
  %v2260 = vmul.f32 %v2252, %v2252
  %v2261 = vmul.f32 %v2253, %v2253
  %v2262 = vmul.f32 %v2254, %v2254
  %v2263 = vmul.f32 %v2255, %v2255
  %v2264 = vmul.f32 %v2256, %v2256
  %v2265 = vsel %vm158, %v2257, 0.0
  %2266 = vadd.xlane.f32.xlu0 %v2265
  %v2267 = vpop.xlane.xlu0 %2266
  %v2268 = vsel %vm158, %v2258, 0.0
  %2269 = vadd.xlane.f32.xlu0 %v2268
  %v2270 = vpop.xlane.xlu0 %2269
  %v2271 = vsel %vm158, %v2259, 0.0
  %2272 = vadd.xlane.f32.xlu0 %v2271
  %v2273 = vpop.xlane.xlu0 %2272
  %v2274 = vsel %vm158, %v2260, 0.0
  %2275 = vadd.xlane.f32.xlu0 %v2274
  %v2276 = vpop.xlane.xlu0 %2275
  %v2277 = vsel %vm158, %v2261, 0.0
  %2278 = vadd.xlane.f32.xlu0 %v2277
  %v2279 = vpop.xlane.xlu0 %2278
  %v2280 = vsel %vm158, %v2262, 0.0
  %2281 = vadd.xlane.f32.xlu0 %v2280
  %v2282 = vpop.xlane.xlu0 %2281
  %v2283 = vsel %vm158, %v2263, 0.0
  %2284 = vadd.xlane.f32.xlu0 %v2283
  %v2285 = vpop.xlane.xlu0 %2284
  %v2286 = vsel %vm158, %v2264, 0.0
  %2287 = vadd.xlane.f32.xlu0 %v2286
  %v2288 = vpop.xlane.xlu0 %2287
  %v2289 = vmul.f32 %v2267, %v1920
  %v2290 = vmul.f32 %v2270, %v1920
  %v2291 = vmul.f32 %v2273, %v1920
  %v2292 = vmul.f32 %v2276, %v1920
  %v2293 = vmul.f32 %v2279, %v1920
  %v2294 = vmul.f32 %v2282, %v1920
  %v2295 = vmul.f32 %v2285, %v1920
  %v2296 = vmul.f32 %v2288, %v1920
  %v2297 = vadd.f32 %v2289, 1e-05
  %v2298 = vadd.f32 %v2290, 1e-05
  %v2299 = vadd.f32 %v2291, 1e-05
  %v2300 = vadd.f32 %v2292, 1e-05
  %v2301 = vadd.f32 %v2293, 1e-05
  %v2302 = vadd.f32 %v2294, 1e-05
  %v2303 = vadd.f32 %v2295, 1e-05
  %v2304 = vadd.f32 %v2296, 1e-05
  %v2305 = vrsqrt.pop %v2297
  %v2306 = vrsqrt.pop %v2298
  %v2307 = vrsqrt.pop %v2299
  %v2308 = vrsqrt.pop %v2300
  %v2309 = vrsqrt.pop %v2301
  %v2310 = vrsqrt.pop %v2302
  %v2311 = vrsqrt.pop %v2303
  %v2312 = vrsqrt.pop %v2304
  %v2313 = vmul.f32 %v2249, %v2305
  %v2314 = vmul.f32 %v2250, %v2306
  %v2315 = vmul.f32 %v2251, %v2307
  %v2316 = vmul.f32 %v2252, %v2308
  %v2317 = vmul.f32 %v2253, %v2309
  %v2318 = vmul.f32 %v2254, %v2310
  %v2319 = vmul.f32 %v2255, %v2311
  %v2320 = vmul.f32 %v2256, %v2312
  %v2322 = vlaneseq
  %v2323 = vshrl.u32 %v2322, 7
  %v2324 = vsub.s32 0, %v2323
  %v2325 = vrot.slane %v144, %v2324
  %v2327 = vmul.f32 %v2313, %v2325
  %v2328 = vmul.f32 %v2314, %v2325
  %v2329 = vmul.f32 %v2315, %v2325
  %v2330 = vmul.f32 %v2316, %v2325
  %v2331 = vmul.f32 %v2317, %v2325
  %v2332 = vmul.f32 %v2318, %v2325
  %v2333 = vmul.f32 %v2319, %v2325
  %v2334 = vmul.f32 %v2320, %v2325
  %v2336 = vlaneseq
  %v2337 = vshrl.u32 %v2336, 7
  %v2338 = vsub.s32 0, %v2337
  %v2339 = vrot.slane %v145, %v2338
  %v2341 = vadd.f32 %v2327, %v2339
  %v2342 = vadd.f32 %v2328, %v2339
  %v2343 = vadd.f32 %v2329, %v2339
  %v2344 = vadd.f32 %v2330, %v2339
  %v2345 = vadd.f32 %v2331, %v2339
  %v2346 = vadd.f32 %v2332, %v2339
  %v2347 = vadd.f32 %v2333, %v2339
  %v2348 = vadd.f32 %v2334, %v2339
  %v2349 = vld [vmem:[%s14] sm:$0xff]
  %v2350 = vld [vmem:[%s14 + $0x8] sm:$0xff]
  %v2351 = vld [vmem:[%s14 + $0x10] sm:$0xff]
  %v2352 = vld [vmem:[%s14 + $0x18] sm:$0xff]
  %v2353 = vld [vmem:[%s15] sm:$0x1]
  %v2354 = vld [vmem:[%s16] sm:$0xff]
  %v2355 = vld [vmem:[%s16 + $0x8] sm:$0xff]
  %v2356 = vld [vmem:[%s16 + $0x10] sm:$0xff]
  %v2357 = vld [vmem:[%s16 + $0x18] sm:$0xff]
  %v2358 = vld [vmem:[%s17] sm:$0x1]
  %v2359 = vld [vmem:[%s18] sm:$0xff]
  %v2360 = vld [vmem:[%s18 + $0x8] sm:$0xff]
  %v2361 = vld [vmem:[%s18 + $0x10] sm:$0xff]
  %v2362 = vld [vmem:[%s18 + $0x18] sm:$0xff]
  %v2363 = vld [vmem:[%s19] sm:$0x1]
  %v2364 = vld [vmem:[%s20] sm:$0xff]
  %v2365 = vld [vmem:[%s20 + $0x8] sm:$0xff]
  %v2366 = vld [vmem:[%s20 + $0x10] sm:$0xff]
  %v2367 = vld [vmem:[%s20 + $0x18] sm:$0xff]
  %v2368 = vld [vmem:[%s20 + $0x20] sm:$0xff]
  %v2369 = vld [vmem:[%s20 + $0x28] sm:$0xff]
  %v2370 = vld [vmem:[%s20 + $0x30] sm:$0xff]
  %v2371 = vld [vmem:[%s20 + $0x38] sm:$0xff]
  %v2372 = vld [vmem:[%s20 + $0x40] sm:$0xff]
  %v2373 = vld [vmem:[%s20 + $0x48] sm:$0xff]
  %v2374 = vld [vmem:[%s20 + $0x50] sm:$0xff]
  %v2375 = vld [vmem:[%s20 + $0x58] sm:$0xff]
  %v2376 = vld [vmem:[%s20 + $0x60] sm:$0xff]
  %v2377 = vld [vmem:[%s20 + $0x68] sm:$0xff]
  %v2378 = vld [vmem:[%s20 + $0x70] sm:$0xff]
  %v2379 = vld [vmem:[%s20 + $0x78] sm:$0xff]
  %v2380 = vld [vmem:[%s21] sm:$0x1]
  %v2381 = vld [vmem:[%s22] sm:$0x1]
  %v2382 = vld [vmem:[%s23] sm:$0x1]
  %v2383 = vld [vmem:[%s24] sm:$0x1]
  %v2384 = vld [vmem:[%s25] sm:$0x1]
  %v2385 = vpack.c.bf16 %v2342, %v2341
  %v2386 = vpack.c.bf16 %v2344, %v2343
  %v2387 = vpack.c.bf16 %v2346, %v2345
  %v2388 = vpack.c.bf16 %v2348, %v2347
  %v2389 = vpack.c.bf16 %v2350, %v2349
  %v2390 = vpack.c.bf16 %v2352, %v2351
  %v2392 = vlaneseq
  %v2393 = vshrl.u32 %v2392, 7
  %v2394 = vsub.s32 0, %v2393
  %v2395 = vrot.slane %v2353, %v2394
  %v2398 = vsel %vm158, %v2385, 0
  %v2401 = vsel %vm158, %v2386, 0
  %v2404 = vsel %vm158, %v2387, 0
  %v2407 = vsel %vm158, %v2388, 0
  %2409 = vmatprep.subr.bf16.mxu0 0
  %2410 = vmatpush1.bf16.msra.mxu0 %v2389
  %2411 = vmatprep.subr.bf16.mxu0 0
  %2412 = vmatpush1.bf16.msra.mxu0 %v2390
  %2413 = vmatprep.subr.bf16.mxu0 0
  %2414 = vmatpush1.bf16.msra.mxu0 0
  %2415 = vmatprep.subr.bf16.mxu0 0
  %2416 = vmatpush1.bf16.msra.mxu0 0
  %2417 = vmatprep.subr.bf16.mxu0 0
  %2418 = vmatpush1.bf16.msra.mxu0 0
  %2419 = vmatprep.subr.bf16.mxu0 0
  %2420 = vmatpush1.bf16.msra.mxu0 0
  %2421 = vmatprep.subr.bf16.mxu0 0
  %2422 = vmatpush1.bf16.msra.mxu0 0
  %2423 = vmatprep.subr.bf16.mxu0 0
  %2424 = vmatpush1.bf16.msra.mxu0 0
  %2425 = vmatprep.subr.bf16.mxu0 0
  %2426 = vmatpush1.bf16.msra.mxu0 0
  %2427 = vmatprep.subr.bf16.mxu0 0
  %2428 = vmatpush1.bf16.msra.mxu0 0
  %2429 = vmatprep.subr.bf16.mxu0 0
  %2430 = vmatpush1.bf16.msra.mxu0 0
  %2431 = vmatprep.subr.bf16.mxu0 0
  %2432 = vmatpush1.bf16.msra.mxu0 0
  %2433 = vmatprep.subr.bf16.mxu0 0
  %2434 = vmatpush1.bf16.msra.mxu0 0
  %2435 = vmatprep.subr.bf16.mxu0 0
  %2436 = vmatpush1.bf16.msra.mxu0 0
  %2437 = vmatprep.subr.bf16.mxu0 0
  %2438 = vmatpush1.bf16.msra.mxu0 0
  %2439 = vmatprep.subr.bf16.mxu0 0
  %2440 = vmatpush1.bf16.msra.mxu0 0
  %2441 = vmatprep.mubr.bf16.mxu0 0
  %2442 = vmatmul.mubr.bf16.gmra.mrb[0].mxu0 %v2398
  %v2443 = vpop.f32.mrb[0].mxu0
  %v2444 = vadd.f32 %v2395, %v2443
  %v2445 = vpop.f32.mrb[0].mxu0
  %v2446 = vpop.f32.mrb[0].mxu0
  %v2447 = vadd.f32 %v2395, %v2446
  %v2448 = vpop.f32.mrb[0].mxu0
  %2449 = vmatprep.mubr.bf16.mxu0 0
  %2450 = vmatmul.mubr.bf16.gmra.mrb[0].mxu0 %v2401
  %v2451 = vpop.f32.mrb[0].mxu0
  %v2452 = vadd.f32 %v2395, %v2451
  %v2453 = vpop.f32.mrb[0].mxu0
  %v2454 = vpop.f32.mrb[0].mxu0
  %v2455 = vadd.f32 %v2395, %v2454
  %v2456 = vpop.f32.mrb[0].mxu0
  %2457 = vmatprep.mubr.bf16.mxu0 0
  %2458 = vmatmul.mubr.bf16.gmra.mrb[0].mxu0 %v2404
  %v2459 = vpop.f32.mrb[0].mxu0
  %v2460 = vadd.f32 %v2395, %v2459
  %v2461 = vpop.f32.mrb[0].mxu0
  %v2462 = vpop.f32.mrb[0].mxu0
  %v2463 = vadd.f32 %v2395, %v2462
  %v2464 = vpop.f32.mrb[0].mxu0
  %2465 = vmatprep.mubr.bf16.mxu0 0
  %2466 = vmatmul.mubr.bf16.gmra.mrb[0].mxu0 %v2407
  %v2467 = vpop.f32.mrb[0].mxu0
  %v2468 = vadd.f32 %v2395, %v2467
  %v2469 = vpop.f32.mrb[0].mxu0
  %v2470 = vpop.f32.mrb[0].mxu0
  %v2471 = vadd.f32 %v2395, %v2470
  %v2472 = vpop.f32.mrb[0].mxu0
  %2473 = vdwg.mxu0
  %v2474 = vpack.c.bf16 %v2447, %v2444
  %v2475 = vpack.c.bf16 %v2455, %v2452
  %2478 = vrot.lane.b32.xlu0 %v2474, 96
  %v2479 = vpop.permute.xlu0 %2478
  %2480 = vrot.lane.b32.xlu0 %v2475, 96
  %v2481 = vpop.permute.xlu0 %2480
  %v2483 = vsel %vm244, %v2474, 0
  %v2486 = vsel %vm244, %v2475, 0
  %v2489 = vsel %vm244, %v2479, 0
  %v2492 = vsel %vm244, %v2481, 0
  %2494 = vmatprep.subr.bf16.mxu0 0
  %2495 = vmatpush1.bf16.xpose.msra.mxu0 %v2489
  %2496 = vmatprep.subr.bf16.mxu0 0
  %2497 = vmatpush1.bf16.xpose.msra.mxu0 %v2492
  %2498 = vmatprep.subr.bf16.mxu0 0
  %2499 = vmatpush1.bf16.xpose.msra.mxu0 0
  %2500 = vmatprep.subr.bf16.mxu0 0
  %2501 = vmatpush1.bf16.xpose.msra.mxu0 0
  %2502 = vmatprep.subr.bf16.mxu0 0
  %2503 = vmatpush1.bf16.xpose.msra.mxu0 0
  %2504 = vmatprep.subr.bf16.mxu0 0
  %2505 = vmatpush1.bf16.xpose.msra.mxu0 0
  %2506 = vmatprep.subr.bf16.mxu0 0
  %2507 = vmatpush1.bf16.xpose.msra.mxu0 0
  %2508 = vmatprep.subr.bf16.mxu0 0
  %2509 = vmatpush1.bf16.xpose.msra.mxu0 0
  %2510 = vmatprep.subr.bf16.mxu0 0
  %2511 = vmatpush1.bf16.xpose.msra.mxu0 0
  %2512 = vmatprep.subr.bf16.mxu0 0
  %2513 = vmatpush1.bf16.xpose.msra.mxu0 0
  %2514 = vmatprep.subr.bf16.mxu0 0
  %2515 = vmatpush1.bf16.xpose.msra.mxu0 0
  %2516 = vmatprep.subr.bf16.mxu0 0
  %2517 = vmatpush1.bf16.xpose.msra.mxu0 0
  %2518 = vmatprep.subr.bf16.mxu0 0
  %2519 = vmatpush1.bf16.xpose.msra.mxu0 0
  %2520 = vmatprep.subr.bf16.mxu0 0
  %2521 = vmatpush1.bf16.xpose.msra.mxu0 0
  %2522 = vmatprep.subr.bf16.mxu0 0
  %2523 = vmatpush1.bf16.xpose.msra.mxu0 0
  %2524 = vmatprep.subr.bf16.mxu0 0
  %2525 = vmatpush1.bf16.xpose.msra.mxu0 0
  %2526 = vmatprep.mubr.bf16.mxu0 0
  %2527 = vmatmul.mubr.bf16.gmra.mrb[0].mxu0 %v2483
  %v2528 = vpop.f32.mrb[0].mxu0
  %v2529 = vadd.f32 0.0, %v2528
  %v2530 = vpop.f32.mrb[0].mxu0
  %v2531 = vpop.f32.mrb[0].mxu0
  %v2532 = vadd.f32 0.0, %v2531
  %v2533 = vpop.f32.mrb[0].mxu0
  %2534 = vmatprep.mubr.bf16.mxu0 0
  %2535 = vmatmul.mubr.bf16.gmra.mrb[0].mxu0 %v2486
  %v2536 = vpop.f32.mrb[0].mxu0
  %v2537 = vadd.f32 0.0, %v2536
  %v2538 = vpop.f32.mrb[0].mxu0
  %v2539 = vpop.f32.mrb[0].mxu0
  %v2540 = vadd.f32 0.0, %v2539
  %v2541 = vpop.f32.mrb[0].mxu0
  %2542 = vdwg.mxu0
  %v2543 = vmul.f32 %v2529, 0.35355338
  %v2544 = vmul.f32 %v2532, 0.35355338
  %v2545 = vmul.f32 %v2537, 0.35355338
  %v2546 = vmul.f32 %v2540, 0.35355338
  %v2547 = vsel %vm158, %v2543, -inf
  %2548 = vmax.xlane.f32.xlu0 %v2547
  %v2549 = vpop.xlane.xlu0 %2548
  %v2550 = vsel %vm158, %v2544, -inf
  %2551 = vmax.xlane.f32.xlu0 %v2550
  %v2552 = vpop.xlane.xlu0 %2551
  %v2553 = vsel %vm158, %v2545, -inf
  %2554 = vmax.xlane.f32.xlu0 %v2553
  %v2555 = vpop.xlane.xlu0 %2554
  %v2556 = vsel %vm158, %v2546, -inf
  %2557 = vmax.xlane.f32.xlu0 %v2556
  %v2558 = vpop.xlane.xlu0 %2557
  %v2559 = vsub.f32 %v2543, %v2549
  %v2560 = vsub.f32 %v2544, %v2552
  %v2561 = vsub.f32 %v2545, %v2555
  %v2562 = vsub.f32 %v2546, %v2558
  %v2563 = vmul.f32 %v2559, 1.442695
  %v2564 = vpow.pop %v2563
  %v2565 = vmul.f32 %v2560, 1.442695
  %v2566 = vpow.pop %v2565
  %v2567 = vmul.f32 %v2561, 1.442695
  %v2568 = vpow.pop %v2567
  %v2569 = vmul.f32 %v2562, 1.442695
  %v2570 = vpow.pop %v2569
  %v2571 = vsel %vm158, %v2564, 0.0
  %2572 = vadd.xlane.f32.xlu0 %v2571
  %v2573 = vpop.xlane.xlu0 %2572
  %v2574 = vsel %vm158, %v2566, 0.0
  %2575 = vadd.xlane.f32.xlu0 %v2574
  %v2576 = vpop.xlane.xlu0 %2575
  %v2577 = vsel %vm158, %v2568, 0.0
  %2578 = vadd.xlane.f32.xlu0 %v2577
  %v2579 = vpop.xlane.xlu0 %2578
  %v2580 = vsel %vm158, %v2570, 0.0
  %2581 = vadd.xlane.f32.xlu0 %v2580
  %v2582 = vpop.xlane.xlu0 %2581
  %v2583 = vrcp.pop %v2573
  %v2584 = vmul.f32 %v2564, %v2583
  %v2585 = vrcp.pop %v2576
  %v2586 = vmul.f32 %v2566, %v2585
  %v2587 = vrcp.pop %v2579
  %v2588 = vmul.f32 %v2568, %v2587
  %v2589 = vrcp.pop %v2582
  %v2590 = vmul.f32 %v2570, %v2589
  %v2591 = vpack.c.bf16 %v2586, %v2584
  %v2592 = vpack.c.bf16 %v2590, %v2588
  %2593 = vrot.lane.b32.xlu0 %v2474, 64
  %v2594 = vpop.permute.xlu0 %2593
  %2595 = vrot.lane.b32.xlu0 %v2475, 64
  %v2596 = vpop.permute.xlu0 %2595
  %v2600 = vsel %vm158, %v2591, 0
  %v2603 = vsel %vm158, %v2592, 0
  %2605 = vmatprep.subr.bf16.mxu0 0
  %2606 = vmatpush1.bf16.msra.mxu0 %v2594
  %2607 = vmatprep.subr.bf16.mxu0 0
  %2608 = vmatpush1.bf16.msra.mxu0 %v2596
  %2609 = vmatprep.subr.bf16.mxu0 0
  %2610 = vmatpush1.bf16.msra.mxu0 0
  %2611 = vmatprep.subr.bf16.mxu0 0
  %2612 = vmatpush1.bf16.msra.mxu0 0
  %2613 = vmatprep.subr.bf16.mxu0 0
  %2614 = vmatpush1.bf16.msra.mxu0 0
  %2615 = vmatprep.subr.bf16.mxu0 0
  %2616 = vmatpush1.bf16.msra.mxu0 0
  %2617 = vmatprep.subr.bf16.mxu0 0
  %2618 = vmatpush1.bf16.msra.mxu0 0
  %2619 = vmatprep.subr.bf16.mxu0 0
  %2620 = vmatpush1.bf16.msra.mxu0 0
  %2621 = vmatprep.subr.bf16.mxu0 0
  %2622 = vmatpush1.bf16.msra.mxu0 0
  %2623 = vmatprep.subr.bf16.mxu0 0
  %2624 = vmatpush1.bf16.msra.mxu0 0
  %2625 = vmatprep.subr.bf16.mxu0 0
  %2626 = vmatpush1.bf16.msra.mxu0 0
  %2627 = vmatprep.subr.bf16.mxu0 0
  %2628 = vmatpush1.bf16.msra.mxu0 0
  %2629 = vmatprep.subr.bf16.mxu0 0
  %2630 = vmatpush1.bf16.msra.mxu0 0
  %2631 = vmatprep.subr.bf16.mxu0 0
  %2632 = vmatpush1.bf16.msra.mxu0 0
  %2633 = vmatprep.subr.bf16.mxu0 0
  %2634 = vmatpush1.bf16.msra.mxu0 0
  %2635 = vmatprep.subr.bf16.mxu0 0
  %2636 = vmatpush1.bf16.msra.mxu0 0
  %2637 = vmatprep.mubr.bf16.mxu0 0
  %2638 = vmatmul.mubr.bf16.gmra.mrb[0].mxu0 %v2600
  %v2639 = vpop.f32.mrb[0].mxu0
  %v2640 = vadd.f32 0.0, %v2639
  %v2641 = vpop.f32.mrb[0].mxu0
  %v2642 = vpop.f32.mrb[0].mxu0
  %v2643 = vadd.f32 0.0, %v2642
  %v2644 = vpop.f32.mrb[0].mxu0
  %2645 = vmatprep.mubr.bf16.mxu0 0
  %2646 = vmatmul.mubr.bf16.gmra.mrb[0].mxu0 %v2603
  %v2647 = vpop.f32.mrb[0].mxu0
  %v2648 = vadd.f32 0.0, %v2647
  %v2649 = vpop.f32.mrb[0].mxu0
  %v2650 = vpop.f32.mrb[0].mxu0
  %v2651 = vadd.f32 0.0, %v2650
  %v2652 = vpop.f32.mrb[0].mxu0
  %2653 = vdwg.mxu0
  %2654 = vrot.lane.b32.xlu0 %v2474, 120
  %v2655 = vpop.permute.xlu0 %2654
  %2656 = vrot.lane.b32.xlu0 %v2475, 120
  %v2657 = vpop.permute.xlu0 %2656
  %2658 = vrot.lane.b32.xlu0 %v2474, 88
  %v2659 = vpop.permute.xlu0 %2658
  %2660 = vrot.lane.b32.xlu0 %v2475, 88
  %v2661 = vpop.permute.xlu0 %2660
  %v2663 = vsel %vm244, %v2655, 0
  %v2666 = vsel %vm244, %v2657, 0
  %v2669 = vsel %vm244, %v2659, 0
  %v2672 = vsel %vm244, %v2661, 0
  %2674 = vmatprep.subr.bf16.mxu0 0
  %2675 = vmatpush1.bf16.xpose.msra.mxu0 %v2669
  %2676 = vmatprep.subr.bf16.mxu0 0
  %2677 = vmatpush1.bf16.xpose.msra.mxu0 %v2672
  %2678 = vmatprep.subr.bf16.mxu0 0
  %2679 = vmatpush1.bf16.xpose.msra.mxu0 0
  %2680 = vmatprep.subr.bf16.mxu0 0
  %2681 = vmatpush1.bf16.xpose.msra.mxu0 0
  %2682 = vmatprep.subr.bf16.mxu0 0
  %2683 = vmatpush1.bf16.xpose.msra.mxu0 0
  %2684 = vmatprep.subr.bf16.mxu0 0
  %2685 = vmatpush1.bf16.xpose.msra.mxu0 0
  %2686 = vmatprep.subr.bf16.mxu0 0
  %2687 = vmatpush1.bf16.xpose.msra.mxu0 0
  %2688 = vmatprep.subr.bf16.mxu0 0
  %2689 = vmatpush1.bf16.xpose.msra.mxu0 0
  %2690 = vmatprep.subr.bf16.mxu0 0
  %2691 = vmatpush1.bf16.xpose.msra.mxu0 0
  %2692 = vmatprep.subr.bf16.mxu0 0
  %2693 = vmatpush1.bf16.xpose.msra.mxu0 0
  %2694 = vmatprep.subr.bf16.mxu0 0
  %2695 = vmatpush1.bf16.xpose.msra.mxu0 0
  %2696 = vmatprep.subr.bf16.mxu0 0
  %2697 = vmatpush1.bf16.xpose.msra.mxu0 0
  %2698 = vmatprep.subr.bf16.mxu0 0
  %2699 = vmatpush1.bf16.xpose.msra.mxu0 0
  %2700 = vmatprep.subr.bf16.mxu0 0
  %2701 = vmatpush1.bf16.xpose.msra.mxu0 0
  %2702 = vmatprep.subr.bf16.mxu0 0
  %2703 = vmatpush1.bf16.xpose.msra.mxu0 0
  %2704 = vmatprep.subr.bf16.mxu0 0
  %2705 = vmatpush1.bf16.xpose.msra.mxu0 0
  %2706 = vmatprep.mubr.bf16.mxu0 0
  %2707 = vmatmul.mubr.bf16.gmra.mrb[0].mxu0 %v2663
  %v2708 = vpop.f32.mrb[0].mxu0
  %v2709 = vadd.f32 0.0, %v2708
  %v2710 = vpop.f32.mrb[0].mxu0
  %v2711 = vpop.f32.mrb[0].mxu0
  %v2712 = vadd.f32 0.0, %v2711
  %v2713 = vpop.f32.mrb[0].mxu0
  %2714 = vmatprep.mubr.bf16.mxu0 0
  %2715 = vmatmul.mubr.bf16.gmra.mrb[0].mxu0 %v2666
  %v2716 = vpop.f32.mrb[0].mxu0
  %v2717 = vadd.f32 0.0, %v2716
  %v2718 = vpop.f32.mrb[0].mxu0
  %v2719 = vpop.f32.mrb[0].mxu0
  %v2720 = vadd.f32 0.0, %v2719
  %v2721 = vpop.f32.mrb[0].mxu0
  %2722 = vdwg.mxu0
  %v2723 = vmul.f32 %v2709, 0.35355338
  %v2724 = vmul.f32 %v2712, 0.35355338
  %v2725 = vmul.f32 %v2717, 0.35355338
  %v2726 = vmul.f32 %v2720, 0.35355338
  %v2727 = vsel %vm158, %v2723, -inf
  %2728 = vmax.xlane.f32.xlu0 %v2727
  %v2729 = vpop.xlane.xlu0 %2728
  %v2730 = vsel %vm158, %v2724, -inf
  %2731 = vmax.xlane.f32.xlu0 %v2730
  %v2732 = vpop.xlane.xlu0 %2731
  %v2733 = vsel %vm158, %v2725, -inf
  %2734 = vmax.xlane.f32.xlu0 %v2733
  %v2735 = vpop.xlane.xlu0 %2734
  %v2736 = vsel %vm158, %v2726, -inf
  %2737 = vmax.xlane.f32.xlu0 %v2736
  %v2738 = vpop.xlane.xlu0 %2737
  %v2739 = vsub.f32 %v2723, %v2729
  %v2740 = vsub.f32 %v2724, %v2732
  %v2741 = vsub.f32 %v2725, %v2735
  %v2742 = vsub.f32 %v2726, %v2738
  %v2743 = vmul.f32 %v2739, 1.442695
  %v2744 = vpow.pop %v2743
  %v2745 = vmul.f32 %v2740, 1.442695
  %v2746 = vpow.pop %v2745
  %v2747 = vmul.f32 %v2741, 1.442695
  %v2748 = vpow.pop %v2747
  %v2749 = vmul.f32 %v2742, 1.442695
  %v2750 = vpow.pop %v2749
  %v2751 = vsel %vm158, %v2744, 0.0
  %2752 = vadd.xlane.f32.xlu0 %v2751
  %v2753 = vpop.xlane.xlu0 %2752
  %v2754 = vsel %vm158, %v2746, 0.0
  %2755 = vadd.xlane.f32.xlu0 %v2754
  %v2756 = vpop.xlane.xlu0 %2755
  %v2757 = vsel %vm158, %v2748, 0.0
  %2758 = vadd.xlane.f32.xlu0 %v2757
  %v2759 = vpop.xlane.xlu0 %2758
  %v2760 = vsel %vm158, %v2750, 0.0
  %2761 = vadd.xlane.f32.xlu0 %v2760
  %v2762 = vpop.xlane.xlu0 %2761
  %v2763 = vrcp.pop %v2753
  %v2764 = vmul.f32 %v2744, %v2763
  %v2765 = vrcp.pop %v2756
  %v2766 = vmul.f32 %v2746, %v2765
  %v2767 = vrcp.pop %v2759
  %v2768 = vmul.f32 %v2748, %v2767
  %v2769 = vrcp.pop %v2762
  %v2770 = vmul.f32 %v2750, %v2769
  %v2771 = vpack.c.bf16 %v2766, %v2764
  %v2772 = vpack.c.bf16 %v2770, %v2768
  %2773 = vrot.lane.b32.xlu0 %v2474, 56
  %v2774 = vpop.permute.xlu0 %2773
  %2775 = vrot.lane.b32.xlu0 %v2475, 56
  %v2776 = vpop.permute.xlu0 %2775
  %v2780 = vsel %vm158, %v2771, 0
  %v2783 = vsel %vm158, %v2772, 0
  %2785 = vmatprep.subr.bf16.mxu0 0
  %2786 = vmatpush1.bf16.msra.mxu0 %v2774
  %2787 = vmatprep.subr.bf16.mxu0 0
  %2788 = vmatpush1.bf16.msra.mxu0 %v2776
  %2789 = vmatprep.subr.bf16.mxu0 0
  %2790 = vmatpush1.bf16.msra.mxu0 0
  %2791 = vmatprep.subr.bf16.mxu0 0
  %2792 = vmatpush1.bf16.msra.mxu0 0
  %2793 = vmatprep.subr.bf16.mxu0 0
  %2794 = vmatpush1.bf16.msra.mxu0 0
  %2795 = vmatprep.subr.bf16.mxu0 0
  %2796 = vmatpush1.bf16.msra.mxu0 0
  %2797 = vmatprep.subr.bf16.mxu0 0
  %2798 = vmatpush1.bf16.msra.mxu0 0
  %2799 = vmatprep.subr.bf16.mxu0 0
  %2800 = vmatpush1.bf16.msra.mxu0 0
  %2801 = vmatprep.subr.bf16.mxu0 0
  %2802 = vmatpush1.bf16.msra.mxu0 0
  %2803 = vmatprep.subr.bf16.mxu0 0
  %2804 = vmatpush1.bf16.msra.mxu0 0
  %2805 = vmatprep.subr.bf16.mxu0 0
  %2806 = vmatpush1.bf16.msra.mxu0 0
  %2807 = vmatprep.subr.bf16.mxu0 0
  %2808 = vmatpush1.bf16.msra.mxu0 0
  %2809 = vmatprep.subr.bf16.mxu0 0
  %2810 = vmatpush1.bf16.msra.mxu0 0
  %2811 = vmatprep.subr.bf16.mxu0 0
  %2812 = vmatpush1.bf16.msra.mxu0 0
  %2813 = vmatprep.subr.bf16.mxu0 0
  %2814 = vmatpush1.bf16.msra.mxu0 0
  %2815 = vmatprep.subr.bf16.mxu0 0
  %2816 = vmatpush1.bf16.msra.mxu0 0
  %2817 = vmatprep.mubr.bf16.mxu0 0
  %2818 = vmatmul.mubr.bf16.gmra.mrb[0].mxu0 %v2780
  %v2819 = vpop.f32.mrb[0].mxu0
  %v2820 = vadd.f32 0.0, %v2819
  %v2821 = vpop.f32.mrb[0].mxu0
  %v2822 = vpop.f32.mrb[0].mxu0
  %v2823 = vadd.f32 0.0, %v2822
  %v2824 = vpop.f32.mrb[0].mxu0
  %2825 = vmatprep.mubr.bf16.mxu0 0
  %2826 = vmatmul.mubr.bf16.gmra.mrb[0].mxu0 %v2783
  %v2827 = vpop.f32.mrb[0].mxu0
  %v2828 = vadd.f32 0.0, %v2827
  %v2829 = vpop.f32.mrb[0].mxu0
  %v2830 = vpop.f32.mrb[0].mxu0
  %v2831 = vadd.f32 0.0, %v2830
  %v2832 = vpop.f32.mrb[0].mxu0
  %2833 = vdwg.mxu0
  %2834 = vrot.lane.b32.xlu0 %v2474, 112
  %v2835 = vpop.permute.xlu0 %2834
  %2836 = vrot.lane.b32.xlu0 %v2475, 112
  %v2837 = vpop.permute.xlu0 %2836
  %2838 = vrot.lane.b32.xlu0 %v2474, 80
  %v2839 = vpop.permute.xlu0 %2838
  %2840 = vrot.lane.b32.xlu0 %v2475, 80
  %v2841 = vpop.permute.xlu0 %2840
  %v2843 = vsel %vm244, %v2835, 0
  %v2846 = vsel %vm244, %v2837, 0
  %v2849 = vsel %vm244, %v2839, 0
  %v2852 = vsel %vm244, %v2841, 0
  %2854 = vmatprep.subr.bf16.mxu0 0
  %2855 = vmatpush1.bf16.xpose.msra.mxu0 %v2849
  %2856 = vmatprep.subr.bf16.mxu0 0
  %2857 = vmatpush1.bf16.xpose.msra.mxu0 %v2852
  %2858 = vmatprep.subr.bf16.mxu0 0
  %2859 = vmatpush1.bf16.xpose.msra.mxu0 0
  %2860 = vmatprep.subr.bf16.mxu0 0
  %2861 = vmatpush1.bf16.xpose.msra.mxu0 0
  %2862 = vmatprep.subr.bf16.mxu0 0
  %2863 = vmatpush1.bf16.xpose.msra.mxu0 0
  %2864 = vmatprep.subr.bf16.mxu0 0
  %2865 = vmatpush1.bf16.xpose.msra.mxu0 0
  %2866 = vmatprep.subr.bf16.mxu0 0
  %2867 = vmatpush1.bf16.xpose.msra.mxu0 0
  %2868 = vmatprep.subr.bf16.mxu0 0
  %2869 = vmatpush1.bf16.xpose.msra.mxu0 0
  %2870 = vmatprep.subr.bf16.mxu0 0
  %2871 = vmatpush1.bf16.xpose.msra.mxu0 0
  %2872 = vmatprep.subr.bf16.mxu0 0
  %2873 = vmatpush1.bf16.xpose.msra.mxu0 0
  %2874 = vmatprep.subr.bf16.mxu0 0
  %2875 = vmatpush1.bf16.xpose.msra.mxu0 0
  %2876 = vmatprep.subr.bf16.mxu0 0
  %2877 = vmatpush1.bf16.xpose.msra.mxu0 0
  %2878 = vmatprep.subr.bf16.mxu0 0
  %2879 = vmatpush1.bf16.xpose.msra.mxu0 0
  %2880 = vmatprep.subr.bf16.mxu0 0
  %2881 = vmatpush1.bf16.xpose.msra.mxu0 0
  %2882 = vmatprep.subr.bf16.mxu0 0
  %2883 = vmatpush1.bf16.xpose.msra.mxu0 0
  %2884 = vmatprep.subr.bf16.mxu0 0
  %2885 = vmatpush1.bf16.xpose.msra.mxu0 0
  %2886 = vmatprep.mubr.bf16.mxu0 0
  %2887 = vmatmul.mubr.bf16.gmra.mrb[0].mxu0 %v2843
  %v2888 = vpop.f32.mrb[0].mxu0
  %v2889 = vadd.f32 0.0, %v2888
  %v2890 = vpop.f32.mrb[0].mxu0
  %v2891 = vpop.f32.mrb[0].mxu0
  %v2892 = vadd.f32 0.0, %v2891
  %v2893 = vpop.f32.mrb[0].mxu0
  %2894 = vmatprep.mubr.bf16.mxu0 0
  %2895 = vmatmul.mubr.bf16.gmra.mrb[0].mxu0 %v2846
  %v2896 = vpop.f32.mrb[0].mxu0
  %v2897 = vadd.f32 0.0, %v2896
  %v2898 = vpop.f32.mrb[0].mxu0
  %v2899 = vpop.f32.mrb[0].mxu0
  %v2900 = vadd.f32 0.0, %v2899
  %v2901 = vpop.f32.mrb[0].mxu0
  %2902 = vdwg.mxu0
  %v2903 = vmul.f32 %v2889, 0.35355338
  %v2904 = vmul.f32 %v2892, 0.35355338
  %v2905 = vmul.f32 %v2897, 0.35355338
  %v2906 = vmul.f32 %v2900, 0.35355338
  %v2907 = vsel %vm158, %v2903, -inf
  %2908 = vmax.xlane.f32.xlu0 %v2907
  %v2909 = vpop.xlane.xlu0 %2908
  %v2910 = vsel %vm158, %v2904, -inf
  %2911 = vmax.xlane.f32.xlu0 %v2910
  %v2912 = vpop.xlane.xlu0 %2911
  %v2913 = vsel %vm158, %v2905, -inf
  %2914 = vmax.xlane.f32.xlu0 %v2913
  %v2915 = vpop.xlane.xlu0 %2914
  %v2916 = vsel %vm158, %v2906, -inf
  %2917 = vmax.xlane.f32.xlu0 %v2916
  %v2918 = vpop.xlane.xlu0 %2917
  %v2919 = vsub.f32 %v2903, %v2909
  %v2920 = vsub.f32 %v2904, %v2912
  %v2921 = vsub.f32 %v2905, %v2915
  %v2922 = vsub.f32 %v2906, %v2918
  %v2923 = vmul.f32 %v2919, 1.442695
  %v2924 = vpow.pop %v2923
  %v2925 = vmul.f32 %v2920, 1.442695
  %v2926 = vpow.pop %v2925
  %v2927 = vmul.f32 %v2921, 1.442695
  %v2928 = vpow.pop %v2927
  %v2929 = vmul.f32 %v2922, 1.442695
  %v2930 = vpow.pop %v2929
  %v2931 = vsel %vm158, %v2924, 0.0
  %2932 = vadd.xlane.f32.xlu0 %v2931
  %v2933 = vpop.xlane.xlu0 %2932
  %v2934 = vsel %vm158, %v2926, 0.0
  %2935 = vadd.xlane.f32.xlu0 %v2934
  %v2936 = vpop.xlane.xlu0 %2935
  %v2937 = vsel %vm158, %v2928, 0.0
  %2938 = vadd.xlane.f32.xlu0 %v2937
  %v2939 = vpop.xlane.xlu0 %2938
  %v2940 = vsel %vm158, %v2930, 0.0
  %2941 = vadd.xlane.f32.xlu0 %v2940
  %v2942 = vpop.xlane.xlu0 %2941
  %v2943 = vrcp.pop %v2933
  %v2944 = vmul.f32 %v2924, %v2943
  %v2945 = vrcp.pop %v2936
  %v2946 = vmul.f32 %v2926, %v2945
  %v2947 = vrcp.pop %v2939
  %v2948 = vmul.f32 %v2928, %v2947
  %v2949 = vrcp.pop %v2942
  %v2950 = vmul.f32 %v2930, %v2949
  %v2951 = vpack.c.bf16 %v2946, %v2944
  %v2952 = vpack.c.bf16 %v2950, %v2948
  %2953 = vrot.lane.b32.xlu0 %v2474, 48
  %v2954 = vpop.permute.xlu0 %2953
  %2955 = vrot.lane.b32.xlu0 %v2475, 48
  %v2956 = vpop.permute.xlu0 %2955
  %v2960 = vsel %vm158, %v2951, 0
  %v2963 = vsel %vm158, %v2952, 0
  %2965 = vmatprep.subr.bf16.mxu0 0
  %2966 = vmatpush1.bf16.msra.mxu0 %v2954
  %2967 = vmatprep.subr.bf16.mxu0 0
  %2968 = vmatpush1.bf16.msra.mxu0 %v2956
  %2969 = vmatprep.subr.bf16.mxu0 0
  %2970 = vmatpush1.bf16.msra.mxu0 0
  %2971 = vmatprep.subr.bf16.mxu0 0
  %2972 = vmatpush1.bf16.msra.mxu0 0
  %2973 = vmatprep.subr.bf16.mxu0 0
  %2974 = vmatpush1.bf16.msra.mxu0 0
  %2975 = vmatprep.subr.bf16.mxu0 0
  %2976 = vmatpush1.bf16.msra.mxu0 0
  %2977 = vmatprep.subr.bf16.mxu0 0
  %2978 = vmatpush1.bf16.msra.mxu0 0
  %2979 = vmatprep.subr.bf16.mxu0 0
  %2980 = vmatpush1.bf16.msra.mxu0 0
  %2981 = vmatprep.subr.bf16.mxu0 0
  %2982 = vmatpush1.bf16.msra.mxu0 0
  %2983 = vmatprep.subr.bf16.mxu0 0
  %2984 = vmatpush1.bf16.msra.mxu0 0
  %2985 = vmatprep.subr.bf16.mxu0 0
  %2986 = vmatpush1.bf16.msra.mxu0 0
  %2987 = vmatprep.subr.bf16.mxu0 0
  %2988 = vmatpush1.bf16.msra.mxu0 0
  %2989 = vmatprep.subr.bf16.mxu0 0
  %2990 = vmatpush1.bf16.msra.mxu0 0
  %2991 = vmatprep.subr.bf16.mxu0 0
  %2992 = vmatpush1.bf16.msra.mxu0 0
  %2993 = vmatprep.subr.bf16.mxu0 0
  %2994 = vmatpush1.bf16.msra.mxu0 0
  %2995 = vmatprep.subr.bf16.mxu0 0
  %2996 = vmatpush1.bf16.msra.mxu0 0
  %2997 = vmatprep.mubr.bf16.mxu0 0
  %2998 = vmatmul.mubr.bf16.gmra.mrb[0].mxu0 %v2960
  %v2999 = vpop.f32.mrb[0].mxu0
  %v3000 = vadd.f32 0.0, %v2999
  %v3001 = vpop.f32.mrb[0].mxu0
  %v3002 = vpop.f32.mrb[0].mxu0
  %v3003 = vadd.f32 0.0, %v3002
  %v3004 = vpop.f32.mrb[0].mxu0
  %3005 = vmatprep.mubr.bf16.mxu0 0
  %3006 = vmatmul.mubr.bf16.gmra.mrb[0].mxu0 %v2963
  %v3007 = vpop.f32.mrb[0].mxu0
  %v3008 = vadd.f32 0.0, %v3007
  %v3009 = vpop.f32.mrb[0].mxu0
  %v3010 = vpop.f32.mrb[0].mxu0
  %v3011 = vadd.f32 0.0, %v3010
  %v3012 = vpop.f32.mrb[0].mxu0
  %3013 = vdwg.mxu0
  %3014 = vrot.lane.b32.xlu0 %v2474, 104
  %v3015 = vpop.permute.xlu0 %3014
  %3016 = vrot.lane.b32.xlu0 %v2475, 104
  %v3017 = vpop.permute.xlu0 %3016
  %3018 = vrot.lane.b32.xlu0 %v2474, 72
  %v3019 = vpop.permute.xlu0 %3018
  %3020 = vrot.lane.b32.xlu0 %v2475, 72
  %v3021 = vpop.permute.xlu0 %3020
  %v3023 = vsel %vm244, %v3015, 0
  %v3026 = vsel %vm244, %v3017, 0
  %v3029 = vsel %vm244, %v3019, 0
  %v3032 = vsel %vm244, %v3021, 0
  %3034 = vmatprep.subr.bf16.mxu0 0
  %3035 = vmatpush1.bf16.xpose.msra.mxu0 %v3029
  %3036 = vmatprep.subr.bf16.mxu0 0
  %3037 = vmatpush1.bf16.xpose.msra.mxu0 %v3032
  %3038 = vmatprep.subr.bf16.mxu0 0
  %3039 = vmatpush1.bf16.xpose.msra.mxu0 0
  %3040 = vmatprep.subr.bf16.mxu0 0
  %3041 = vmatpush1.bf16.xpose.msra.mxu0 0
  %3042 = vmatprep.subr.bf16.mxu0 0
  %3043 = vmatpush1.bf16.xpose.msra.mxu0 0
  %3044 = vmatprep.subr.bf16.mxu0 0
  %3045 = vmatpush1.bf16.xpose.msra.mxu0 0
  %3046 = vmatprep.subr.bf16.mxu0 0
  %3047 = vmatpush1.bf16.xpose.msra.mxu0 0
  %3048 = vmatprep.subr.bf16.mxu0 0
  %3049 = vmatpush1.bf16.xpose.msra.mxu0 0
  %3050 = vmatprep.subr.bf16.mxu0 0
  %3051 = vmatpush1.bf16.xpose.msra.mxu0 0
  %3052 = vmatprep.subr.bf16.mxu0 0
  %3053 = vmatpush1.bf16.xpose.msra.mxu0 0
  %3054 = vmatprep.subr.bf16.mxu0 0
  %3055 = vmatpush1.bf16.xpose.msra.mxu0 0
  %3056 = vmatprep.subr.bf16.mxu0 0
  %3057 = vmatpush1.bf16.xpose.msra.mxu0 0
  %3058 = vmatprep.subr.bf16.mxu0 0
  %3059 = vmatpush1.bf16.xpose.msra.mxu0 0
  %3060 = vmatprep.subr.bf16.mxu0 0
  %3061 = vmatpush1.bf16.xpose.msra.mxu0 0
  %3062 = vmatprep.subr.bf16.mxu0 0
  %3063 = vmatpush1.bf16.xpose.msra.mxu0 0
  %3064 = vmatprep.subr.bf16.mxu0 0
  %3065 = vmatpush1.bf16.xpose.msra.mxu0 0
  %3066 = vmatprep.mubr.bf16.mxu0 0
  %3067 = vmatmul.mubr.bf16.gmra.mrb[0].mxu0 %v3023
  %v3068 = vpop.f32.mrb[0].mxu0
  %v3069 = vadd.f32 0.0, %v3068
  %v3070 = vpop.f32.mrb[0].mxu0
  %v3071 = vpop.f32.mrb[0].mxu0
  %v3072 = vadd.f32 0.0, %v3071
  %v3073 = vpop.f32.mrb[0].mxu0
  %3074 = vmatprep.mubr.bf16.mxu0 0
  %3075 = vmatmul.mubr.bf16.gmra.mrb[0].mxu0 %v3026
  %v3076 = vpop.f32.mrb[0].mxu0
  %v3077 = vadd.f32 0.0, %v3076
  %v3078 = vpop.f32.mrb[0].mxu0
  %v3079 = vpop.f32.mrb[0].mxu0
  %v3080 = vadd.f32 0.0, %v3079
  %v3081 = vpop.f32.mrb[0].mxu0
  %3082 = vdwg.mxu0
  %v3083 = vmul.f32 %v3069, 0.35355338
  %v3084 = vmul.f32 %v3072, 0.35355338
  %v3085 = vmul.f32 %v3077, 0.35355338
  %v3086 = vmul.f32 %v3080, 0.35355338
  %v3087 = vsel %vm158, %v3083, -inf
  %3088 = vmax.xlane.f32.xlu0 %v3087
  %v3089 = vpop.xlane.xlu0 %3088
  %v3090 = vsel %vm158, %v3084, -inf
  %3091 = vmax.xlane.f32.xlu0 %v3090
  %v3092 = vpop.xlane.xlu0 %3091
  %v3093 = vsel %vm158, %v3085, -inf
  %3094 = vmax.xlane.f32.xlu0 %v3093
  %v3095 = vpop.xlane.xlu0 %3094
  %v3096 = vsel %vm158, %v3086, -inf
  %3097 = vmax.xlane.f32.xlu0 %v3096
  %v3098 = vpop.xlane.xlu0 %3097
  %v3099 = vsub.f32 %v3083, %v3089
  %v3100 = vsub.f32 %v3084, %v3092
  %v3101 = vsub.f32 %v3085, %v3095
  %v3102 = vsub.f32 %v3086, %v3098
  %v3103 = vmul.f32 %v3099, 1.442695
  %v3104 = vpow.pop %v3103
  %v3105 = vmul.f32 %v3100, 1.442695
  %v3106 = vpow.pop %v3105
  %v3107 = vmul.f32 %v3101, 1.442695
  %v3108 = vpow.pop %v3107
  %v3109 = vmul.f32 %v3102, 1.442695
  %v3110 = vpow.pop %v3109
  %v3111 = vsel %vm158, %v3104, 0.0
  %3112 = vadd.xlane.f32.xlu0 %v3111
  %v3113 = vpop.xlane.xlu0 %3112
  %v3114 = vsel %vm158, %v3106, 0.0
  %3115 = vadd.xlane.f32.xlu0 %v3114
  %v3116 = vpop.xlane.xlu0 %3115
  %v3117 = vsel %vm158, %v3108, 0.0
  %3118 = vadd.xlane.f32.xlu0 %v3117
  %v3119 = vpop.xlane.xlu0 %3118
  %v3120 = vsel %vm158, %v3110, 0.0
  %3121 = vadd.xlane.f32.xlu0 %v3120
  %v3122 = vpop.xlane.xlu0 %3121
  %v3123 = vrcp.pop %v3113
  %v3124 = vmul.f32 %v3104, %v3123
  %v3125 = vrcp.pop %v3116
  %v3126 = vmul.f32 %v3106, %v3125
  %v3127 = vrcp.pop %v3119
  %v3128 = vmul.f32 %v3108, %v3127
  %v3129 = vrcp.pop %v3122
  %v3130 = vmul.f32 %v3110, %v3129
  %v3131 = vpack.c.bf16 %v3126, %v3124
  %v3132 = vpack.c.bf16 %v3130, %v3128
  %3133 = vrot.lane.b32.xlu0 %v2474, 40
  %v3134 = vpop.permute.xlu0 %3133
  %3135 = vrot.lane.b32.xlu0 %v2475, 40
  %v3136 = vpop.permute.xlu0 %3135
  %v3140 = vsel %vm158, %v3131, 0
  %v3143 = vsel %vm158, %v3132, 0
  %3145 = vmatprep.subr.bf16.mxu0 0
  %3146 = vmatpush1.bf16.msra.mxu0 %v3134
  %3147 = vmatprep.subr.bf16.mxu0 0
  %3148 = vmatpush1.bf16.msra.mxu0 %v3136
  %3149 = vmatprep.subr.bf16.mxu0 0
  %3150 = vmatpush1.bf16.msra.mxu0 0
  %3151 = vmatprep.subr.bf16.mxu0 0
  %3152 = vmatpush1.bf16.msra.mxu0 0
  %3153 = vmatprep.subr.bf16.mxu0 0
  %3154 = vmatpush1.bf16.msra.mxu0 0
  %3155 = vmatprep.subr.bf16.mxu0 0
  %3156 = vmatpush1.bf16.msra.mxu0 0
  %3157 = vmatprep.subr.bf16.mxu0 0
  %3158 = vmatpush1.bf16.msra.mxu0 0
  %3159 = vmatprep.subr.bf16.mxu0 0
  %3160 = vmatpush1.bf16.msra.mxu0 0
  %3161 = vmatprep.subr.bf16.mxu0 0
  %3162 = vmatpush1.bf16.msra.mxu0 0
  %3163 = vmatprep.subr.bf16.mxu0 0
  %3164 = vmatpush1.bf16.msra.mxu0 0
  %3165 = vmatprep.subr.bf16.mxu0 0
  %3166 = vmatpush1.bf16.msra.mxu0 0
  %3167 = vmatprep.subr.bf16.mxu0 0
  %3168 = vmatpush1.bf16.msra.mxu0 0
  %3169 = vmatprep.subr.bf16.mxu0 0
  %3170 = vmatpush1.bf16.msra.mxu0 0
  %3171 = vmatprep.subr.bf16.mxu0 0
  %3172 = vmatpush1.bf16.msra.mxu0 0
  %3173 = vmatprep.subr.bf16.mxu0 0
  %3174 = vmatpush1.bf16.msra.mxu0 0
  %3175 = vmatprep.subr.bf16.mxu0 0
  %3176 = vmatpush1.bf16.msra.mxu0 0
  %3177 = vmatprep.mubr.bf16.mxu0 0
  %3178 = vmatmul.mubr.bf16.gmra.mrb[0].mxu0 %v3140
  %v3179 = vpop.f32.mrb[0].mxu0
  %v3180 = vadd.f32 0.0, %v3179
  %v3181 = vpop.f32.mrb[0].mxu0
  %v3182 = vpop.f32.mrb[0].mxu0
  %v3183 = vadd.f32 0.0, %v3182
  %v3184 = vpop.f32.mrb[0].mxu0
  %3185 = vmatprep.mubr.bf16.mxu0 0
  %3186 = vmatmul.mubr.bf16.gmra.mrb[0].mxu0 %v3143
  %v3187 = vpop.f32.mrb[0].mxu0
  %v3188 = vadd.f32 0.0, %v3187
  %v3189 = vpop.f32.mrb[0].mxu0
  %v3190 = vpop.f32.mrb[0].mxu0
  %v3191 = vadd.f32 0.0, %v3190
  %v3192 = vpop.f32.mrb[0].mxu0
  %3193 = vdwg.mxu0
  %3198 = vrot.lane.b32.xlu0 %v2820, 8
  %v3199 = vpop.permute.xlu0 %3198
  %3200 = vrot.lane.b32.xlu0 %v2823, 8
  %v3201 = vpop.permute.xlu0 %3200
  %3202 = vrot.lane.b32.xlu0 %v2828, 8
  %v3203 = vpop.permute.xlu0 %3202
  %3204 = vrot.lane.b32.xlu0 %v2831, 8
  %v3205 = vpop.permute.xlu0 %3204
  %3214 = vrot.lane.b32.xlu0 %v3000, 16
  %v3215 = vpop.permute.xlu0 %3214
  %3216 = vrot.lane.b32.xlu0 %v3003, 16
  %v3217 = vpop.permute.xlu0 %3216
  %3218 = vrot.lane.b32.xlu0 %v3008, 16
  %v3219 = vpop.permute.xlu0 %3218
  %3220 = vrot.lane.b32.xlu0 %v3011, 16
  %v3221 = vpop.permute.xlu0 %3220
  %3230 = vrot.lane.b32.xlu0 %v3180, 24
  %v3231 = vpop.permute.xlu0 %3230
  %3232 = vrot.lane.b32.xlu0 %v3183, 24
  %v3233 = vpop.permute.xlu0 %3232
  %3234 = vrot.lane.b32.xlu0 %v3188, 24
  %v3235 = vpop.permute.xlu0 %3234
  %3236 = vrot.lane.b32.xlu0 %v3191, 24
  %v3237 = vpop.permute.xlu0 %3236
  %v3242 = vsel %vm244, %v2640, %v3199
  %v3243 = vsel %vm244, %v2643, %v3201
  %v3244 = vsel %vm244, %v2648, %v3203
  %v3245 = vsel %vm244, %v2651, %v3205
  %v3246 = vsel %vm1009, %v3242, %v3215
  %v3247 = vsel %vm1009, %v3243, %v3217
  %v3248 = vsel %vm1009, %v3244, %v3219
  %v3249 = vsel %vm1009, %v3245, %v3221
  %v3250 = vsel %vm1014, %v3246, %v3231
  %v3251 = vsel %vm1014, %v3247, %v3233
  %v3252 = vsel %vm1014, %v3248, %v3235
  %v3253 = vsel %vm1014, %v3249, %v3237
  %v3254 = vpack.c.bf16 %v2463, %v2460
  %v3255 = vpack.c.bf16 %v2471, %v2468
  %3258 = vrot.lane.b32.xlu0 %v3254, 96
  %v3259 = vpop.permute.xlu0 %3258
  %3260 = vrot.lane.b32.xlu0 %v3255, 96
  %v3261 = vpop.permute.xlu0 %3260
  %v3263 = vsel %vm244, %v3254, 0
  %v3266 = vsel %vm244, %v3255, 0
  %v3269 = vsel %vm244, %v3259, 0
  %v3272 = vsel %vm244, %v3261, 0
  %3274 = vmatprep.subr.bf16.mxu0 0
  %3275 = vmatpush1.bf16.xpose.msra.mxu0 %v3269
  %3276 = vmatprep.subr.bf16.mxu0 0
  %3277 = vmatpush1.bf16.xpose.msra.mxu0 %v3272
  %3278 = vmatprep.subr.bf16.mxu0 0
  %3279 = vmatpush1.bf16.xpose.msra.mxu0 0
  %3280 = vmatprep.subr.bf16.mxu0 0
  %3281 = vmatpush1.bf16.xpose.msra.mxu0 0
  %3282 = vmatprep.subr.bf16.mxu0 0
  %3283 = vmatpush1.bf16.xpose.msra.mxu0 0
  %3284 = vmatprep.subr.bf16.mxu0 0
  %3285 = vmatpush1.bf16.xpose.msra.mxu0 0
  %3286 = vmatprep.subr.bf16.mxu0 0
  %3287 = vmatpush1.bf16.xpose.msra.mxu0 0
  %3288 = vmatprep.subr.bf16.mxu0 0
  %3289 = vmatpush1.bf16.xpose.msra.mxu0 0
  %3290 = vmatprep.subr.bf16.mxu0 0
  %3291 = vmatpush1.bf16.xpose.msra.mxu0 0
  %3292 = vmatprep.subr.bf16.mxu0 0
  %3293 = vmatpush1.bf16.xpose.msra.mxu0 0
  %3294 = vmatprep.subr.bf16.mxu0 0
  %3295 = vmatpush1.bf16.xpose.msra.mxu0 0
  %3296 = vmatprep.subr.bf16.mxu0 0
  %3297 = vmatpush1.bf16.xpose.msra.mxu0 0
  %3298 = vmatprep.subr.bf16.mxu0 0
  %3299 = vmatpush1.bf16.xpose.msra.mxu0 0
  %3300 = vmatprep.subr.bf16.mxu0 0
  %3301 = vmatpush1.bf16.xpose.msra.mxu0 0
  %3302 = vmatprep.subr.bf16.mxu0 0
  %3303 = vmatpush1.bf16.xpose.msra.mxu0 0
  %3304 = vmatprep.subr.bf16.mxu0 0
  %3305 = vmatpush1.bf16.xpose.msra.mxu0 0
  %3306 = vmatprep.mubr.bf16.mxu0 0
  %3307 = vmatmul.mubr.bf16.gmra.mrb[0].mxu0 %v3263
  %v3308 = vpop.f32.mrb[0].mxu0
  %v3309 = vadd.f32 0.0, %v3308
  %v3310 = vpop.f32.mrb[0].mxu0
  %v3311 = vpop.f32.mrb[0].mxu0
  %v3312 = vadd.f32 0.0, %v3311
  %v3313 = vpop.f32.mrb[0].mxu0
  %3314 = vmatprep.mubr.bf16.mxu0 0
  %3315 = vmatmul.mubr.bf16.gmra.mrb[0].mxu0 %v3266
  %v3316 = vpop.f32.mrb[0].mxu0
  %v3317 = vadd.f32 0.0, %v3316
  %v3318 = vpop.f32.mrb[0].mxu0
  %v3319 = vpop.f32.mrb[0].mxu0
  %v3320 = vadd.f32 0.0, %v3319
  %v3321 = vpop.f32.mrb[0].mxu0
  %3322 = vdwg.mxu0
  %v3323 = vmul.f32 %v3309, 0.35355338
  %v3324 = vmul.f32 %v3312, 0.35355338
  %v3325 = vmul.f32 %v3317, 0.35355338
  %v3326 = vmul.f32 %v3320, 0.35355338
  %v3327 = vsel %vm158, %v3323, -inf
  %3328 = vmax.xlane.f32.xlu0 %v3327
  %v3329 = vpop.xlane.xlu0 %3328
  %v3330 = vsel %vm158, %v3324, -inf
  %3331 = vmax.xlane.f32.xlu0 %v3330
  %v3332 = vpop.xlane.xlu0 %3331
  %v3333 = vsel %vm158, %v3325, -inf
  %3334 = vmax.xlane.f32.xlu0 %v3333
  %v3335 = vpop.xlane.xlu0 %3334
  %v3336 = vsel %vm158, %v3326, -inf
  %3337 = vmax.xlane.f32.xlu0 %v3336
  %v3338 = vpop.xlane.xlu0 %3337
  %v3339 = vsub.f32 %v3323, %v3329
  %v3340 = vsub.f32 %v3324, %v3332
  %v3341 = vsub.f32 %v3325, %v3335
  %v3342 = vsub.f32 %v3326, %v3338
  %v3343 = vmul.f32 %v3339, 1.442695
  %v3344 = vpow.pop %v3343
  %v3345 = vmul.f32 %v3340, 1.442695
  %v3346 = vpow.pop %v3345
  %v3347 = vmul.f32 %v3341, 1.442695
  %v3348 = vpow.pop %v3347
  %v3349 = vmul.f32 %v3342, 1.442695
  %v3350 = vpow.pop %v3349
  %v3351 = vsel %vm158, %v3344, 0.0
  %3352 = vadd.xlane.f32.xlu0 %v3351
  %v3353 = vpop.xlane.xlu0 %3352
  %v3354 = vsel %vm158, %v3346, 0.0
  %3355 = vadd.xlane.f32.xlu0 %v3354
  %v3356 = vpop.xlane.xlu0 %3355
  %v3357 = vsel %vm158, %v3348, 0.0
  %3358 = vadd.xlane.f32.xlu0 %v3357
  %v3359 = vpop.xlane.xlu0 %3358
  %v3360 = vsel %vm158, %v3350, 0.0
  %3361 = vadd.xlane.f32.xlu0 %v3360
  %v3362 = vpop.xlane.xlu0 %3361
  %v3363 = vrcp.pop %v3353
  %v3364 = vmul.f32 %v3344, %v3363
  %v3365 = vrcp.pop %v3356
  %v3366 = vmul.f32 %v3346, %v3365
  %v3367 = vrcp.pop %v3359
  %v3368 = vmul.f32 %v3348, %v3367
  %v3369 = vrcp.pop %v3362
  %v3370 = vmul.f32 %v3350, %v3369
  %v3371 = vpack.c.bf16 %v3366, %v3364
  %v3372 = vpack.c.bf16 %v3370, %v3368
  %3373 = vrot.lane.b32.xlu0 %v3254, 64
  %v3374 = vpop.permute.xlu0 %3373
  %3375 = vrot.lane.b32.xlu0 %v3255, 64
  %v3376 = vpop.permute.xlu0 %3375
  %v3380 = vsel %vm158, %v3371, 0
  %v3383 = vsel %vm158, %v3372, 0
  %3385 = vmatprep.subr.bf16.mxu0 0
  %3386 = vmatpush1.bf16.msra.mxu0 %v3374
  %3387 = vmatprep.subr.bf16.mxu0 0
  %3388 = vmatpush1.bf16.msra.mxu0 %v3376
  %3389 = vmatprep.subr.bf16.mxu0 0
  %3390 = vmatpush1.bf16.msra.mxu0 0
  %3391 = vmatprep.subr.bf16.mxu0 0
  %3392 = vmatpush1.bf16.msra.mxu0 0
  %3393 = vmatprep.subr.bf16.mxu0 0
  %3394 = vmatpush1.bf16.msra.mxu0 0
  %3395 = vmatprep.subr.bf16.mxu0 0
  %3396 = vmatpush1.bf16.msra.mxu0 0
  %3397 = vmatprep.subr.bf16.mxu0 0
  %3398 = vmatpush1.bf16.msra.mxu0 0
  %3399 = vmatprep.subr.bf16.mxu0 0
  %3400 = vmatpush1.bf16.msra.mxu0 0
  %3401 = vmatprep.subr.bf16.mxu0 0
  %3402 = vmatpush1.bf16.msra.mxu0 0
  %3403 = vmatprep.subr.bf16.mxu0 0
  %3404 = vmatpush1.bf16.msra.mxu0 0
  %3405 = vmatprep.subr.bf16.mxu0 0
  %3406 = vmatpush1.bf16.msra.mxu0 0
  %3407 = vmatprep.subr.bf16.mxu0 0
  %3408 = vmatpush1.bf16.msra.mxu0 0
  %3409 = vmatprep.subr.bf16.mxu0 0
  %3410 = vmatpush1.bf16.msra.mxu0 0
  %3411 = vmatprep.subr.bf16.mxu0 0
  %3412 = vmatpush1.bf16.msra.mxu0 0
  %3413 = vmatprep.subr.bf16.mxu0 0
  %3414 = vmatpush1.bf16.msra.mxu0 0
  %3415 = vmatprep.subr.bf16.mxu0 0
  %3416 = vmatpush1.bf16.msra.mxu0 0
  %3417 = vmatprep.mubr.bf16.mxu0 0
  %3418 = vmatmul.mubr.bf16.gmra.mrb[0].mxu0 %v3380
  %v3419 = vpop.f32.mrb[0].mxu0
  %v3420 = vadd.f32 0.0, %v3419
  %v3421 = vpop.f32.mrb[0].mxu0
  %v3422 = vpop.f32.mrb[0].mxu0
  %v3423 = vadd.f32 0.0, %v3422
  %v3424 = vpop.f32.mrb[0].mxu0
  %3425 = vmatprep.mubr.bf16.mxu0 0
  %3426 = vmatmul.mubr.bf16.gmra.mrb[0].mxu0 %v3383
  %v3427 = vpop.f32.mrb[0].mxu0
  %v3428 = vadd.f32 0.0, %v3427
  %v3429 = vpop.f32.mrb[0].mxu0
  %v3430 = vpop.f32.mrb[0].mxu0
  %v3431 = vadd.f32 0.0, %v3430
  %v3432 = vpop.f32.mrb[0].mxu0
  %3433 = vdwg.mxu0
  %3434 = vrot.lane.b32.xlu0 %v3254, 120
  %v3435 = vpop.permute.xlu0 %3434
  %3436 = vrot.lane.b32.xlu0 %v3255, 120
  %v3437 = vpop.permute.xlu0 %3436
  %3438 = vrot.lane.b32.xlu0 %v3254, 88
  %v3439 = vpop.permute.xlu0 %3438
  %3440 = vrot.lane.b32.xlu0 %v3255, 88
  %v3441 = vpop.permute.xlu0 %3440
  %v3443 = vsel %vm244, %v3435, 0
  %v3446 = vsel %vm244, %v3437, 0
  %v3449 = vsel %vm244, %v3439, 0
  %v3452 = vsel %vm244, %v3441, 0
  %3454 = vmatprep.subr.bf16.mxu0 0
  %3455 = vmatpush1.bf16.xpose.msra.mxu0 %v3449
  %3456 = vmatprep.subr.bf16.mxu0 0
  %3457 = vmatpush1.bf16.xpose.msra.mxu0 %v3452
  %3458 = vmatprep.subr.bf16.mxu0 0
  %3459 = vmatpush1.bf16.xpose.msra.mxu0 0
  %3460 = vmatprep.subr.bf16.mxu0 0
  %3461 = vmatpush1.bf16.xpose.msra.mxu0 0
  %3462 = vmatprep.subr.bf16.mxu0 0
  %3463 = vmatpush1.bf16.xpose.msra.mxu0 0
  %3464 = vmatprep.subr.bf16.mxu0 0
  %3465 = vmatpush1.bf16.xpose.msra.mxu0 0
  %3466 = vmatprep.subr.bf16.mxu0 0
  %3467 = vmatpush1.bf16.xpose.msra.mxu0 0
  %3468 = vmatprep.subr.bf16.mxu0 0
  %3469 = vmatpush1.bf16.xpose.msra.mxu0 0
  %3470 = vmatprep.subr.bf16.mxu0 0
  %3471 = vmatpush1.bf16.xpose.msra.mxu0 0
  %3472 = vmatprep.subr.bf16.mxu0 0
  %3473 = vmatpush1.bf16.xpose.msra.mxu0 0
  %3474 = vmatprep.subr.bf16.mxu0 0
  %3475 = vmatpush1.bf16.xpose.msra.mxu0 0
  %3476 = vmatprep.subr.bf16.mxu0 0
  %3477 = vmatpush1.bf16.xpose.msra.mxu0 0
  %3478 = vmatprep.subr.bf16.mxu0 0
  %3479 = vmatpush1.bf16.xpose.msra.mxu0 0
  %3480 = vmatprep.subr.bf16.mxu0 0
  %3481 = vmatpush1.bf16.xpose.msra.mxu0 0
  %3482 = vmatprep.subr.bf16.mxu0 0
  %3483 = vmatpush1.bf16.xpose.msra.mxu0 0
  %3484 = vmatprep.subr.bf16.mxu0 0
  %3485 = vmatpush1.bf16.xpose.msra.mxu0 0
  %3486 = vmatprep.mubr.bf16.mxu0 0
  %3487 = vmatmul.mubr.bf16.gmra.mrb[0].mxu0 %v3443
  %v3488 = vpop.f32.mrb[0].mxu0
  %v3489 = vadd.f32 0.0, %v3488
  %v3490 = vpop.f32.mrb[0].mxu0
  %v3491 = vpop.f32.mrb[0].mxu0
  %v3492 = vadd.f32 0.0, %v3491
  %v3493 = vpop.f32.mrb[0].mxu0
  %3494 = vmatprep.mubr.bf16.mxu0 0
  %3495 = vmatmul.mubr.bf16.gmra.mrb[0].mxu0 %v3446
  %v3496 = vpop.f32.mrb[0].mxu0
  %v3497 = vadd.f32 0.0, %v3496
  %v3498 = vpop.f32.mrb[0].mxu0
  %v3499 = vpop.f32.mrb[0].mxu0
  %v3500 = vadd.f32 0.0, %v3499
  %v3501 = vpop.f32.mrb[0].mxu0
  %3502 = vdwg.mxu0
  %v3503 = vmul.f32 %v3489, 0.35355338
  %v3504 = vmul.f32 %v3492, 0.35355338
  %v3505 = vmul.f32 %v3497, 0.35355338
  %v3506 = vmul.f32 %v3500, 0.35355338
  %v3507 = vsel %vm158, %v3503, -inf
  %3508 = vmax.xlane.f32.xlu0 %v3507
  %v3509 = vpop.xlane.xlu0 %3508
  %v3510 = vsel %vm158, %v3504, -inf
  %3511 = vmax.xlane.f32.xlu0 %v3510
  %v3512 = vpop.xlane.xlu0 %3511
  %v3513 = vsel %vm158, %v3505, -inf
  %3514 = vmax.xlane.f32.xlu0 %v3513
  %v3515 = vpop.xlane.xlu0 %3514
  %v3516 = vsel %vm158, %v3506, -inf
  %3517 = vmax.xlane.f32.xlu0 %v3516
  %v3518 = vpop.xlane.xlu0 %3517
  %v3519 = vsub.f32 %v3503, %v3509
  %v3520 = vsub.f32 %v3504, %v3512
  %v3521 = vsub.f32 %v3505, %v3515
  %v3522 = vsub.f32 %v3506, %v3518
  %v3523 = vmul.f32 %v3519, 1.442695
  %v3524 = vpow.pop %v3523
  %v3525 = vmul.f32 %v3520, 1.442695
  %v3526 = vpow.pop %v3525
  %v3527 = vmul.f32 %v3521, 1.442695
  %v3528 = vpow.pop %v3527
  %v3529 = vmul.f32 %v3522, 1.442695
  %v3530 = vpow.pop %v3529
  %v3531 = vsel %vm158, %v3524, 0.0
  %3532 = vadd.xlane.f32.xlu0 %v3531
  %v3533 = vpop.xlane.xlu0 %3532
  %v3534 = vsel %vm158, %v3526, 0.0
  %3535 = vadd.xlane.f32.xlu0 %v3534
  %v3536 = vpop.xlane.xlu0 %3535
  %v3537 = vsel %vm158, %v3528, 0.0
  %3538 = vadd.xlane.f32.xlu0 %v3537
  %v3539 = vpop.xlane.xlu0 %3538
  %v3540 = vsel %vm158, %v3530, 0.0
  %3541 = vadd.xlane.f32.xlu0 %v3540
  %v3542 = vpop.xlane.xlu0 %3541
  %v3543 = vrcp.pop %v3533
  %v3544 = vmul.f32 %v3524, %v3543
  %v3545 = vrcp.pop %v3536
  %v3546 = vmul.f32 %v3526, %v3545
  %v3547 = vrcp.pop %v3539
  %v3548 = vmul.f32 %v3528, %v3547
  %v3549 = vrcp.pop %v3542
  %v3550 = vmul.f32 %v3530, %v3549
  %v3551 = vpack.c.bf16 %v3546, %v3544
  %v3552 = vpack.c.bf16 %v3550, %v3548
  %3553 = vrot.lane.b32.xlu0 %v3254, 56
  %v3554 = vpop.permute.xlu0 %3553
  %3555 = vrot.lane.b32.xlu0 %v3255, 56
  %v3556 = vpop.permute.xlu0 %3555
  %v3560 = vsel %vm158, %v3551, 0
  %v3563 = vsel %vm158, %v3552, 0
  %3565 = vmatprep.subr.bf16.mxu0 0
  %3566 = vmatpush1.bf16.msra.mxu0 %v3554
  %3567 = vmatprep.subr.bf16.mxu0 0
  %3568 = vmatpush1.bf16.msra.mxu0 %v3556
  %3569 = vmatprep.subr.bf16.mxu0 0
  %3570 = vmatpush1.bf16.msra.mxu0 0
  %3571 = vmatprep.subr.bf16.mxu0 0
  %3572 = vmatpush1.bf16.msra.mxu0 0
  %3573 = vmatprep.subr.bf16.mxu0 0
  %3574 = vmatpush1.bf16.msra.mxu0 0
  %3575 = vmatprep.subr.bf16.mxu0 0
  %3576 = vmatpush1.bf16.msra.mxu0 0
  %3577 = vmatprep.subr.bf16.mxu0 0
  %3578 = vmatpush1.bf16.msra.mxu0 0
  %3579 = vmatprep.subr.bf16.mxu0 0
  %3580 = vmatpush1.bf16.msra.mxu0 0
  %3581 = vmatprep.subr.bf16.mxu0 0
  %3582 = vmatpush1.bf16.msra.mxu0 0
  %3583 = vmatprep.subr.bf16.mxu0 0
  %3584 = vmatpush1.bf16.msra.mxu0 0
  %3585 = vmatprep.subr.bf16.mxu0 0
  %3586 = vmatpush1.bf16.msra.mxu0 0
  %3587 = vmatprep.subr.bf16.mxu0 0
  %3588 = vmatpush1.bf16.msra.mxu0 0
  %3589 = vmatprep.subr.bf16.mxu0 0
  %3590 = vmatpush1.bf16.msra.mxu0 0
  %3591 = vmatprep.subr.bf16.mxu0 0
  %3592 = vmatpush1.bf16.msra.mxu0 0
  %3593 = vmatprep.subr.bf16.mxu0 0
  %3594 = vmatpush1.bf16.msra.mxu0 0
  %3595 = vmatprep.subr.bf16.mxu0 0
  %3596 = vmatpush1.bf16.msra.mxu0 0
  %3597 = vmatprep.mubr.bf16.mxu0 0
  %3598 = vmatmul.mubr.bf16.gmra.mrb[0].mxu0 %v3560
  %v3599 = vpop.f32.mrb[0].mxu0
  %v3600 = vadd.f32 0.0, %v3599
  %v3601 = vpop.f32.mrb[0].mxu0
  %v3602 = vpop.f32.mrb[0].mxu0
  %v3603 = vadd.f32 0.0, %v3602
  %v3604 = vpop.f32.mrb[0].mxu0
  %3605 = vmatprep.mubr.bf16.mxu0 0
  %3606 = vmatmul.mubr.bf16.gmra.mrb[0].mxu0 %v3563
  %v3607 = vpop.f32.mrb[0].mxu0
  %v3608 = vadd.f32 0.0, %v3607
  %v3609 = vpop.f32.mrb[0].mxu0
  %v3610 = vpop.f32.mrb[0].mxu0
  %v3611 = vadd.f32 0.0, %v3610
  %v3612 = vpop.f32.mrb[0].mxu0
  %3613 = vdwg.mxu0
  %3614 = vrot.lane.b32.xlu0 %v3254, 112
  %v3615 = vpop.permute.xlu0 %3614
  %3616 = vrot.lane.b32.xlu0 %v3255, 112
  %v3617 = vpop.permute.xlu0 %3616
  %3618 = vrot.lane.b32.xlu0 %v3254, 80
  %v3619 = vpop.permute.xlu0 %3618
  %3620 = vrot.lane.b32.xlu0 %v3255, 80
  %v3621 = vpop.permute.xlu0 %3620
  %v3623 = vsel %vm244, %v3615, 0
  %v3626 = vsel %vm244, %v3617, 0
  %v3629 = vsel %vm244, %v3619, 0
  %v3632 = vsel %vm244, %v3621, 0
  %3634 = vmatprep.subr.bf16.mxu0 0
  %3635 = vmatpush1.bf16.xpose.msra.mxu0 %v3629
  %3636 = vmatprep.subr.bf16.mxu0 0
  %3637 = vmatpush1.bf16.xpose.msra.mxu0 %v3632
  %3638 = vmatprep.subr.bf16.mxu0 0
  %3639 = vmatpush1.bf16.xpose.msra.mxu0 0
  %3640 = vmatprep.subr.bf16.mxu0 0
  %3641 = vmatpush1.bf16.xpose.msra.mxu0 0
  %3642 = vmatprep.subr.bf16.mxu0 0
  %3643 = vmatpush1.bf16.xpose.msra.mxu0 0
  %3644 = vmatprep.subr.bf16.mxu0 0
  %3645 = vmatpush1.bf16.xpose.msra.mxu0 0
  %3646 = vmatprep.subr.bf16.mxu0 0
  %3647 = vmatpush1.bf16.xpose.msra.mxu0 0
  %3648 = vmatprep.subr.bf16.mxu0 0
  %3649 = vmatpush1.bf16.xpose.msra.mxu0 0
  %3650 = vmatprep.subr.bf16.mxu0 0
  %3651 = vmatpush1.bf16.xpose.msra.mxu0 0
  %3652 = vmatprep.subr.bf16.mxu0 0
  %3653 = vmatpush1.bf16.xpose.msra.mxu0 0
  %3654 = vmatprep.subr.bf16.mxu0 0
  %3655 = vmatpush1.bf16.xpose.msra.mxu0 0
  %3656 = vmatprep.subr.bf16.mxu0 0
  %3657 = vmatpush1.bf16.xpose.msra.mxu0 0
  %3658 = vmatprep.subr.bf16.mxu0 0
  %3659 = vmatpush1.bf16.xpose.msra.mxu0 0
  %3660 = vmatprep.subr.bf16.mxu0 0
  %3661 = vmatpush1.bf16.xpose.msra.mxu0 0
  %3662 = vmatprep.subr.bf16.mxu0 0
  %3663 = vmatpush1.bf16.xpose.msra.mxu0 0
  %3664 = vmatprep.subr.bf16.mxu0 0
  %3665 = vmatpush1.bf16.xpose.msra.mxu0 0
  %3666 = vmatprep.mubr.bf16.mxu0 0
  %3667 = vmatmul.mubr.bf16.gmra.mrb[0].mxu0 %v3623
  %v3668 = vpop.f32.mrb[0].mxu0
  %v3669 = vadd.f32 0.0, %v3668
  %v3670 = vpop.f32.mrb[0].mxu0
  %v3671 = vpop.f32.mrb[0].mxu0
  %v3672 = vadd.f32 0.0, %v3671
  %v3673 = vpop.f32.mrb[0].mxu0
  %3674 = vmatprep.mubr.bf16.mxu0 0
  %3675 = vmatmul.mubr.bf16.gmra.mrb[0].mxu0 %v3626
  %v3676 = vpop.f32.mrb[0].mxu0
  %v3677 = vadd.f32 0.0, %v3676
  %v3678 = vpop.f32.mrb[0].mxu0
  %v3679 = vpop.f32.mrb[0].mxu0
  %v3680 = vadd.f32 0.0, %v3679
  %v3681 = vpop.f32.mrb[0].mxu0
  %3682 = vdwg.mxu0
  %v3683 = vmul.f32 %v3669, 0.35355338
  %v3684 = vmul.f32 %v3672, 0.35355338
  %v3685 = vmul.f32 %v3677, 0.35355338
  %v3686 = vmul.f32 %v3680, 0.35355338
  %v3687 = vsel %vm158, %v3683, -inf
  %3688 = vmax.xlane.f32.xlu0 %v3687
  %v3689 = vpop.xlane.xlu0 %3688
  %v3690 = vsel %vm158, %v3684, -inf
  %3691 = vmax.xlane.f32.xlu0 %v3690
  %v3692 = vpop.xlane.xlu0 %3691
  %v3693 = vsel %vm158, %v3685, -inf
  %3694 = vmax.xlane.f32.xlu0 %v3693
  %v3695 = vpop.xlane.xlu0 %3694
  %v3696 = vsel %vm158, %v3686, -inf
  %3697 = vmax.xlane.f32.xlu0 %v3696
  %v3698 = vpop.xlane.xlu0 %3697
  %v3699 = vsub.f32 %v3683, %v3689
  %v3700 = vsub.f32 %v3684, %v3692
  %v3701 = vsub.f32 %v3685, %v3695
  %v3702 = vsub.f32 %v3686, %v3698
  %v3703 = vmul.f32 %v3699, 1.442695
  %v3704 = vpow.pop %v3703
  %v3705 = vmul.f32 %v3700, 1.442695
  %v3706 = vpow.pop %v3705
  %v3707 = vmul.f32 %v3701, 1.442695
  %v3708 = vpow.pop %v3707
  %v3709 = vmul.f32 %v3702, 1.442695
  %v3710 = vpow.pop %v3709
  %v3711 = vsel %vm158, %v3704, 0.0
  %3712 = vadd.xlane.f32.xlu0 %v3711
  %v3713 = vpop.xlane.xlu0 %3712
  %v3714 = vsel %vm158, %v3706, 0.0
  %3715 = vadd.xlane.f32.xlu0 %v3714
  %v3716 = vpop.xlane.xlu0 %3715
  %v3717 = vsel %vm158, %v3708, 0.0
  %3718 = vadd.xlane.f32.xlu0 %v3717
  %v3719 = vpop.xlane.xlu0 %3718
  %v3720 = vsel %vm158, %v3710, 0.0
  %3721 = vadd.xlane.f32.xlu0 %v3720
  %v3722 = vpop.xlane.xlu0 %3721
  %v3723 = vrcp.pop %v3713
  %v3724 = vmul.f32 %v3704, %v3723
  %v3725 = vrcp.pop %v3716
  %v3726 = vmul.f32 %v3706, %v3725
  %v3727 = vrcp.pop %v3719
  %v3728 = vmul.f32 %v3708, %v3727
  %v3729 = vrcp.pop %v3722
  %v3730 = vmul.f32 %v3710, %v3729
  %v3731 = vpack.c.bf16 %v3726, %v3724
  %v3732 = vpack.c.bf16 %v3730, %v3728
  %3733 = vrot.lane.b32.xlu0 %v3254, 48
  %v3734 = vpop.permute.xlu0 %3733
  %3735 = vrot.lane.b32.xlu0 %v3255, 48
  %v3736 = vpop.permute.xlu0 %3735
  %v3740 = vsel %vm158, %v3731, 0
  %v3743 = vsel %vm158, %v3732, 0
  %3745 = vmatprep.subr.bf16.mxu0 0
  %3746 = vmatpush1.bf16.msra.mxu0 %v3734
  %3747 = vmatprep.subr.bf16.mxu0 0
  %3748 = vmatpush1.bf16.msra.mxu0 %v3736
  %3749 = vmatprep.subr.bf16.mxu0 0
  %3750 = vmatpush1.bf16.msra.mxu0 0
  %3751 = vmatprep.subr.bf16.mxu0 0
  %3752 = vmatpush1.bf16.msra.mxu0 0
  %3753 = vmatprep.subr.bf16.mxu0 0
  %3754 = vmatpush1.bf16.msra.mxu0 0
  %3755 = vmatprep.subr.bf16.mxu0 0
  %3756 = vmatpush1.bf16.msra.mxu0 0
  %3757 = vmatprep.subr.bf16.mxu0 0
  %3758 = vmatpush1.bf16.msra.mxu0 0
  %3759 = vmatprep.subr.bf16.mxu0 0
  %3760 = vmatpush1.bf16.msra.mxu0 0
  %3761 = vmatprep.subr.bf16.mxu0 0
  %3762 = vmatpush1.bf16.msra.mxu0 0
  %3763 = vmatprep.subr.bf16.mxu0 0
  %3764 = vmatpush1.bf16.msra.mxu0 0
  %3765 = vmatprep.subr.bf16.mxu0 0
  %3766 = vmatpush1.bf16.msra.mxu0 0
  %3767 = vmatprep.subr.bf16.mxu0 0
  %3768 = vmatpush1.bf16.msra.mxu0 0
  %3769 = vmatprep.subr.bf16.mxu0 0
  %3770 = vmatpush1.bf16.msra.mxu0 0
  %3771 = vmatprep.subr.bf16.mxu0 0
  %3772 = vmatpush1.bf16.msra.mxu0 0
  %3773 = vmatprep.subr.bf16.mxu0 0
  %3774 = vmatpush1.bf16.msra.mxu0 0
  %3775 = vmatprep.subr.bf16.mxu0 0
  %3776 = vmatpush1.bf16.msra.mxu0 0
  %3777 = vmatprep.mubr.bf16.mxu0 0
  %3778 = vmatmul.mubr.bf16.gmra.mrb[0].mxu0 %v3740
  %v3779 = vpop.f32.mrb[0].mxu0
  %v3780 = vadd.f32 0.0, %v3779
  %v3781 = vpop.f32.mrb[0].mxu0
  %v3782 = vpop.f32.mrb[0].mxu0
  %v3783 = vadd.f32 0.0, %v3782
  %v3784 = vpop.f32.mrb[0].mxu0
  %3785 = vmatprep.mubr.bf16.mxu0 0
  %3786 = vmatmul.mubr.bf16.gmra.mrb[0].mxu0 %v3743
  %v3787 = vpop.f32.mrb[0].mxu0
  %v3788 = vadd.f32 0.0, %v3787
  %v3789 = vpop.f32.mrb[0].mxu0
  %v3790 = vpop.f32.mrb[0].mxu0
  %v3791 = vadd.f32 0.0, %v3790
  %v3792 = vpop.f32.mrb[0].mxu0
  %3793 = vdwg.mxu0
  %3794 = vrot.lane.b32.xlu0 %v3254, 104
  %v3795 = vpop.permute.xlu0 %3794
  %3796 = vrot.lane.b32.xlu0 %v3255, 104
  %v3797 = vpop.permute.xlu0 %3796
  %3798 = vrot.lane.b32.xlu0 %v3254, 72
  %v3799 = vpop.permute.xlu0 %3798
  %3800 = vrot.lane.b32.xlu0 %v3255, 72
  %v3801 = vpop.permute.xlu0 %3800
  %v3803 = vsel %vm244, %v3795, 0
  %v3806 = vsel %vm244, %v3797, 0
  %v3809 = vsel %vm244, %v3799, 0
  %v3812 = vsel %vm244, %v3801, 0
  %3814 = vmatprep.subr.bf16.mxu0 0
  %3815 = vmatpush1.bf16.xpose.msra.mxu0 %v3809
  %3816 = vmatprep.subr.bf16.mxu0 0
  %3817 = vmatpush1.bf16.xpose.msra.mxu0 %v3812
  %3818 = vmatprep.subr.bf16.mxu0 0
  %3819 = vmatpush1.bf16.xpose.msra.mxu0 0
  %3820 = vmatprep.subr.bf16.mxu0 0
  %3821 = vmatpush1.bf16.xpose.msra.mxu0 0
  %3822 = vmatprep.subr.bf16.mxu0 0
  %3823 = vmatpush1.bf16.xpose.msra.mxu0 0
  %3824 = vmatprep.subr.bf16.mxu0 0
  %3825 = vmatpush1.bf16.xpose.msra.mxu0 0
  %3826 = vmatprep.subr.bf16.mxu0 0
  %3827 = vmatpush1.bf16.xpose.msra.mxu0 0
  %3828 = vmatprep.subr.bf16.mxu0 0
  %3829 = vmatpush1.bf16.xpose.msra.mxu0 0
  %3830 = vmatprep.subr.bf16.mxu0 0
  %3831 = vmatpush1.bf16.xpose.msra.mxu0 0
  %3832 = vmatprep.subr.bf16.mxu0 0
  %3833 = vmatpush1.bf16.xpose.msra.mxu0 0
  %3834 = vmatprep.subr.bf16.mxu0 0
  %3835 = vmatpush1.bf16.xpose.msra.mxu0 0
  %3836 = vmatprep.subr.bf16.mxu0 0
  %3837 = vmatpush1.bf16.xpose.msra.mxu0 0
  %3838 = vmatprep.subr.bf16.mxu0 0
  %3839 = vmatpush1.bf16.xpose.msra.mxu0 0
  %3840 = vmatprep.subr.bf16.mxu0 0
  %3841 = vmatpush1.bf16.xpose.msra.mxu0 0
  %3842 = vmatprep.subr.bf16.mxu0 0
  %3843 = vmatpush1.bf16.xpose.msra.mxu0 0
  %3844 = vmatprep.subr.bf16.mxu0 0
  %3845 = vmatpush1.bf16.xpose.msra.mxu0 0
  %3846 = vmatprep.mubr.bf16.mxu0 0
  %3847 = vmatmul.mubr.bf16.gmra.mrb[0].mxu0 %v3803
  %v3848 = vpop.f32.mrb[0].mxu0
  %v3849 = vadd.f32 0.0, %v3848
  %v3850 = vpop.f32.mrb[0].mxu0
  %v3851 = vpop.f32.mrb[0].mxu0
  %v3852 = vadd.f32 0.0, %v3851
  %v3853 = vpop.f32.mrb[0].mxu0
  %3854 = vmatprep.mubr.bf16.mxu0 0
  %3855 = vmatmul.mubr.bf16.gmra.mrb[0].mxu0 %v3806
  %v3856 = vpop.f32.mrb[0].mxu0
  %v3857 = vadd.f32 0.0, %v3856
  %v3858 = vpop.f32.mrb[0].mxu0
  %v3859 = vpop.f32.mrb[0].mxu0
  %v3860 = vadd.f32 0.0, %v3859
  %v3861 = vpop.f32.mrb[0].mxu0
  %3862 = vdwg.mxu0
  %v3863 = vmul.f32 %v3849, 0.35355338
  %v3864 = vmul.f32 %v3852, 0.35355338
  %v3865 = vmul.f32 %v3857, 0.35355338
  %v3866 = vmul.f32 %v3860, 0.35355338
  %v3867 = vsel %vm158, %v3863, -inf
  %3868 = vmax.xlane.f32.xlu0 %v3867
  %v3869 = vpop.xlane.xlu0 %3868
  %v3870 = vsel %vm158, %v3864, -inf
  %3871 = vmax.xlane.f32.xlu0 %v3870
  %v3872 = vpop.xlane.xlu0 %3871
  %v3873 = vsel %vm158, %v3865, -inf
  %3874 = vmax.xlane.f32.xlu0 %v3873
  %v3875 = vpop.xlane.xlu0 %3874
  %v3876 = vsel %vm158, %v3866, -inf
  %3877 = vmax.xlane.f32.xlu0 %v3876
  %v3878 = vpop.xlane.xlu0 %3877
  %v3879 = vsub.f32 %v3863, %v3869
  %v3880 = vsub.f32 %v3864, %v3872
  %v3881 = vsub.f32 %v3865, %v3875
  %v3882 = vsub.f32 %v3866, %v3878
  %v3883 = vmul.f32 %v3879, 1.442695
  %v3884 = vpow.pop %v3883
  %v3885 = vmul.f32 %v3880, 1.442695
  %v3886 = vpow.pop %v3885
  %v3887 = vmul.f32 %v3881, 1.442695
  %v3888 = vpow.pop %v3887
  %v3889 = vmul.f32 %v3882, 1.442695
  %v3890 = vpow.pop %v3889
  %v3891 = vsel %vm158, %v3884, 0.0
  %3892 = vadd.xlane.f32.xlu0 %v3891
  %v3893 = vpop.xlane.xlu0 %3892
  %v3894 = vsel %vm158, %v3886, 0.0
  %3895 = vadd.xlane.f32.xlu0 %v3894
  %v3896 = vpop.xlane.xlu0 %3895
  %v3897 = vsel %vm158, %v3888, 0.0
  %3898 = vadd.xlane.f32.xlu0 %v3897
  %v3899 = vpop.xlane.xlu0 %3898
  %v3900 = vsel %vm158, %v3890, 0.0
  %3901 = vadd.xlane.f32.xlu0 %v3900
  %v3902 = vpop.xlane.xlu0 %3901
  %v3903 = vrcp.pop %v3893
  %v3904 = vmul.f32 %v3884, %v3903
  %v3905 = vrcp.pop %v3896
  %v3906 = vmul.f32 %v3886, %v3905
  %v3907 = vrcp.pop %v3899
  %v3908 = vmul.f32 %v3888, %v3907
  %v3909 = vrcp.pop %v3902
  %v3910 = vmul.f32 %v3890, %v3909
  %v3911 = vpack.c.bf16 %v3906, %v3904
  %v3912 = vpack.c.bf16 %v3910, %v3908
  %3913 = vrot.lane.b32.xlu0 %v3254, 40
  %v3914 = vpop.permute.xlu0 %3913
  %3915 = vrot.lane.b32.xlu0 %v3255, 40
  %v3916 = vpop.permute.xlu0 %3915
  %v3920 = vsel %vm158, %v3911, 0
  %v3923 = vsel %vm158, %v3912, 0
  %3925 = vmatprep.subr.bf16.mxu0 0
  %3926 = vmatpush1.bf16.msra.mxu0 %v3914
  %3927 = vmatprep.subr.bf16.mxu0 0
  %3928 = vmatpush1.bf16.msra.mxu0 %v3916
  %3929 = vmatprep.subr.bf16.mxu0 0
  %3930 = vmatpush1.bf16.msra.mxu0 0
  %3931 = vmatprep.subr.bf16.mxu0 0
  %3932 = vmatpush1.bf16.msra.mxu0 0
  %3933 = vmatprep.subr.bf16.mxu0 0
  %3934 = vmatpush1.bf16.msra.mxu0 0
  %3935 = vmatprep.subr.bf16.mxu0 0
  %3936 = vmatpush1.bf16.msra.mxu0 0
  %3937 = vmatprep.subr.bf16.mxu0 0
  %3938 = vmatpush1.bf16.msra.mxu0 0
  %3939 = vmatprep.subr.bf16.mxu0 0
  %3940 = vmatpush1.bf16.msra.mxu0 0
  %3941 = vmatprep.subr.bf16.mxu0 0
  %3942 = vmatpush1.bf16.msra.mxu0 0
  %3943 = vmatprep.subr.bf16.mxu0 0
  %3944 = vmatpush1.bf16.msra.mxu0 0
  %3945 = vmatprep.subr.bf16.mxu0 0
  %3946 = vmatpush1.bf16.msra.mxu0 0
  %3947 = vmatprep.subr.bf16.mxu0 0
  %3948 = vmatpush1.bf16.msra.mxu0 0
  %3949 = vmatprep.subr.bf16.mxu0 0
  %3950 = vmatpush1.bf16.msra.mxu0 0
  %3951 = vmatprep.subr.bf16.mxu0 0
  %3952 = vmatpush1.bf16.msra.mxu0 0
  %3953 = vmatprep.subr.bf16.mxu0 0
  %3954 = vmatpush1.bf16.msra.mxu0 0
  %3955 = vmatprep.subr.bf16.mxu0 0
  %3956 = vmatpush1.bf16.msra.mxu0 0
  %3957 = vmatprep.mubr.bf16.mxu0 0
  %3958 = vmatmul.mubr.bf16.gmra.mrb[0].mxu0 %v3920
  %v3959 = vpop.f32.mrb[0].mxu0
  %v3960 = vadd.f32 0.0, %v3959
  %v3961 = vpop.f32.mrb[0].mxu0
  %v3962 = vpop.f32.mrb[0].mxu0
  %v3963 = vadd.f32 0.0, %v3962
  %v3964 = vpop.f32.mrb[0].mxu0
  %3965 = vmatprep.mubr.bf16.mxu0 0
  %3966 = vmatmul.mubr.bf16.gmra.mrb[0].mxu0 %v3923
  %v3967 = vpop.f32.mrb[0].mxu0
  %v3968 = vadd.f32 0.0, %v3967
  %v3969 = vpop.f32.mrb[0].mxu0
  %v3970 = vpop.f32.mrb[0].mxu0
  %v3971 = vadd.f32 0.0, %v3970
  %v3972 = vpop.f32.mrb[0].mxu0
  %3973 = vdwg.mxu0
  %3978 = vrot.lane.b32.xlu0 %v3600, 8
  %v3979 = vpop.permute.xlu0 %3978
  %3980 = vrot.lane.b32.xlu0 %v3603, 8
  %v3981 = vpop.permute.xlu0 %3980
  %3982 = vrot.lane.b32.xlu0 %v3608, 8
  %v3983 = vpop.permute.xlu0 %3982
  %3984 = vrot.lane.b32.xlu0 %v3611, 8
  %v3985 = vpop.permute.xlu0 %3984
  %3994 = vrot.lane.b32.xlu0 %v3780, 16
  %v3995 = vpop.permute.xlu0 %3994
  %3996 = vrot.lane.b32.xlu0 %v3783, 16
  %v3997 = vpop.permute.xlu0 %3996
  %3998 = vrot.lane.b32.xlu0 %v3788, 16
  %v3999 = vpop.permute.xlu0 %3998
  %4000 = vrot.lane.b32.xlu0 %v3791, 16
  %v4001 = vpop.permute.xlu0 %4000
  %4010 = vrot.lane.b32.xlu0 %v3960, 24
  %v4011 = vpop.permute.xlu0 %4010
  %4012 = vrot.lane.b32.xlu0 %v3963, 24
  %v4013 = vpop.permute.xlu0 %4012
  %4014 = vrot.lane.b32.xlu0 %v3968, 24
  %v4015 = vpop.permute.xlu0 %4014
  %4016 = vrot.lane.b32.xlu0 %v3971, 24
  %v4017 = vpop.permute.xlu0 %4016
  %v4022 = vsel %vm244, %v3420, %v3979
  %v4023 = vsel %vm244, %v3423, %v3981
  %v4024 = vsel %vm244, %v3428, %v3983
  %v4025 = vsel %vm244, %v3431, %v3985
  %v4026 = vsel %vm1009, %v4022, %v3995
  %v4027 = vsel %vm1009, %v4023, %v3997
  %v4028 = vsel %vm1009, %v4024, %v3999
  %v4029 = vsel %vm1009, %v4025, %v4001
  %v4030 = vsel %vm1014, %v4026, %v4011
  %v4031 = vsel %vm1014, %v4027, %v4013
  %v4032 = vsel %vm1014, %v4028, %v4015
  %v4033 = vsel %vm1014, %v4029, %v4017
  %v4034 = vpack.c.bf16 %v3251, %v3250
  %v4035 = vpack.c.bf16 %v3253, %v3252
  %v4036 = vpack.c.bf16 %v4031, %v4030
  %v4037 = vpack.c.bf16 %v4033, %v4032
  %v4038 = vpack.c.bf16 %v2355, %v2354
  %v4039 = vpack.c.bf16 %v2357, %v2356
  %v4041 = vlaneseq
  %v4042 = vshrl.u32 %v4041, 7
  %v4043 = vsub.s32 0, %v4042
  %v4044 = vrot.slane %v2358, %v4043
  %v4047 = vsel %vm158, %v4034, 0
  %v4050 = vsel %vm158, %v4035, 0
  %v4053 = vsel %vm158, %v4036, 0
  %v4056 = vsel %vm158, %v4037, 0
  %4058 = vmatprep.subr.bf16.mxu0 0
  %4059 = vmatpush1.bf16.msra.mxu0 %v4038
  %4060 = vmatprep.subr.bf16.mxu0 0
  %4061 = vmatpush1.bf16.msra.mxu0 %v4039
  %4062 = vmatprep.subr.bf16.mxu0 0
  %4063 = vmatpush1.bf16.msra.mxu0 0
  %4064 = vmatprep.subr.bf16.mxu0 0
  %4065 = vmatpush1.bf16.msra.mxu0 0
  %4066 = vmatprep.subr.bf16.mxu0 0
  %4067 = vmatpush1.bf16.msra.mxu0 0
  %4068 = vmatprep.subr.bf16.mxu0 0
  %4069 = vmatpush1.bf16.msra.mxu0 0
  %4070 = vmatprep.subr.bf16.mxu0 0
  %4071 = vmatpush1.bf16.msra.mxu0 0
  %4072 = vmatprep.subr.bf16.mxu0 0
  %4073 = vmatpush1.bf16.msra.mxu0 0
  %4074 = vmatprep.subr.bf16.mxu0 0
  %4075 = vmatpush1.bf16.msra.mxu0 0
  %4076 = vmatprep.subr.bf16.mxu0 0
  %4077 = vmatpush1.bf16.msra.mxu0 0
  %4078 = vmatprep.subr.bf16.mxu0 0
  %4079 = vmatpush1.bf16.msra.mxu0 0
  %4080 = vmatprep.subr.bf16.mxu0 0
  %4081 = vmatpush1.bf16.msra.mxu0 0
  %4082 = vmatprep.subr.bf16.mxu0 0
  %4083 = vmatpush1.bf16.msra.mxu0 0
  %4084 = vmatprep.subr.bf16.mxu0 0
  %4085 = vmatpush1.bf16.msra.mxu0 0
  %4086 = vmatprep.subr.bf16.mxu0 0
  %4087 = vmatpush1.bf16.msra.mxu0 0
  %4088 = vmatprep.subr.bf16.mxu0 0
  %4089 = vmatpush1.bf16.msra.mxu0 0
  %4090 = vmatprep.mubr.bf16.mxu0 0
  %4091 = vmatmul.mubr.bf16.gmra.mrb[0].mxu0 %v4047
  %v4092 = vpop.f32.mrb[0].mxu0
  %v4093 = vadd.f32 %v4044, %v4092
  %v4094 = vpop.f32.mrb[0].mxu0
  %v4095 = vpop.f32.mrb[0].mxu0
  %v4096 = vadd.f32 %v4044, %v4095
  %v4097 = vpop.f32.mrb[0].mxu0
  %4098 = vmatprep.mubr.bf16.mxu0 0
  %4099 = vmatmul.mubr.bf16.gmra.mrb[0].mxu0 %v4050
  %v4100 = vpop.f32.mrb[0].mxu0
  %v4101 = vadd.f32 %v4044, %v4100
  %v4102 = vpop.f32.mrb[0].mxu0
  %v4103 = vpop.f32.mrb[0].mxu0
  %v4104 = vadd.f32 %v4044, %v4103
  %v4105 = vpop.f32.mrb[0].mxu0
  %4106 = vmatprep.mubr.bf16.mxu0 0
  %4107 = vmatmul.mubr.bf16.gmra.mrb[0].mxu0 %v4053
  %v4108 = vpop.f32.mrb[0].mxu0
  %v4109 = vadd.f32 %v4044, %v4108
  %v4110 = vpop.f32.mrb[0].mxu0
  %v4111 = vpop.f32.mrb[0].mxu0
  %v4112 = vadd.f32 %v4044, %v4111
  %v4113 = vpop.f32.mrb[0].mxu0
  %4114 = vmatprep.mubr.bf16.mxu0 0
  %4115 = vmatmul.mubr.bf16.gmra.mrb[0].mxu0 %v4056
  %v4116 = vpop.f32.mrb[0].mxu0
  %v4117 = vadd.f32 %v4044, %v4116
  %v4118 = vpop.f32.mrb[0].mxu0
  %v4119 = vpop.f32.mrb[0].mxu0
  %v4120 = vadd.f32 %v4044, %v4119
  %v4121 = vpop.f32.mrb[0].mxu0
  %4122 = vdwg.mxu0
  %v4123 = vadd.f32 %v2341, %v4093
  %v4124 = vadd.f32 %v2342, %v4096
  %v4125 = vadd.f32 %v2343, %v4101
  %v4126 = vadd.f32 %v2344, %v4104
  %v4127 = vadd.f32 %v2345, %v4109
  %v4128 = vadd.f32 %v2346, %v4112
  %v4129 = vadd.f32 %v2347, %v4117
  %v4130 = vadd.f32 %v2348, %v4120
  %v4131 = vsel %vm158, %v4123, 0.0
  %4132 = vadd.xlane.f32.xlu0 %v4131
  %v4133 = vpop.xlane.xlu0 %4132
  %v4134 = vsel %vm158, %v4124, 0.0
  %4135 = vadd.xlane.f32.xlu0 %v4134
  %v4136 = vpop.xlane.xlu0 %4135
  %v4137 = vsel %vm158, %v4125, 0.0
  %4138 = vadd.xlane.f32.xlu0 %v4137
  %v4139 = vpop.xlane.xlu0 %4138
  %v4140 = vsel %vm158, %v4126, 0.0
  %4141 = vadd.xlane.f32.xlu0 %v4140
  %v4142 = vpop.xlane.xlu0 %4141
  %v4143 = vsel %vm158, %v4127, 0.0
  %4144 = vadd.xlane.f32.xlu0 %v4143
  %v4145 = vpop.xlane.xlu0 %4144
  %v4146 = vsel %vm158, %v4128, 0.0
  %4147 = vadd.xlane.f32.xlu0 %v4146
  %v4148 = vpop.xlane.xlu0 %4147
  %v4149 = vsel %vm158, %v4129, 0.0
  %4150 = vadd.xlane.f32.xlu0 %v4149
  %v4151 = vpop.xlane.xlu0 %4150
  %v4152 = vsel %vm158, %v4130, 0.0
  %4153 = vadd.xlane.f32.xlu0 %v4152
  %v4154 = vpop.xlane.xlu0 %4153
  %v4155 = vmul.f32 %v4133, %v1920
  %v4156 = vmul.f32 %v4136, %v1920
  %v4157 = vmul.f32 %v4139, %v1920
  %v4158 = vmul.f32 %v4142, %v1920
  %v4159 = vmul.f32 %v4145, %v1920
  %v4160 = vmul.f32 %v4148, %v1920
  %v4161 = vmul.f32 %v4151, %v1920
  %v4162 = vmul.f32 %v4154, %v1920
  %v4163 = vsub.f32 %v4123, %v4155
  %v4164 = vsub.f32 %v4124, %v4156
  %v4165 = vsub.f32 %v4125, %v4157
  %v4166 = vsub.f32 %v4126, %v4158
  %v4167 = vsub.f32 %v4127, %v4159
  %v4168 = vsub.f32 %v4128, %v4160
  %v4169 = vsub.f32 %v4129, %v4161
  %v4170 = vsub.f32 %v4130, %v4162
  %v4171 = vmul.f32 %v4163, %v4163
  %v4172 = vmul.f32 %v4164, %v4164
  %v4173 = vmul.f32 %v4165, %v4165
  %v4174 = vmul.f32 %v4166, %v4166
  %v4175 = vmul.f32 %v4167, %v4167
  %v4176 = vmul.f32 %v4168, %v4168
  %v4177 = vmul.f32 %v4169, %v4169
  %v4178 = vmul.f32 %v4170, %v4170
  %v4179 = vsel %vm158, %v4171, 0.0
  %4180 = vadd.xlane.f32.xlu0 %v4179
  %v4181 = vpop.xlane.xlu0 %4180
  %v4182 = vsel %vm158, %v4172, 0.0
  %4183 = vadd.xlane.f32.xlu0 %v4182
  %v4184 = vpop.xlane.xlu0 %4183
  %v4185 = vsel %vm158, %v4173, 0.0
  %4186 = vadd.xlane.f32.xlu0 %v4185
  %v4187 = vpop.xlane.xlu0 %4186
  %v4188 = vsel %vm158, %v4174, 0.0
  %4189 = vadd.xlane.f32.xlu0 %v4188
  %v4190 = vpop.xlane.xlu0 %4189
  %v4191 = vsel %vm158, %v4175, 0.0
  %4192 = vadd.xlane.f32.xlu0 %v4191
  %v4193 = vpop.xlane.xlu0 %4192
  %v4194 = vsel %vm158, %v4176, 0.0
  %4195 = vadd.xlane.f32.xlu0 %v4194
  %v4196 = vpop.xlane.xlu0 %4195
  %v4197 = vsel %vm158, %v4177, 0.0
  %4198 = vadd.xlane.f32.xlu0 %v4197
  %v4199 = vpop.xlane.xlu0 %4198
  %v4200 = vsel %vm158, %v4178, 0.0
  %4201 = vadd.xlane.f32.xlu0 %v4200
  %v4202 = vpop.xlane.xlu0 %4201
  %v4203 = vmul.f32 %v4181, %v1920
  %v4204 = vmul.f32 %v4184, %v1920
  %v4205 = vmul.f32 %v4187, %v1920
  %v4206 = vmul.f32 %v4190, %v1920
  %v4207 = vmul.f32 %v4193, %v1920
  %v4208 = vmul.f32 %v4196, %v1920
  %v4209 = vmul.f32 %v4199, %v1920
  %v4210 = vmul.f32 %v4202, %v1920
  %v4211 = vadd.f32 %v4203, 1e-05
  %v4212 = vadd.f32 %v4204, 1e-05
  %v4213 = vadd.f32 %v4205, 1e-05
  %v4214 = vadd.f32 %v4206, 1e-05
  %v4215 = vadd.f32 %v4207, 1e-05
  %v4216 = vadd.f32 %v4208, 1e-05
  %v4217 = vadd.f32 %v4209, 1e-05
  %v4218 = vadd.f32 %v4210, 1e-05
  %v4219 = vrsqrt.pop %v4211
  %v4220 = vrsqrt.pop %v4212
  %v4221 = vrsqrt.pop %v4213
  %v4222 = vrsqrt.pop %v4214
  %v4223 = vrsqrt.pop %v4215
  %v4224 = vrsqrt.pop %v4216
  %v4225 = vrsqrt.pop %v4217
  %v4226 = vrsqrt.pop %v4218
  %v4227 = vmul.f32 %v4163, %v4219
  %v4228 = vmul.f32 %v4164, %v4220
  %v4229 = vmul.f32 %v4165, %v4221
  %v4230 = vmul.f32 %v4166, %v4222
  %v4231 = vmul.f32 %v4167, %v4223
  %v4232 = vmul.f32 %v4168, %v4224
  %v4233 = vmul.f32 %v4169, %v4225
  %v4234 = vmul.f32 %v4170, %v4226
  %v4236 = vlaneseq
  %v4237 = vshrl.u32 %v4236, 7
  %v4238 = vsub.s32 0, %v4237
  %v4239 = vrot.slane %v2381, %v4238
  %v4241 = vmul.f32 %v4227, %v4239
  %v4242 = vmul.f32 %v4228, %v4239
  %v4243 = vmul.f32 %v4229, %v4239
  %v4244 = vmul.f32 %v4230, %v4239
  %v4245 = vmul.f32 %v4231, %v4239
  %v4246 = vmul.f32 %v4232, %v4239
  %v4247 = vmul.f32 %v4233, %v4239
  %v4248 = vmul.f32 %v4234, %v4239
  %v4250 = vlaneseq
  %v4251 = vshrl.u32 %v4250, 7
  %v4252 = vsub.s32 0, %v4251
  %v4253 = vrot.slane %v2382, %v4252
  %v4255 = vadd.f32 %v4241, %v4253
  %v4256 = vadd.f32 %v4242, %v4253
  %v4257 = vadd.f32 %v4243, %v4253
  %v4258 = vadd.f32 %v4244, %v4253
  %v4259 = vadd.f32 %v4245, %v4253
  %v4260 = vadd.f32 %v4246, %v4253
  %v4261 = vadd.f32 %v4247, %v4253
  %v4262 = vadd.f32 %v4248, %v4253
  %v4263 = vpack.c.bf16 %v4256, %v4255
  %v4264 = vpack.c.bf16 %v4258, %v4257
  %v4265 = vpack.c.bf16 %v4260, %v4259
  %v4266 = vpack.c.bf16 %v4262, %v4261
  %v4267 = vpack.c.bf16 %v2360, %v2359
  %v4268 = vpack.c.bf16 %v2362, %v2361
  %v4270 = vlaneseq
  %v4271 = vshrl.u32 %v4270, 7
  %v4272 = vsub.s32 0, %v4271
  %v4273 = vrot.slane %v2363, %v4272
  %v4276 = vsel %vm158, %v4263, 0
  %v4279 = vsel %vm158, %v4264, 0
  %v4282 = vsel %vm158, %v4265, 0
  %v4285 = vsel %vm158, %v4266, 0
  %4287 = vmatprep.subr.bf16.mxu0 0
  %4288 = vmatpush1.bf16.msra.mxu0 %v4267
  %4289 = vmatprep.subr.bf16.mxu0 0
  %4290 = vmatpush1.bf16.msra.mxu0 %v4268
  %4291 = vmatprep.subr.bf16.mxu0 0
  %4292 = vmatpush1.bf16.msra.mxu0 0
  %4293 = vmatprep.subr.bf16.mxu0 0
  %4294 = vmatpush1.bf16.msra.mxu0 0
  %4295 = vmatprep.subr.bf16.mxu0 0
  %4296 = vmatpush1.bf16.msra.mxu0 0
  %4297 = vmatprep.subr.bf16.mxu0 0
  %4298 = vmatpush1.bf16.msra.mxu0 0
  %4299 = vmatprep.subr.bf16.mxu0 0
  %4300 = vmatpush1.bf16.msra.mxu0 0
  %4301 = vmatprep.subr.bf16.mxu0 0
  %4302 = vmatpush1.bf16.msra.mxu0 0
  %4303 = vmatprep.subr.bf16.mxu0 0
  %4304 = vmatpush1.bf16.msra.mxu0 0
  %4305 = vmatprep.subr.bf16.mxu0 0
  %4306 = vmatpush1.bf16.msra.mxu0 0
  %4307 = vmatprep.subr.bf16.mxu0 0
  %4308 = vmatpush1.bf16.msra.mxu0 0
  %4309 = vmatprep.subr.bf16.mxu0 0
  %4310 = vmatpush1.bf16.msra.mxu0 0
  %4311 = vmatprep.subr.bf16.mxu0 0
  %4312 = vmatpush1.bf16.msra.mxu0 0
  %4313 = vmatprep.subr.bf16.mxu0 0
  %4314 = vmatpush1.bf16.msra.mxu0 0
  %4315 = vmatprep.subr.bf16.mxu0 0
  %4316 = vmatpush1.bf16.msra.mxu0 0
  %4317 = vmatprep.subr.bf16.mxu0 0
  %4318 = vmatpush1.bf16.msra.mxu0 0
  %4319 = vmatprep.mubr.bf16.mxu0 0
  %4320 = vmatmul.mubr.bf16.gmra.mrb[0].mxu0 %v4276
  %v4321 = vpop.f32.mrb[0].mxu0
  %v4322 = vadd.f32 %v4273, %v4321
  %v4323 = vpop.f32.mrb[0].mxu0
  %v4324 = vpop.f32.mrb[0].mxu0
  %v4325 = vadd.f32 %v4273, %v4324
  %v4326 = vpop.f32.mrb[0].mxu0
  %4327 = vmatprep.mubr.bf16.mxu0 0
  %4328 = vmatmul.mubr.bf16.gmra.mrb[0].mxu0 %v4279
  %v4329 = vpop.f32.mrb[0].mxu0
  %v4330 = vadd.f32 %v4273, %v4329
  %v4331 = vpop.f32.mrb[0].mxu0
  %v4332 = vpop.f32.mrb[0].mxu0
  %v4333 = vadd.f32 %v4273, %v4332
  %v4334 = vpop.f32.mrb[0].mxu0
  %4335 = vmatprep.mubr.bf16.mxu0 0
  %4336 = vmatmul.mubr.bf16.gmra.mrb[0].mxu0 %v4282
  %v4337 = vpop.f32.mrb[0].mxu0
  %v4338 = vadd.f32 %v4273, %v4337
  %v4339 = vpop.f32.mrb[0].mxu0
  %v4340 = vpop.f32.mrb[0].mxu0
  %v4341 = vadd.f32 %v4273, %v4340
  %v4342 = vpop.f32.mrb[0].mxu0
  %4343 = vmatprep.mubr.bf16.mxu0 0
  %4344 = vmatmul.mubr.bf16.gmra.mrb[0].mxu0 %v4285
  %v4345 = vpop.f32.mrb[0].mxu0
  %v4346 = vadd.f32 %v4273, %v4345
  %v4347 = vpop.f32.mrb[0].mxu0
  %v4348 = vpop.f32.mrb[0].mxu0
  %v4349 = vadd.f32 %v4273, %v4348
  %v4350 = vpop.f32.mrb[0].mxu0
  %4351 = vdwg.mxu0
  %v4352 = vmax.f32 %v4322, 0.0
  %v4353 = vmax.f32 %v4325, 0.0
  %v4354 = vmax.f32 %v4330, 0.0
  %v4355 = vmax.f32 %v4333, 0.0
  %v4356 = vmax.f32 %v4338, 0.0
  %v4357 = vmax.f32 %v4341, 0.0
  %v4358 = vmax.f32 %v4346, 0.0
  %v4359 = vmax.f32 %v4349, 0.0
  %v4360 = vpack.c.bf16 %v4353, %v4352
  %v4361 = vpack.c.bf16 %v4355, %v4354
  %v4362 = vpack.c.bf16 %v4357, %v4356
  %v4363 = vpack.c.bf16 %v4359, %v4358
  %v4364 = vpack.c.bf16 %v2365, %v2364
  %v4365 = vpack.c.bf16 %v2367, %v2366
  %v4366 = vpack.c.bf16 %v2369, %v2368
  %v4367 = vpack.c.bf16 %v2371, %v2370
  %v4368 = vpack.c.bf16 %v2373, %v2372
  %v4369 = vpack.c.bf16 %v2375, %v2374
  %v4370 = vpack.c.bf16 %v2377, %v2376
  %v4371 = vpack.c.bf16 %v2379, %v2378
  %v4373 = vlaneseq
  %v4374 = vshrl.u32 %v4373, 7
  %v4375 = vsub.s32 0, %v4374
  %v4376 = vrot.slane %v2380, %v4375
  %4378 = vmatprep.subr.bf16.mxu0 0
  %4379 = vmatpush1.bf16.msra.mxu0 %v4364
  %4380 = vmatprep.subr.bf16.mxu0 0
  %4381 = vmatpush1.bf16.msra.mxu0 %v4365
  %4382 = vmatprep.subr.bf16.mxu0 0
  %4383 = vmatpush1.bf16.msra.mxu0 %v4366
  %4384 = vmatprep.subr.bf16.mxu0 0
  %4385 = vmatpush1.bf16.msra.mxu0 %v4367
  %4386 = vmatprep.subr.bf16.mxu0 0
  %4387 = vmatpush1.bf16.msra.mxu0 %v4368
  %4388 = vmatprep.subr.bf16.mxu0 0
  %4389 = vmatpush1.bf16.msra.mxu0 %v4369
  %4390 = vmatprep.subr.bf16.mxu0 0
  %4391 = vmatpush1.bf16.msra.mxu0 %v4370
  %4392 = vmatprep.subr.bf16.mxu0 0
  %4393 = vmatpush1.bf16.msra.mxu0 %v4371
  %4394 = vmatprep.subr.bf16.mxu0 0
  %4395 = vmatpush1.bf16.msra.mxu0 0
  %4396 = vmatprep.subr.bf16.mxu0 0
  %4397 = vmatpush1.bf16.msra.mxu0 0
  %4398 = vmatprep.subr.bf16.mxu0 0
  %4399 = vmatpush1.bf16.msra.mxu0 0
  %4400 = vmatprep.subr.bf16.mxu0 0
  %4401 = vmatpush1.bf16.msra.mxu0 0
  %4402 = vmatprep.subr.bf16.mxu0 0
  %4403 = vmatpush1.bf16.msra.mxu0 0
  %4404 = vmatprep.subr.bf16.mxu0 0
  %4405 = vmatpush1.bf16.msra.mxu0 0
  %4406 = vmatprep.subr.bf16.mxu0 0
  %4407 = vmatpush1.bf16.msra.mxu0 0
  %4408 = vmatprep.subr.bf16.mxu0 0
  %4409 = vmatpush1.bf16.msra.mxu0 0
  %4410 = vmatprep.mubr.bf16.mxu0 0
  %4411 = vmatmul.mubr.bf16.gmra.mrb[0].mxu0 %v4360
  %v4412 = vpop.f32.mrb[0].mxu0
  %v4413 = vadd.f32 %v4376, %v4412
  %v4414 = vpop.f32.mrb[0].mxu0
  %v4415 = vpop.f32.mrb[0].mxu0
  %v4416 = vadd.f32 %v4376, %v4415
  %v4417 = vpop.f32.mrb[0].mxu0
  %4418 = vmatprep.mubr.bf16.mxu0 0
  %4419 = vmatmul.mubr.bf16.gmra.mrb[0].mxu0 %v4361
  %v4420 = vpop.f32.mrb[0].mxu0
  %v4421 = vadd.f32 %v4376, %v4420
  %v4422 = vpop.f32.mrb[0].mxu0
  %v4423 = vpop.f32.mrb[0].mxu0
  %v4424 = vadd.f32 %v4376, %v4423
  %v4425 = vpop.f32.mrb[0].mxu0
  %4426 = vmatprep.mubr.bf16.mxu0 0
  %4427 = vmatmul.mubr.bf16.gmra.mrb[0].mxu0 %v4362
  %v4428 = vpop.f32.mrb[0].mxu0
  %v4429 = vadd.f32 %v4376, %v4428
  %v4430 = vpop.f32.mrb[0].mxu0
  %v4431 = vpop.f32.mrb[0].mxu0
  %v4432 = vadd.f32 %v4376, %v4431
  %v4433 = vpop.f32.mrb[0].mxu0
  %4434 = vmatprep.mubr.bf16.mxu0 0
  %4435 = vmatmul.mubr.bf16.gmra.mrb[0].mxu0 %v4363
  %v4436 = vpop.f32.mrb[0].mxu0
  %v4437 = vadd.f32 %v4376, %v4436
  %v4438 = vpop.f32.mrb[0].mxu0
  %v4439 = vpop.f32.mrb[0].mxu0
  %v4440 = vadd.f32 %v4376, %v4439
  %v4441 = vpop.f32.mrb[0].mxu0
  %4442 = vdwg.mxu0
  %v4443 = vadd.f32 %v4255, %v4413
  %v4444 = vadd.f32 %v4256, %v4416
  %v4445 = vadd.f32 %v4257, %v4421
  %v4446 = vadd.f32 %v4258, %v4424
  %v4447 = vadd.f32 %v4259, %v4429
  %v4448 = vadd.f32 %v4260, %v4432
  %v4449 = vadd.f32 %v4261, %v4437
  %v4450 = vadd.f32 %v4262, %v4440
  %v4451 = vsel %vm158, %v4443, 0.0
  %4452 = vadd.xlane.f32.xlu0 %v4451
  %v4453 = vpop.xlane.xlu0 %4452
  %v4454 = vsel %vm158, %v4444, 0.0
  %4455 = vadd.xlane.f32.xlu0 %v4454
  %v4456 = vpop.xlane.xlu0 %4455
  %v4457 = vsel %vm158, %v4445, 0.0
  %4458 = vadd.xlane.f32.xlu0 %v4457
  %v4459 = vpop.xlane.xlu0 %4458
  %v4460 = vsel %vm158, %v4446, 0.0
  %4461 = vadd.xlane.f32.xlu0 %v4460
  %v4462 = vpop.xlane.xlu0 %4461
  %v4463 = vsel %vm158, %v4447, 0.0
  %4464 = vadd.xlane.f32.xlu0 %v4463
  %v4465 = vpop.xlane.xlu0 %4464
  %v4466 = vsel %vm158, %v4448, 0.0
  %4467 = vadd.xlane.f32.xlu0 %v4466
  %v4468 = vpop.xlane.xlu0 %4467
  %v4469 = vsel %vm158, %v4449, 0.0
  %4470 = vadd.xlane.f32.xlu0 %v4469
  %v4471 = vpop.xlane.xlu0 %4470
  %v4472 = vsel %vm158, %v4450, 0.0
  %4473 = vadd.xlane.f32.xlu0 %v4472
  %v4474 = vpop.xlane.xlu0 %4473
  %v4475 = vmul.f32 %v4453, %v1920
  %v4476 = vmul.f32 %v4456, %v1920
  %v4477 = vmul.f32 %v4459, %v1920
  %v4478 = vmul.f32 %v4462, %v1920
  %v4479 = vmul.f32 %v4465, %v1920
  %v4480 = vmul.f32 %v4468, %v1920
  %v4481 = vmul.f32 %v4471, %v1920
  %v4482 = vmul.f32 %v4474, %v1920
  %v4483 = vsub.f32 %v4443, %v4475
  %v4484 = vsub.f32 %v4444, %v4476
  %v4485 = vsub.f32 %v4445, %v4477
  %v4486 = vsub.f32 %v4446, %v4478
  %v4487 = vsub.f32 %v4447, %v4479
  %v4488 = vsub.f32 %v4448, %v4480
  %v4489 = vsub.f32 %v4449, %v4481
  %v4490 = vsub.f32 %v4450, %v4482
  %v4491 = vmul.f32 %v4483, %v4483
  %v4492 = vmul.f32 %v4484, %v4484
  %v4493 = vmul.f32 %v4485, %v4485
  %v4494 = vmul.f32 %v4486, %v4486
  %v4495 = vmul.f32 %v4487, %v4487
  %v4496 = vmul.f32 %v4488, %v4488
  %v4497 = vmul.f32 %v4489, %v4489
  %v4498 = vmul.f32 %v4490, %v4490
  %v4499 = vsel %vm158, %v4491, 0.0
  %4500 = vadd.xlane.f32.xlu0 %v4499
  %v4501 = vpop.xlane.xlu0 %4500
  %v4502 = vsel %vm158, %v4492, 0.0
  %4503 = vadd.xlane.f32.xlu0 %v4502
  %v4504 = vpop.xlane.xlu0 %4503
  %v4505 = vsel %vm158, %v4493, 0.0
  %4506 = vadd.xlane.f32.xlu0 %v4505
  %v4507 = vpop.xlane.xlu0 %4506
  %v4508 = vsel %vm158, %v4494, 0.0
  %4509 = vadd.xlane.f32.xlu0 %v4508
  %v4510 = vpop.xlane.xlu0 %4509
  %v4511 = vsel %vm158, %v4495, 0.0
  %4512 = vadd.xlane.f32.xlu0 %v4511
  %v4513 = vpop.xlane.xlu0 %4512
  %v4514 = vsel %vm158, %v4496, 0.0
  %4515 = vadd.xlane.f32.xlu0 %v4514
  %v4516 = vpop.xlane.xlu0 %4515
  %v4517 = vsel %vm158, %v4497, 0.0
  %4518 = vadd.xlane.f32.xlu0 %v4517
  %v4519 = vpop.xlane.xlu0 %4518
  %v4520 = vsel %vm158, %v4498, 0.0
  %4521 = vadd.xlane.f32.xlu0 %v4520
  %v4522 = vpop.xlane.xlu0 %4521
  %v4523 = vmul.f32 %v4501, %v1920
  %v4524 = vmul.f32 %v4504, %v1920
  %v4525 = vmul.f32 %v4507, %v1920
  %v4526 = vmul.f32 %v4510, %v1920
  %v4527 = vmul.f32 %v4513, %v1920
  %v4528 = vmul.f32 %v4516, %v1920
  %v4529 = vmul.f32 %v4519, %v1920
  %v4530 = vmul.f32 %v4522, %v1920
  %v4531 = vadd.f32 %v4523, 1e-05
  %v4532 = vadd.f32 %v4524, 1e-05
  %v4533 = vadd.f32 %v4525, 1e-05
  %v4534 = vadd.f32 %v4526, 1e-05
  %v4535 = vadd.f32 %v4527, 1e-05
  %v4536 = vadd.f32 %v4528, 1e-05
  %v4537 = vadd.f32 %v4529, 1e-05
  %v4538 = vadd.f32 %v4530, 1e-05
  %v4539 = vrsqrt.pop %v4531
  %v4540 = vrsqrt.pop %v4532
  %v4541 = vrsqrt.pop %v4533
  %v4542 = vrsqrt.pop %v4534
  %v4543 = vrsqrt.pop %v4535
  %v4544 = vrsqrt.pop %v4536
  %v4545 = vrsqrt.pop %v4537
  %v4546 = vrsqrt.pop %v4538
  %v4547 = vmul.f32 %v4483, %v4539
  %v4548 = vmul.f32 %v4484, %v4540
  %v4549 = vmul.f32 %v4485, %v4541
  %v4550 = vmul.f32 %v4486, %v4542
  %v4551 = vmul.f32 %v4487, %v4543
  %v4552 = vmul.f32 %v4488, %v4544
  %v4553 = vmul.f32 %v4489, %v4545
  %v4554 = vmul.f32 %v4490, %v4546
  %v4556 = vlaneseq
  %v4557 = vshrl.u32 %v4556, 7
  %v4558 = vsub.s32 0, %v4557
  %v4559 = vrot.slane %v2383, %v4558
  %v4561 = vmul.f32 %v4547, %v4559
  %v4562 = vmul.f32 %v4548, %v4559
  %v4563 = vmul.f32 %v4549, %v4559
  %v4564 = vmul.f32 %v4550, %v4559
  %v4565 = vmul.f32 %v4551, %v4559
  %v4566 = vmul.f32 %v4552, %v4559
  %v4567 = vmul.f32 %v4553, %v4559
  %v4568 = vmul.f32 %v4554, %v4559
  %v4570 = vlaneseq
  %v4571 = vshrl.u32 %v4570, 7
  %v4572 = vsub.s32 0, %v4571
  %v4573 = vrot.slane %v2384, %v4572
  %v4575 = vadd.f32 %v4561, %v4573
  %v4576 = vadd.f32 %v4562, %v4573
  %v4577 = vadd.f32 %v4563, %v4573
  %v4578 = vadd.f32 %v4564, %v4573
  %v4579 = vadd.f32 %v4565, %v4573
  %v4580 = vadd.f32 %v4566, %v4573
  %v4581 = vadd.f32 %v4567, %v4573
  %v4582 = vadd.f32 %v4568, %v4573
  %v4583 = vld [vmem:[%s26] sm:$0xff]
  %v4584 = vld [vmem:[%s26 + $0x8] sm:$0xff]
  %v4585 = vld [vmem:[%s26 + $0x10] sm:$0xff]
  %v4586 = vld [vmem:[%s26 + $0x18] sm:$0xff]
  %v4587 = vpack.c.bf16 %v4576, %v4575
  %v4588 = vpack.c.bf16 %v4578, %v4577
  %v4589 = vpack.c.bf16 %v4580, %v4579
  %v4590 = vpack.c.bf16 %v4582, %v4581
  %v4591 = vpack.c.bf16 %v4584, %v4583
  %v4592 = vpack.c.bf16 %v4586, %v4585
  %v4593 = vld [vmem:[%s27] sm:$0x1]
  %v4595 = vlaneseq
  %v4596 = vshrl.u32 %v4595, 7
  %v4597 = vsub.s32 0, %v4596
  %v4598 = vrot.slane %v4593, %v4597
  %v4601 = vsel %vm158, %v4587, 0
  %v4604 = vsel %vm158, %v4588, 0
  %v4607 = vsel %vm158, %v4589, 0
  %v4610 = vsel %vm158, %v4590, 0
  %4612 = vmatprep.subr.bf16.mxu0 0
  %4613 = vmatpush1.bf16.msra.mxu0 %v4591
  %4614 = vmatprep.subr.bf16.mxu0 0
  %4615 = vmatpush1.bf16.msra.mxu0 %v4592
  %4616 = vmatprep.subr.bf16.mxu0 0
  %4617 = vmatpush1.bf16.msra.mxu0 0
  %4618 = vmatprep.subr.bf16.mxu0 0
  %4619 = vmatpush1.bf16.msra.mxu0 0
  %4620 = vmatprep.subr.bf16.mxu0 0
  %4621 = vmatpush1.bf16.msra.mxu0 0
  %4622 = vmatprep.subr.bf16.mxu0 0
  %4623 = vmatpush1.bf16.msra.mxu0 0
  %4624 = vmatprep.subr.bf16.mxu0 0
  %4625 = vmatpush1.bf16.msra.mxu0 0
  %4626 = vmatprep.subr.bf16.mxu0 0
  %4627 = vmatpush1.bf16.msra.mxu0 0
  %4628 = vmatprep.subr.bf16.mxu0 0
  %4629 = vmatpush1.bf16.msra.mxu0 0
  %4630 = vmatprep.subr.bf16.mxu0 0
  %4631 = vmatpush1.bf16.msra.mxu0 0
  %4632 = vmatprep.subr.bf16.mxu0 0
  %4633 = vmatpush1.bf16.msra.mxu0 0
  %4634 = vmatprep.subr.bf16.mxu0 0
  %4635 = vmatpush1.bf16.msra.mxu0 0
  %4636 = vmatprep.subr.bf16.mxu0 0
  %4637 = vmatpush1.bf16.msra.mxu0 0
  %4638 = vmatprep.subr.bf16.mxu0 0
  %4639 = vmatpush1.bf16.msra.mxu0 0
  %4640 = vmatprep.subr.bf16.mxu0 0
  %4641 = vmatpush1.bf16.msra.mxu0 0
  %4642 = vmatprep.subr.bf16.mxu0 0
  %4643 = vmatpush1.bf16.msra.mxu0 0
  %4644 = vmatprep.mubr.bf16.mxu0 0
  %4645 = vmatmul.mubr.bf16.gmra.mrb[0].mxu0 %v4601
  %v4646 = vpop.f32.mrb[0].mxu0
  %v4647 = vadd.f32 %v4598, %v4646
  %v4648 = vpop.f32.mrb[0].mxu0
  %v4649 = vpop.f32.mrb[0].mxu0
  %v4650 = vadd.f32 %v4598, %v4649
  %v4651 = vpop.f32.mrb[0].mxu0
  %4652 = vmatprep.mubr.bf16.mxu0 0
  %4653 = vmatmul.mubr.bf16.gmra.mrb[0].mxu0 %v4604
  %v4654 = vpop.f32.mrb[0].mxu0
  %v4655 = vadd.f32 %v4598, %v4654
  %v4656 = vpop.f32.mrb[0].mxu0
  %v4657 = vpop.f32.mrb[0].mxu0
  %v4658 = vadd.f32 %v4598, %v4657
  %v4659 = vpop.f32.mrb[0].mxu0
  %4660 = vmatprep.mubr.bf16.mxu0 0
  %4661 = vmatmul.mubr.bf16.gmra.mrb[0].mxu0 %v4607
  %v4662 = vpop.f32.mrb[0].mxu0
  %v4663 = vadd.f32 %v4598, %v4662
  %v4664 = vpop.f32.mrb[0].mxu0
  %v4665 = vpop.f32.mrb[0].mxu0
  %v4666 = vadd.f32 %v4598, %v4665
  %v4667 = vpop.f32.mrb[0].mxu0
  %4668 = vmatprep.mubr.bf16.mxu0 0
  %4669 = vmatmul.mubr.bf16.gmra.mrb[0].mxu0 %v4610
  %v4670 = vpop.f32.mrb[0].mxu0
  %v4671 = vadd.f32 %v4598, %v4670
  %v4672 = vpop.f32.mrb[0].mxu0
  %v4673 = vpop.f32.mrb[0].mxu0
  %v4674 = vadd.f32 %v4598, %v4673
  %v4675 = vpop.f32.mrb[0].mxu0
  %4676 = vdwg.mxu0
  %v4677 = vxor.u32 %v4647, 2147483648
  %v4678 = vxor.u32 %v4650, 2147483648
  %v4679 = vxor.u32 %v4655, 2147483648
  %v4680 = vxor.u32 %v4658, 2147483648
  %v4681 = vxor.u32 %v4663, 2147483648
  %v4682 = vxor.u32 %v4666, 2147483648
  %v4683 = vxor.u32 %v4671, 2147483648
  %v4684 = vxor.u32 %v4674, 2147483648
  %v4685 = vmul.f32 %v4677, 1.442695
  %v4686 = vpow.pop %v4685
  %v4687 = vmul.f32 %v4678, 1.442695
  %v4688 = vpow.pop %v4687
  %v4689 = vmul.f32 %v4679, 1.442695
  %v4690 = vpow.pop %v4689
  %v4691 = vmul.f32 %v4680, 1.442695
  %v4692 = vpow.pop %v4691
  %v4693 = vmul.f32 %v4681, 1.442695
  %v4694 = vpow.pop %v4693
  %v4695 = vmul.f32 %v4682, 1.442695
  %v4696 = vpow.pop %v4695
  %v4697 = vmul.f32 %v4683, 1.442695
  %v4698 = vpow.pop %v4697
  %v4699 = vmul.f32 %v4684, 1.442695
  %v4700 = vpow.pop %v4699
  %v4701 = vadd.f32 %v4686, 1.0
  %v4702 = vadd.f32 %v4688, 1.0
  %v4703 = vadd.f32 %v4690, 1.0
  %v4704 = vadd.f32 %v4692, 1.0
  %v4705 = vadd.f32 %v4694, 1.0
  %v4706 = vadd.f32 %v4696, 1.0
  %v4707 = vadd.f32 %v4698, 1.0
  %v4708 = vadd.f32 %v4700, 1.0
  %v4709 = vrcp.pop %v4701
  %v4710 = vmul.f32 1.0, %v4709
  %v4711 = vrcp.pop %v4702
  %v4712 = vmul.f32 1.0, %v4711
  %v4713 = vrcp.pop %v4703
  %v4714 = vmul.f32 1.0, %v4713
  %v4715 = vrcp.pop %v4704
  %v4716 = vmul.f32 1.0, %v4715
  %v4717 = vrcp.pop %v4705
  %v4718 = vmul.f32 1.0, %v4717
  %v4719 = vrcp.pop %v4706
  %v4720 = vmul.f32 1.0, %v4719
  %v4721 = vrcp.pop %v4707
  %v4722 = vmul.f32 1.0, %v4721
  %v4723 = vrcp.pop %v4708
  %v4724 = vmul.f32 1.0, %v4723
  %4725 = vst.msk [vmem:[%s28] sm:$0xff] %vm1009, %v4710
  %4726 = vst.msk [vmem:[%s28 + $0x8] sm:$0xff] %vm1009, %v4712
  %4727 = vst.msk [vmem:[%s28 + $0x10] sm:$0xff] %vm1009, %v4714
  %4728 = vst.msk [vmem:[%s28 + $0x18] sm:$0xff] %vm1009, %v4716
  %4729 = vst.msk [vmem:[%s28 + $0x20] sm:$0xff] %vm1009, %v4718
  %4730 = vst.msk [vmem:[%s28 + $0x28] sm:$0xff] %vm1009, %v4720
  %4731 = vst.msk [vmem:[%s28 + $0x30] sm:$0xff] %vm1009, %v4722
  %4732 = vst.msk [vmem:[%s28 + $0x38] sm:$0xff] %vm1009, %v4724
  // Predicated region
  $region114: #{vitvae_forward.5} parent=0 // pred_check
    _
  $region115: #{vitvae_forward.5} parent=0 // pred_check_branch
    %4734 = sbr.rel (0) target = $region117
  $region116: #{vitvae_forward.5} parent=0 // pred_region
    _
  $region117: #{vitvae_forward.5} parent=0 // pred_fallthru
    _
  // Predicated region
  $region118: #{vitvae_forward.5} parent=0 // pred_check
    _
  $region119: #{vitvae_forward.5} parent=0 // pred_check_branch
    %4736 = sbr.rel (0) target = $region121
  $region120: #{vitvae_forward.5} parent=0 // pred_region
    _
  $region121: #{vitvae_forward.5} parent=0 // pred_fallthru
    _

// kernel: vitvae_forward.3
$region0: #{vitvae_forward.3}
  #allocation0 [shape = 'u32[]', space=smem, size = 0x4, offset = 0x4, fixed_abs, tag = 'smem constant byte address 0x4 - core index']
  #allocation1 [shape = 'u32[144,128]{1,0:T(1,128)}', space=vmem, size = 0x12000, scoped, tag = 'internal scratch']
  %s0 = inlined_call_operand.vmem [shape: f32[64,16], index: 0, kind: input, shape index: {}]
  %s1 = inlined_call_operand.vmem [shape: f32[32,32], index: 1, kind: input, shape index: {}]
  %s2 = inlined_call_operand.vmem [shape: f32[16,32], index: 2, kind: input, shape index: {}]
  %s3 = inlined_call_operand.vmem [shape: f32[1,32], index: 3, kind: input, shape index: {}]
  %s4 = inlined_call_operand.vmem [shape: f32[32,96], index: 4, kind: input, shape index: {}]
  %s5 = inlined_call_operand.vmem [shape: f32[1,96], index: 5, kind: input, shape index: {}]
  %s6 = inlined_call_operand.vmem [shape: f32[32,32], index: 6, kind: input, shape index: {}]
  %s7 = inlined_call_operand.vmem [shape: f32[1,32], index: 7, kind: input, shape index: {}]
  %s8 = inlined_call_operand.vmem [shape: f32[32,128], index: 8, kind: input, shape index: {}]
  %s9 = inlined_call_operand.vmem [shape: f32[1,128], index: 9, kind: input, shape index: {}]
  %s10 = inlined_call_operand.vmem [shape: f32[128,32], index: 10, kind: input, shape index: {}]
  %s11 = inlined_call_operand.vmem [shape: f32[1,32], index: 11, kind: input, shape index: {}]
  %s12 = inlined_call_operand.vmem [shape: f32[1,32], index: 12, kind: input, shape index: {}]
  %s13 = inlined_call_operand.vmem [shape: f32[1,32], index: 13, kind: input, shape index: {}]
  %s14 = inlined_call_operand.vmem [shape: f32[1,32], index: 14, kind: input, shape index: {}]
  %s15 = inlined_call_operand.vmem [shape: f32[1,32], index: 15, kind: input, shape index: {}]
  %s16 = inlined_call_operand.vmem [shape: f32[32,96], index: 16, kind: input, shape index: {}]
  %s17 = inlined_call_operand.vmem [shape: f32[1,96], index: 17, kind: input, shape index: {}]
  %s18 = inlined_call_operand.vmem [shape: f32[32,32], index: 18, kind: input, shape index: {}]
  %s19 = inlined_call_operand.vmem [shape: f32[1,32], index: 19, kind: input, shape index: {}]
  %s20 = inlined_call_operand.vmem [shape: f32[32,128], index: 20, kind: input, shape index: {}]
  %s21 = inlined_call_operand.vmem [shape: f32[1,128], index: 21, kind: input, shape index: {}]
  %s22 = inlined_call_operand.vmem [shape: f32[128,32], index: 22, kind: input, shape index: {}]
  %s23 = inlined_call_operand.vmem [shape: f32[1,32], index: 23, kind: input, shape index: {}]
  %s24 = inlined_call_operand.vmem [shape: f32[1,32], index: 24, kind: input, shape index: {}]
  %s25 = inlined_call_operand.vmem [shape: f32[1,32], index: 25, kind: input, shape index: {}]
  %s26 = inlined_call_operand.vmem [shape: f32[1,32], index: 26, kind: input, shape index: {}]
  %s27 = inlined_call_operand.vmem [shape: f32[1,32], index: 27, kind: input, shape index: {}]
  %s28 = inlined_call_operand.vmem [shape: f32[64,32], index: 28, kind: output, shape index: {}]
  %s29 = sld [smem:[#allocation0]]
  $region122: #{vitvae_forward.3} parent=0
    _
  %s31 = ssub.s32 1, %s29
  %s32 = scalar_select 0, %s31, %s29
  // Predicated region
  $region2: #{vitvae_forward.3} parent=0 // pred_check
    _
  $region3: #{vitvae_forward.3} parent=0 // pred_check_branch
    %34 = sbr.rel (0) target = $region5
  $region4: #{vitvae_forward.3} parent=0 // pred_region
    _
  $region5: #{vitvae_forward.3} parent=0 // pred_fallthru
    _
  // Predicated region
  $region6: #{vitvae_forward.3} parent=0 // pred_check
    _
  $region7: #{vitvae_forward.3} parent=0 // pred_check_branch
    %36 = sbr.rel (0) target = $region9
  $region8: #{vitvae_forward.3} parent=0 // pred_region
    _
  $region9: #{vitvae_forward.3} parent=0 // pred_fallthru
    _
  // Predicated region
  $region10: #{vitvae_forward.3} parent=0 // pred_check
    _
  $region11: #{vitvae_forward.3} parent=0 // pred_check_branch
    %38 = sbr.rel (0) target = $region13
  $region12: #{vitvae_forward.3} parent=0 // pred_region
    _
  $region13: #{vitvae_forward.3} parent=0 // pred_fallthru
    _
  // Predicated region
  $region14: #{vitvae_forward.3} parent=0 // pred_check
    _
  $region15: #{vitvae_forward.3} parent=0 // pred_check_branch
    %40 = sbr.rel (0) target = $region17
  $region16: #{vitvae_forward.3} parent=0 // pred_region
    _
  $region17: #{vitvae_forward.3} parent=0 // pred_fallthru
    _
  // Predicated region
  $region18: #{vitvae_forward.3} parent=0 // pred_check
    _
  $region19: #{vitvae_forward.3} parent=0 // pred_check_branch
    %42 = sbr.rel (0) target = $region21
  $region20: #{vitvae_forward.3} parent=0 // pred_region
    _
  $region21: #{vitvae_forward.3} parent=0 // pred_fallthru
    _
  // Predicated region
  $region22: #{vitvae_forward.3} parent=0 // pred_check
    _
  $region23: #{vitvae_forward.3} parent=0 // pred_check_branch
    %44 = sbr.rel (0) target = $region25
  $region24: #{vitvae_forward.3} parent=0 // pred_region
    _
  $region25: #{vitvae_forward.3} parent=0 // pred_fallthru
    _
  // Predicated region
  $region26: #{vitvae_forward.3} parent=0 // pred_check
    _
  $region27: #{vitvae_forward.3} parent=0 // pred_check_branch
    %46 = sbr.rel (0) target = $region29
  $region28: #{vitvae_forward.3} parent=0 // pred_region
    _
  $region29: #{vitvae_forward.3} parent=0 // pred_fallthru
    _
  // Predicated region
  $region30: #{vitvae_forward.3} parent=0 // pred_check
    _
  $region31: #{vitvae_forward.3} parent=0 // pred_check_branch
    %48 = sbr.rel (0) target = $region33
  $region32: #{vitvae_forward.3} parent=0 // pred_region
    _
  $region33: #{vitvae_forward.3} parent=0 // pred_fallthru
    _
  // Predicated region
  $region34: #{vitvae_forward.3} parent=0 // pred_check
    _
  $region35: #{vitvae_forward.3} parent=0 // pred_check_branch
    %50 = sbr.rel (0) target = $region37
  $region36: #{vitvae_forward.3} parent=0 // pred_region
    _
  $region37: #{vitvae_forward.3} parent=0 // pred_fallthru
    _
  // Predicated region
  $region38: #{vitvae_forward.3} parent=0 // pred_check
    _
  $region39: #{vitvae_forward.3} parent=0 // pred_check_branch
    %52 = sbr.rel (0) target = $region41
  $region40: #{vitvae_forward.3} parent=0 // pred_region
    _
  $region41: #{vitvae_forward.3} parent=0 // pred_fallthru
    _
  // Predicated region
  $region42: #{vitvae_forward.3} parent=0 // pred_check
    _
  $region43: #{vitvae_forward.3} parent=0 // pred_check_branch
    %54 = sbr.rel (0) target = $region45
  $region44: #{vitvae_forward.3} parent=0 // pred_region
    _
  $region45: #{vitvae_forward.3} parent=0 // pred_fallthru
    _
  // Predicated region
  $region46: #{vitvae_forward.3} parent=0 // pred_check
    _
  $region47: #{vitvae_forward.3} parent=0 // pred_check_branch
    %56 = sbr.rel (0) target = $region49
  $region48: #{vitvae_forward.3} parent=0 // pred_region
    _
  $region49: #{vitvae_forward.3} parent=0 // pred_fallthru
    _
  // Predicated region
  $region50: #{vitvae_forward.3} parent=0 // pred_check
    _
  $region51: #{vitvae_forward.3} parent=0 // pred_check_branch
    %58 = sbr.rel (0) target = $region53
  $region52: #{vitvae_forward.3} parent=0 // pred_region
    _
  $region53: #{vitvae_forward.3} parent=0 // pred_fallthru
    _
  // Predicated region
  $region54: #{vitvae_forward.3} parent=0 // pred_check
    _
  $region55: #{vitvae_forward.3} parent=0 // pred_check_branch
    %60 = sbr.rel (0) target = $region57
  $region56: #{vitvae_forward.3} parent=0 // pred_region
    _
  $region57: #{vitvae_forward.3} parent=0 // pred_fallthru
    _
  // Predicated region
  $region58: #{vitvae_forward.3} parent=0 // pred_check
    _
  $region59: #{vitvae_forward.3} parent=0 // pred_check_branch
    %62 = sbr.rel (0) target = $region61
  $region60: #{vitvae_forward.3} parent=0 // pred_region
    _
  $region61: #{vitvae_forward.3} parent=0 // pred_fallthru
    _
  // Predicated region
  $region62: #{vitvae_forward.3} parent=0 // pred_check
    _
  $region63: #{vitvae_forward.3} parent=0 // pred_check_branch
    %64 = sbr.rel (0) target = $region65
  $region64: #{vitvae_forward.3} parent=0 // pred_region
    _
  $region65: #{vitvae_forward.3} parent=0 // pred_fallthru
    _
  // Predicated region
  $region66: #{vitvae_forward.3} parent=0 // pred_check
    _
  $region67: #{vitvae_forward.3} parent=0 // pred_check_branch
    %66 = sbr.rel (0) target = $region69
  $region68: #{vitvae_forward.3} parent=0 // pred_region
    _
  $region69: #{vitvae_forward.3} parent=0 // pred_fallthru
    _
  // Predicated region
  $region70: #{vitvae_forward.3} parent=0 // pred_check
    _
  $region71: #{vitvae_forward.3} parent=0 // pred_check_branch
    %68 = sbr.rel (0) target = $region73
  $region72: #{vitvae_forward.3} parent=0 // pred_region
    _
  $region73: #{vitvae_forward.3} parent=0 // pred_fallthru
    _
  // Predicated region
  $region74: #{vitvae_forward.3} parent=0 // pred_check
    _
  $region75: #{vitvae_forward.3} parent=0 // pred_check_branch
    %70 = sbr.rel (0) target = $region77
  $region76: #{vitvae_forward.3} parent=0 // pred_region
    _
  $region77: #{vitvae_forward.3} parent=0 // pred_fallthru
    _
  // Predicated region
  $region78: #{vitvae_forward.3} parent=0 // pred_check
    _
  $region79: #{vitvae_forward.3} parent=0 // pred_check_branch
    %72 = sbr.rel (0) target = $region81
  $region80: #{vitvae_forward.3} parent=0 // pred_region
    _
  $region81: #{vitvae_forward.3} parent=0 // pred_fallthru
    _
  // Predicated region
  $region82: #{vitvae_forward.3} parent=0 // pred_check
    _
  $region83: #{vitvae_forward.3} parent=0 // pred_check_branch
    %74 = sbr.rel (0) target = $region85
  $region84: #{vitvae_forward.3} parent=0 // pred_region
    _
  $region85: #{vitvae_forward.3} parent=0 // pred_fallthru
    _
  // Predicated region
  $region86: #{vitvae_forward.3} parent=0 // pred_check
    _
  $region87: #{vitvae_forward.3} parent=0 // pred_check_branch
    %76 = sbr.rel (0) target = $region89
  $region88: #{vitvae_forward.3} parent=0 // pred_region
    _
  $region89: #{vitvae_forward.3} parent=0 // pred_fallthru
    _
  // Predicated region
  $region90: #{vitvae_forward.3} parent=0 // pred_check
    _
  $region91: #{vitvae_forward.3} parent=0 // pred_check_branch
    %78 = sbr.rel (0) target = $region93
  $region92: #{vitvae_forward.3} parent=0 // pred_region
    _
  $region93: #{vitvae_forward.3} parent=0 // pred_fallthru
    _
  // Predicated region
  $region94: #{vitvae_forward.3} parent=0 // pred_check
    _
  $region95: #{vitvae_forward.3} parent=0 // pred_check_branch
    %80 = sbr.rel (0) target = $region97
  $region96: #{vitvae_forward.3} parent=0 // pred_region
    _
  $region97: #{vitvae_forward.3} parent=0 // pred_fallthru
    _
  // Predicated region
  $region98: #{vitvae_forward.3} parent=0 // pred_check
    _
  $region99: #{vitvae_forward.3} parent=0 // pred_check_branch
    %82 = sbr.rel (0) target = $region101
  $region100: #{vitvae_forward.3} parent=0 // pred_region
    _
  $region101: #{vitvae_forward.3} parent=0 // pred_fallthru
    _
  // Predicated region
  $region102: #{vitvae_forward.3} parent=0 // pred_check
    _
  $region103: #{vitvae_forward.3} parent=0 // pred_check_branch
    %84 = sbr.rel (0) target = $region105
  $region104: #{vitvae_forward.3} parent=0 // pred_region
    _
  $region105: #{vitvae_forward.3} parent=0 // pred_fallthru
    _
  // Predicated region
  $region106: #{vitvae_forward.3} parent=0 // pred_check
    _
  $region107: #{vitvae_forward.3} parent=0 // pred_check_branch
    %86 = sbr.rel (0) target = $region109
  $region108: #{vitvae_forward.3} parent=0 // pred_region
    _
  $region109: #{vitvae_forward.3} parent=0 // pred_fallthru
    _
  // Predicated region
  $region110: #{vitvae_forward.3} parent=0 // pred_check
    _
  $region111: #{vitvae_forward.3} parent=0 // pred_check_branch
    %88 = sbr.rel (0) target = $region113
  $region112: #{vitvae_forward.3} parent=0 // pred_region
    _
  $region113: #{vitvae_forward.3} parent=0 // pred_fallthru
    _
  %v90 = vld [vmem:[%s0] sm:$0xff]
  %v91 = vld [vmem:[%s0 + $0x8] sm:$0xff]
  %v92 = vld [vmem:[%s0 + $0x10] sm:$0xff]
  %v93 = vld [vmem:[%s0 + $0x18] sm:$0xff]
  %v94 = vld [vmem:[%s0 + $0x20] sm:$0xff]
  %v95 = vld [vmem:[%s0 + $0x28] sm:$0xff]
  %v96 = vld [vmem:[%s0 + $0x30] sm:$0xff]
  %v97 = vld [vmem:[%s0 + $0x38] sm:$0xff]
  %v98 = vld [vmem:[%s2] sm:$0xff]
  %v99 = vld [vmem:[%s2 + $0x8] sm:$0xff]
  %v100 = vpack.c.bf16 %v91, %v90
  %v101 = vpack.c.bf16 %v93, %v92
  %v102 = vpack.c.bf16 %v95, %v94
  %v103 = vpack.c.bf16 %v97, %v96
  %v104 = vpack.c.bf16 %v99, %v98
  %v105 = vld [vmem:[%s3] sm:$0x1]
  %v107 = vlaneseq
  %v108 = vshrl.u32 %v107, 7
  %v109 = vsub.s32 0, %v108
  %v110 = vrot.slane %v105, %v109
  %vm112 = vcmask 130048
  %v114 = vsel %vm112, %v100, 0
  %v117 = vsel %vm112, %v101, 0
  %v120 = vsel %vm112, %v102, 0
  %v123 = vsel %vm112, %v103, 0
  %125 = vmatprep.subr.bf16.mxu0 0
  %126 = vmatpush1.bf16.msra.mxu0 %v104
  %127 = vmatprep.subr.bf16.mxu0 0
  %128 = vmatpush1.bf16.msra.mxu0 0
  %129 = vmatprep.subr.bf16.mxu0 0
  %130 = vmatpush1.bf16.msra.mxu0 0
  %131 = vmatprep.subr.bf16.mxu0 0
  %132 = vmatpush1.bf16.msra.mxu0 0
  %133 = vmatprep.subr.bf16.mxu0 0
  %134 = vmatpush1.bf16.msra.mxu0 0
  %135 = vmatprep.subr.bf16.mxu0 0
  %136 = vmatpush1.bf16.msra.mxu0 0
  %137 = vmatprep.subr.bf16.mxu0 0
  %138 = vmatpush1.bf16.msra.mxu0 0
  %139 = vmatprep.subr.bf16.mxu0 0
  %140 = vmatpush1.bf16.msra.mxu0 0
  %141 = vmatprep.subr.bf16.mxu0 0
  %142 = vmatpush1.bf16.msra.mxu0 0
  %143 = vmatprep.subr.bf16.mxu0 0
  %144 = vmatpush1.bf16.msra.mxu0 0
  %145 = vmatprep.subr.bf16.mxu0 0
  %146 = vmatpush1.bf16.msra.mxu0 0
  %147 = vmatprep.subr.bf16.mxu0 0
  %148 = vmatpush1.bf16.msra.mxu0 0
  %149 = vmatprep.subr.bf16.mxu0 0
  %150 = vmatpush1.bf16.msra.mxu0 0
  %151 = vmatprep.subr.bf16.mxu0 0
  %152 = vmatpush1.bf16.msra.mxu0 0
  %153 = vmatprep.subr.bf16.mxu0 0
  %154 = vmatpush1.bf16.msra.mxu0 0
  %155 = vmatprep.subr.bf16.mxu0 0
  %156 = vmatpush1.bf16.msra.mxu0 0
  %157 = vmatprep.mubr.bf16.mxu0 0
  %158 = vmatmul.mubr.bf16.gmra.mrb[0].mxu0 %v114
  %v159 = vpop.f32.mrb[0].mxu0
  %v160 = vadd.f32 %v110, %v159
  %v161 = vpop.f32.mrb[0].mxu0
  %v162 = vpop.f32.mrb[0].mxu0
  %v163 = vadd.f32 %v110, %v162
  %v164 = vpop.f32.mrb[0].mxu0
  %165 = vmatprep.mubr.bf16.mxu0 0
  %166 = vmatmul.mubr.bf16.gmra.mrb[0].mxu0 %v117
  %v167 = vpop.f32.mrb[0].mxu0
  %v168 = vadd.f32 %v110, %v167
  %v169 = vpop.f32.mrb[0].mxu0
  %v170 = vpop.f32.mrb[0].mxu0
  %v171 = vadd.f32 %v110, %v170
  %v172 = vpop.f32.mrb[0].mxu0
  %173 = vmatprep.mubr.bf16.mxu0 0
  %174 = vmatmul.mubr.bf16.gmra.mrb[0].mxu0 %v120
  %v175 = vpop.f32.mrb[0].mxu0
  %v176 = vadd.f32 %v110, %v175
  %v177 = vpop.f32.mrb[0].mxu0
  %v178 = vpop.f32.mrb[0].mxu0
  %v179 = vadd.f32 %v110, %v178
  %v180 = vpop.f32.mrb[0].mxu0
  %181 = vmatprep.mubr.bf16.mxu0 0
  %182 = vmatmul.mubr.bf16.gmra.mrb[0].mxu0 %v123
  %v183 = vpop.f32.mrb[0].mxu0
  %v184 = vadd.f32 %v110, %v183
  %v185 = vpop.f32.mrb[0].mxu0
  %v186 = vpop.f32.mrb[0].mxu0
  %v187 = vadd.f32 %v110, %v186
  %v188 = vpop.f32.mrb[0].mxu0
  %189 = vdwg.mxu0
  %v190 = vld [vmem:[%s1] sm:$0xff]
  %v191 = vld [vmem:[%s1 + $0x8] sm:$0xff]
  %v192 = vld [vmem:[%s1 + $0x10] sm:$0xff]
  %v193 = vld [vmem:[%s1 + $0x18] sm:$0xff]
  %v194 = vadd.f32 %v160, %v190
  %v195 = vadd.f32 %v163, %v191
  %v196 = vadd.f32 %v168, %v192
  %v197 = vadd.f32 %v171, %v193
  %v198 = vadd.f32 %v176, %v190
  %v199 = vadd.f32 %v179, %v191
  %v200 = vadd.f32 %v184, %v192
  %v201 = vadd.f32 %v187, %v193
  %v202 = vld [vmem:[%s4] sm:$0xff]
  %v203 = vld [vmem:[%s4 + $0x8] sm:$0xff]
  %v204 = vld [vmem:[%s4 + $0x10] sm:$0xff]
  %v205 = vld [vmem:[%s4 + $0x18] sm:$0xff]
  %v206 = vld [vmem:[%s5] sm:$0x1]
  %v207 = vld [vmem:[%s6] sm:$0xff]
  %v208 = vld [vmem:[%s6 + $0x8] sm:$0xff]
  %v209 = vld [vmem:[%s6 + $0x10] sm:$0xff]
  %v210 = vld [vmem:[%s6 + $0x18] sm:$0xff]
  %v211 = vld [vmem:[%s7] sm:$0x1]
  %v212 = vld [vmem:[%s8] sm:$0xff]
  %v213 = vld [vmem:[%s8 + $0x8] sm:$0xff]
  %v214 = vld [vmem:[%s8 + $0x10] sm:$0xff]
  %v215 = vld [vmem:[%s8 + $0x18] sm:$0xff]
  %v216 = vld [vmem:[%s9] sm:$0x1]
  %v217 = vld [vmem:[%s10] sm:$0xff]
  %v218 = vld [vmem:[%s10 + $0x8] sm:$0xff]
  %v219 = vld [vmem:[%s10 + $0x10] sm:$0xff]
  %v220 = vld [vmem:[%s10 + $0x18] sm:$0xff]
  %v221 = vld [vmem:[%s10 + $0x20] sm:$0xff]
  %v222 = vld [vmem:[%s10 + $0x28] sm:$0xff]
  %v223 = vld [vmem:[%s10 + $0x30] sm:$0xff]
  %v224 = vld [vmem:[%s10 + $0x38] sm:$0xff]
  %v225 = vld [vmem:[%s10 + $0x40] sm:$0xff]
  %v226 = vld [vmem:[%s10 + $0x48] sm:$0xff]
  %v227 = vld [vmem:[%s10 + $0x50] sm:$0xff]
  %v228 = vld [vmem:[%s10 + $0x58] sm:$0xff]
  %v229 = vld [vmem:[%s10 + $0x60] sm:$0xff]
  %v230 = vld [vmem:[%s10 + $0x68] sm:$0xff]
  %v231 = vld [vmem:[%s10 + $0x70] sm:$0xff]
  %v232 = vld [vmem:[%s10 + $0x78] sm:$0xff]
  %v233 = vld [vmem:[%s11] sm:$0x1]
  %v234 = vld [vmem:[%s12] sm:$0x1]
  %v235 = vld [vmem:[%s13] sm:$0x1]
  %v236 = vld [vmem:[%s14] sm:$0x1]
  %v237 = vld [vmem:[%s15] sm:$0x1]
  %v238 = vpack.c.bf16 %v195, %v194
  %v239 = vpack.c.bf16 %v197, %v196
  %v240 = vpack.c.bf16 %v199, %v198
  %v241 = vpack.c.bf16 %v201, %v200
  %v242 = vpack.c.bf16 %v203, %v202
  %v243 = vpack.c.bf16 %v205, %v204
  %v245 = vlaneseq
  %v246 = vshrl.u32 %v245, 7
  %v247 = vsub.s32 0, %v246
  %v248 = vrot.slane %v206, %v247
  %vm250 = vcmask 261120
  %v252 = vsel %vm250, %v238, 0
  %v255 = vsel %vm250, %v239, 0
  %v258 = vsel %vm250, %v240, 0
  %v261 = vsel %vm250, %v241, 0
  %263 = vmatprep.subr.bf16.mxu0 0
  %264 = vmatpush1.bf16.msra.mxu0 %v242
  %265 = vmatprep.subr.bf16.mxu0 0
  %266 = vmatpush1.bf16.msra.mxu0 %v243
  %267 = vmatprep.subr.bf16.mxu0 0
  %268 = vmatpush1.bf16.msra.mxu0 0
  %269 = vmatprep.subr.bf16.mxu0 0
  %270 = vmatpush1.bf16.msra.mxu0 0
  %271 = vmatprep.subr.bf16.mxu0 0
  %272 = vmatpush1.bf16.msra.mxu0 0
  %273 = vmatprep.subr.bf16.mxu0 0
  %274 = vmatpush1.bf16.msra.mxu0 0
  %275 = vmatprep.subr.bf16.mxu0 0
  %276 = vmatpush1.bf16.msra.mxu0 0
  %277 = vmatprep.subr.bf16.mxu0 0
  %278 = vmatpush1.bf16.msra.mxu0 0
  %279 = vmatprep.subr.bf16.mxu0 0
  %280 = vmatpush1.bf16.msra.mxu0 0
  %281 = vmatprep.subr.bf16.mxu0 0
  %282 = vmatpush1.bf16.msra.mxu0 0
  %283 = vmatprep.subr.bf16.mxu0 0
  %284 = vmatpush1.bf16.msra.mxu0 0
  %285 = vmatprep.subr.bf16.mxu0 0
  %286 = vmatpush1.bf16.msra.mxu0 0
  %287 = vmatprep.subr.bf16.mxu0 0
  %288 = vmatpush1.bf16.msra.mxu0 0
  %289 = vmatprep.subr.bf16.mxu0 0
  %290 = vmatpush1.bf16.msra.mxu0 0
  %291 = vmatprep.subr.bf16.mxu0 0
  %292 = vmatpush1.bf16.msra.mxu0 0
  %293 = vmatprep.subr.bf16.mxu0 0
  %294 = vmatpush1.bf16.msra.mxu0 0
  %295 = vmatprep.mubr.bf16.mxu0 0
  %296 = vmatmul.mubr.bf16.gmra.mrb[0].mxu0 %v252
  %v297 = vpop.f32.mrb[0].mxu0
  %v298 = vadd.f32 %v248, %v297
  %v299 = vpop.f32.mrb[0].mxu0
  %v300 = vpop.f32.mrb[0].mxu0
  %v301 = vadd.f32 %v248, %v300
  %v302 = vpop.f32.mrb[0].mxu0
  %303 = vmatprep.mubr.bf16.mxu0 0
  %304 = vmatmul.mubr.bf16.gmra.mrb[0].mxu0 %v255
  %v305 = vpop.f32.mrb[0].mxu0
  %v306 = vadd.f32 %v248, %v305
  %v307 = vpop.f32.mrb[0].mxu0
  %v308 = vpop.f32.mrb[0].mxu0
  %v309 = vadd.f32 %v248, %v308
  %v310 = vpop.f32.mrb[0].mxu0
  %311 = vmatprep.mubr.bf16.mxu0 0
  %312 = vmatmul.mubr.bf16.gmra.mrb[0].mxu0 %v258
  %v313 = vpop.f32.mrb[0].mxu0
  %v314 = vadd.f32 %v248, %v313
  %v315 = vpop.f32.mrb[0].mxu0
  %v316 = vpop.f32.mrb[0].mxu0
  %v317 = vadd.f32 %v248, %v316
  %v318 = vpop.f32.mrb[0].mxu0
  %319 = vmatprep.mubr.bf16.mxu0 0
  %320 = vmatmul.mubr.bf16.gmra.mrb[0].mxu0 %v261
  %v321 = vpop.f32.mrb[0].mxu0
  %v322 = vadd.f32 %v248, %v321
  %v323 = vpop.f32.mrb[0].mxu0
  %v324 = vpop.f32.mrb[0].mxu0
  %v325 = vadd.f32 %v248, %v324
  %v326 = vpop.f32.mrb[0].mxu0
  %327 = vdwg.mxu0
  %v328 = vpack.c.bf16 %v301, %v298
  %v329 = vpack.c.bf16 %v309, %v306
  %332 = vrot.lane.b32.xlu0 %v328, 96
  %v333 = vpop.permute.xlu0 %332
  %334 = vrot.lane.b32.xlu0 %v329, 96
  %v335 = vpop.permute.xlu0 %334
  %vm336 = vcmask 64512
  %v338 = vsel %vm336, %v328, 0
  %v341 = vsel %vm336, %v329, 0
  %v344 = vsel %vm336, %v333, 0
  %v347 = vsel %vm336, %v335, 0
  %349 = vmatprep.subr.bf16.mxu0 0
  %350 = vmatpush1.bf16.xpose.msra.mxu0 %v344
  %351 = vmatprep.subr.bf16.mxu0 0
  %352 = vmatpush1.bf16.xpose.msra.mxu0 %v347
  %353 = vmatprep.subr.bf16.mxu0 0
  %354 = vmatpush1.bf16.xpose.msra.mxu0 0
  %355 = vmatprep.subr.bf16.mxu0 0
  %356 = vmatpush1.bf16.xpose.msra.mxu0 0
  %357 = vmatprep.subr.bf16.mxu0 0
  %358 = vmatpush1.bf16.xpose.msra.mxu0 0
  %359 = vmatprep.subr.bf16.mxu0 0
  %360 = vmatpush1.bf16.xpose.msra.mxu0 0
  %361 = vmatprep.subr.bf16.mxu0 0
  %362 = vmatpush1.bf16.xpose.msra.mxu0 0
  %363 = vmatprep.subr.bf16.mxu0 0
  %364 = vmatpush1.bf16.xpose.msra.mxu0 0
  %365 = vmatprep.subr.bf16.mxu0 0
  %366 = vmatpush1.bf16.xpose.msra.mxu0 0
  %367 = vmatprep.subr.bf16.mxu0 0
  %368 = vmatpush1.bf16.xpose.msra.mxu0 0
  %369 = vmatprep.subr.bf16.mxu0 0
  %370 = vmatpush1.bf16.xpose.msra.mxu0 0
  %371 = vmatprep.subr.bf16.mxu0 0
  %372 = vmatpush1.bf16.xpose.msra.mxu0 0
  %373 = vmatprep.subr.bf16.mxu0 0
  %374 = vmatpush1.bf16.xpose.msra.mxu0 0
  %375 = vmatprep.subr.bf16.mxu0 0
  %376 = vmatpush1.bf16.xpose.msra.mxu0 0
  %377 = vmatprep.subr.bf16.mxu0 0
  %378 = vmatpush1.bf16.xpose.msra.mxu0 0
  %379 = vmatprep.subr.bf16.mxu0 0
  %380 = vmatpush1.bf16.xpose.msra.mxu0 0
  %381 = vmatprep.mubr.bf16.mxu0 0
  %382 = vmatmul.mubr.bf16.gmra.mrb[0].mxu0 %v338
  %v383 = vpop.f32.mrb[0].mxu0
  %v384 = vadd.f32 0.0, %v383
  %v385 = vpop.f32.mrb[0].mxu0
  %v386 = vpop.f32.mrb[0].mxu0
  %v387 = vadd.f32 0.0, %v386
  %v388 = vpop.f32.mrb[0].mxu0
  %389 = vmatprep.mubr.bf16.mxu0 0
  %390 = vmatmul.mubr.bf16.gmra.mrb[0].mxu0 %v341
  %v391 = vpop.f32.mrb[0].mxu0
  %v392 = vadd.f32 0.0, %v391
  %v393 = vpop.f32.mrb[0].mxu0
  %v394 = vpop.f32.mrb[0].mxu0
  %v395 = vadd.f32 0.0, %v394
  %v396 = vpop.f32.mrb[0].mxu0
  %397 = vdwg.mxu0
  %v398 = vmul.f32 %v384, 0.35355338
  %v399 = vmul.f32 %v387, 0.35355338
  %v400 = vmul.f32 %v392, 0.35355338
  %v401 = vmul.f32 %v395, 0.35355338
  %v402 = vsel %vm250, %v398, -inf
  %403 = vmax.xlane.f32.xlu0 %v402
  %v404 = vpop.xlane.xlu0 %403
  %v405 = vsel %vm250, %v399, -inf
  %406 = vmax.xlane.f32.xlu0 %v405
  %v407 = vpop.xlane.xlu0 %406
  %v408 = vsel %vm250, %v400, -inf
  %409 = vmax.xlane.f32.xlu0 %v408
  %v410 = vpop.xlane.xlu0 %409
  %v411 = vsel %vm250, %v401, -inf
  %412 = vmax.xlane.f32.xlu0 %v411
  %v413 = vpop.xlane.xlu0 %412
  %v414 = vsub.f32 %v398, %v404
  %v415 = vsub.f32 %v399, %v407
  %v416 = vsub.f32 %v400, %v410
  %v417 = vsub.f32 %v401, %v413
  %v418 = vmul.f32 %v414, 1.442695
  %v419 = vpow.pop %v418
  %v420 = vmul.f32 %v415, 1.442695
  %v421 = vpow.pop %v420
  %v422 = vmul.f32 %v416, 1.442695
  %v423 = vpow.pop %v422
  %v424 = vmul.f32 %v417, 1.442695
  %v425 = vpow.pop %v424
  %v426 = vsel %vm250, %v419, 0.0
  %427 = vadd.xlane.f32.xlu0 %v426
  %v428 = vpop.xlane.xlu0 %427
  %v429 = vsel %vm250, %v421, 0.0
  %430 = vadd.xlane.f32.xlu0 %v429
  %v431 = vpop.xlane.xlu0 %430
  %v432 = vsel %vm250, %v423, 0.0
  %433 = vadd.xlane.f32.xlu0 %v432
  %v434 = vpop.xlane.xlu0 %433
  %v435 = vsel %vm250, %v425, 0.0
  %436 = vadd.xlane.f32.xlu0 %v435
  %v437 = vpop.xlane.xlu0 %436
  %v438 = vrcp.pop %v428
  %v439 = vmul.f32 %v419, %v438
  %v440 = vrcp.pop %v431
  %v441 = vmul.f32 %v421, %v440
  %v442 = vrcp.pop %v434
  %v443 = vmul.f32 %v423, %v442
  %v444 = vrcp.pop %v437
  %v445 = vmul.f32 %v425, %v444
  %v446 = vpack.c.bf16 %v441, %v439
  %v447 = vpack.c.bf16 %v445, %v443
  %448 = vrot.lane.b32.xlu0 %v328, 64
  %v449 = vpop.permute.xlu0 %448
  %450 = vrot.lane.b32.xlu0 %v329, 64
  %v451 = vpop.permute.xlu0 %450
  %v455 = vsel %vm250, %v446, 0
  %v458 = vsel %vm250, %v447, 0
  %460 = vmatprep.subr.bf16.mxu0 0
  %461 = vmatpush1.bf16.msra.mxu0 %v449
  %462 = vmatprep.subr.bf16.mxu0 0
  %463 = vmatpush1.bf16.msra.mxu0 %v451
  %464 = vmatprep.subr.bf16.mxu0 0
  %465 = vmatpush1.bf16.msra.mxu0 0
  %466 = vmatprep.subr.bf16.mxu0 0
  %467 = vmatpush1.bf16.msra.mxu0 0
  %468 = vmatprep.subr.bf16.mxu0 0
  %469 = vmatpush1.bf16.msra.mxu0 0
  %470 = vmatprep.subr.bf16.mxu0 0
  %471 = vmatpush1.bf16.msra.mxu0 0
  %472 = vmatprep.subr.bf16.mxu0 0
  %473 = vmatpush1.bf16.msra.mxu0 0
  %474 = vmatprep.subr.bf16.mxu0 0
  %475 = vmatpush1.bf16.msra.mxu0 0
  %476 = vmatprep.subr.bf16.mxu0 0
  %477 = vmatpush1.bf16.msra.mxu0 0
  %478 = vmatprep.subr.bf16.mxu0 0
  %479 = vmatpush1.bf16.msra.mxu0 0
  %480 = vmatprep.subr.bf16.mxu0 0
  %481 = vmatpush1.bf16.msra.mxu0 0
  %482 = vmatprep.subr.bf16.mxu0 0
  %483 = vmatpush1.bf16.msra.mxu0 0
  %484 = vmatprep.subr.bf16.mxu0 0
  %485 = vmatpush1.bf16.msra.mxu0 0
  %486 = vmatprep.subr.bf16.mxu0 0
  %487 = vmatpush1.bf16.msra.mxu0 0
  %488 = vmatprep.subr.bf16.mxu0 0
  %489 = vmatpush1.bf16.msra.mxu0 0
  %490 = vmatprep.subr.bf16.mxu0 0
  %491 = vmatpush1.bf16.msra.mxu0 0
  %492 = vmatprep.mubr.bf16.mxu0 0
  %493 = vmatmul.mubr.bf16.gmra.mrb[0].mxu0 %v455
  %v494 = vpop.f32.mrb[0].mxu0
  %v495 = vadd.f32 0.0, %v494
  %v496 = vpop.f32.mrb[0].mxu0
  %v497 = vpop.f32.mrb[0].mxu0
  %v498 = vadd.f32 0.0, %v497
  %v499 = vpop.f32.mrb[0].mxu0
  %500 = vmatprep.mubr.bf16.mxu0 0
  %501 = vmatmul.mubr.bf16.gmra.mrb[0].mxu0 %v458
  %v502 = vpop.f32.mrb[0].mxu0
  %v503 = vadd.f32 0.0, %v502
  %v504 = vpop.f32.mrb[0].mxu0
  %v505 = vpop.f32.mrb[0].mxu0
  %v506 = vadd.f32 0.0, %v505
  %v507 = vpop.f32.mrb[0].mxu0
  %508 = vdwg.mxu0
  %509 = vrot.lane.b32.xlu0 %v328, 120
  %v510 = vpop.permute.xlu0 %509
  %511 = vrot.lane.b32.xlu0 %v329, 120
  %v512 = vpop.permute.xlu0 %511
  %513 = vrot.lane.b32.xlu0 %v328, 88
  %v514 = vpop.permute.xlu0 %513
  %515 = vrot.lane.b32.xlu0 %v329, 88
  %v516 = vpop.permute.xlu0 %515
  %v518 = vsel %vm336, %v510, 0
  %v521 = vsel %vm336, %v512, 0
  %v524 = vsel %vm336, %v514, 0
  %v527 = vsel %vm336, %v516, 0
  %529 = vmatprep.subr.bf16.mxu0 0
  %530 = vmatpush1.bf16.xpose.msra.mxu0 %v524
  %531 = vmatprep.subr.bf16.mxu0 0
  %532 = vmatpush1.bf16.xpose.msra.mxu0 %v527
  %533 = vmatprep.subr.bf16.mxu0 0
  %534 = vmatpush1.bf16.xpose.msra.mxu0 0
  %535 = vmatprep.subr.bf16.mxu0 0
  %536 = vmatpush1.bf16.xpose.msra.mxu0 0
  %537 = vmatprep.subr.bf16.mxu0 0
  %538 = vmatpush1.bf16.xpose.msra.mxu0 0
  %539 = vmatprep.subr.bf16.mxu0 0
  %540 = vmatpush1.bf16.xpose.msra.mxu0 0
  %541 = vmatprep.subr.bf16.mxu0 0
  %542 = vmatpush1.bf16.xpose.msra.mxu0 0
  %543 = vmatprep.subr.bf16.mxu0 0
  %544 = vmatpush1.bf16.xpose.msra.mxu0 0
  %545 = vmatprep.subr.bf16.mxu0 0
  %546 = vmatpush1.bf16.xpose.msra.mxu0 0
  %547 = vmatprep.subr.bf16.mxu0 0
  %548 = vmatpush1.bf16.xpose.msra.mxu0 0
  %549 = vmatprep.subr.bf16.mxu0 0
  %550 = vmatpush1.bf16.xpose.msra.mxu0 0
  %551 = vmatprep.subr.bf16.mxu0 0
  %552 = vmatpush1.bf16.xpose.msra.mxu0 0
  %553 = vmatprep.subr.bf16.mxu0 0
  %554 = vmatpush1.bf16.xpose.msra.mxu0 0
  %555 = vmatprep.subr.bf16.mxu0 0
  %556 = vmatpush1.bf16.xpose.msra.mxu0 0
  %557 = vmatprep.subr.bf16.mxu0 0
  %558 = vmatpush1.bf16.xpose.msra.mxu0 0
  %559 = vmatprep.subr.bf16.mxu0 0
  %560 = vmatpush1.bf16.xpose.msra.mxu0 0
  %561 = vmatprep.mubr.bf16.mxu0 0
  %562 = vmatmul.mubr.bf16.gmra.mrb[0].mxu0 %v518
  %v563 = vpop.f32.mrb[0].mxu0
  %v564 = vadd.f32 0.0, %v563
  %v565 = vpop.f32.mrb[0].mxu0
  %v566 = vpop.f32.mrb[0].mxu0
  %v567 = vadd.f32 0.0, %v566
  %v568 = vpop.f32.mrb[0].mxu0
  %569 = vmatprep.mubr.bf16.mxu0 0
  %570 = vmatmul.mubr.bf16.gmra.mrb[0].mxu0 %v521
  %v571 = vpop.f32.mrb[0].mxu0
  %v572 = vadd.f32 0.0, %v571
  %v573 = vpop.f32.mrb[0].mxu0
  %v574 = vpop.f32.mrb[0].mxu0
  %v575 = vadd.f32 0.0, %v574
  %v576 = vpop.f32.mrb[0].mxu0
  %577 = vdwg.mxu0
  %v578 = vmul.f32 %v564, 0.35355338
  %v579 = vmul.f32 %v567, 0.35355338
  %v580 = vmul.f32 %v572, 0.35355338
  %v581 = vmul.f32 %v575, 0.35355338
  %v582 = vsel %vm250, %v578, -inf
  %583 = vmax.xlane.f32.xlu0 %v582
  %v584 = vpop.xlane.xlu0 %583
  %v585 = vsel %vm250, %v579, -inf
  %586 = vmax.xlane.f32.xlu0 %v585
  %v587 = vpop.xlane.xlu0 %586
  %v588 = vsel %vm250, %v580, -inf
  %589 = vmax.xlane.f32.xlu0 %v588
  %v590 = vpop.xlane.xlu0 %589
  %v591 = vsel %vm250, %v581, -inf
  %592 = vmax.xlane.f32.xlu0 %v591
  %v593 = vpop.xlane.xlu0 %592
  %v594 = vsub.f32 %v578, %v584
  %v595 = vsub.f32 %v579, %v587
  %v596 = vsub.f32 %v580, %v590
  %v597 = vsub.f32 %v581, %v593
  %v598 = vmul.f32 %v594, 1.442695
  %v599 = vpow.pop %v598
  %v600 = vmul.f32 %v595, 1.442695
  %v601 = vpow.pop %v600
  %v602 = vmul.f32 %v596, 1.442695
  %v603 = vpow.pop %v602
  %v604 = vmul.f32 %v597, 1.442695
  %v605 = vpow.pop %v604
  %v606 = vsel %vm250, %v599, 0.0
  %607 = vadd.xlane.f32.xlu0 %v606
  %v608 = vpop.xlane.xlu0 %607
  %v609 = vsel %vm250, %v601, 0.0
  %610 = vadd.xlane.f32.xlu0 %v609
  %v611 = vpop.xlane.xlu0 %610
  %v612 = vsel %vm250, %v603, 0.0
  %613 = vadd.xlane.f32.xlu0 %v612
  %v614 = vpop.xlane.xlu0 %613
  %v615 = vsel %vm250, %v605, 0.0
  %616 = vadd.xlane.f32.xlu0 %v615
  %v617 = vpop.xlane.xlu0 %616
  %v618 = vrcp.pop %v608
  %v619 = vmul.f32 %v599, %v618
  %v620 = vrcp.pop %v611
  %v621 = vmul.f32 %v601, %v620
  %v622 = vrcp.pop %v614
  %v623 = vmul.f32 %v603, %v622
  %v624 = vrcp.pop %v617
  %v625 = vmul.f32 %v605, %v624
  %v626 = vpack.c.bf16 %v621, %v619
  %v627 = vpack.c.bf16 %v625, %v623
  %628 = vrot.lane.b32.xlu0 %v328, 56
  %v629 = vpop.permute.xlu0 %628
  %630 = vrot.lane.b32.xlu0 %v329, 56
  %v631 = vpop.permute.xlu0 %630
  %v635 = vsel %vm250, %v626, 0
  %v638 = vsel %vm250, %v627, 0
  %640 = vmatprep.subr.bf16.mxu0 0
  %641 = vmatpush1.bf16.msra.mxu0 %v629
  %642 = vmatprep.subr.bf16.mxu0 0
  %643 = vmatpush1.bf16.msra.mxu0 %v631
  %644 = vmatprep.subr.bf16.mxu0 0
  %645 = vmatpush1.bf16.msra.mxu0 0
  %646 = vmatprep.subr.bf16.mxu0 0
  %647 = vmatpush1.bf16.msra.mxu0 0
  %648 = vmatprep.subr.bf16.mxu0 0
  %649 = vmatpush1.bf16.msra.mxu0 0
  %650 = vmatprep.subr.bf16.mxu0 0
  %651 = vmatpush1.bf16.msra.mxu0 0
  %652 = vmatprep.subr.bf16.mxu0 0
  %653 = vmatpush1.bf16.msra.mxu0 0
  %654 = vmatprep.subr.bf16.mxu0 0
  %655 = vmatpush1.bf16.msra.mxu0 0
  %656 = vmatprep.subr.bf16.mxu0 0
  %657 = vmatpush1.bf16.msra.mxu0 0
  %658 = vmatprep.subr.bf16.mxu0 0
  %659 = vmatpush1.bf16.msra.mxu0 0
  %660 = vmatprep.subr.bf16.mxu0 0
  %661 = vmatpush1.bf16.msra.mxu0 0
  %662 = vmatprep.subr.bf16.mxu0 0
  %663 = vmatpush1.bf16.msra.mxu0 0
  %664 = vmatprep.subr.bf16.mxu0 0
  %665 = vmatpush1.bf16.msra.mxu0 0
  %666 = vmatprep.subr.bf16.mxu0 0
  %667 = vmatpush1.bf16.msra.mxu0 0
  %668 = vmatprep.subr.bf16.mxu0 0
  %669 = vmatpush1.bf16.msra.mxu0 0
  %670 = vmatprep.subr.bf16.mxu0 0
  %671 = vmatpush1.bf16.msra.mxu0 0
  %672 = vmatprep.mubr.bf16.mxu0 0
  %673 = vmatmul.mubr.bf16.gmra.mrb[0].mxu0 %v635
  %v674 = vpop.f32.mrb[0].mxu0
  %v675 = vadd.f32 0.0, %v674
  %v676 = vpop.f32.mrb[0].mxu0
  %v677 = vpop.f32.mrb[0].mxu0
  %v678 = vadd.f32 0.0, %v677
  %v679 = vpop.f32.mrb[0].mxu0
  %680 = vmatprep.mubr.bf16.mxu0 0
  %681 = vmatmul.mubr.bf16.gmra.mrb[0].mxu0 %v638
  %v682 = vpop.f32.mrb[0].mxu0
  %v683 = vadd.f32 0.0, %v682
  %v684 = vpop.f32.mrb[0].mxu0
  %v685 = vpop.f32.mrb[0].mxu0
  %v686 = vadd.f32 0.0, %v685
  %v687 = vpop.f32.mrb[0].mxu0
  %688 = vdwg.mxu0
  %689 = vrot.lane.b32.xlu0 %v328, 112
  %v690 = vpop.permute.xlu0 %689
  %691 = vrot.lane.b32.xlu0 %v329, 112
  %v692 = vpop.permute.xlu0 %691
  %693 = vrot.lane.b32.xlu0 %v328, 80
  %v694 = vpop.permute.xlu0 %693
  %695 = vrot.lane.b32.xlu0 %v329, 80
  %v696 = vpop.permute.xlu0 %695
  %v698 = vsel %vm336, %v690, 0
  %v701 = vsel %vm336, %v692, 0
  %v704 = vsel %vm336, %v694, 0
  %v707 = vsel %vm336, %v696, 0
  %709 = vmatprep.subr.bf16.mxu0 0
  %710 = vmatpush1.bf16.xpose.msra.mxu0 %v704
  %711 = vmatprep.subr.bf16.mxu0 0
  %712 = vmatpush1.bf16.xpose.msra.mxu0 %v707
  %713 = vmatprep.subr.bf16.mxu0 0
  %714 = vmatpush1.bf16.xpose.msra.mxu0 0
  %715 = vmatprep.subr.bf16.mxu0 0
  %716 = vmatpush1.bf16.xpose.msra.mxu0 0
  %717 = vmatprep.subr.bf16.mxu0 0
  %718 = vmatpush1.bf16.xpose.msra.mxu0 0
  %719 = vmatprep.subr.bf16.mxu0 0
  %720 = vmatpush1.bf16.xpose.msra.mxu0 0
  %721 = vmatprep.subr.bf16.mxu0 0
  %722 = vmatpush1.bf16.xpose.msra.mxu0 0
  %723 = vmatprep.subr.bf16.mxu0 0
  %724 = vmatpush1.bf16.xpose.msra.mxu0 0
  %725 = vmatprep.subr.bf16.mxu0 0
  %726 = vmatpush1.bf16.xpose.msra.mxu0 0
  %727 = vmatprep.subr.bf16.mxu0 0
  %728 = vmatpush1.bf16.xpose.msra.mxu0 0
  %729 = vmatprep.subr.bf16.mxu0 0
  %730 = vmatpush1.bf16.xpose.msra.mxu0 0
  %731 = vmatprep.subr.bf16.mxu0 0
  %732 = vmatpush1.bf16.xpose.msra.mxu0 0
  %733 = vmatprep.subr.bf16.mxu0 0
  %734 = vmatpush1.bf16.xpose.msra.mxu0 0
  %735 = vmatprep.subr.bf16.mxu0 0
  %736 = vmatpush1.bf16.xpose.msra.mxu0 0
  %737 = vmatprep.subr.bf16.mxu0 0
  %738 = vmatpush1.bf16.xpose.msra.mxu0 0
  %739 = vmatprep.subr.bf16.mxu0 0
  %740 = vmatpush1.bf16.xpose.msra.mxu0 0
  %741 = vmatprep.mubr.bf16.mxu0 0
  %742 = vmatmul.mubr.bf16.gmra.mrb[0].mxu0 %v698
  %v743 = vpop.f32.mrb[0].mxu0
  %v744 = vadd.f32 0.0, %v743
  %v745 = vpop.f32.mrb[0].mxu0
  %v746 = vpop.f32.mrb[0].mxu0
  %v747 = vadd.f32 0.0, %v746
  %v748 = vpop.f32.mrb[0].mxu0
  %749 = vmatprep.mubr.bf16.mxu0 0
  %750 = vmatmul.mubr.bf16.gmra.mrb[0].mxu0 %v701
  %v751 = vpop.f32.mrb[0].mxu0
  %v752 = vadd.f32 0.0, %v751
  %v753 = vpop.f32.mrb[0].mxu0
  %v754 = vpop.f32.mrb[0].mxu0
  %v755 = vadd.f32 0.0, %v754
  %v756 = vpop.f32.mrb[0].mxu0
  %757 = vdwg.mxu0
  %v758 = vmul.f32 %v744, 0.35355338
  %v759 = vmul.f32 %v747, 0.35355338
  %v760 = vmul.f32 %v752, 0.35355338
  %v761 = vmul.f32 %v755, 0.35355338
  %v762 = vsel %vm250, %v758, -inf
  %763 = vmax.xlane.f32.xlu0 %v762
  %v764 = vpop.xlane.xlu0 %763
  %v765 = vsel %vm250, %v759, -inf
  %766 = vmax.xlane.f32.xlu0 %v765
  %v767 = vpop.xlane.xlu0 %766
  %v768 = vsel %vm250, %v760, -inf
  %769 = vmax.xlane.f32.xlu0 %v768
  %v770 = vpop.xlane.xlu0 %769
  %v771 = vsel %vm250, %v761, -inf
  %772 = vmax.xlane.f32.xlu0 %v771
  %v773 = vpop.xlane.xlu0 %772
  %v774 = vsub.f32 %v758, %v764
  %v775 = vsub.f32 %v759, %v767
  %v776 = vsub.f32 %v760, %v770
  %v777 = vsub.f32 %v761, %v773
  %v778 = vmul.f32 %v774, 1.442695
  %v779 = vpow.pop %v778
  %v780 = vmul.f32 %v775, 1.442695
  %v781 = vpow.pop %v780
  %v782 = vmul.f32 %v776, 1.442695
  %v783 = vpow.pop %v782
  %v784 = vmul.f32 %v777, 1.442695
  %v785 = vpow.pop %v784
  %v786 = vsel %vm250, %v779, 0.0
  %787 = vadd.xlane.f32.xlu0 %v786
  %v788 = vpop.xlane.xlu0 %787
  %v789 = vsel %vm250, %v781, 0.0
  %790 = vadd.xlane.f32.xlu0 %v789
  %v791 = vpop.xlane.xlu0 %790
  %v792 = vsel %vm250, %v783, 0.0
  %793 = vadd.xlane.f32.xlu0 %v792
  %v794 = vpop.xlane.xlu0 %793
  %v795 = vsel %vm250, %v785, 0.0
  %796 = vadd.xlane.f32.xlu0 %v795
  %v797 = vpop.xlane.xlu0 %796
  %v798 = vrcp.pop %v788
  %v799 = vmul.f32 %v779, %v798
  %v800 = vrcp.pop %v791
  %v801 = vmul.f32 %v781, %v800
  %v802 = vrcp.pop %v794
  %v803 = vmul.f32 %v783, %v802
  %v804 = vrcp.pop %v797
  %v805 = vmul.f32 %v785, %v804
  %v806 = vpack.c.bf16 %v801, %v799
  %v807 = vpack.c.bf16 %v805, %v803
  %808 = vrot.lane.b32.xlu0 %v328, 48
  %v809 = vpop.permute.xlu0 %808
  %810 = vrot.lane.b32.xlu0 %v329, 48
  %v811 = vpop.permute.xlu0 %810
  %v815 = vsel %vm250, %v806, 0
  %v818 = vsel %vm250, %v807, 0
  %820 = vmatprep.subr.bf16.mxu0 0
  %821 = vmatpush1.bf16.msra.mxu0 %v809
  %822 = vmatprep.subr.bf16.mxu0 0
  %823 = vmatpush1.bf16.msra.mxu0 %v811
  %824 = vmatprep.subr.bf16.mxu0 0
  %825 = vmatpush1.bf16.msra.mxu0 0
  %826 = vmatprep.subr.bf16.mxu0 0
  %827 = vmatpush1.bf16.msra.mxu0 0
  %828 = vmatprep.subr.bf16.mxu0 0
  %829 = vmatpush1.bf16.msra.mxu0 0
  %830 = vmatprep.subr.bf16.mxu0 0
  %831 = vmatpush1.bf16.msra.mxu0 0
  %832 = vmatprep.subr.bf16.mxu0 0
  %833 = vmatpush1.bf16.msra.mxu0 0
  %834 = vmatprep.subr.bf16.mxu0 0
  %835 = vmatpush1.bf16.msra.mxu0 0
  %836 = vmatprep.subr.bf16.mxu0 0
  %837 = vmatpush1.bf16.msra.mxu0 0
  %838 = vmatprep.subr.bf16.mxu0 0
  %839 = vmatpush1.bf16.msra.mxu0 0
  %840 = vmatprep.subr.bf16.mxu0 0
  %841 = vmatpush1.bf16.msra.mxu0 0
  %842 = vmatprep.subr.bf16.mxu0 0
  %843 = vmatpush1.bf16.msra.mxu0 0
  %844 = vmatprep.subr.bf16.mxu0 0
  %845 = vmatpush1.bf16.msra.mxu0 0
  %846 = vmatprep.subr.bf16.mxu0 0
  %847 = vmatpush1.bf16.msra.mxu0 0
  %848 = vmatprep.subr.bf16.mxu0 0
  %849 = vmatpush1.bf16.msra.mxu0 0
  %850 = vmatprep.subr.bf16.mxu0 0
  %851 = vmatpush1.bf16.msra.mxu0 0
  %852 = vmatprep.mubr.bf16.mxu0 0
  %853 = vmatmul.mubr.bf16.gmra.mrb[0].mxu0 %v815
  %v854 = vpop.f32.mrb[0].mxu0
  %v855 = vadd.f32 0.0, %v854
  %v856 = vpop.f32.mrb[0].mxu0
  %v857 = vpop.f32.mrb[0].mxu0
  %v858 = vadd.f32 0.0, %v857
  %v859 = vpop.f32.mrb[0].mxu0
  %860 = vmatprep.mubr.bf16.mxu0 0
  %861 = vmatmul.mubr.bf16.gmra.mrb[0].mxu0 %v818
  %v862 = vpop.f32.mrb[0].mxu0
  %v863 = vadd.f32 0.0, %v862
  %v864 = vpop.f32.mrb[0].mxu0
  %v865 = vpop.f32.mrb[0].mxu0
  %v866 = vadd.f32 0.0, %v865
  %v867 = vpop.f32.mrb[0].mxu0
  %868 = vdwg.mxu0
  %869 = vrot.lane.b32.xlu0 %v328, 104
  %v870 = vpop.permute.xlu0 %869
  %871 = vrot.lane.b32.xlu0 %v329, 104
  %v872 = vpop.permute.xlu0 %871
  %873 = vrot.lane.b32.xlu0 %v328, 72
  %v874 = vpop.permute.xlu0 %873
  %875 = vrot.lane.b32.xlu0 %v329, 72
  %v876 = vpop.permute.xlu0 %875
  %v878 = vsel %vm336, %v870, 0
  %v881 = vsel %vm336, %v872, 0
  %v884 = vsel %vm336, %v874, 0
  %v887 = vsel %vm336, %v876, 0
  %889 = vmatprep.subr.bf16.mxu0 0
  %890 = vmatpush1.bf16.xpose.msra.mxu0 %v884
  %891 = vmatprep.subr.bf16.mxu0 0
  %892 = vmatpush1.bf16.xpose.msra.mxu0 %v887
  %893 = vmatprep.subr.bf16.mxu0 0
  %894 = vmatpush1.bf16.xpose.msra.mxu0 0
  %895 = vmatprep.subr.bf16.mxu0 0
  %896 = vmatpush1.bf16.xpose.msra.mxu0 0
  %897 = vmatprep.subr.bf16.mxu0 0
  %898 = vmatpush1.bf16.xpose.msra.mxu0 0
  %899 = vmatprep.subr.bf16.mxu0 0
  %900 = vmatpush1.bf16.xpose.msra.mxu0 0
  %901 = vmatprep.subr.bf16.mxu0 0
  %902 = vmatpush1.bf16.xpose.msra.mxu0 0
  %903 = vmatprep.subr.bf16.mxu0 0
  %904 = vmatpush1.bf16.xpose.msra.mxu0 0
  %905 = vmatprep.subr.bf16.mxu0 0
  %906 = vmatpush1.bf16.xpose.msra.mxu0 0
  %907 = vmatprep.subr.bf16.mxu0 0
  %908 = vmatpush1.bf16.xpose.msra.mxu0 0
  %909 = vmatprep.subr.bf16.mxu0 0
  %910 = vmatpush1.bf16.xpose.msra.mxu0 0
  %911 = vmatprep.subr.bf16.mxu0 0
  %912 = vmatpush1.bf16.xpose.msra.mxu0 0
  %913 = vmatprep.subr.bf16.mxu0 0
  %914 = vmatpush1.bf16.xpose.msra.mxu0 0
  %915 = vmatprep.subr.bf16.mxu0 0
  %916 = vmatpush1.bf16.xpose.msra.mxu0 0
  %917 = vmatprep.subr.bf16.mxu0 0
  %918 = vmatpush1.bf16.xpose.msra.mxu0 0
  %919 = vmatprep.subr.bf16.mxu0 0
  %920 = vmatpush1.bf16.xpose.msra.mxu0 0
  %921 = vmatprep.mubr.bf16.mxu0 0
  %922 = vmatmul.mubr.bf16.gmra.mrb[0].mxu0 %v878
  %v923 = vpop.f32.mrb[0].mxu0
  %v924 = vadd.f32 0.0, %v923
  %v925 = vpop.f32.mrb[0].mxu0
  %v926 = vpop.f32.mrb[0].mxu0
  %v927 = vadd.f32 0.0, %v926
  %v928 = vpop.f32.mrb[0].mxu0
  %929 = vmatprep.mubr.bf16.mxu0 0
  %930 = vmatmul.mubr.bf16.gmra.mrb[0].mxu0 %v881
  %v931 = vpop.f32.mrb[0].mxu0
  %v932 = vadd.f32 0.0, %v931
  %v933 = vpop.f32.mrb[0].mxu0
  %v934 = vpop.f32.mrb[0].mxu0
  %v935 = vadd.f32 0.0, %v934
  %v936 = vpop.f32.mrb[0].mxu0
  %937 = vdwg.mxu0
  %v938 = vmul.f32 %v924, 0.35355338
  %v939 = vmul.f32 %v927, 0.35355338
  %v940 = vmul.f32 %v932, 0.35355338
  %v941 = vmul.f32 %v935, 0.35355338
  %v942 = vsel %vm250, %v938, -inf
  %943 = vmax.xlane.f32.xlu0 %v942
  %v944 = vpop.xlane.xlu0 %943
  %v945 = vsel %vm250, %v939, -inf
  %946 = vmax.xlane.f32.xlu0 %v945
  %v947 = vpop.xlane.xlu0 %946
  %v948 = vsel %vm250, %v940, -inf
  %949 = vmax.xlane.f32.xlu0 %v948
  %v950 = vpop.xlane.xlu0 %949
  %v951 = vsel %vm250, %v941, -inf
  %952 = vmax.xlane.f32.xlu0 %v951
  %v953 = vpop.xlane.xlu0 %952
  %v954 = vsub.f32 %v938, %v944
  %v955 = vsub.f32 %v939, %v947
  %v956 = vsub.f32 %v940, %v950
  %v957 = vsub.f32 %v941, %v953
  %v958 = vmul.f32 %v954, 1.442695
  %v959 = vpow.pop %v958
  %v960 = vmul.f32 %v955, 1.442695
  %v961 = vpow.pop %v960
  %v962 = vmul.f32 %v956, 1.442695
  %v963 = vpow.pop %v962
  %v964 = vmul.f32 %v957, 1.442695
  %v965 = vpow.pop %v964
  %v966 = vsel %vm250, %v959, 0.0
  %967 = vadd.xlane.f32.xlu0 %v966
  %v968 = vpop.xlane.xlu0 %967
  %v969 = vsel %vm250, %v961, 0.0
  %970 = vadd.xlane.f32.xlu0 %v969
  %v971 = vpop.xlane.xlu0 %970
  %v972 = vsel %vm250, %v963, 0.0
  %973 = vadd.xlane.f32.xlu0 %v972
  %v974 = vpop.xlane.xlu0 %973
  %v975 = vsel %vm250, %v965, 0.0
  %976 = vadd.xlane.f32.xlu0 %v975
  %v977 = vpop.xlane.xlu0 %976
  %v978 = vrcp.pop %v968
  %v979 = vmul.f32 %v959, %v978
  %v980 = vrcp.pop %v971
  %v981 = vmul.f32 %v961, %v980
  %v982 = vrcp.pop %v974
  %v983 = vmul.f32 %v963, %v982
  %v984 = vrcp.pop %v977
  %v985 = vmul.f32 %v965, %v984
  %v986 = vpack.c.bf16 %v981, %v979
  %v987 = vpack.c.bf16 %v985, %v983
  %988 = vrot.lane.b32.xlu0 %v328, 40
  %v989 = vpop.permute.xlu0 %988
  %990 = vrot.lane.b32.xlu0 %v329, 40
  %v991 = vpop.permute.xlu0 %990
  %v995 = vsel %vm250, %v986, 0
  %v998 = vsel %vm250, %v987, 0
  %1000 = vmatprep.subr.bf16.mxu0 0
  %1001 = vmatpush1.bf16.msra.mxu0 %v989
  %1002 = vmatprep.subr.bf16.mxu0 0
  %1003 = vmatpush1.bf16.msra.mxu0 %v991
  %1004 = vmatprep.subr.bf16.mxu0 0
  %1005 = vmatpush1.bf16.msra.mxu0 0
  %1006 = vmatprep.subr.bf16.mxu0 0
  %1007 = vmatpush1.bf16.msra.mxu0 0
  %1008 = vmatprep.subr.bf16.mxu0 0
  %1009 = vmatpush1.bf16.msra.mxu0 0
  %1010 = vmatprep.subr.bf16.mxu0 0
  %1011 = vmatpush1.bf16.msra.mxu0 0
  %1012 = vmatprep.subr.bf16.mxu0 0
  %1013 = vmatpush1.bf16.msra.mxu0 0
  %1014 = vmatprep.subr.bf16.mxu0 0
  %1015 = vmatpush1.bf16.msra.mxu0 0
  %1016 = vmatprep.subr.bf16.mxu0 0
  %1017 = vmatpush1.bf16.msra.mxu0 0
  %1018 = vmatprep.subr.bf16.mxu0 0
  %1019 = vmatpush1.bf16.msra.mxu0 0
  %1020 = vmatprep.subr.bf16.mxu0 0
  %1021 = vmatpush1.bf16.msra.mxu0 0
  %1022 = vmatprep.subr.bf16.mxu0 0
  %1023 = vmatpush1.bf16.msra.mxu0 0
  %1024 = vmatprep.subr.bf16.mxu0 0
  %1025 = vmatpush1.bf16.msra.mxu0 0
  %1026 = vmatprep.subr.bf16.mxu0 0
  %1027 = vmatpush1.bf16.msra.mxu0 0
  %1028 = vmatprep.subr.bf16.mxu0 0
  %1029 = vmatpush1.bf16.msra.mxu0 0
  %1030 = vmatprep.subr.bf16.mxu0 0
  %1031 = vmatpush1.bf16.msra.mxu0 0
  %1032 = vmatprep.mubr.bf16.mxu0 0
  %1033 = vmatmul.mubr.bf16.gmra.mrb[0].mxu0 %v995
  %v1034 = vpop.f32.mrb[0].mxu0
  %v1035 = vadd.f32 0.0, %v1034
  %v1036 = vpop.f32.mrb[0].mxu0
  %v1037 = vpop.f32.mrb[0].mxu0
  %v1038 = vadd.f32 0.0, %v1037
  %v1039 = vpop.f32.mrb[0].mxu0
  %1040 = vmatprep.mubr.bf16.mxu0 0
  %1041 = vmatmul.mubr.bf16.gmra.mrb[0].mxu0 %v998
  %v1042 = vpop.f32.mrb[0].mxu0
  %v1043 = vadd.f32 0.0, %v1042
  %v1044 = vpop.f32.mrb[0].mxu0
  %v1045 = vpop.f32.mrb[0].mxu0
  %v1046 = vadd.f32 0.0, %v1045
  %v1047 = vpop.f32.mrb[0].mxu0
  %1048 = vdwg.mxu0
  %1053 = vrot.lane.b32.xlu0 %v675, 8
  %v1054 = vpop.permute.xlu0 %1053
  %1055 = vrot.lane.b32.xlu0 %v678, 8
  %v1056 = vpop.permute.xlu0 %1055
  %1057 = vrot.lane.b32.xlu0 %v683, 8
  %v1058 = vpop.permute.xlu0 %1057
  %1059 = vrot.lane.b32.xlu0 %v686, 8
  %v1060 = vpop.permute.xlu0 %1059
  %1069 = vrot.lane.b32.xlu0 %v855, 16
  %v1070 = vpop.permute.xlu0 %1069
  %1071 = vrot.lane.b32.xlu0 %v858, 16
  %v1072 = vpop.permute.xlu0 %1071
  %1073 = vrot.lane.b32.xlu0 %v863, 16
  %v1074 = vpop.permute.xlu0 %1073
  %1075 = vrot.lane.b32.xlu0 %v866, 16
  %v1076 = vpop.permute.xlu0 %1075
  %1085 = vrot.lane.b32.xlu0 %v1035, 24
  %v1086 = vpop.permute.xlu0 %1085
  %1087 = vrot.lane.b32.xlu0 %v1038, 24
  %v1088 = vpop.permute.xlu0 %1087
  %1089 = vrot.lane.b32.xlu0 %v1043, 24
  %v1090 = vpop.permute.xlu0 %1089
  %1091 = vrot.lane.b32.xlu0 %v1046, 24
  %v1092 = vpop.permute.xlu0 %1091
  %v1097 = vsel %vm336, %v495, %v1054
  %v1098 = vsel %vm336, %v498, %v1056
  %v1099 = vsel %vm336, %v503, %v1058
  %v1100 = vsel %vm336, %v506, %v1060
  %v1101 = vsel %vm112, %v1097, %v1070
  %v1102 = vsel %vm112, %v1098, %v1072
  %v1103 = vsel %vm112, %v1099, %v1074
  %v1104 = vsel %vm112, %v1100, %v1076
  %vm1105 = vcmask 195584
  %v1106 = vsel %vm1105, %v1101, %v1086
  %v1107 = vsel %vm1105, %v1102, %v1088
  %v1108 = vsel %vm1105, %v1103, %v1090
  %v1109 = vsel %vm1105, %v1104, %v1092
  %v1110 = vpack.c.bf16 %v317, %v314
  %v1111 = vpack.c.bf16 %v325, %v322
  %1114 = vrot.lane.b32.xlu0 %v1110, 96
  %v1115 = vpop.permute.xlu0 %1114
  %1116 = vrot.lane.b32.xlu0 %v1111, 96
  %v1117 = vpop.permute.xlu0 %1116
  %v1119 = vsel %vm336, %v1110, 0
  %v1122 = vsel %vm336, %v1111, 0
  %v1125 = vsel %vm336, %v1115, 0
  %v1128 = vsel %vm336, %v1117, 0
  %1130 = vmatprep.subr.bf16.mxu0 0
  %1131 = vmatpush1.bf16.xpose.msra.mxu0 %v1125
  %1132 = vmatprep.subr.bf16.mxu0 0
  %1133 = vmatpush1.bf16.xpose.msra.mxu0 %v1128
  %1134 = vmatprep.subr.bf16.mxu0 0
  %1135 = vmatpush1.bf16.xpose.msra.mxu0 0
  %1136 = vmatprep.subr.bf16.mxu0 0
  %1137 = vmatpush1.bf16.xpose.msra.mxu0 0
  %1138 = vmatprep.subr.bf16.mxu0 0
  %1139 = vmatpush1.bf16.xpose.msra.mxu0 0
  %1140 = vmatprep.subr.bf16.mxu0 0
  %1141 = vmatpush1.bf16.xpose.msra.mxu0 0
  %1142 = vmatprep.subr.bf16.mxu0 0
  %1143 = vmatpush1.bf16.xpose.msra.mxu0 0
  %1144 = vmatprep.subr.bf16.mxu0 0
  %1145 = vmatpush1.bf16.xpose.msra.mxu0 0
  %1146 = vmatprep.subr.bf16.mxu0 0
  %1147 = vmatpush1.bf16.xpose.msra.mxu0 0
  %1148 = vmatprep.subr.bf16.mxu0 0
  %1149 = vmatpush1.bf16.xpose.msra.mxu0 0
  %1150 = vmatprep.subr.bf16.mxu0 0
  %1151 = vmatpush1.bf16.xpose.msra.mxu0 0
  %1152 = vmatprep.subr.bf16.mxu0 0
  %1153 = vmatpush1.bf16.xpose.msra.mxu0 0
  %1154 = vmatprep.subr.bf16.mxu0 0
  %1155 = vmatpush1.bf16.xpose.msra.mxu0 0
  %1156 = vmatprep.subr.bf16.mxu0 0
  %1157 = vmatpush1.bf16.xpose.msra.mxu0 0
  %1158 = vmatprep.subr.bf16.mxu0 0
  %1159 = vmatpush1.bf16.xpose.msra.mxu0 0
  %1160 = vmatprep.subr.bf16.mxu0 0
  %1161 = vmatpush1.bf16.xpose.msra.mxu0 0
  %1162 = vmatprep.mubr.bf16.mxu0 0
  %1163 = vmatmul.mubr.bf16.gmra.mrb[0].mxu0 %v1119
  %v1164 = vpop.f32.mrb[0].mxu0
  %v1165 = vadd.f32 0.0, %v1164
  %v1166 = vpop.f32.mrb[0].mxu0
  %v1167 = vpop.f32.mrb[0].mxu0
  %v1168 = vadd.f32 0.0, %v1167
  %v1169 = vpop.f32.mrb[0].mxu0
  %1170 = vmatprep.mubr.bf16.mxu0 0
  %1171 = vmatmul.mubr.bf16.gmra.mrb[0].mxu0 %v1122
  %v1172 = vpop.f32.mrb[0].mxu0
  %v1173 = vadd.f32 0.0, %v1172
  %v1174 = vpop.f32.mrb[0].mxu0
  %v1175 = vpop.f32.mrb[0].mxu0
  %v1176 = vadd.f32 0.0, %v1175
  %v1177 = vpop.f32.mrb[0].mxu0
  %1178 = vdwg.mxu0
  %v1179 = vmul.f32 %v1165, 0.35355338
  %v1180 = vmul.f32 %v1168, 0.35355338
  %v1181 = vmul.f32 %v1173, 0.35355338
  %v1182 = vmul.f32 %v1176, 0.35355338
  %v1183 = vsel %vm250, %v1179, -inf
  %1184 = vmax.xlane.f32.xlu0 %v1183
  %v1185 = vpop.xlane.xlu0 %1184
  %v1186 = vsel %vm250, %v1180, -inf
  %1187 = vmax.xlane.f32.xlu0 %v1186
  %v1188 = vpop.xlane.xlu0 %1187
  %v1189 = vsel %vm250, %v1181, -inf
  %1190 = vmax.xlane.f32.xlu0 %v1189
  %v1191 = vpop.xlane.xlu0 %1190
  %v1192 = vsel %vm250, %v1182, -inf
  %1193 = vmax.xlane.f32.xlu0 %v1192
  %v1194 = vpop.xlane.xlu0 %1193
  %v1195 = vsub.f32 %v1179, %v1185
  %v1196 = vsub.f32 %v1180, %v1188
  %v1197 = vsub.f32 %v1181, %v1191
  %v1198 = vsub.f32 %v1182, %v1194
  %v1199 = vmul.f32 %v1195, 1.442695
  %v1200 = vpow.pop %v1199
  %v1201 = vmul.f32 %v1196, 1.442695
  %v1202 = vpow.pop %v1201
  %v1203 = vmul.f32 %v1197, 1.442695
  %v1204 = vpow.pop %v1203
  %v1205 = vmul.f32 %v1198, 1.442695
  %v1206 = vpow.pop %v1205
  %v1207 = vsel %vm250, %v1200, 0.0
  %1208 = vadd.xlane.f32.xlu0 %v1207
  %v1209 = vpop.xlane.xlu0 %1208
  %v1210 = vsel %vm250, %v1202, 0.0
  %1211 = vadd.xlane.f32.xlu0 %v1210
  %v1212 = vpop.xlane.xlu0 %1211
  %v1213 = vsel %vm250, %v1204, 0.0
  %1214 = vadd.xlane.f32.xlu0 %v1213
  %v1215 = vpop.xlane.xlu0 %1214
  %v1216 = vsel %vm250, %v1206, 0.0
  %1217 = vadd.xlane.f32.xlu0 %v1216
  %v1218 = vpop.xlane.xlu0 %1217
  %v1219 = vrcp.pop %v1209
  %v1220 = vmul.f32 %v1200, %v1219
  %v1221 = vrcp.pop %v1212
  %v1222 = vmul.f32 %v1202, %v1221
  %v1223 = vrcp.pop %v1215
  %v1224 = vmul.f32 %v1204, %v1223
  %v1225 = vrcp.pop %v1218
  %v1226 = vmul.f32 %v1206, %v1225
  %v1227 = vpack.c.bf16 %v1222, %v1220
  %v1228 = vpack.c.bf16 %v1226, %v1224
  %1229 = vrot.lane.b32.xlu0 %v1110, 64
  %v1230 = vpop.permute.xlu0 %1229
  %1231 = vrot.lane.b32.xlu0 %v1111, 64
  %v1232 = vpop.permute.xlu0 %1231
  %v1236 = vsel %vm250, %v1227, 0
  %v1239 = vsel %vm250, %v1228, 0
  %1241 = vmatprep.subr.bf16.mxu0 0
  %1242 = vmatpush1.bf16.msra.mxu0 %v1230
  %1243 = vmatprep.subr.bf16.mxu0 0
  %1244 = vmatpush1.bf16.msra.mxu0 %v1232
  %1245 = vmatprep.subr.bf16.mxu0 0
  %1246 = vmatpush1.bf16.msra.mxu0 0
  %1247 = vmatprep.subr.bf16.mxu0 0
  %1248 = vmatpush1.bf16.msra.mxu0 0
  %1249 = vmatprep.subr.bf16.mxu0 0
  %1250 = vmatpush1.bf16.msra.mxu0 0
  %1251 = vmatprep.subr.bf16.mxu0 0
  %1252 = vmatpush1.bf16.msra.mxu0 0
  %1253 = vmatprep.subr.bf16.mxu0 0
  %1254 = vmatpush1.bf16.msra.mxu0 0
  %1255 = vmatprep.subr.bf16.mxu0 0
  %1256 = vmatpush1.bf16.msra.mxu0 0
  %1257 = vmatprep.subr.bf16.mxu0 0
  %1258 = vmatpush1.bf16.msra.mxu0 0
  %1259 = vmatprep.subr.bf16.mxu0 0
  %1260 = vmatpush1.bf16.msra.mxu0 0
  %1261 = vmatprep.subr.bf16.mxu0 0
  %1262 = vmatpush1.bf16.msra.mxu0 0
  %1263 = vmatprep.subr.bf16.mxu0 0
  %1264 = vmatpush1.bf16.msra.mxu0 0
  %1265 = vmatprep.subr.bf16.mxu0 0
  %1266 = vmatpush1.bf16.msra.mxu0 0
  %1267 = vmatprep.subr.bf16.mxu0 0
  %1268 = vmatpush1.bf16.msra.mxu0 0
  %1269 = vmatprep.subr.bf16.mxu0 0
  %1270 = vmatpush1.bf16.msra.mxu0 0
  %1271 = vmatprep.subr.bf16.mxu0 0
  %1272 = vmatpush1.bf16.msra.mxu0 0
  %1273 = vmatprep.mubr.bf16.mxu0 0
  %1274 = vmatmul.mubr.bf16.gmra.mrb[0].mxu0 %v1236
  %v1275 = vpop.f32.mrb[0].mxu0
  %v1276 = vadd.f32 0.0, %v1275
  %v1277 = vpop.f32.mrb[0].mxu0
  %v1278 = vpop.f32.mrb[0].mxu0
  %v1279 = vadd.f32 0.0, %v1278
  %v1280 = vpop.f32.mrb[0].mxu0
  %1281 = vmatprep.mubr.bf16.mxu0 0
  %1282 = vmatmul.mubr.bf16.gmra.mrb[0].mxu0 %v1239
  %v1283 = vpop.f32.mrb[0].mxu0
  %v1284 = vadd.f32 0.0, %v1283
  %v1285 = vpop.f32.mrb[0].mxu0
  %v1286 = vpop.f32.mrb[0].mxu0
  %v1287 = vadd.f32 0.0, %v1286
  %v1288 = vpop.f32.mrb[0].mxu0
  %1289 = vdwg.mxu0
  %1290 = vrot.lane.b32.xlu0 %v1110, 120
  %v1291 = vpop.permute.xlu0 %1290
  %1292 = vrot.lane.b32.xlu0 %v1111, 120
  %v1293 = vpop.permute.xlu0 %1292
  %1294 = vrot.lane.b32.xlu0 %v1110, 88
  %v1295 = vpop.permute.xlu0 %1294
  %1296 = vrot.lane.b32.xlu0 %v1111, 88
  %v1297 = vpop.permute.xlu0 %1296
  %v1299 = vsel %vm336, %v1291, 0
  %v1302 = vsel %vm336, %v1293, 0
  %v1305 = vsel %vm336, %v1295, 0
  %v1308 = vsel %vm336, %v1297, 0
  %1310 = vmatprep.subr.bf16.mxu0 0
  %1311 = vmatpush1.bf16.xpose.msra.mxu0 %v1305
  %1312 = vmatprep.subr.bf16.mxu0 0
  %1313 = vmatpush1.bf16.xpose.msra.mxu0 %v1308
  %1314 = vmatprep.subr.bf16.mxu0 0
  %1315 = vmatpush1.bf16.xpose.msra.mxu0 0
  %1316 = vmatprep.subr.bf16.mxu0 0
  %1317 = vmatpush1.bf16.xpose.msra.mxu0 0
  %1318 = vmatprep.subr.bf16.mxu0 0
  %1319 = vmatpush1.bf16.xpose.msra.mxu0 0
  %1320 = vmatprep.subr.bf16.mxu0 0
  %1321 = vmatpush1.bf16.xpose.msra.mxu0 0
  %1322 = vmatprep.subr.bf16.mxu0 0
  %1323 = vmatpush1.bf16.xpose.msra.mxu0 0
  %1324 = vmatprep.subr.bf16.mxu0 0
  %1325 = vmatpush1.bf16.xpose.msra.mxu0 0
  %1326 = vmatprep.subr.bf16.mxu0 0
  %1327 = vmatpush1.bf16.xpose.msra.mxu0 0
  %1328 = vmatprep.subr.bf16.mxu0 0
  %1329 = vmatpush1.bf16.xpose.msra.mxu0 0
  %1330 = vmatprep.subr.bf16.mxu0 0
  %1331 = vmatpush1.bf16.xpose.msra.mxu0 0
  %1332 = vmatprep.subr.bf16.mxu0 0
  %1333 = vmatpush1.bf16.xpose.msra.mxu0 0
  %1334 = vmatprep.subr.bf16.mxu0 0
  %1335 = vmatpush1.bf16.xpose.msra.mxu0 0
  %1336 = vmatprep.subr.bf16.mxu0 0
  %1337 = vmatpush1.bf16.xpose.msra.mxu0 0
  %1338 = vmatprep.subr.bf16.mxu0 0
  %1339 = vmatpush1.bf16.xpose.msra.mxu0 0
  %1340 = vmatprep.subr.bf16.mxu0 0
  %1341 = vmatpush1.bf16.xpose.msra.mxu0 0
  %1342 = vmatprep.mubr.bf16.mxu0 0
  %1343 = vmatmul.mubr.bf16.gmra.mrb[0].mxu0 %v1299
  %v1344 = vpop.f32.mrb[0].mxu0
  %v1345 = vadd.f32 0.0, %v1344
  %v1346 = vpop.f32.mrb[0].mxu0
  %v1347 = vpop.f32.mrb[0].mxu0
  %v1348 = vadd.f32 0.0, %v1347
  %v1349 = vpop.f32.mrb[0].mxu0
  %1350 = vmatprep.mubr.bf16.mxu0 0
  %1351 = vmatmul.mubr.bf16.gmra.mrb[0].mxu0 %v1302
  %v1352 = vpop.f32.mrb[0].mxu0
  %v1353 = vadd.f32 0.0, %v1352
  %v1354 = vpop.f32.mrb[0].mxu0
  %v1355 = vpop.f32.mrb[0].mxu0
  %v1356 = vadd.f32 0.0, %v1355
  %v1357 = vpop.f32.mrb[0].mxu0
  %1358 = vdwg.mxu0
  %v1359 = vmul.f32 %v1345, 0.35355338
  %v1360 = vmul.f32 %v1348, 0.35355338
  %v1361 = vmul.f32 %v1353, 0.35355338
  %v1362 = vmul.f32 %v1356, 0.35355338
  %v1363 = vsel %vm250, %v1359, -inf
  %1364 = vmax.xlane.f32.xlu0 %v1363
  %v1365 = vpop.xlane.xlu0 %1364
  %v1366 = vsel %vm250, %v1360, -inf
  %1367 = vmax.xlane.f32.xlu0 %v1366
  %v1368 = vpop.xlane.xlu0 %1367
  %v1369 = vsel %vm250, %v1361, -inf
  %1370 = vmax.xlane.f32.xlu0 %v1369
  %v1371 = vpop.xlane.xlu0 %1370
  %v1372 = vsel %vm250, %v1362, -inf
  %1373 = vmax.xlane.f32.xlu0 %v1372
  %v1374 = vpop.xlane.xlu0 %1373
  %v1375 = vsub.f32 %v1359, %v1365
  %v1376 = vsub.f32 %v1360, %v1368
  %v1377 = vsub.f32 %v1361, %v1371
  %v1378 = vsub.f32 %v1362, %v1374
  %v1379 = vmul.f32 %v1375, 1.442695
  %v1380 = vpow.pop %v1379
  %v1381 = vmul.f32 %v1376, 1.442695
  %v1382 = vpow.pop %v1381
  %v1383 = vmul.f32 %v1377, 1.442695
  %v1384 = vpow.pop %v1383
  %v1385 = vmul.f32 %v1378, 1.442695
  %v1386 = vpow.pop %v1385
  %v1387 = vsel %vm250, %v1380, 0.0
  %1388 = vadd.xlane.f32.xlu0 %v1387
  %v1389 = vpop.xlane.xlu0 %1388
  %v1390 = vsel %vm250, %v1382, 0.0
  %1391 = vadd.xlane.f32.xlu0 %v1390
  %v1392 = vpop.xlane.xlu0 %1391
  %v1393 = vsel %vm250, %v1384, 0.0
  %1394 = vadd.xlane.f32.xlu0 %v1393
  %v1395 = vpop.xlane.xlu0 %1394
  %v1396 = vsel %vm250, %v1386, 0.0
  %1397 = vadd.xlane.f32.xlu0 %v1396
  %v1398 = vpop.xlane.xlu0 %1397
  %v1399 = vrcp.pop %v1389
  %v1400 = vmul.f32 %v1380, %v1399
  %v1401 = vrcp.pop %v1392
  %v1402 = vmul.f32 %v1382, %v1401
  %v1403 = vrcp.pop %v1395
  %v1404 = vmul.f32 %v1384, %v1403
  %v1405 = vrcp.pop %v1398
  %v1406 = vmul.f32 %v1386, %v1405
  %v1407 = vpack.c.bf16 %v1402, %v1400
  %v1408 = vpack.c.bf16 %v1406, %v1404
  %1409 = vrot.lane.b32.xlu0 %v1110, 56
  %v1410 = vpop.permute.xlu0 %1409
  %1411 = vrot.lane.b32.xlu0 %v1111, 56
  %v1412 = vpop.permute.xlu0 %1411
  %v1416 = vsel %vm250, %v1407, 0
  %v1419 = vsel %vm250, %v1408, 0
  %1421 = vmatprep.subr.bf16.mxu0 0
  %1422 = vmatpush1.bf16.msra.mxu0 %v1410
  %1423 = vmatprep.subr.bf16.mxu0 0
  %1424 = vmatpush1.bf16.msra.mxu0 %v1412
  %1425 = vmatprep.subr.bf16.mxu0 0
  %1426 = vmatpush1.bf16.msra.mxu0 0
  %1427 = vmatprep.subr.bf16.mxu0 0
  %1428 = vmatpush1.bf16.msra.mxu0 0
  %1429 = vmatprep.subr.bf16.mxu0 0
  %1430 = vmatpush1.bf16.msra.mxu0 0
  %1431 = vmatprep.subr.bf16.mxu0 0
  %1432 = vmatpush1.bf16.msra.mxu0 0
  %1433 = vmatprep.subr.bf16.mxu0 0
  %1434 = vmatpush1.bf16.msra.mxu0 0
  %1435 = vmatprep.subr.bf16.mxu0 0
  %1436 = vmatpush1.bf16.msra.mxu0 0
  %1437 = vmatprep.subr.bf16.mxu0 0
  %1438 = vmatpush1.bf16.msra.mxu0 0
  %1439 = vmatprep.subr.bf16.mxu0 0
  %1440 = vmatpush1.bf16.msra.mxu0 0
  %1441 = vmatprep.subr.bf16.mxu0 0
  %1442 = vmatpush1.bf16.msra.mxu0 0
  %1443 = vmatprep.subr.bf16.mxu0 0
  %1444 = vmatpush1.bf16.msra.mxu0 0
  %1445 = vmatprep.subr.bf16.mxu0 0
  %1446 = vmatpush1.bf16.msra.mxu0 0
  %1447 = vmatprep.subr.bf16.mxu0 0
  %1448 = vmatpush1.bf16.msra.mxu0 0
  %1449 = vmatprep.subr.bf16.mxu0 0
  %1450 = vmatpush1.bf16.msra.mxu0 0
  %1451 = vmatprep.subr.bf16.mxu0 0
  %1452 = vmatpush1.bf16.msra.mxu0 0
  %1453 = vmatprep.mubr.bf16.mxu0 0
  %1454 = vmatmul.mubr.bf16.gmra.mrb[0].mxu0 %v1416
  %v1455 = vpop.f32.mrb[0].mxu0
  %v1456 = vadd.f32 0.0, %v1455
  %v1457 = vpop.f32.mrb[0].mxu0
  %v1458 = vpop.f32.mrb[0].mxu0
  %v1459 = vadd.f32 0.0, %v1458
  %v1460 = vpop.f32.mrb[0].mxu0
  %1461 = vmatprep.mubr.bf16.mxu0 0
  %1462 = vmatmul.mubr.bf16.gmra.mrb[0].mxu0 %v1419
  %v1463 = vpop.f32.mrb[0].mxu0
  %v1464 = vadd.f32 0.0, %v1463
  %v1465 = vpop.f32.mrb[0].mxu0
  %v1466 = vpop.f32.mrb[0].mxu0
  %v1467 = vadd.f32 0.0, %v1466
  %v1468 = vpop.f32.mrb[0].mxu0
  %1469 = vdwg.mxu0
  %1470 = vrot.lane.b32.xlu0 %v1110, 112
  %v1471 = vpop.permute.xlu0 %1470
  %1472 = vrot.lane.b32.xlu0 %v1111, 112
  %v1473 = vpop.permute.xlu0 %1472
  %1474 = vrot.lane.b32.xlu0 %v1110, 80
  %v1475 = vpop.permute.xlu0 %1474
  %1476 = vrot.lane.b32.xlu0 %v1111, 80
  %v1477 = vpop.permute.xlu0 %1476
  %v1479 = vsel %vm336, %v1471, 0
  %v1482 = vsel %vm336, %v1473, 0
  %v1485 = vsel %vm336, %v1475, 0
  %v1488 = vsel %vm336, %v1477, 0
  %1490 = vmatprep.subr.bf16.mxu0 0
  %1491 = vmatpush1.bf16.xpose.msra.mxu0 %v1485
  %1492 = vmatprep.subr.bf16.mxu0 0
  %1493 = vmatpush1.bf16.xpose.msra.mxu0 %v1488
  %1494 = vmatprep.subr.bf16.mxu0 0
  %1495 = vmatpush1.bf16.xpose.msra.mxu0 0
  %1496 = vmatprep.subr.bf16.mxu0 0
  %1497 = vmatpush1.bf16.xpose.msra.mxu0 0
  %1498 = vmatprep.subr.bf16.mxu0 0
  %1499 = vmatpush1.bf16.xpose.msra.mxu0 0
  %1500 = vmatprep.subr.bf16.mxu0 0
  %1501 = vmatpush1.bf16.xpose.msra.mxu0 0
  %1502 = vmatprep.subr.bf16.mxu0 0
  %1503 = vmatpush1.bf16.xpose.msra.mxu0 0
  %1504 = vmatprep.subr.bf16.mxu0 0
  %1505 = vmatpush1.bf16.xpose.msra.mxu0 0
  %1506 = vmatprep.subr.bf16.mxu0 0
  %1507 = vmatpush1.bf16.xpose.msra.mxu0 0
  %1508 = vmatprep.subr.bf16.mxu0 0
  %1509 = vmatpush1.bf16.xpose.msra.mxu0 0
  %1510 = vmatprep.subr.bf16.mxu0 0
  %1511 = vmatpush1.bf16.xpose.msra.mxu0 0
  %1512 = vmatprep.subr.bf16.mxu0 0
  %1513 = vmatpush1.bf16.xpose.msra.mxu0 0
  %1514 = vmatprep.subr.bf16.mxu0 0
  %1515 = vmatpush1.bf16.xpose.msra.mxu0 0
  %1516 = vmatprep.subr.bf16.mxu0 0
  %1517 = vmatpush1.bf16.xpose.msra.mxu0 0
  %1518 = vmatprep.subr.bf16.mxu0 0
  %1519 = vmatpush1.bf16.xpose.msra.mxu0 0
  %1520 = vmatprep.subr.bf16.mxu0 0
  %1521 = vmatpush1.bf16.xpose.msra.mxu0 0
  %1522 = vmatprep.mubr.bf16.mxu0 0
  %1523 = vmatmul.mubr.bf16.gmra.mrb[0].mxu0 %v1479
  %v1524 = vpop.f32.mrb[0].mxu0
  %v1525 = vadd.f32 0.0, %v1524
  %v1526 = vpop.f32.mrb[0].mxu0
  %v1527 = vpop.f32.mrb[0].mxu0
  %v1528 = vadd.f32 0.0, %v1527
  %v1529 = vpop.f32.mrb[0].mxu0
  %1530 = vmatprep.mubr.bf16.mxu0 0
  %1531 = vmatmul.mubr.bf16.gmra.mrb[0].mxu0 %v1482
  %v1532 = vpop.f32.mrb[0].mxu0
  %v1533 = vadd.f32 0.0, %v1532
  %v1534 = vpop.f32.mrb[0].mxu0
  %v1535 = vpop.f32.mrb[0].mxu0
  %v1536 = vadd.f32 0.0, %v1535
  %v1537 = vpop.f32.mrb[0].mxu0
  %1538 = vdwg.mxu0
  %v1539 = vmul.f32 %v1525, 0.35355338
  %v1540 = vmul.f32 %v1528, 0.35355338
  %v1541 = vmul.f32 %v1533, 0.35355338
  %v1542 = vmul.f32 %v1536, 0.35355338
  %v1543 = vsel %vm250, %v1539, -inf
  %1544 = vmax.xlane.f32.xlu0 %v1543
  %v1545 = vpop.xlane.xlu0 %1544
  %v1546 = vsel %vm250, %v1540, -inf
  %1547 = vmax.xlane.f32.xlu0 %v1546
  %v1548 = vpop.xlane.xlu0 %1547
  %v1549 = vsel %vm250, %v1541, -inf
  %1550 = vmax.xlane.f32.xlu0 %v1549
  %v1551 = vpop.xlane.xlu0 %1550
  %v1552 = vsel %vm250, %v1542, -inf
  %1553 = vmax.xlane.f32.xlu0 %v1552
  %v1554 = vpop.xlane.xlu0 %1553
  %v1555 = vsub.f32 %v1539, %v1545
  %v1556 = vsub.f32 %v1540, %v1548
  %v1557 = vsub.f32 %v1541, %v1551
  %v1558 = vsub.f32 %v1542, %v1554
  %v1559 = vmul.f32 %v1555, 1.442695
  %v1560 = vpow.pop %v1559
  %v1561 = vmul.f32 %v1556, 1.442695
  %v1562 = vpow.pop %v1561
  %v1563 = vmul.f32 %v1557, 1.442695
  %v1564 = vpow.pop %v1563
  %v1565 = vmul.f32 %v1558, 1.442695
  %v1566 = vpow.pop %v1565
  %v1567 = vsel %vm250, %v1560, 0.0
  %1568 = vadd.xlane.f32.xlu0 %v1567
  %v1569 = vpop.xlane.xlu0 %1568
  %v1570 = vsel %vm250, %v1562, 0.0
  %1571 = vadd.xlane.f32.xlu0 %v1570
  %v1572 = vpop.xlane.xlu0 %1571
  %v1573 = vsel %vm250, %v1564, 0.0
  %1574 = vadd.xlane.f32.xlu0 %v1573
  %v1575 = vpop.xlane.xlu0 %1574
  %v1576 = vsel %vm250, %v1566, 0.0
  %1577 = vadd.xlane.f32.xlu0 %v1576
  %v1578 = vpop.xlane.xlu0 %1577
  %v1579 = vrcp.pop %v1569
  %v1580 = vmul.f32 %v1560, %v1579
  %v1581 = vrcp.pop %v1572
  %v1582 = vmul.f32 %v1562, %v1581
  %v1583 = vrcp.pop %v1575
  %v1584 = vmul.f32 %v1564, %v1583
  %v1585 = vrcp.pop %v1578
  %v1586 = vmul.f32 %v1566, %v1585
  %v1587 = vpack.c.bf16 %v1582, %v1580
  %v1588 = vpack.c.bf16 %v1586, %v1584
  %1589 = vrot.lane.b32.xlu0 %v1110, 48
  %v1590 = vpop.permute.xlu0 %1589
  %1591 = vrot.lane.b32.xlu0 %v1111, 48
  %v1592 = vpop.permute.xlu0 %1591
  %v1596 = vsel %vm250, %v1587, 0
  %v1599 = vsel %vm250, %v1588, 0
  %1601 = vmatprep.subr.bf16.mxu0 0
  %1602 = vmatpush1.bf16.msra.mxu0 %v1590
  %1603 = vmatprep.subr.bf16.mxu0 0
  %1604 = vmatpush1.bf16.msra.mxu0 %v1592
  %1605 = vmatprep.subr.bf16.mxu0 0
  %1606 = vmatpush1.bf16.msra.mxu0 0
  %1607 = vmatprep.subr.bf16.mxu0 0
  %1608 = vmatpush1.bf16.msra.mxu0 0
  %1609 = vmatprep.subr.bf16.mxu0 0
  %1610 = vmatpush1.bf16.msra.mxu0 0
  %1611 = vmatprep.subr.bf16.mxu0 0
  %1612 = vmatpush1.bf16.msra.mxu0 0
  %1613 = vmatprep.subr.bf16.mxu0 0
  %1614 = vmatpush1.bf16.msra.mxu0 0
  %1615 = vmatprep.subr.bf16.mxu0 0
  %1616 = vmatpush1.bf16.msra.mxu0 0
  %1617 = vmatprep.subr.bf16.mxu0 0
  %1618 = vmatpush1.bf16.msra.mxu0 0
  %1619 = vmatprep.subr.bf16.mxu0 0
  %1620 = vmatpush1.bf16.msra.mxu0 0
  %1621 = vmatprep.subr.bf16.mxu0 0
  %1622 = vmatpush1.bf16.msra.mxu0 0
  %1623 = vmatprep.subr.bf16.mxu0 0
  %1624 = vmatpush1.bf16.msra.mxu0 0
  %1625 = vmatprep.subr.bf16.mxu0 0
  %1626 = vmatpush1.bf16.msra.mxu0 0
  %1627 = vmatprep.subr.bf16.mxu0 0
  %1628 = vmatpush1.bf16.msra.mxu0 0
  %1629 = vmatprep.subr.bf16.mxu0 0
  %1630 = vmatpush1.bf16.msra.mxu0 0
  %1631 = vmatprep.subr.bf16.mxu0 0
  %1632 = vmatpush1.bf16.msra.mxu0 0
  %1633 = vmatprep.mubr.bf16.mxu0 0
  %1634 = vmatmul.mubr.bf16.gmra.mrb[0].mxu0 %v1596
  %v1635 = vpop.f32.mrb[0].mxu0
  %v1636 = vadd.f32 0.0, %v1635
  %v1637 = vpop.f32.mrb[0].mxu0
  %v1638 = vpop.f32.mrb[0].mxu0
  %v1639 = vadd.f32 0.0, %v1638
  %v1640 = vpop.f32.mrb[0].mxu0
  %1641 = vmatprep.mubr.bf16.mxu0 0
  %1642 = vmatmul.mubr.bf16.gmra.mrb[0].mxu0 %v1599
  %v1643 = vpop.f32.mrb[0].mxu0
  %v1644 = vadd.f32 0.0, %v1643
  %v1645 = vpop.f32.mrb[0].mxu0
  %v1646 = vpop.f32.mrb[0].mxu0
  %v1647 = vadd.f32 0.0, %v1646
  %v1648 = vpop.f32.mrb[0].mxu0
  %1649 = vdwg.mxu0
  %1650 = vrot.lane.b32.xlu0 %v1110, 104
  %v1651 = vpop.permute.xlu0 %1650
  %1652 = vrot.lane.b32.xlu0 %v1111, 104
  %v1653 = vpop.permute.xlu0 %1652
  %1654 = vrot.lane.b32.xlu0 %v1110, 72
  %v1655 = vpop.permute.xlu0 %1654
  %1656 = vrot.lane.b32.xlu0 %v1111, 72
  %v1657 = vpop.permute.xlu0 %1656
  %v1659 = vsel %vm336, %v1651, 0
  %v1662 = vsel %vm336, %v1653, 0
  %v1665 = vsel %vm336, %v1655, 0
  %v1668 = vsel %vm336, %v1657, 0
  %1670 = vmatprep.subr.bf16.mxu0 0
  %1671 = vmatpush1.bf16.xpose.msra.mxu0 %v1665
  %1672 = vmatprep.subr.bf16.mxu0 0
  %1673 = vmatpush1.bf16.xpose.msra.mxu0 %v1668
  %1674 = vmatprep.subr.bf16.mxu0 0
  %1675 = vmatpush1.bf16.xpose.msra.mxu0 0
  %1676 = vmatprep.subr.bf16.mxu0 0
  %1677 = vmatpush1.bf16.xpose.msra.mxu0 0
  %1678 = vmatprep.subr.bf16.mxu0 0
  %1679 = vmatpush1.bf16.xpose.msra.mxu0 0
  %1680 = vmatprep.subr.bf16.mxu0 0
  %1681 = vmatpush1.bf16.xpose.msra.mxu0 0
  %1682 = vmatprep.subr.bf16.mxu0 0
  %1683 = vmatpush1.bf16.xpose.msra.mxu0 0
  %1684 = vmatprep.subr.bf16.mxu0 0
  %1685 = vmatpush1.bf16.xpose.msra.mxu0 0
  %1686 = vmatprep.subr.bf16.mxu0 0
  %1687 = vmatpush1.bf16.xpose.msra.mxu0 0
  %1688 = vmatprep.subr.bf16.mxu0 0
  %1689 = vmatpush1.bf16.xpose.msra.mxu0 0
  %1690 = vmatprep.subr.bf16.mxu0 0
  %1691 = vmatpush1.bf16.xpose.msra.mxu0 0
  %1692 = vmatprep.subr.bf16.mxu0 0
  %1693 = vmatpush1.bf16.xpose.msra.mxu0 0
  %1694 = vmatprep.subr.bf16.mxu0 0
  %1695 = vmatpush1.bf16.xpose.msra.mxu0 0
  %1696 = vmatprep.subr.bf16.mxu0 0
  %1697 = vmatpush1.bf16.xpose.msra.mxu0 0
  %1698 = vmatprep.subr.bf16.mxu0 0
  %1699 = vmatpush1.bf16.xpose.msra.mxu0 0
  %1700 = vmatprep.subr.bf16.mxu0 0
  %1701 = vmatpush1.bf16.xpose.msra.mxu0 0
  %1702 = vmatprep.mubr.bf16.mxu0 0
  %1703 = vmatmul.mubr.bf16.gmra.mrb[0].mxu0 %v1659
  %v1704 = vpop.f32.mrb[0].mxu0
  %v1705 = vadd.f32 0.0, %v1704
  %v1706 = vpop.f32.mrb[0].mxu0
  %v1707 = vpop.f32.mrb[0].mxu0
  %v1708 = vadd.f32 0.0, %v1707
  %v1709 = vpop.f32.mrb[0].mxu0
  %1710 = vmatprep.mubr.bf16.mxu0 0
  %1711 = vmatmul.mubr.bf16.gmra.mrb[0].mxu0 %v1662
  %v1712 = vpop.f32.mrb[0].mxu0
  %v1713 = vadd.f32 0.0, %v1712
  %v1714 = vpop.f32.mrb[0].mxu0
  %v1715 = vpop.f32.mrb[0].mxu0
  %v1716 = vadd.f32 0.0, %v1715
  %v1717 = vpop.f32.mrb[0].mxu0
  %1718 = vdwg.mxu0
  %v1719 = vmul.f32 %v1705, 0.35355338
  %v1720 = vmul.f32 %v1708, 0.35355338
  %v1721 = vmul.f32 %v1713, 0.35355338
  %v1722 = vmul.f32 %v1716, 0.35355338
  %v1723 = vsel %vm250, %v1719, -inf
  %1724 = vmax.xlane.f32.xlu0 %v1723
  %v1725 = vpop.xlane.xlu0 %1724
  %v1726 = vsel %vm250, %v1720, -inf
  %1727 = vmax.xlane.f32.xlu0 %v1726
  %v1728 = vpop.xlane.xlu0 %1727
  %v1729 = vsel %vm250, %v1721, -inf
  %1730 = vmax.xlane.f32.xlu0 %v1729
  %v1731 = vpop.xlane.xlu0 %1730
  %v1732 = vsel %vm250, %v1722, -inf
  %1733 = vmax.xlane.f32.xlu0 %v1732
  %v1734 = vpop.xlane.xlu0 %1733
  %v1735 = vsub.f32 %v1719, %v1725
  %v1736 = vsub.f32 %v1720, %v1728
  %v1737 = vsub.f32 %v1721, %v1731
  %v1738 = vsub.f32 %v1722, %v1734
  %v1739 = vmul.f32 %v1735, 1.442695
  %v1740 = vpow.pop %v1739
  %v1741 = vmul.f32 %v1736, 1.442695
  %v1742 = vpow.pop %v1741
  %v1743 = vmul.f32 %v1737, 1.442695
  %v1744 = vpow.pop %v1743
  %v1745 = vmul.f32 %v1738, 1.442695
  %v1746 = vpow.pop %v1745
  %v1747 = vsel %vm250, %v1740, 0.0
  %1748 = vadd.xlane.f32.xlu0 %v1747
  %v1749 = vpop.xlane.xlu0 %1748
  %v1750 = vsel %vm250, %v1742, 0.0
  %1751 = vadd.xlane.f32.xlu0 %v1750
  %v1752 = vpop.xlane.xlu0 %1751
  %v1753 = vsel %vm250, %v1744, 0.0
  %1754 = vadd.xlane.f32.xlu0 %v1753
  %v1755 = vpop.xlane.xlu0 %1754
  %v1756 = vsel %vm250, %v1746, 0.0
  %1757 = vadd.xlane.f32.xlu0 %v1756
  %v1758 = vpop.xlane.xlu0 %1757
  %v1759 = vrcp.pop %v1749
  %v1760 = vmul.f32 %v1740, %v1759
  %v1761 = vrcp.pop %v1752
  %v1762 = vmul.f32 %v1742, %v1761
  %v1763 = vrcp.pop %v1755
  %v1764 = vmul.f32 %v1744, %v1763
  %v1765 = vrcp.pop %v1758
  %v1766 = vmul.f32 %v1746, %v1765
  %v1767 = vpack.c.bf16 %v1762, %v1760
  %v1768 = vpack.c.bf16 %v1766, %v1764
  %1769 = vrot.lane.b32.xlu0 %v1110, 40
  %v1770 = vpop.permute.xlu0 %1769
  %1771 = vrot.lane.b32.xlu0 %v1111, 40
  %v1772 = vpop.permute.xlu0 %1771
  %v1776 = vsel %vm250, %v1767, 0
  %v1779 = vsel %vm250, %v1768, 0
  %1781 = vmatprep.subr.bf16.mxu0 0
  %1782 = vmatpush1.bf16.msra.mxu0 %v1770
  %1783 = vmatprep.subr.bf16.mxu0 0
  %1784 = vmatpush1.bf16.msra.mxu0 %v1772
  %1785 = vmatprep.subr.bf16.mxu0 0
  %1786 = vmatpush1.bf16.msra.mxu0 0
  %1787 = vmatprep.subr.bf16.mxu0 0
  %1788 = vmatpush1.bf16.msra.mxu0 0
  %1789 = vmatprep.subr.bf16.mxu0 0
  %1790 = vmatpush1.bf16.msra.mxu0 0
  %1791 = vmatprep.subr.bf16.mxu0 0
  %1792 = vmatpush1.bf16.msra.mxu0 0
  %1793 = vmatprep.subr.bf16.mxu0 0
  %1794 = vmatpush1.bf16.msra.mxu0 0
  %1795 = vmatprep.subr.bf16.mxu0 0
  %1796 = vmatpush1.bf16.msra.mxu0 0
  %1797 = vmatprep.subr.bf16.mxu0 0
  %1798 = vmatpush1.bf16.msra.mxu0 0
  %1799 = vmatprep.subr.bf16.mxu0 0
  %1800 = vmatpush1.bf16.msra.mxu0 0
  %1801 = vmatprep.subr.bf16.mxu0 0
  %1802 = vmatpush1.bf16.msra.mxu0 0
  %1803 = vmatprep.subr.bf16.mxu0 0
  %1804 = vmatpush1.bf16.msra.mxu0 0
  %1805 = vmatprep.subr.bf16.mxu0 0
  %1806 = vmatpush1.bf16.msra.mxu0 0
  %1807 = vmatprep.subr.bf16.mxu0 0
  %1808 = vmatpush1.bf16.msra.mxu0 0
  %1809 = vmatprep.subr.bf16.mxu0 0
  %1810 = vmatpush1.bf16.msra.mxu0 0
  %1811 = vmatprep.subr.bf16.mxu0 0
  %1812 = vmatpush1.bf16.msra.mxu0 0
  %1813 = vmatprep.mubr.bf16.mxu0 0
  %1814 = vmatmul.mubr.bf16.gmra.mrb[0].mxu0 %v1776
  %v1815 = vpop.f32.mrb[0].mxu0
  %v1816 = vadd.f32 0.0, %v1815
  %v1817 = vpop.f32.mrb[0].mxu0
  %v1818 = vpop.f32.mrb[0].mxu0
  %v1819 = vadd.f32 0.0, %v1818
  %v1820 = vpop.f32.mrb[0].mxu0
  %1821 = vmatprep.mubr.bf16.mxu0 0
  %1822 = vmatmul.mubr.bf16.gmra.mrb[0].mxu0 %v1779
  %v1823 = vpop.f32.mrb[0].mxu0
  %v1824 = vadd.f32 0.0, %v1823
  %v1825 = vpop.f32.mrb[0].mxu0
  %v1826 = vpop.f32.mrb[0].mxu0
  %v1827 = vadd.f32 0.0, %v1826
  %v1828 = vpop.f32.mrb[0].mxu0
  %1829 = vdwg.mxu0
  %1834 = vrot.lane.b32.xlu0 %v1456, 8
  %v1835 = vpop.permute.xlu0 %1834
  %1836 = vrot.lane.b32.xlu0 %v1459, 8
  %v1837 = vpop.permute.xlu0 %1836
  %1838 = vrot.lane.b32.xlu0 %v1464, 8
  %v1839 = vpop.permute.xlu0 %1838
  %1840 = vrot.lane.b32.xlu0 %v1467, 8
  %v1841 = vpop.permute.xlu0 %1840
  %1850 = vrot.lane.b32.xlu0 %v1636, 16
  %v1851 = vpop.permute.xlu0 %1850
  %1852 = vrot.lane.b32.xlu0 %v1639, 16
  %v1853 = vpop.permute.xlu0 %1852
  %1854 = vrot.lane.b32.xlu0 %v1644, 16
  %v1855 = vpop.permute.xlu0 %1854
  %1856 = vrot.lane.b32.xlu0 %v1647, 16
  %v1857 = vpop.permute.xlu0 %1856
  %1866 = vrot.lane.b32.xlu0 %v1816, 24
  %v1867 = vpop.permute.xlu0 %1866
  %1868 = vrot.lane.b32.xlu0 %v1819, 24
  %v1869 = vpop.permute.xlu0 %1868
  %1870 = vrot.lane.b32.xlu0 %v1824, 24
  %v1871 = vpop.permute.xlu0 %1870
  %1872 = vrot.lane.b32.xlu0 %v1827, 24
  %v1873 = vpop.permute.xlu0 %1872
  %v1878 = vsel %vm336, %v1276, %v1835
  %v1879 = vsel %vm336, %v1279, %v1837
  %v1880 = vsel %vm336, %v1284, %v1839
  %v1881 = vsel %vm336, %v1287, %v1841
  %v1882 = vsel %vm112, %v1878, %v1851
  %v1883 = vsel %vm112, %v1879, %v1853
  %v1884 = vsel %vm112, %v1880, %v1855
  %v1885 = vsel %vm112, %v1881, %v1857
  %v1886 = vsel %vm1105, %v1882, %v1867
  %v1887 = vsel %vm1105, %v1883, %v1869
  %v1888 = vsel %vm1105, %v1884, %v1871
  %v1889 = vsel %vm1105, %v1885, %v1873
  %v1890 = vpack.c.bf16 %v1107, %v1106
  %v1891 = vpack.c.bf16 %v1109, %v1108
  %v1892 = vpack.c.bf16 %v1887, %v1886
  %v1893 = vpack.c.bf16 %v1889, %v1888
  %v1894 = vpack.c.bf16 %v208, %v207
  %v1895 = vpack.c.bf16 %v210, %v209
  %v1897 = vlaneseq
  %v1898 = vshrl.u32 %v1897, 7
  %v1899 = vsub.s32 0, %v1898
  %v1900 = vrot.slane %v211, %v1899
  %v1903 = vsel %vm250, %v1890, 0
  %v1906 = vsel %vm250, %v1891, 0
  %v1909 = vsel %vm250, %v1892, 0
  %v1912 = vsel %vm250, %v1893, 0
  %1914 = vmatprep.subr.bf16.mxu0 0
  %1915 = vmatpush1.bf16.msra.mxu0 %v1894
  %1916 = vmatprep.subr.bf16.mxu0 0
  %1917 = vmatpush1.bf16.msra.mxu0 %v1895
  %1918 = vmatprep.subr.bf16.mxu0 0
  %1919 = vmatpush1.bf16.msra.mxu0 0
  %1920 = vmatprep.subr.bf16.mxu0 0
  %1921 = vmatpush1.bf16.msra.mxu0 0
  %1922 = vmatprep.subr.bf16.mxu0 0
  %1923 = vmatpush1.bf16.msra.mxu0 0
  %1924 = vmatprep.subr.bf16.mxu0 0
  %1925 = vmatpush1.bf16.msra.mxu0 0
  %1926 = vmatprep.subr.bf16.mxu0 0
  %1927 = vmatpush1.bf16.msra.mxu0 0
  %1928 = vmatprep.subr.bf16.mxu0 0
  %1929 = vmatpush1.bf16.msra.mxu0 0
  %1930 = vmatprep.subr.bf16.mxu0 0
  %1931 = vmatpush1.bf16.msra.mxu0 0
  %1932 = vmatprep.subr.bf16.mxu0 0
  %1933 = vmatpush1.bf16.msra.mxu0 0
  %1934 = vmatprep.subr.bf16.mxu0 0
  %1935 = vmatpush1.bf16.msra.mxu0 0
  %1936 = vmatprep.subr.bf16.mxu0 0
  %1937 = vmatpush1.bf16.msra.mxu0 0
  %1938 = vmatprep.subr.bf16.mxu0 0
  %1939 = vmatpush1.bf16.msra.mxu0 0
  %1940 = vmatprep.subr.bf16.mxu0 0
  %1941 = vmatpush1.bf16.msra.mxu0 0
  %1942 = vmatprep.subr.bf16.mxu0 0
  %1943 = vmatpush1.bf16.msra.mxu0 0
  %1944 = vmatprep.subr.bf16.mxu0 0
  %1945 = vmatpush1.bf16.msra.mxu0 0
  %1946 = vmatprep.mubr.bf16.mxu0 0
  %1947 = vmatmul.mubr.bf16.gmra.mrb[0].mxu0 %v1903
  %v1948 = vpop.f32.mrb[0].mxu0
  %v1949 = vadd.f32 %v1900, %v1948
  %v1950 = vpop.f32.mrb[0].mxu0
  %v1951 = vpop.f32.mrb[0].mxu0
  %v1952 = vadd.f32 %v1900, %v1951
  %v1953 = vpop.f32.mrb[0].mxu0
  %1954 = vmatprep.mubr.bf16.mxu0 0
  %1955 = vmatmul.mubr.bf16.gmra.mrb[0].mxu0 %v1906
  %v1956 = vpop.f32.mrb[0].mxu0
  %v1957 = vadd.f32 %v1900, %v1956
  %v1958 = vpop.f32.mrb[0].mxu0
  %v1959 = vpop.f32.mrb[0].mxu0
  %v1960 = vadd.f32 %v1900, %v1959
  %v1961 = vpop.f32.mrb[0].mxu0
  %1962 = vmatprep.mubr.bf16.mxu0 0
  %1963 = vmatmul.mubr.bf16.gmra.mrb[0].mxu0 %v1909
  %v1964 = vpop.f32.mrb[0].mxu0
  %v1965 = vadd.f32 %v1900, %v1964
  %v1966 = vpop.f32.mrb[0].mxu0
  %v1967 = vpop.f32.mrb[0].mxu0
  %v1968 = vadd.f32 %v1900, %v1967
  %v1969 = vpop.f32.mrb[0].mxu0
  %1970 = vmatprep.mubr.bf16.mxu0 0
  %1971 = vmatmul.mubr.bf16.gmra.mrb[0].mxu0 %v1912
  %v1972 = vpop.f32.mrb[0].mxu0
  %v1973 = vadd.f32 %v1900, %v1972
  %v1974 = vpop.f32.mrb[0].mxu0
  %v1975 = vpop.f32.mrb[0].mxu0
  %v1976 = vadd.f32 %v1900, %v1975
  %v1977 = vpop.f32.mrb[0].mxu0
  %1978 = vdwg.mxu0
  %v1979 = vadd.f32 %v194, %v1949
  %v1980 = vadd.f32 %v195, %v1952
  %v1981 = vadd.f32 %v196, %v1957
  %v1982 = vadd.f32 %v197, %v1960
  %v1983 = vadd.f32 %v198, %v1965
  %v1984 = vadd.f32 %v199, %v1968
  %v1985 = vadd.f32 %v200, %v1973
  %v1986 = vadd.f32 %v201, %v1976
  %v1987 = vsel %vm250, %v1979, 0.0
  %1988 = vadd.xlane.f32.xlu0 %v1987
  %v1989 = vpop.xlane.xlu0 %1988
  %v1990 = vsel %vm250, %v1980, 0.0
  %1991 = vadd.xlane.f32.xlu0 %v1990
  %v1992 = vpop.xlane.xlu0 %1991
  %v1993 = vsel %vm250, %v1981, 0.0
  %1994 = vadd.xlane.f32.xlu0 %v1993
  %v1995 = vpop.xlane.xlu0 %1994
  %v1996 = vsel %vm250, %v1982, 0.0
  %1997 = vadd.xlane.f32.xlu0 %v1996
  %v1998 = vpop.xlane.xlu0 %1997
  %v1999 = vsel %vm250, %v1983, 0.0
  %2000 = vadd.xlane.f32.xlu0 %v1999
  %v2001 = vpop.xlane.xlu0 %2000
  %v2002 = vsel %vm250, %v1984, 0.0
  %2003 = vadd.xlane.f32.xlu0 %v2002
  %v2004 = vpop.xlane.xlu0 %2003
  %v2005 = vsel %vm250, %v1985, 0.0
  %2006 = vadd.xlane.f32.xlu0 %v2005
  %v2007 = vpop.xlane.xlu0 %2006
  %v2008 = vsel %vm250, %v1986, 0.0
  %2009 = vadd.xlane.f32.xlu0 %v2008
  %v2010 = vpop.xlane.xlu0 %2009
  %v2011 = vrcp.pop 32.0
  %v2012 = vmul.f32 %v1989, %v2011
  %v2013 = vmul.f32 %v1992, %v2011
  %v2014 = vmul.f32 %v1995, %v2011
  %v2015 = vmul.f32 %v1998, %v2011
  %v2016 = vmul.f32 %v2001, %v2011
  %v2017 = vmul.f32 %v2004, %v2011
  %v2018 = vmul.f32 %v2007, %v2011
  %v2019 = vmul.f32 %v2010, %v2011
  %v2020 = vsub.f32 %v1979, %v2012
  %v2021 = vsub.f32 %v1980, %v2013
  %v2022 = vsub.f32 %v1981, %v2014
  %v2023 = vsub.f32 %v1982, %v2015
  %v2024 = vsub.f32 %v1983, %v2016
  %v2025 = vsub.f32 %v1984, %v2017
  %v2026 = vsub.f32 %v1985, %v2018
  %v2027 = vsub.f32 %v1986, %v2019
  %v2028 = vmul.f32 %v2020, %v2020
  %v2029 = vmul.f32 %v2021, %v2021
  %v2030 = vmul.f32 %v2022, %v2022
  %v2031 = vmul.f32 %v2023, %v2023
  %v2032 = vmul.f32 %v2024, %v2024
  %v2033 = vmul.f32 %v2025, %v2025
  %v2034 = vmul.f32 %v2026, %v2026
  %v2035 = vmul.f32 %v2027, %v2027
  %v2036 = vsel %vm250, %v2028, 0.0
  %2037 = vadd.xlane.f32.xlu0 %v2036
  %v2038 = vpop.xlane.xlu0 %2037
  %v2039 = vsel %vm250, %v2029, 0.0
  %2040 = vadd.xlane.f32.xlu0 %v2039
  %v2041 = vpop.xlane.xlu0 %2040
  %v2042 = vsel %vm250, %v2030, 0.0
  %2043 = vadd.xlane.f32.xlu0 %v2042
  %v2044 = vpop.xlane.xlu0 %2043
  %v2045 = vsel %vm250, %v2031, 0.0
  %2046 = vadd.xlane.f32.xlu0 %v2045
  %v2047 = vpop.xlane.xlu0 %2046
  %v2048 = vsel %vm250, %v2032, 0.0
  %2049 = vadd.xlane.f32.xlu0 %v2048
  %v2050 = vpop.xlane.xlu0 %2049
  %v2051 = vsel %vm250, %v2033, 0.0
  %2052 = vadd.xlane.f32.xlu0 %v2051
  %v2053 = vpop.xlane.xlu0 %2052
  %v2054 = vsel %vm250, %v2034, 0.0
  %2055 = vadd.xlane.f32.xlu0 %v2054
  %v2056 = vpop.xlane.xlu0 %2055
  %v2057 = vsel %vm250, %v2035, 0.0
  %2058 = vadd.xlane.f32.xlu0 %v2057
  %v2059 = vpop.xlane.xlu0 %2058
  %v2060 = vmul.f32 %v2038, %v2011
  %v2061 = vmul.f32 %v2041, %v2011
  %v2062 = vmul.f32 %v2044, %v2011
  %v2063 = vmul.f32 %v2047, %v2011
  %v2064 = vmul.f32 %v2050, %v2011
  %v2065 = vmul.f32 %v2053, %v2011
  %v2066 = vmul.f32 %v2056, %v2011
  %v2067 = vmul.f32 %v2059, %v2011
  %v2068 = vadd.f32 %v2060, 1e-05
  %v2069 = vadd.f32 %v2061, 1e-05
  %v2070 = vadd.f32 %v2062, 1e-05
  %v2071 = vadd.f32 %v2063, 1e-05
  %v2072 = vadd.f32 %v2064, 1e-05
  %v2073 = vadd.f32 %v2065, 1e-05
  %v2074 = vadd.f32 %v2066, 1e-05
  %v2075 = vadd.f32 %v2067, 1e-05
  %v2076 = vrsqrt.pop %v2068
  %v2077 = vrsqrt.pop %v2069
  %v2078 = vrsqrt.pop %v2070
  %v2079 = vrsqrt.pop %v2071
  %v2080 = vrsqrt.pop %v2072
  %v2081 = vrsqrt.pop %v2073
  %v2082 = vrsqrt.pop %v2074
  %v2083 = vrsqrt.pop %v2075
  %v2084 = vmul.f32 %v2020, %v2076
  %v2085 = vmul.f32 %v2021, %v2077
  %v2086 = vmul.f32 %v2022, %v2078
  %v2087 = vmul.f32 %v2023, %v2079
  %v2088 = vmul.f32 %v2024, %v2080
  %v2089 = vmul.f32 %v2025, %v2081
  %v2090 = vmul.f32 %v2026, %v2082
  %v2091 = vmul.f32 %v2027, %v2083
  %v2093 = vlaneseq
  %v2094 = vshrl.u32 %v2093, 7
  %v2095 = vsub.s32 0, %v2094
  %v2096 = vrot.slane %v234, %v2095
  %v2098 = vmul.f32 %v2084, %v2096
  %v2099 = vmul.f32 %v2085, %v2096
  %v2100 = vmul.f32 %v2086, %v2096
  %v2101 = vmul.f32 %v2087, %v2096
  %v2102 = vmul.f32 %v2088, %v2096
  %v2103 = vmul.f32 %v2089, %v2096
  %v2104 = vmul.f32 %v2090, %v2096
  %v2105 = vmul.f32 %v2091, %v2096
  %v2107 = vlaneseq
  %v2108 = vshrl.u32 %v2107, 7
  %v2109 = vsub.s32 0, %v2108
  %v2110 = vrot.slane %v235, %v2109
  %v2112 = vadd.f32 %v2098, %v2110
  %v2113 = vadd.f32 %v2099, %v2110
  %v2114 = vadd.f32 %v2100, %v2110
  %v2115 = vadd.f32 %v2101, %v2110
  %v2116 = vadd.f32 %v2102, %v2110
  %v2117 = vadd.f32 %v2103, %v2110
  %v2118 = vadd.f32 %v2104, %v2110
  %v2119 = vadd.f32 %v2105, %v2110
  %v2120 = vpack.c.bf16 %v2113, %v2112
  %v2121 = vpack.c.bf16 %v2115, %v2114
  %v2122 = vpack.c.bf16 %v2117, %v2116
  %v2123 = vpack.c.bf16 %v2119, %v2118
  %v2124 = vpack.c.bf16 %v213, %v212
  %v2125 = vpack.c.bf16 %v215, %v214
  %v2127 = vlaneseq
  %v2128 = vshrl.u32 %v2127, 7
  %v2129 = vsub.s32 0, %v2128
  %v2130 = vrot.slane %v216, %v2129
  %v2133 = vsel %vm250, %v2120, 0
  %v2136 = vsel %vm250, %v2121, 0
  %v2139 = vsel %vm250, %v2122, 0
  %v2142 = vsel %vm250, %v2123, 0
  %2144 = vmatprep.subr.bf16.mxu0 0
  %2145 = vmatpush1.bf16.msra.mxu0 %v2124
  %2146 = vmatprep.subr.bf16.mxu0 0
  %2147 = vmatpush1.bf16.msra.mxu0 %v2125
  %2148 = vmatprep.subr.bf16.mxu0 0
  %2149 = vmatpush1.bf16.msra.mxu0 0
  %2150 = vmatprep.subr.bf16.mxu0 0
  %2151 = vmatpush1.bf16.msra.mxu0 0
  %2152 = vmatprep.subr.bf16.mxu0 0
  %2153 = vmatpush1.bf16.msra.mxu0 0
  %2154 = vmatprep.subr.bf16.mxu0 0
  %2155 = vmatpush1.bf16.msra.mxu0 0
  %2156 = vmatprep.subr.bf16.mxu0 0
  %2157 = vmatpush1.bf16.msra.mxu0 0
  %2158 = vmatprep.subr.bf16.mxu0 0
  %2159 = vmatpush1.bf16.msra.mxu0 0
  %2160 = vmatprep.subr.bf16.mxu0 0
  %2161 = vmatpush1.bf16.msra.mxu0 0
  %2162 = vmatprep.subr.bf16.mxu0 0
  %2163 = vmatpush1.bf16.msra.mxu0 0
  %2164 = vmatprep.subr.bf16.mxu0 0
  %2165 = vmatpush1.bf16.msra.mxu0 0
  %2166 = vmatprep.subr.bf16.mxu0 0
  %2167 = vmatpush1.bf16.msra.mxu0 0
  %2168 = vmatprep.subr.bf16.mxu0 0
  %2169 = vmatpush1.bf16.msra.mxu0 0
  %2170 = vmatprep.subr.bf16.mxu0 0
  %2171 = vmatpush1.bf16.msra.mxu0 0
  %2172 = vmatprep.subr.bf16.mxu0 0
  %2173 = vmatpush1.bf16.msra.mxu0 0
  %2174 = vmatprep.subr.bf16.mxu0 0
  %2175 = vmatpush1.bf16.msra.mxu0 0
  %2176 = vmatprep.mubr.bf16.mxu0 0
  %2177 = vmatmul.mubr.bf16.gmra.mrb[0].mxu0 %v2133
  %v2178 = vpop.f32.mrb[0].mxu0
  %v2179 = vadd.f32 %v2130, %v2178
  %v2180 = vpop.f32.mrb[0].mxu0
  %v2181 = vpop.f32.mrb[0].mxu0
  %v2182 = vadd.f32 %v2130, %v2181
  %v2183 = vpop.f32.mrb[0].mxu0
  %2184 = vmatprep.mubr.bf16.mxu0 0
  %2185 = vmatmul.mubr.bf16.gmra.mrb[0].mxu0 %v2136
  %v2186 = vpop.f32.mrb[0].mxu0
  %v2187 = vadd.f32 %v2130, %v2186
  %v2188 = vpop.f32.mrb[0].mxu0
  %v2189 = vpop.f32.mrb[0].mxu0
  %v2190 = vadd.f32 %v2130, %v2189
  %v2191 = vpop.f32.mrb[0].mxu0
  %2192 = vmatprep.mubr.bf16.mxu0 0
  %2193 = vmatmul.mubr.bf16.gmra.mrb[0].mxu0 %v2139
  %v2194 = vpop.f32.mrb[0].mxu0
  %v2195 = vadd.f32 %v2130, %v2194
  %v2196 = vpop.f32.mrb[0].mxu0
  %v2197 = vpop.f32.mrb[0].mxu0
  %v2198 = vadd.f32 %v2130, %v2197
  %v2199 = vpop.f32.mrb[0].mxu0
  %2200 = vmatprep.mubr.bf16.mxu0 0
  %2201 = vmatmul.mubr.bf16.gmra.mrb[0].mxu0 %v2142
  %v2202 = vpop.f32.mrb[0].mxu0
  %v2203 = vadd.f32 %v2130, %v2202
  %v2204 = vpop.f32.mrb[0].mxu0
  %v2205 = vpop.f32.mrb[0].mxu0
  %v2206 = vadd.f32 %v2130, %v2205
  %v2207 = vpop.f32.mrb[0].mxu0
  %2208 = vdwg.mxu0
  %v2209 = vmax.f32 %v2179, 0.0
  %v2210 = vmax.f32 %v2182, 0.0
  %v2211 = vmax.f32 %v2187, 0.0
  %v2212 = vmax.f32 %v2190, 0.0
  %v2213 = vmax.f32 %v2195, 0.0
  %v2214 = vmax.f32 %v2198, 0.0
  %v2215 = vmax.f32 %v2203, 0.0
  %v2216 = vmax.f32 %v2206, 0.0
  %v2217 = vpack.c.bf16 %v2210, %v2209
  %v2218 = vpack.c.bf16 %v2212, %v2211
  %v2219 = vpack.c.bf16 %v2214, %v2213
  %v2220 = vpack.c.bf16 %v2216, %v2215
  %v2221 = vpack.c.bf16 %v218, %v217
  %v2222 = vpack.c.bf16 %v220, %v219
  %v2223 = vpack.c.bf16 %v222, %v221
  %v2224 = vpack.c.bf16 %v224, %v223
  %v2225 = vpack.c.bf16 %v226, %v225
  %v2226 = vpack.c.bf16 %v228, %v227
  %v2227 = vpack.c.bf16 %v230, %v229
  %v2228 = vpack.c.bf16 %v232, %v231
  %v2230 = vlaneseq
  %v2231 = vshrl.u32 %v2230, 7
  %v2232 = vsub.s32 0, %v2231
  %v2233 = vrot.slane %v233, %v2232
  %2235 = vmatprep.subr.bf16.mxu0 0
  %2236 = vmatpush1.bf16.msra.mxu0 %v2221
  %2237 = vmatprep.subr.bf16.mxu0 0
  %2238 = vmatpush1.bf16.msra.mxu0 %v2222
  %2239 = vmatprep.subr.bf16.mxu0 0
  %2240 = vmatpush1.bf16.msra.mxu0 %v2223
  %2241 = vmatprep.subr.bf16.mxu0 0
  %2242 = vmatpush1.bf16.msra.mxu0 %v2224
  %2243 = vmatprep.subr.bf16.mxu0 0
  %2244 = vmatpush1.bf16.msra.mxu0 %v2225
  %2245 = vmatprep.subr.bf16.mxu0 0
  %2246 = vmatpush1.bf16.msra.mxu0 %v2226
  %2247 = vmatprep.subr.bf16.mxu0 0
  %2248 = vmatpush1.bf16.msra.mxu0 %v2227
  %2249 = vmatprep.subr.bf16.mxu0 0
  %2250 = vmatpush1.bf16.msra.mxu0 %v2228
  %2251 = vmatprep.subr.bf16.mxu0 0
  %2252 = vmatpush1.bf16.msra.mxu0 0
  %2253 = vmatprep.subr.bf16.mxu0 0
  %2254 = vmatpush1.bf16.msra.mxu0 0
  %2255 = vmatprep.subr.bf16.mxu0 0
  %2256 = vmatpush1.bf16.msra.mxu0 0
  %2257 = vmatprep.subr.bf16.mxu0 0
  %2258 = vmatpush1.bf16.msra.mxu0 0
  %2259 = vmatprep.subr.bf16.mxu0 0
  %2260 = vmatpush1.bf16.msra.mxu0 0
  %2261 = vmatprep.subr.bf16.mxu0 0
  %2262 = vmatpush1.bf16.msra.mxu0 0
  %2263 = vmatprep.subr.bf16.mxu0 0
  %2264 = vmatpush1.bf16.msra.mxu0 0
  %2265 = vmatprep.subr.bf16.mxu0 0
  %2266 = vmatpush1.bf16.msra.mxu0 0
  %2267 = vmatprep.mubr.bf16.mxu0 0
  %2268 = vmatmul.mubr.bf16.gmra.mrb[0].mxu0 %v2217
  %v2269 = vpop.f32.mrb[0].mxu0
  %v2270 = vadd.f32 %v2233, %v2269
  %v2271 = vpop.f32.mrb[0].mxu0
  %v2272 = vpop.f32.mrb[0].mxu0
  %v2273 = vadd.f32 %v2233, %v2272
  %v2274 = vpop.f32.mrb[0].mxu0
  %2275 = vmatprep.mubr.bf16.mxu0 0
  %2276 = vmatmul.mubr.bf16.gmra.mrb[0].mxu0 %v2218
  %v2277 = vpop.f32.mrb[0].mxu0
  %v2278 = vadd.f32 %v2233, %v2277
  %v2279 = vpop.f32.mrb[0].mxu0
  %v2280 = vpop.f32.mrb[0].mxu0
  %v2281 = vadd.f32 %v2233, %v2280
  %v2282 = vpop.f32.mrb[0].mxu0
  %2283 = vmatprep.mubr.bf16.mxu0 0
  %2284 = vmatmul.mubr.bf16.gmra.mrb[0].mxu0 %v2219
  %v2285 = vpop.f32.mrb[0].mxu0
  %v2286 = vadd.f32 %v2233, %v2285
  %v2287 = vpop.f32.mrb[0].mxu0
  %v2288 = vpop.f32.mrb[0].mxu0
  %v2289 = vadd.f32 %v2233, %v2288
  %v2290 = vpop.f32.mrb[0].mxu0
  %2291 = vmatprep.mubr.bf16.mxu0 0
  %2292 = vmatmul.mubr.bf16.gmra.mrb[0].mxu0 %v2220
  %v2293 = vpop.f32.mrb[0].mxu0
  %v2294 = vadd.f32 %v2233, %v2293
  %v2295 = vpop.f32.mrb[0].mxu0
  %v2296 = vpop.f32.mrb[0].mxu0
  %v2297 = vadd.f32 %v2233, %v2296
  %v2298 = vpop.f32.mrb[0].mxu0
  %2299 = vdwg.mxu0
  %v2300 = vadd.f32 %v2112, %v2270
  %v2301 = vadd.f32 %v2113, %v2273
  %v2302 = vadd.f32 %v2114, %v2278
  %v2303 = vadd.f32 %v2115, %v2281
  %v2304 = vadd.f32 %v2116, %v2286
  %v2305 = vadd.f32 %v2117, %v2289
  %v2306 = vadd.f32 %v2118, %v2294
  %v2307 = vadd.f32 %v2119, %v2297
  %v2308 = vsel %vm250, %v2300, 0.0
  %2309 = vadd.xlane.f32.xlu0 %v2308
  %v2310 = vpop.xlane.xlu0 %2309
  %v2311 = vsel %vm250, %v2301, 0.0
  %2312 = vadd.xlane.f32.xlu0 %v2311
  %v2313 = vpop.xlane.xlu0 %2312
  %v2314 = vsel %vm250, %v2302, 0.0
  %2315 = vadd.xlane.f32.xlu0 %v2314
  %v2316 = vpop.xlane.xlu0 %2315
  %v2317 = vsel %vm250, %v2303, 0.0
  %2318 = vadd.xlane.f32.xlu0 %v2317
  %v2319 = vpop.xlane.xlu0 %2318
  %v2320 = vsel %vm250, %v2304, 0.0
  %2321 = vadd.xlane.f32.xlu0 %v2320
  %v2322 = vpop.xlane.xlu0 %2321
  %v2323 = vsel %vm250, %v2305, 0.0
  %2324 = vadd.xlane.f32.xlu0 %v2323
  %v2325 = vpop.xlane.xlu0 %2324
  %v2326 = vsel %vm250, %v2306, 0.0
  %2327 = vadd.xlane.f32.xlu0 %v2326
  %v2328 = vpop.xlane.xlu0 %2327
  %v2329 = vsel %vm250, %v2307, 0.0
  %2330 = vadd.xlane.f32.xlu0 %v2329
  %v2331 = vpop.xlane.xlu0 %2330
  %v2332 = vmul.f32 %v2310, %v2011
  %v2333 = vmul.f32 %v2313, %v2011
  %v2334 = vmul.f32 %v2316, %v2011
  %v2335 = vmul.f32 %v2319, %v2011
  %v2336 = vmul.f32 %v2322, %v2011
  %v2337 = vmul.f32 %v2325, %v2011
  %v2338 = vmul.f32 %v2328, %v2011
  %v2339 = vmul.f32 %v2331, %v2011
  %v2340 = vsub.f32 %v2300, %v2332
  %v2341 = vsub.f32 %v2301, %v2333
  %v2342 = vsub.f32 %v2302, %v2334
  %v2343 = vsub.f32 %v2303, %v2335
  %v2344 = vsub.f32 %v2304, %v2336
  %v2345 = vsub.f32 %v2305, %v2337
  %v2346 = vsub.f32 %v2306, %v2338
  %v2347 = vsub.f32 %v2307, %v2339
  %v2348 = vmul.f32 %v2340, %v2340
  %v2349 = vmul.f32 %v2341, %v2341
  %v2350 = vmul.f32 %v2342, %v2342
  %v2351 = vmul.f32 %v2343, %v2343
  %v2352 = vmul.f32 %v2344, %v2344
  %v2353 = vmul.f32 %v2345, %v2345
  %v2354 = vmul.f32 %v2346, %v2346
  %v2355 = vmul.f32 %v2347, %v2347
  %v2356 = vsel %vm250, %v2348, 0.0
  %2357 = vadd.xlane.f32.xlu0 %v2356
  %v2358 = vpop.xlane.xlu0 %2357
  %v2359 = vsel %vm250, %v2349, 0.0
  %2360 = vadd.xlane.f32.xlu0 %v2359
  %v2361 = vpop.xlane.xlu0 %2360
  %v2362 = vsel %vm250, %v2350, 0.0
  %2363 = vadd.xlane.f32.xlu0 %v2362
  %v2364 = vpop.xlane.xlu0 %2363
  %v2365 = vsel %vm250, %v2351, 0.0
  %2366 = vadd.xlane.f32.xlu0 %v2365
  %v2367 = vpop.xlane.xlu0 %2366
  %v2368 = vsel %vm250, %v2352, 0.0
  %2369 = vadd.xlane.f32.xlu0 %v2368
  %v2370 = vpop.xlane.xlu0 %2369
  %v2371 = vsel %vm250, %v2353, 0.0
  %2372 = vadd.xlane.f32.xlu0 %v2371
  %v2373 = vpop.xlane.xlu0 %2372
  %v2374 = vsel %vm250, %v2354, 0.0
  %2375 = vadd.xlane.f32.xlu0 %v2374
  %v2376 = vpop.xlane.xlu0 %2375
  %v2377 = vsel %vm250, %v2355, 0.0
  %2378 = vadd.xlane.f32.xlu0 %v2377
  %v2379 = vpop.xlane.xlu0 %2378
  %v2380 = vmul.f32 %v2358, %v2011
  %v2381 = vmul.f32 %v2361, %v2011
  %v2382 = vmul.f32 %v2364, %v2011
  %v2383 = vmul.f32 %v2367, %v2011
  %v2384 = vmul.f32 %v2370, %v2011
  %v2385 = vmul.f32 %v2373, %v2011
  %v2386 = vmul.f32 %v2376, %v2011
  %v2387 = vmul.f32 %v2379, %v2011
  %v2388 = vadd.f32 %v2380, 1e-05
  %v2389 = vadd.f32 %v2381, 1e-05
  %v2390 = vadd.f32 %v2382, 1e-05
  %v2391 = vadd.f32 %v2383, 1e-05
  %v2392 = vadd.f32 %v2384, 1e-05
  %v2393 = vadd.f32 %v2385, 1e-05
  %v2394 = vadd.f32 %v2386, 1e-05
  %v2395 = vadd.f32 %v2387, 1e-05
  %v2396 = vrsqrt.pop %v2388
  %v2397 = vrsqrt.pop %v2389
  %v2398 = vrsqrt.pop %v2390
  %v2399 = vrsqrt.pop %v2391
  %v2400 = vrsqrt.pop %v2392
  %v2401 = vrsqrt.pop %v2393
  %v2402 = vrsqrt.pop %v2394
  %v2403 = vrsqrt.pop %v2395
  %v2404 = vmul.f32 %v2340, %v2396
  %v2405 = vmul.f32 %v2341, %v2397
  %v2406 = vmul.f32 %v2342, %v2398
  %v2407 = vmul.f32 %v2343, %v2399
  %v2408 = vmul.f32 %v2344, %v2400
  %v2409 = vmul.f32 %v2345, %v2401
  %v2410 = vmul.f32 %v2346, %v2402
  %v2411 = vmul.f32 %v2347, %v2403
  %v2413 = vlaneseq
  %v2414 = vshrl.u32 %v2413, 7
  %v2415 = vsub.s32 0, %v2414
  %v2416 = vrot.slane %v236, %v2415
  %v2418 = vmul.f32 %v2404, %v2416
  %v2419 = vmul.f32 %v2405, %v2416
  %v2420 = vmul.f32 %v2406, %v2416
  %v2421 = vmul.f32 %v2407, %v2416
  %v2422 = vmul.f32 %v2408, %v2416
  %v2423 = vmul.f32 %v2409, %v2416
  %v2424 = vmul.f32 %v2410, %v2416
  %v2425 = vmul.f32 %v2411, %v2416
  %v2427 = vlaneseq
  %v2428 = vshrl.u32 %v2427, 7
  %v2429 = vsub.s32 0, %v2428
  %v2430 = vrot.slane %v237, %v2429
  %v2432 = vadd.f32 %v2418, %v2430
  %v2433 = vadd.f32 %v2419, %v2430
  %v2434 = vadd.f32 %v2420, %v2430
  %v2435 = vadd.f32 %v2421, %v2430
  %v2436 = vadd.f32 %v2422, %v2430
  %v2437 = vadd.f32 %v2423, %v2430
  %v2438 = vadd.f32 %v2424, %v2430
  %v2439 = vadd.f32 %v2425, %v2430
  %v2440 = vld [vmem:[%s16] sm:$0xff]
  %v2441 = vld [vmem:[%s16 + $0x8] sm:$0xff]
  %v2442 = vld [vmem:[%s16 + $0x10] sm:$0xff]
  %v2443 = vld [vmem:[%s16 + $0x18] sm:$0xff]
  %v2444 = vld [vmem:[%s17] sm:$0x1]
  %v2445 = vld [vmem:[%s18] sm:$0xff]
  %v2446 = vld [vmem:[%s18 + $0x8] sm:$0xff]
  %v2447 = vld [vmem:[%s18 + $0x10] sm:$0xff]
  %v2448 = vld [vmem:[%s18 + $0x18] sm:$0xff]
  %v2449 = vld [vmem:[%s19] sm:$0x1]
  %v2450 = vld [vmem:[%s20] sm:$0xff]
  %v2451 = vld [vmem:[%s20 + $0x8] sm:$0xff]
  %v2452 = vld [vmem:[%s20 + $0x10] sm:$0xff]
  %v2453 = vld [vmem:[%s20 + $0x18] sm:$0xff]
  %v2454 = vld [vmem:[%s21] sm:$0x1]
  %v2455 = vld [vmem:[%s22] sm:$0xff]
  %v2456 = vld [vmem:[%s22 + $0x8] sm:$0xff]
  %v2457 = vld [vmem:[%s22 + $0x10] sm:$0xff]
  %v2458 = vld [vmem:[%s22 + $0x18] sm:$0xff]
  %v2459 = vld [vmem:[%s22 + $0x20] sm:$0xff]
  %v2460 = vld [vmem:[%s22 + $0x28] sm:$0xff]
  %v2461 = vld [vmem:[%s22 + $0x30] sm:$0xff]
  %v2462 = vld [vmem:[%s22 + $0x38] sm:$0xff]
  %v2463 = vld [vmem:[%s22 + $0x40] sm:$0xff]
  %v2464 = vld [vmem:[%s22 + $0x48] sm:$0xff]
  %v2465 = vld [vmem:[%s22 + $0x50] sm:$0xff]
  %v2466 = vld [vmem:[%s22 + $0x58] sm:$0xff]
  %v2467 = vld [vmem:[%s22 + $0x60] sm:$0xff]
  %v2468 = vld [vmem:[%s22 + $0x68] sm:$0xff]
  %v2469 = vld [vmem:[%s22 + $0x70] sm:$0xff]
  %v2470 = vld [vmem:[%s22 + $0x78] sm:$0xff]
  %v2471 = vld [vmem:[%s23] sm:$0x1]
  %v2472 = vld [vmem:[%s24] sm:$0x1]
  %v2473 = vld [vmem:[%s25] sm:$0x1]
  %v2474 = vld [vmem:[%s26] sm:$0x1]
  %v2475 = vld [vmem:[%s27] sm:$0x1]
  %v2476 = vpack.c.bf16 %v2433, %v2432
  %v2477 = vpack.c.bf16 %v2435, %v2434
  %v2478 = vpack.c.bf16 %v2437, %v2436
  %v2479 = vpack.c.bf16 %v2439, %v2438
  %v2480 = vpack.c.bf16 %v2441, %v2440
  %v2481 = vpack.c.bf16 %v2443, %v2442
  %v2483 = vlaneseq
  %v2484 = vshrl.u32 %v2483, 7
  %v2485 = vsub.s32 0, %v2484
  %v2486 = vrot.slane %v2444, %v2485
  %v2489 = vsel %vm250, %v2476, 0
  %v2492 = vsel %vm250, %v2477, 0
  %v2495 = vsel %vm250, %v2478, 0
  %v2498 = vsel %vm250, %v2479, 0
  %2500 = vmatprep.subr.bf16.mxu0 0
  %2501 = vmatpush1.bf16.msra.mxu0 %v2480
  %2502 = vmatprep.subr.bf16.mxu0 0
  %2503 = vmatpush1.bf16.msra.mxu0 %v2481
  %2504 = vmatprep.subr.bf16.mxu0 0
  %2505 = vmatpush1.bf16.msra.mxu0 0
  %2506 = vmatprep.subr.bf16.mxu0 0
  %2507 = vmatpush1.bf16.msra.mxu0 0
  %2508 = vmatprep.subr.bf16.mxu0 0
  %2509 = vmatpush1.bf16.msra.mxu0 0
  %2510 = vmatprep.subr.bf16.mxu0 0
  %2511 = vmatpush1.bf16.msra.mxu0 0
  %2512 = vmatprep.subr.bf16.mxu0 0
  %2513 = vmatpush1.bf16.msra.mxu0 0
  %2514 = vmatprep.subr.bf16.mxu0 0
  %2515 = vmatpush1.bf16.msra.mxu0 0
  %2516 = vmatprep.subr.bf16.mxu0 0
  %2517 = vmatpush1.bf16.msra.mxu0 0
  %2518 = vmatprep.subr.bf16.mxu0 0
  %2519 = vmatpush1.bf16.msra.mxu0 0
  %2520 = vmatprep.subr.bf16.mxu0 0
  %2521 = vmatpush1.bf16.msra.mxu0 0
  %2522 = vmatprep.subr.bf16.mxu0 0
  %2523 = vmatpush1.bf16.msra.mxu0 0
  %2524 = vmatprep.subr.bf16.mxu0 0
  %2525 = vmatpush1.bf16.msra.mxu0 0
  %2526 = vmatprep.subr.bf16.mxu0 0
  %2527 = vmatpush1.bf16.msra.mxu0 0
  %2528 = vmatprep.subr.bf16.mxu0 0
  %2529 = vmatpush1.bf16.msra.mxu0 0
  %2530 = vmatprep.subr.bf16.mxu0 0
  %2531 = vmatpush1.bf16.msra.mxu0 0
  %2532 = vmatprep.mubr.bf16.mxu0 0
  %2533 = vmatmul.mubr.bf16.gmra.mrb[0].mxu0 %v2489
  %v2534 = vpop.f32.mrb[0].mxu0
  %v2535 = vadd.f32 %v2486, %v2534
  %v2536 = vpop.f32.mrb[0].mxu0
  %v2537 = vpop.f32.mrb[0].mxu0
  %v2538 = vadd.f32 %v2486, %v2537
  %v2539 = vpop.f32.mrb[0].mxu0
  %2540 = vmatprep.mubr.bf16.mxu0 0
  %2541 = vmatmul.mubr.bf16.gmra.mrb[0].mxu0 %v2492
  %v2542 = vpop.f32.mrb[0].mxu0
  %v2543 = vadd.f32 %v2486, %v2542
  %v2544 = vpop.f32.mrb[0].mxu0
  %v2545 = vpop.f32.mrb[0].mxu0
  %v2546 = vadd.f32 %v2486, %v2545
  %v2547 = vpop.f32.mrb[0].mxu0
  %2548 = vmatprep.mubr.bf16.mxu0 0
  %2549 = vmatmul.mubr.bf16.gmra.mrb[0].mxu0 %v2495
  %v2550 = vpop.f32.mrb[0].mxu0
  %v2551 = vadd.f32 %v2486, %v2550
  %v2552 = vpop.f32.mrb[0].mxu0
  %v2553 = vpop.f32.mrb[0].mxu0
  %v2554 = vadd.f32 %v2486, %v2553
  %v2555 = vpop.f32.mrb[0].mxu0
  %2556 = vmatprep.mubr.bf16.mxu0 0
  %2557 = vmatmul.mubr.bf16.gmra.mrb[0].mxu0 %v2498
  %v2558 = vpop.f32.mrb[0].mxu0
  %v2559 = vadd.f32 %v2486, %v2558
  %v2560 = vpop.f32.mrb[0].mxu0
  %v2561 = vpop.f32.mrb[0].mxu0
  %v2562 = vadd.f32 %v2486, %v2561
  %v2563 = vpop.f32.mrb[0].mxu0
  %2564 = vdwg.mxu0
  %v2565 = vpack.c.bf16 %v2538, %v2535
  %v2566 = vpack.c.bf16 %v2546, %v2543
  %2569 = vrot.lane.b32.xlu0 %v2565, 96
  %v2570 = vpop.permute.xlu0 %2569
  %2571 = vrot.lane.b32.xlu0 %v2566, 96
  %v2572 = vpop.permute.xlu0 %2571
  %v2574 = vsel %vm336, %v2565, 0
  %v2577 = vsel %vm336, %v2566, 0
  %v2580 = vsel %vm336, %v2570, 0
  %v2583 = vsel %vm336, %v2572, 0
  %2585 = vmatprep.subr.bf16.mxu0 0
  %2586 = vmatpush1.bf16.xpose.msra.mxu0 %v2580
  %2587 = vmatprep.subr.bf16.mxu0 0
  %2588 = vmatpush1.bf16.xpose.msra.mxu0 %v2583
  %2589 = vmatprep.subr.bf16.mxu0 0
  %2590 = vmatpush1.bf16.xpose.msra.mxu0 0
  %2591 = vmatprep.subr.bf16.mxu0 0
  %2592 = vmatpush1.bf16.xpose.msra.mxu0 0
  %2593 = vmatprep.subr.bf16.mxu0 0
  %2594 = vmatpush1.bf16.xpose.msra.mxu0 0
  %2595 = vmatprep.subr.bf16.mxu0 0
  %2596 = vmatpush1.bf16.xpose.msra.mxu0 0
  %2597 = vmatprep.subr.bf16.mxu0 0
  %2598 = vmatpush1.bf16.xpose.msra.mxu0 0
  %2599 = vmatprep.subr.bf16.mxu0 0
  %2600 = vmatpush1.bf16.xpose.msra.mxu0 0
  %2601 = vmatprep.subr.bf16.mxu0 0
  %2602 = vmatpush1.bf16.xpose.msra.mxu0 0
  %2603 = vmatprep.subr.bf16.mxu0 0
  %2604 = vmatpush1.bf16.xpose.msra.mxu0 0
  %2605 = vmatprep.subr.bf16.mxu0 0
  %2606 = vmatpush1.bf16.xpose.msra.mxu0 0
  %2607 = vmatprep.subr.bf16.mxu0 0
  %2608 = vmatpush1.bf16.xpose.msra.mxu0 0
  %2609 = vmatprep.subr.bf16.mxu0 0
  %2610 = vmatpush1.bf16.xpose.msra.mxu0 0
  %2611 = vmatprep.subr.bf16.mxu0 0
  %2612 = vmatpush1.bf16.xpose.msra.mxu0 0
  %2613 = vmatprep.subr.bf16.mxu0 0
  %2614 = vmatpush1.bf16.xpose.msra.mxu0 0
  %2615 = vmatprep.subr.bf16.mxu0 0
  %2616 = vmatpush1.bf16.xpose.msra.mxu0 0
  %2617 = vmatprep.mubr.bf16.mxu0 0
  %2618 = vmatmul.mubr.bf16.gmra.mrb[0].mxu0 %v2574
  %v2619 = vpop.f32.mrb[0].mxu0
  %v2620 = vadd.f32 0.0, %v2619
  %v2621 = vpop.f32.mrb[0].mxu0
  %v2622 = vpop.f32.mrb[0].mxu0
  %v2623 = vadd.f32 0.0, %v2622
  %v2624 = vpop.f32.mrb[0].mxu0
  %2625 = vmatprep.mubr.bf16.mxu0 0
  %2626 = vmatmul.mubr.bf16.gmra.mrb[0].mxu0 %v2577
  %v2627 = vpop.f32.mrb[0].mxu0
  %v2628 = vadd.f32 0.0, %v2627
  %v2629 = vpop.f32.mrb[0].mxu0
  %v2630 = vpop.f32.mrb[0].mxu0
  %v2631 = vadd.f32 0.0, %v2630
  %v2632 = vpop.f32.mrb[0].mxu0
  %2633 = vdwg.mxu0
  %v2634 = vmul.f32 %v2620, 0.35355338
  %v2635 = vmul.f32 %v2623, 0.35355338
  %v2636 = vmul.f32 %v2628, 0.35355338
  %v2637 = vmul.f32 %v2631, 0.35355338
  %v2638 = vsel %vm250, %v2634, -inf
  %2639 = vmax.xlane.f32.xlu0 %v2638
  %v2640 = vpop.xlane.xlu0 %2639
  %v2641 = vsel %vm250, %v2635, -inf
  %2642 = vmax.xlane.f32.xlu0 %v2641
  %v2643 = vpop.xlane.xlu0 %2642
  %v2644 = vsel %vm250, %v2636, -inf
  %2645 = vmax.xlane.f32.xlu0 %v2644
  %v2646 = vpop.xlane.xlu0 %2645
  %v2647 = vsel %vm250, %v2637, -inf
  %2648 = vmax.xlane.f32.xlu0 %v2647
  %v2649 = vpop.xlane.xlu0 %2648
  %v2650 = vsub.f32 %v2634, %v2640
  %v2651 = vsub.f32 %v2635, %v2643
  %v2652 = vsub.f32 %v2636, %v2646
  %v2653 = vsub.f32 %v2637, %v2649
  %v2654 = vmul.f32 %v2650, 1.442695
  %v2655 = vpow.pop %v2654
  %v2656 = vmul.f32 %v2651, 1.442695
  %v2657 = vpow.pop %v2656
  %v2658 = vmul.f32 %v2652, 1.442695
  %v2659 = vpow.pop %v2658
  %v2660 = vmul.f32 %v2653, 1.442695
  %v2661 = vpow.pop %v2660
  %v2662 = vsel %vm250, %v2655, 0.0
  %2663 = vadd.xlane.f32.xlu0 %v2662
  %v2664 = vpop.xlane.xlu0 %2663
  %v2665 = vsel %vm250, %v2657, 0.0
  %2666 = vadd.xlane.f32.xlu0 %v2665
  %v2667 = vpop.xlane.xlu0 %2666
  %v2668 = vsel %vm250, %v2659, 0.0
  %2669 = vadd.xlane.f32.xlu0 %v2668
  %v2670 = vpop.xlane.xlu0 %2669
  %v2671 = vsel %vm250, %v2661, 0.0
  %2672 = vadd.xlane.f32.xlu0 %v2671
  %v2673 = vpop.xlane.xlu0 %2672
  %v2674 = vrcp.pop %v2664
  %v2675 = vmul.f32 %v2655, %v2674
  %v2676 = vrcp.pop %v2667
  %v2677 = vmul.f32 %v2657, %v2676
  %v2678 = vrcp.pop %v2670
  %v2679 = vmul.f32 %v2659, %v2678
  %v2680 = vrcp.pop %v2673
  %v2681 = vmul.f32 %v2661, %v2680
  %v2682 = vpack.c.bf16 %v2677, %v2675
  %v2683 = vpack.c.bf16 %v2681, %v2679
  %2684 = vrot.lane.b32.xlu0 %v2565, 64
  %v2685 = vpop.permute.xlu0 %2684
  %2686 = vrot.lane.b32.xlu0 %v2566, 64
  %v2687 = vpop.permute.xlu0 %2686
  %v2691 = vsel %vm250, %v2682, 0
  %v2694 = vsel %vm250, %v2683, 0
  %2696 = vmatprep.subr.bf16.mxu0 0
  %2697 = vmatpush1.bf16.msra.mxu0 %v2685
  %2698 = vmatprep.subr.bf16.mxu0 0
  %2699 = vmatpush1.bf16.msra.mxu0 %v2687
  %2700 = vmatprep.subr.bf16.mxu0 0
  %2701 = vmatpush1.bf16.msra.mxu0 0
  %2702 = vmatprep.subr.bf16.mxu0 0
  %2703 = vmatpush1.bf16.msra.mxu0 0
  %2704 = vmatprep.subr.bf16.mxu0 0
  %2705 = vmatpush1.bf16.msra.mxu0 0
  %2706 = vmatprep.subr.bf16.mxu0 0
  %2707 = vmatpush1.bf16.msra.mxu0 0
  %2708 = vmatprep.subr.bf16.mxu0 0
  %2709 = vmatpush1.bf16.msra.mxu0 0
  %2710 = vmatprep.subr.bf16.mxu0 0
  %2711 = vmatpush1.bf16.msra.mxu0 0
  %2712 = vmatprep.subr.bf16.mxu0 0
  %2713 = vmatpush1.bf16.msra.mxu0 0
  %2714 = vmatprep.subr.bf16.mxu0 0
  %2715 = vmatpush1.bf16.msra.mxu0 0
  %2716 = vmatprep.subr.bf16.mxu0 0
  %2717 = vmatpush1.bf16.msra.mxu0 0
  %2718 = vmatprep.subr.bf16.mxu0 0
  %2719 = vmatpush1.bf16.msra.mxu0 0
  %2720 = vmatprep.subr.bf16.mxu0 0
  %2721 = vmatpush1.bf16.msra.mxu0 0
  %2722 = vmatprep.subr.bf16.mxu0 0
  %2723 = vmatpush1.bf16.msra.mxu0 0
  %2724 = vmatprep.subr.bf16.mxu0 0
  %2725 = vmatpush1.bf16.msra.mxu0 0
  %2726 = vmatprep.subr.bf16.mxu0 0
  %2727 = vmatpush1.bf16.msra.mxu0 0
  %2728 = vmatprep.mubr.bf16.mxu0 0
  %2729 = vmatmul.mubr.bf16.gmra.mrb[0].mxu0 %v2691
  %v2730 = vpop.f32.mrb[0].mxu0
  %v2731 = vadd.f32 0.0, %v2730
  %v2732 = vpop.f32.mrb[0].mxu0
  %v2733 = vpop.f32.mrb[0].mxu0
  %v2734 = vadd.f32 0.0, %v2733
  %v2735 = vpop.f32.mrb[0].mxu0
  %2736 = vmatprep.mubr.bf16.mxu0 0
  %2737 = vmatmul.mubr.bf16.gmra.mrb[0].mxu0 %v2694
  %v2738 = vpop.f32.mrb[0].mxu0
  %v2739 = vadd.f32 0.0, %v2738
  %v2740 = vpop.f32.mrb[0].mxu0
  %v2741 = vpop.f32.mrb[0].mxu0
  %v2742 = vadd.f32 0.0, %v2741
  %v2743 = vpop.f32.mrb[0].mxu0
  %2744 = vdwg.mxu0
  %2745 = vrot.lane.b32.xlu0 %v2565, 120
  %v2746 = vpop.permute.xlu0 %2745
  %2747 = vrot.lane.b32.xlu0 %v2566, 120
  %v2748 = vpop.permute.xlu0 %2747
  %2749 = vrot.lane.b32.xlu0 %v2565, 88
  %v2750 = vpop.permute.xlu0 %2749
  %2751 = vrot.lane.b32.xlu0 %v2566, 88
  %v2752 = vpop.permute.xlu0 %2751
  %v2754 = vsel %vm336, %v2746, 0
  %v2757 = vsel %vm336, %v2748, 0
  %v2760 = vsel %vm336, %v2750, 0
  %v2763 = vsel %vm336, %v2752, 0
  %2765 = vmatprep.subr.bf16.mxu0 0
  %2766 = vmatpush1.bf16.xpose.msra.mxu0 %v2760
  %2767 = vmatprep.subr.bf16.mxu0 0
  %2768 = vmatpush1.bf16.xpose.msra.mxu0 %v2763
  %2769 = vmatprep.subr.bf16.mxu0 0
  %2770 = vmatpush1.bf16.xpose.msra.mxu0 0
  %2771 = vmatprep.subr.bf16.mxu0 0
  %2772 = vmatpush1.bf16.xpose.msra.mxu0 0
  %2773 = vmatprep.subr.bf16.mxu0 0
  %2774 = vmatpush1.bf16.xpose.msra.mxu0 0
  %2775 = vmatprep.subr.bf16.mxu0 0
  %2776 = vmatpush1.bf16.xpose.msra.mxu0 0
  %2777 = vmatprep.subr.bf16.mxu0 0
  %2778 = vmatpush1.bf16.xpose.msra.mxu0 0
  %2779 = vmatprep.subr.bf16.mxu0 0
  %2780 = vmatpush1.bf16.xpose.msra.mxu0 0
  %2781 = vmatprep.subr.bf16.mxu0 0
  %2782 = vmatpush1.bf16.xpose.msra.mxu0 0
  %2783 = vmatprep.subr.bf16.mxu0 0
  %2784 = vmatpush1.bf16.xpose.msra.mxu0 0
  %2785 = vmatprep.subr.bf16.mxu0 0
  %2786 = vmatpush1.bf16.xpose.msra.mxu0 0
  %2787 = vmatprep.subr.bf16.mxu0 0
  %2788 = vmatpush1.bf16.xpose.msra.mxu0 0
  %2789 = vmatprep.subr.bf16.mxu0 0
  %2790 = vmatpush1.bf16.xpose.msra.mxu0 0
  %2791 = vmatprep.subr.bf16.mxu0 0
  %2792 = vmatpush1.bf16.xpose.msra.mxu0 0
  %2793 = vmatprep.subr.bf16.mxu0 0
  %2794 = vmatpush1.bf16.xpose.msra.mxu0 0
  %2795 = vmatprep.subr.bf16.mxu0 0
  %2796 = vmatpush1.bf16.xpose.msra.mxu0 0
  %2797 = vmatprep.mubr.bf16.mxu0 0
  %2798 = vmatmul.mubr.bf16.gmra.mrb[0].mxu0 %v2754
  %v2799 = vpop.f32.mrb[0].mxu0
  %v2800 = vadd.f32 0.0, %v2799
  %v2801 = vpop.f32.mrb[0].mxu0
  %v2802 = vpop.f32.mrb[0].mxu0
  %v2803 = vadd.f32 0.0, %v2802
  %v2804 = vpop.f32.mrb[0].mxu0
  %2805 = vmatprep.mubr.bf16.mxu0 0
  %2806 = vmatmul.mubr.bf16.gmra.mrb[0].mxu0 %v2757
  %v2807 = vpop.f32.mrb[0].mxu0
  %v2808 = vadd.f32 0.0, %v2807
  %v2809 = vpop.f32.mrb[0].mxu0
  %v2810 = vpop.f32.mrb[0].mxu0
  %v2811 = vadd.f32 0.0, %v2810
  %v2812 = vpop.f32.mrb[0].mxu0
  %2813 = vdwg.mxu0
  %v2814 = vmul.f32 %v2800, 0.35355338
  %v2815 = vmul.f32 %v2803, 0.35355338
  %v2816 = vmul.f32 %v2808, 0.35355338
  %v2817 = vmul.f32 %v2811, 0.35355338
  %v2818 = vsel %vm250, %v2814, -inf
  %2819 = vmax.xlane.f32.xlu0 %v2818
  %v2820 = vpop.xlane.xlu0 %2819
  %v2821 = vsel %vm250, %v2815, -inf
  %2822 = vmax.xlane.f32.xlu0 %v2821
  %v2823 = vpop.xlane.xlu0 %2822
  %v2824 = vsel %vm250, %v2816, -inf
  %2825 = vmax.xlane.f32.xlu0 %v2824
  %v2826 = vpop.xlane.xlu0 %2825
  %v2827 = vsel %vm250, %v2817, -inf
  %2828 = vmax.xlane.f32.xlu0 %v2827
  %v2829 = vpop.xlane.xlu0 %2828
  %v2830 = vsub.f32 %v2814, %v2820
  %v2831 = vsub.f32 %v2815, %v2823
  %v2832 = vsub.f32 %v2816, %v2826
  %v2833 = vsub.f32 %v2817, %v2829
  %v2834 = vmul.f32 %v2830, 1.442695
  %v2835 = vpow.pop %v2834
  %v2836 = vmul.f32 %v2831, 1.442695
  %v2837 = vpow.pop %v2836
  %v2838 = vmul.f32 %v2832, 1.442695
  %v2839 = vpow.pop %v2838
  %v2840 = vmul.f32 %v2833, 1.442695
  %v2841 = vpow.pop %v2840
  %v2842 = vsel %vm250, %v2835, 0.0
  %2843 = vadd.xlane.f32.xlu0 %v2842
  %v2844 = vpop.xlane.xlu0 %2843
  %v2845 = vsel %vm250, %v2837, 0.0
  %2846 = vadd.xlane.f32.xlu0 %v2845
  %v2847 = vpop.xlane.xlu0 %2846
  %v2848 = vsel %vm250, %v2839, 0.0
  %2849 = vadd.xlane.f32.xlu0 %v2848
  %v2850 = vpop.xlane.xlu0 %2849
  %v2851 = vsel %vm250, %v2841, 0.0
  %2852 = vadd.xlane.f32.xlu0 %v2851
  %v2853 = vpop.xlane.xlu0 %2852
  %v2854 = vrcp.pop %v2844
  %v2855 = vmul.f32 %v2835, %v2854
  %v2856 = vrcp.pop %v2847
  %v2857 = vmul.f32 %v2837, %v2856
  %v2858 = vrcp.pop %v2850
  %v2859 = vmul.f32 %v2839, %v2858
  %v2860 = vrcp.pop %v2853
  %v2861 = vmul.f32 %v2841, %v2860
  %v2862 = vpack.c.bf16 %v2857, %v2855
  %v2863 = vpack.c.bf16 %v2861, %v2859
  %2864 = vrot.lane.b32.xlu0 %v2565, 56
  %v2865 = vpop.permute.xlu0 %2864
  %2866 = vrot.lane.b32.xlu0 %v2566, 56
  %v2867 = vpop.permute.xlu0 %2866
  %v2871 = vsel %vm250, %v2862, 0
  %v2874 = vsel %vm250, %v2863, 0
  %2876 = vmatprep.subr.bf16.mxu0 0
  %2877 = vmatpush1.bf16.msra.mxu0 %v2865
  %2878 = vmatprep.subr.bf16.mxu0 0
  %2879 = vmatpush1.bf16.msra.mxu0 %v2867
  %2880 = vmatprep.subr.bf16.mxu0 0
  %2881 = vmatpush1.bf16.msra.mxu0 0
  %2882 = vmatprep.subr.bf16.mxu0 0
  %2883 = vmatpush1.bf16.msra.mxu0 0
  %2884 = vmatprep.subr.bf16.mxu0 0
  %2885 = vmatpush1.bf16.msra.mxu0 0
  %2886 = vmatprep.subr.bf16.mxu0 0
  %2887 = vmatpush1.bf16.msra.mxu0 0
  %2888 = vmatprep.subr.bf16.mxu0 0
  %2889 = vmatpush1.bf16.msra.mxu0 0
  %2890 = vmatprep.subr.bf16.mxu0 0
  %2891 = vmatpush1.bf16.msra.mxu0 0
  %2892 = vmatprep.subr.bf16.mxu0 0
  %2893 = vmatpush1.bf16.msra.mxu0 0
  %2894 = vmatprep.subr.bf16.mxu0 0
  %2895 = vmatpush1.bf16.msra.mxu0 0
  %2896 = vmatprep.subr.bf16.mxu0 0
  %2897 = vmatpush1.bf16.msra.mxu0 0
  %2898 = vmatprep.subr.bf16.mxu0 0
  %2899 = vmatpush1.bf16.msra.mxu0 0
  %2900 = vmatprep.subr.bf16.mxu0 0
  %2901 = vmatpush1.bf16.msra.mxu0 0
  %2902 = vmatprep.subr.bf16.mxu0 0
  %2903 = vmatpush1.bf16.msra.mxu0 0
  %2904 = vmatprep.subr.bf16.mxu0 0
  %2905 = vmatpush1.bf16.msra.mxu0 0
  %2906 = vmatprep.subr.bf16.mxu0 0
  %2907 = vmatpush1.bf16.msra.mxu0 0
  %2908 = vmatprep.mubr.bf16.mxu0 0
  %2909 = vmatmul.mubr.bf16.gmra.mrb[0].mxu0 %v2871
  %v2910 = vpop.f32.mrb[0].mxu0
  %v2911 = vadd.f32 0.0, %v2910
  %v2912 = vpop.f32.mrb[0].mxu0
  %v2913 = vpop.f32.mrb[0].mxu0
  %v2914 = vadd.f32 0.0, %v2913
  %v2915 = vpop.f32.mrb[0].mxu0
  %2916 = vmatprep.mubr.bf16.mxu0 0
  %2917 = vmatmul.mubr.bf16.gmra.mrb[0].mxu0 %v2874
  %v2918 = vpop.f32.mrb[0].mxu0
  %v2919 = vadd.f32 0.0, %v2918
  %v2920 = vpop.f32.mrb[0].mxu0
  %v2921 = vpop.f32.mrb[0].mxu0
  %v2922 = vadd.f32 0.0, %v2921
  %v2923 = vpop.f32.mrb[0].mxu0
  %2924 = vdwg.mxu0
  %2925 = vrot.lane.b32.xlu0 %v2565, 112
  %v2926 = vpop.permute.xlu0 %2925
  %2927 = vrot.lane.b32.xlu0 %v2566, 112
  %v2928 = vpop.permute.xlu0 %2927
  %2929 = vrot.lane.b32.xlu0 %v2565, 80
  %v2930 = vpop.permute.xlu0 %2929
  %2931 = vrot.lane.b32.xlu0 %v2566, 80
  %v2932 = vpop.permute.xlu0 %2931
  %v2934 = vsel %vm336, %v2926, 0
  %v2937 = vsel %vm336, %v2928, 0
  %v2940 = vsel %vm336, %v2930, 0
  %v2943 = vsel %vm336, %v2932, 0
  %2945 = vmatprep.subr.bf16.mxu0 0
  %2946 = vmatpush1.bf16.xpose.msra.mxu0 %v2940
  %2947 = vmatprep.subr.bf16.mxu0 0
  %2948 = vmatpush1.bf16.xpose.msra.mxu0 %v2943
  %2949 = vmatprep.subr.bf16.mxu0 0
  %2950 = vmatpush1.bf16.xpose.msra.mxu0 0
  %2951 = vmatprep.subr.bf16.mxu0 0
  %2952 = vmatpush1.bf16.xpose.msra.mxu0 0
  %2953 = vmatprep.subr.bf16.mxu0 0
  %2954 = vmatpush1.bf16.xpose.msra.mxu0 0
  %2955 = vmatprep.subr.bf16.mxu0 0
  %2956 = vmatpush1.bf16.xpose.msra.mxu0 0
  %2957 = vmatprep.subr.bf16.mxu0 0
  %2958 = vmatpush1.bf16.xpose.msra.mxu0 0
  %2959 = vmatprep.subr.bf16.mxu0 0
  %2960 = vmatpush1.bf16.xpose.msra.mxu0 0
  %2961 = vmatprep.subr.bf16.mxu0 0
  %2962 = vmatpush1.bf16.xpose.msra.mxu0 0
  %2963 = vmatprep.subr.bf16.mxu0 0
  %2964 = vmatpush1.bf16.xpose.msra.mxu0 0
  %2965 = vmatprep.subr.bf16.mxu0 0
  %2966 = vmatpush1.bf16.xpose.msra.mxu0 0
  %2967 = vmatprep.subr.bf16.mxu0 0
  %2968 = vmatpush1.bf16.xpose.msra.mxu0 0
  %2969 = vmatprep.subr.bf16.mxu0 0
  %2970 = vmatpush1.bf16.xpose.msra.mxu0 0
  %2971 = vmatprep.subr.bf16.mxu0 0
  %2972 = vmatpush1.bf16.xpose.msra.mxu0 0
  %2973 = vmatprep.subr.bf16.mxu0 0
  %2974 = vmatpush1.bf16.xpose.msra.mxu0 0
  %2975 = vmatprep.subr.bf16.mxu0 0
  %2976 = vmatpush1.bf16.xpose.msra.mxu0 0
  %2977 = vmatprep.mubr.bf16.mxu0 0
  %2978 = vmatmul.mubr.bf16.gmra.mrb[0].mxu0 %v2934
  %v2979 = vpop.f32.mrb[0].mxu0
  %v2980 = vadd.f32 0.0, %v2979
  %v2981 = vpop.f32.mrb[0].mxu0
  %v2982 = vpop.f32.mrb[0].mxu0
  %v2983 = vadd.f32 0.0, %v2982
  %v2984 = vpop.f32.mrb[0].mxu0
  %2985 = vmatprep.mubr.bf16.mxu0 0
  %2986 = vmatmul.mubr.bf16.gmra.mrb[0].mxu0 %v2937
  %v2987 = vpop.f32.mrb[0].mxu0
  %v2988 = vadd.f32 0.0, %v2987
  %v2989 = vpop.f32.mrb[0].mxu0
  %v2990 = vpop.f32.mrb[0].mxu0
  %v2991 = vadd.f32 0.0, %v2990
  %v2992 = vpop.f32.mrb[0].mxu0
  %2993 = vdwg.mxu0
  %v2994 = vmul.f32 %v2980, 0.35355338
  %v2995 = vmul.f32 %v2983, 0.35355338
  %v2996 = vmul.f32 %v2988, 0.35355338
  %v2997 = vmul.f32 %v2991, 0.35355338
  %v2998 = vsel %vm250, %v2994, -inf
  %2999 = vmax.xlane.f32.xlu0 %v2998
  %v3000 = vpop.xlane.xlu0 %2999
  %v3001 = vsel %vm250, %v2995, -inf
  %3002 = vmax.xlane.f32.xlu0 %v3001
  %v3003 = vpop.xlane.xlu0 %3002
  %v3004 = vsel %vm250, %v2996, -inf
  %3005 = vmax.xlane.f32.xlu0 %v3004
  %v3006 = vpop.xlane.xlu0 %3005
  %v3007 = vsel %vm250, %v2997, -inf
  %3008 = vmax.xlane.f32.xlu0 %v3007
  %v3009 = vpop.xlane.xlu0 %3008
  %v3010 = vsub.f32 %v2994, %v3000
  %v3011 = vsub.f32 %v2995, %v3003
  %v3012 = vsub.f32 %v2996, %v3006
  %v3013 = vsub.f32 %v2997, %v3009
  %v3014 = vmul.f32 %v3010, 1.442695
  %v3015 = vpow.pop %v3014
  %v3016 = vmul.f32 %v3011, 1.442695
  %v3017 = vpow.pop %v3016
  %v3018 = vmul.f32 %v3012, 1.442695
  %v3019 = vpow.pop %v3018
  %v3020 = vmul.f32 %v3013, 1.442695
  %v3021 = vpow.pop %v3020
  %v3022 = vsel %vm250, %v3015, 0.0
  %3023 = vadd.xlane.f32.xlu0 %v3022
  %v3024 = vpop.xlane.xlu0 %3023
  %v3025 = vsel %vm250, %v3017, 0.0
  %3026 = vadd.xlane.f32.xlu0 %v3025
  %v3027 = vpop.xlane.xlu0 %3026
  %v3028 = vsel %vm250, %v3019, 0.0
  %3029 = vadd.xlane.f32.xlu0 %v3028
  %v3030 = vpop.xlane.xlu0 %3029
  %v3031 = vsel %vm250, %v3021, 0.0
  %3032 = vadd.xlane.f32.xlu0 %v3031
  %v3033 = vpop.xlane.xlu0 %3032
  %v3034 = vrcp.pop %v3024
  %v3035 = vmul.f32 %v3015, %v3034
  %v3036 = vrcp.pop %v3027
  %v3037 = vmul.f32 %v3017, %v3036
  %v3038 = vrcp.pop %v3030
  %v3039 = vmul.f32 %v3019, %v3038
  %v3040 = vrcp.pop %v3033
  %v3041 = vmul.f32 %v3021, %v3040
  %v3042 = vpack.c.bf16 %v3037, %v3035
  %v3043 = vpack.c.bf16 %v3041, %v3039
  %3044 = vrot.lane.b32.xlu0 %v2565, 48
  %v3045 = vpop.permute.xlu0 %3044
  %3046 = vrot.lane.b32.xlu0 %v2566, 48
  %v3047 = vpop.permute.xlu0 %3046
  %v3051 = vsel %vm250, %v3042, 0
  %v3054 = vsel %vm250, %v3043, 0
  %3056 = vmatprep.subr.bf16.mxu0 0
  %3057 = vmatpush1.bf16.msra.mxu0 %v3045
  %3058 = vmatprep.subr.bf16.mxu0 0
  %3059 = vmatpush1.bf16.msra.mxu0 %v3047
  %3060 = vmatprep.subr.bf16.mxu0 0
  %3061 = vmatpush1.bf16.msra.mxu0 0
  %3062 = vmatprep.subr.bf16.mxu0 0
  %3063 = vmatpush1.bf16.msra.mxu0 0
  %3064 = vmatprep.subr.bf16.mxu0 0
  %3065 = vmatpush1.bf16.msra.mxu0 0
  %3066 = vmatprep.subr.bf16.mxu0 0
  %3067 = vmatpush1.bf16.msra.mxu0 0
  %3068 = vmatprep.subr.bf16.mxu0 0
  %3069 = vmatpush1.bf16.msra.mxu0 0
  %3070 = vmatprep.subr.bf16.mxu0 0
  %3071 = vmatpush1.bf16.msra.mxu0 0
  %3072 = vmatprep.subr.bf16.mxu0 0
  %3073 = vmatpush1.bf16.msra.mxu0 0
  %3074 = vmatprep.subr.bf16.mxu0 0
  %3075 = vmatpush1.bf16.msra.mxu0 0
  %3076 = vmatprep.subr.bf16.mxu0 0
  %3077 = vmatpush1.bf16.msra.mxu0 0
  %3078 = vmatprep.subr.bf16.mxu0 0
  %3079 = vmatpush1.bf16.msra.mxu0 0
  %3080 = vmatprep.subr.bf16.mxu0 0
  %3081 = vmatpush1.bf16.msra.mxu0 0
  %3082 = vmatprep.subr.bf16.mxu0 0
  %3083 = vmatpush1.bf16.msra.mxu0 0
  %3084 = vmatprep.subr.bf16.mxu0 0
  %3085 = vmatpush1.bf16.msra.mxu0 0
  %3086 = vmatprep.subr.bf16.mxu0 0
  %3087 = vmatpush1.bf16.msra.mxu0 0
  %3088 = vmatprep.mubr.bf16.mxu0 0
  %3089 = vmatmul.mubr.bf16.gmra.mrb[0].mxu0 %v3051
  %v3090 = vpop.f32.mrb[0].mxu0
  %v3091 = vadd.f32 0.0, %v3090
  %v3092 = vpop.f32.mrb[0].mxu0
  %v3093 = vpop.f32.mrb[0].mxu0
  %v3094 = vadd.f32 0.0, %v3093
  %v3095 = vpop.f32.mrb[0].mxu0
  %3096 = vmatprep.mubr.bf16.mxu0 0
  %3097 = vmatmul.mubr.bf16.gmra.mrb[0].mxu0 %v3054
  %v3098 = vpop.f32.mrb[0].mxu0
  %v3099 = vadd.f32 0.0, %v3098
  %v3100 = vpop.f32.mrb[0].mxu0
  %v3101 = vpop.f32.mrb[0].mxu0
  %v3102 = vadd.f32 0.0, %v3101
  %v3103 = vpop.f32.mrb[0].mxu0
  %3104 = vdwg.mxu0
  %3105 = vrot.lane.b32.xlu0 %v2565, 104
  %v3106 = vpop.permute.xlu0 %3105
  %3107 = vrot.lane.b32.xlu0 %v2566, 104
  %v3108 = vpop.permute.xlu0 %3107
  %3109 = vrot.lane.b32.xlu0 %v2565, 72
  %v3110 = vpop.permute.xlu0 %3109
  %3111 = vrot.lane.b32.xlu0 %v2566, 72
  %v3112 = vpop.permute.xlu0 %3111
  %v3114 = vsel %vm336, %v3106, 0
  %v3117 = vsel %vm336, %v3108, 0
  %v3120 = vsel %vm336, %v3110, 0
  %v3123 = vsel %vm336, %v3112, 0
  %3125 = vmatprep.subr.bf16.mxu0 0
  %3126 = vmatpush1.bf16.xpose.msra.mxu0 %v3120
  %3127 = vmatprep.subr.bf16.mxu0 0
  %3128 = vmatpush1.bf16.xpose.msra.mxu0 %v3123
  %3129 = vmatprep.subr.bf16.mxu0 0
  %3130 = vmatpush1.bf16.xpose.msra.mxu0 0
  %3131 = vmatprep.subr.bf16.mxu0 0
  %3132 = vmatpush1.bf16.xpose.msra.mxu0 0
  %3133 = vmatprep.subr.bf16.mxu0 0
  %3134 = vmatpush1.bf16.xpose.msra.mxu0 0
  %3135 = vmatprep.subr.bf16.mxu0 0
  %3136 = vmatpush1.bf16.xpose.msra.mxu0 0
  %3137 = vmatprep.subr.bf16.mxu0 0
  %3138 = vmatpush1.bf16.xpose.msra.mxu0 0
  %3139 = vmatprep.subr.bf16.mxu0 0
  %3140 = vmatpush1.bf16.xpose.msra.mxu0 0
  %3141 = vmatprep.subr.bf16.mxu0 0
  %3142 = vmatpush1.bf16.xpose.msra.mxu0 0
  %3143 = vmatprep.subr.bf16.mxu0 0
  %3144 = vmatpush1.bf16.xpose.msra.mxu0 0
  %3145 = vmatprep.subr.bf16.mxu0 0
  %3146 = vmatpush1.bf16.xpose.msra.mxu0 0
  %3147 = vmatprep.subr.bf16.mxu0 0
  %3148 = vmatpush1.bf16.xpose.msra.mxu0 0
  %3149 = vmatprep.subr.bf16.mxu0 0
  %3150 = vmatpush1.bf16.xpose.msra.mxu0 0
  %3151 = vmatprep.subr.bf16.mxu0 0
  %3152 = vmatpush1.bf16.xpose.msra.mxu0 0
  %3153 = vmatprep.subr.bf16.mxu0 0
  %3154 = vmatpush1.bf16.xpose.msra.mxu0 0
  %3155 = vmatprep.subr.bf16.mxu0 0
  %3156 = vmatpush1.bf16.xpose.msra.mxu0 0
  %3157 = vmatprep.mubr.bf16.mxu0 0
  %3158 = vmatmul.mubr.bf16.gmra.mrb[0].mxu0 %v3114
  %v3159 = vpop.f32.mrb[0].mxu0
  %v3160 = vadd.f32 0.0, %v3159
  %v3161 = vpop.f32.mrb[0].mxu0
  %v3162 = vpop.f32.mrb[0].mxu0
  %v3163 = vadd.f32 0.0, %v3162
  %v3164 = vpop.f32.mrb[0].mxu0
  %3165 = vmatprep.mubr.bf16.mxu0 0
  %3166 = vmatmul.mubr.bf16.gmra.mrb[0].mxu0 %v3117
  %v3167 = vpop.f32.mrb[0].mxu0
  %v3168 = vadd.f32 0.0, %v3167
  %v3169 = vpop.f32.mrb[0].mxu0
  %v3170 = vpop.f32.mrb[0].mxu0
  %v3171 = vadd.f32 0.0, %v3170
  %v3172 = vpop.f32.mrb[0].mxu0
  %3173 = vdwg.mxu0
  %v3174 = vmul.f32 %v3160, 0.35355338
  %v3175 = vmul.f32 %v3163, 0.35355338
  %v3176 = vmul.f32 %v3168, 0.35355338
  %v3177 = vmul.f32 %v3171, 0.35355338
  %v3178 = vsel %vm250, %v3174, -inf
  %3179 = vmax.xlane.f32.xlu0 %v3178
  %v3180 = vpop.xlane.xlu0 %3179
  %v3181 = vsel %vm250, %v3175, -inf
  %3182 = vmax.xlane.f32.xlu0 %v3181
  %v3183 = vpop.xlane.xlu0 %3182
  %v3184 = vsel %vm250, %v3176, -inf
  %3185 = vmax.xlane.f32.xlu0 %v3184
  %v3186 = vpop.xlane.xlu0 %3185
  %v3187 = vsel %vm250, %v3177, -inf
  %3188 = vmax.xlane.f32.xlu0 %v3187
  %v3189 = vpop.xlane.xlu0 %3188
  %v3190 = vsub.f32 %v3174, %v3180
  %v3191 = vsub.f32 %v3175, %v3183
  %v3192 = vsub.f32 %v3176, %v3186
  %v3193 = vsub.f32 %v3177, %v3189
  %v3194 = vmul.f32 %v3190, 1.442695
  %v3195 = vpow.pop %v3194
  %v3196 = vmul.f32 %v3191, 1.442695
  %v3197 = vpow.pop %v3196
  %v3198 = vmul.f32 %v3192, 1.442695
  %v3199 = vpow.pop %v3198
  %v3200 = vmul.f32 %v3193, 1.442695
  %v3201 = vpow.pop %v3200
  %v3202 = vsel %vm250, %v3195, 0.0
  %3203 = vadd.xlane.f32.xlu0 %v3202
  %v3204 = vpop.xlane.xlu0 %3203
  %v3205 = vsel %vm250, %v3197, 0.0
  %3206 = vadd.xlane.f32.xlu0 %v3205
  %v3207 = vpop.xlane.xlu0 %3206
  %v3208 = vsel %vm250, %v3199, 0.0
  %3209 = vadd.xlane.f32.xlu0 %v3208
  %v3210 = vpop.xlane.xlu0 %3209
  %v3211 = vsel %vm250, %v3201, 0.0
  %3212 = vadd.xlane.f32.xlu0 %v3211
  %v3213 = vpop.xlane.xlu0 %3212
  %v3214 = vrcp.pop %v3204
  %v3215 = vmul.f32 %v3195, %v3214
  %v3216 = vrcp.pop %v3207
  %v3217 = vmul.f32 %v3197, %v3216
  %v3218 = vrcp.pop %v3210
  %v3219 = vmul.f32 %v3199, %v3218
  %v3220 = vrcp.pop %v3213
  %v3221 = vmul.f32 %v3201, %v3220
  %v3222 = vpack.c.bf16 %v3217, %v3215
  %v3223 = vpack.c.bf16 %v3221, %v3219
  %3224 = vrot.lane.b32.xlu0 %v2565, 40
  %v3225 = vpop.permute.xlu0 %3224
  %3226 = vrot.lane.b32.xlu0 %v2566, 40
  %v3227 = vpop.permute.xlu0 %3226
  %v3231 = vsel %vm250, %v3222, 0
  %v3234 = vsel %vm250, %v3223, 0
  %3236 = vmatprep.subr.bf16.mxu0 0
  %3237 = vmatpush1.bf16.msra.mxu0 %v3225
  %3238 = vmatprep.subr.bf16.mxu0 0
  %3239 = vmatpush1.bf16.msra.mxu0 %v3227
  %3240 = vmatprep.subr.bf16.mxu0 0
  %3241 = vmatpush1.bf16.msra.mxu0 0
  %3242 = vmatprep.subr.bf16.mxu0 0
  %3243 = vmatpush1.bf16.msra.mxu0 0
  %3244 = vmatprep.subr.bf16.mxu0 0
  %3245 = vmatpush1.bf16.msra.mxu0 0
  %3246 = vmatprep.subr.bf16.mxu0 0
  %3247 = vmatpush1.bf16.msra.mxu0 0
  %3248 = vmatprep.subr.bf16.mxu0 0
  %3249 = vmatpush1.bf16.msra.mxu0 0
  %3250 = vmatprep.subr.bf16.mxu0 0
  %3251 = vmatpush1.bf16.msra.mxu0 0
  %3252 = vmatprep.subr.bf16.mxu0 0
  %3253 = vmatpush1.bf16.msra.mxu0 0
  %3254 = vmatprep.subr.bf16.mxu0 0
  %3255 = vmatpush1.bf16.msra.mxu0 0
  %3256 = vmatprep.subr.bf16.mxu0 0
  %3257 = vmatpush1.bf16.msra.mxu0 0
  %3258 = vmatprep.subr.bf16.mxu0 0
  %3259 = vmatpush1.bf16.msra.mxu0 0
  %3260 = vmatprep.subr.bf16.mxu0 0
  %3261 = vmatpush1.bf16.msra.mxu0 0
  %3262 = vmatprep.subr.bf16.mxu0 0
  %3263 = vmatpush1.bf16.msra.mxu0 0
  %3264 = vmatprep.subr.bf16.mxu0 0
  %3265 = vmatpush1.bf16.msra.mxu0 0
  %3266 = vmatprep.subr.bf16.mxu0 0
  %3267 = vmatpush1.bf16.msra.mxu0 0
  %3268 = vmatprep.mubr.bf16.mxu0 0
  %3269 = vmatmul.mubr.bf16.gmra.mrb[0].mxu0 %v3231
  %v3270 = vpop.f32.mrb[0].mxu0
  %v3271 = vadd.f32 0.0, %v3270
  %v3272 = vpop.f32.mrb[0].mxu0
  %v3273 = vpop.f32.mrb[0].mxu0
  %v3274 = vadd.f32 0.0, %v3273
  %v3275 = vpop.f32.mrb[0].mxu0
  %3276 = vmatprep.mubr.bf16.mxu0 0
  %3277 = vmatmul.mubr.bf16.gmra.mrb[0].mxu0 %v3234
  %v3278 = vpop.f32.mrb[0].mxu0
  %v3279 = vadd.f32 0.0, %v3278
  %v3280 = vpop.f32.mrb[0].mxu0
  %v3281 = vpop.f32.mrb[0].mxu0
  %v3282 = vadd.f32 0.0, %v3281
  %v3283 = vpop.f32.mrb[0].mxu0
  %3284 = vdwg.mxu0
  %3289 = vrot.lane.b32.xlu0 %v2911, 8
  %v3290 = vpop.permute.xlu0 %3289
  %3291 = vrot.lane.b32.xlu0 %v2914, 8
  %v3292 = vpop.permute.xlu0 %3291
  %3293 = vrot.lane.b32.xlu0 %v2919, 8
  %v3294 = vpop.permute.xlu0 %3293
  %3295 = vrot.lane.b32.xlu0 %v2922, 8
  %v3296 = vpop.permute.xlu0 %3295
  %3305 = vrot.lane.b32.xlu0 %v3091, 16
  %v3306 = vpop.permute.xlu0 %3305
  %3307 = vrot.lane.b32.xlu0 %v3094, 16
  %v3308 = vpop.permute.xlu0 %3307
  %3309 = vrot.lane.b32.xlu0 %v3099, 16
  %v3310 = vpop.permute.xlu0 %3309
  %3311 = vrot.lane.b32.xlu0 %v3102, 16
  %v3312 = vpop.permute.xlu0 %3311
  %3321 = vrot.lane.b32.xlu0 %v3271, 24
  %v3322 = vpop.permute.xlu0 %3321
  %3323 = vrot.lane.b32.xlu0 %v3274, 24
  %v3324 = vpop.permute.xlu0 %3323
  %3325 = vrot.lane.b32.xlu0 %v3279, 24
  %v3326 = vpop.permute.xlu0 %3325
  %3327 = vrot.lane.b32.xlu0 %v3282, 24
  %v3328 = vpop.permute.xlu0 %3327
  %v3333 = vsel %vm336, %v2731, %v3290
  %v3334 = vsel %vm336, %v2734, %v3292
  %v3335 = vsel %vm336, %v2739, %v3294
  %v3336 = vsel %vm336, %v2742, %v3296
  %v3337 = vsel %vm112, %v3333, %v3306
  %v3338 = vsel %vm112, %v3334, %v3308
  %v3339 = vsel %vm112, %v3335, %v3310
  %v3340 = vsel %vm112, %v3336, %v3312
  %v3341 = vsel %vm1105, %v3337, %v3322
  %v3342 = vsel %vm1105, %v3338, %v3324
  %v3343 = vsel %vm1105, %v3339, %v3326
  %v3344 = vsel %vm1105, %v3340, %v3328
  %v3345 = vpack.c.bf16 %v2554, %v2551
  %v3346 = vpack.c.bf16 %v2562, %v2559
  %3349 = vrot.lane.b32.xlu0 %v3345, 96
  %v3350 = vpop.permute.xlu0 %3349
  %3351 = vrot.lane.b32.xlu0 %v3346, 96
  %v3352 = vpop.permute.xlu0 %3351
  %v3354 = vsel %vm336, %v3345, 0
  %v3357 = vsel %vm336, %v3346, 0
  %v3360 = vsel %vm336, %v3350, 0
  %v3363 = vsel %vm336, %v3352, 0
  %3365 = vmatprep.subr.bf16.mxu0 0
  %3366 = vmatpush1.bf16.xpose.msra.mxu0 %v3360
  %3367 = vmatprep.subr.bf16.mxu0 0
  %3368 = vmatpush1.bf16.xpose.msra.mxu0 %v3363
  %3369 = vmatprep.subr.bf16.mxu0 0
  %3370 = vmatpush1.bf16.xpose.msra.mxu0 0
  %3371 = vmatprep.subr.bf16.mxu0 0
  %3372 = vmatpush1.bf16.xpose.msra.mxu0 0
  %3373 = vmatprep.subr.bf16.mxu0 0
  %3374 = vmatpush1.bf16.xpose.msra.mxu0 0
  %3375 = vmatprep.subr.bf16.mxu0 0
  %3376 = vmatpush1.bf16.xpose.msra.mxu0 0
  %3377 = vmatprep.subr.bf16.mxu0 0
  %3378 = vmatpush1.bf16.xpose.msra.mxu0 0
  %3379 = vmatprep.subr.bf16.mxu0 0
  %3380 = vmatpush1.bf16.xpose.msra.mxu0 0
  %3381 = vmatprep.subr.bf16.mxu0 0
  %3382 = vmatpush1.bf16.xpose.msra.mxu0 0
  %3383 = vmatprep.subr.bf16.mxu0 0
  %3384 = vmatpush1.bf16.xpose.msra.mxu0 0
  %3385 = vmatprep.subr.bf16.mxu0 0
  %3386 = vmatpush1.bf16.xpose.msra.mxu0 0
  %3387 = vmatprep.subr.bf16.mxu0 0
  %3388 = vmatpush1.bf16.xpose.msra.mxu0 0
  %3389 = vmatprep.subr.bf16.mxu0 0
  %3390 = vmatpush1.bf16.xpose.msra.mxu0 0
  %3391 = vmatprep.subr.bf16.mxu0 0
  %3392 = vmatpush1.bf16.xpose.msra.mxu0 0
  %3393 = vmatprep.subr.bf16.mxu0 0
  %3394 = vmatpush1.bf16.xpose.msra.mxu0 0
  %3395 = vmatprep.subr.bf16.mxu0 0
  %3396 = vmatpush1.bf16.xpose.msra.mxu0 0
  %3397 = vmatprep.mubr.bf16.mxu0 0
  %3398 = vmatmul.mubr.bf16.gmra.mrb[0].mxu0 %v3354
  %v3399 = vpop.f32.mrb[0].mxu0
  %v3400 = vadd.f32 0.0, %v3399
  %v3401 = vpop.f32.mrb[0].mxu0
  %v3402 = vpop.f32.mrb[0].mxu0
  %v3403 = vadd.f32 0.0, %v3402
  %v3404 = vpop.f32.mrb[0].mxu0
  %3405 = vmatprep.mubr.bf16.mxu0 0
  %3406 = vmatmul.mubr.bf16.gmra.mrb[0].mxu0 %v3357
  %v3407 = vpop.f32.mrb[0].mxu0
  %v3408 = vadd.f32 0.0, %v3407
  %v3409 = vpop.f32.mrb[0].mxu0
  %v3410 = vpop.f32.mrb[0].mxu0
  %v3411 = vadd.f32 0.0, %v3410
  %v3412 = vpop.f32.mrb[0].mxu0
  %3413 = vdwg.mxu0
  %v3414 = vmul.f32 %v3400, 0.35355338
  %v3415 = vmul.f32 %v3403, 0.35355338
  %v3416 = vmul.f32 %v3408, 0.35355338
  %v3417 = vmul.f32 %v3411, 0.35355338
  %v3418 = vsel %vm250, %v3414, -inf
  %3419 = vmax.xlane.f32.xlu0 %v3418
  %v3420 = vpop.xlane.xlu0 %3419
  %v3421 = vsel %vm250, %v3415, -inf
  %3422 = vmax.xlane.f32.xlu0 %v3421
  %v3423 = vpop.xlane.xlu0 %3422
  %v3424 = vsel %vm250, %v3416, -inf
  %3425 = vmax.xlane.f32.xlu0 %v3424
  %v3426 = vpop.xlane.xlu0 %3425
  %v3427 = vsel %vm250, %v3417, -inf
  %3428 = vmax.xlane.f32.xlu0 %v3427
  %v3429 = vpop.xlane.xlu0 %3428
  %v3430 = vsub.f32 %v3414, %v3420
  %v3431 = vsub.f32 %v3415, %v3423
  %v3432 = vsub.f32 %v3416, %v3426
  %v3433 = vsub.f32 %v3417, %v3429
  %v3434 = vmul.f32 %v3430, 1.442695
  %v3435 = vpow.pop %v3434
  %v3436 = vmul.f32 %v3431, 1.442695
  %v3437 = vpow.pop %v3436
  %v3438 = vmul.f32 %v3432, 1.442695
  %v3439 = vpow.pop %v3438
  %v3440 = vmul.f32 %v3433, 1.442695
  %v3441 = vpow.pop %v3440
  %v3442 = vsel %vm250, %v3435, 0.0
  %3443 = vadd.xlane.f32.xlu0 %v3442
  %v3444 = vpop.xlane.xlu0 %3443
  %v3445 = vsel %vm250, %v3437, 0.0
  %3446 = vadd.xlane.f32.xlu0 %v3445
  %v3447 = vpop.xlane.xlu0 %3446
  %v3448 = vsel %vm250, %v3439, 0.0
  %3449 = vadd.xlane.f32.xlu0 %v3448
  %v3450 = vpop.xlane.xlu0 %3449
  %v3451 = vsel %vm250, %v3441, 0.0
  %3452 = vadd.xlane.f32.xlu0 %v3451
  %v3453 = vpop.xlane.xlu0 %3452
  %v3454 = vrcp.pop %v3444
  %v3455 = vmul.f32 %v3435, %v3454
  %v3456 = vrcp.pop %v3447
  %v3457 = vmul.f32 %v3437, %v3456
  %v3458 = vrcp.pop %v3450
  %v3459 = vmul.f32 %v3439, %v3458
  %v3460 = vrcp.pop %v3453
  %v3461 = vmul.f32 %v3441, %v3460
  %v3462 = vpack.c.bf16 %v3457, %v3455
  %v3463 = vpack.c.bf16 %v3461, %v3459
  %3464 = vrot.lane.b32.xlu0 %v3345, 64
  %v3465 = vpop.permute.xlu0 %3464
  %3466 = vrot.lane.b32.xlu0 %v3346, 64
  %v3467 = vpop.permute.xlu0 %3466
  %v3471 = vsel %vm250, %v3462, 0
  %v3474 = vsel %vm250, %v3463, 0
  %3476 = vmatprep.subr.bf16.mxu0 0
  %3477 = vmatpush1.bf16.msra.mxu0 %v3465
  %3478 = vmatprep.subr.bf16.mxu0 0
  %3479 = vmatpush1.bf16.msra.mxu0 %v3467
  %3480 = vmatprep.subr.bf16.mxu0 0
  %3481 = vmatpush1.bf16.msra.mxu0 0
  %3482 = vmatprep.subr.bf16.mxu0 0
  %3483 = vmatpush1.bf16.msra.mxu0 0
  %3484 = vmatprep.subr.bf16.mxu0 0
  %3485 = vmatpush1.bf16.msra.mxu0 0
  %3486 = vmatprep.subr.bf16.mxu0 0
  %3487 = vmatpush1.bf16.msra.mxu0 0
  %3488 = vmatprep.subr.bf16.mxu0 0
  %3489 = vmatpush1.bf16.msra.mxu0 0
  %3490 = vmatprep.subr.bf16.mxu0 0
  %3491 = vmatpush1.bf16.msra.mxu0 0
  %3492 = vmatprep.subr.bf16.mxu0 0
  %3493 = vmatpush1.bf16.msra.mxu0 0
  %3494 = vmatprep.subr.bf16.mxu0 0
  %3495 = vmatpush1.bf16.msra.mxu0 0
  %3496 = vmatprep.subr.bf16.mxu0 0
  %3497 = vmatpush1.bf16.msra.mxu0 0
  %3498 = vmatprep.subr.bf16.mxu0 0
  %3499 = vmatpush1.bf16.msra.mxu0 0
  %3500 = vmatprep.subr.bf16.mxu0 0
  %3501 = vmatpush1.bf16.msra.mxu0 0
  %3502 = vmatprep.subr.bf16.mxu0 0
  %3503 = vmatpush1.bf16.msra.mxu0 0
  %3504 = vmatprep.subr.bf16.mxu0 0
  %3505 = vmatpush1.bf16.msra.mxu0 0
  %3506 = vmatprep.subr.bf16.mxu0 0
  %3507 = vmatpush1.bf16.msra.mxu0 0
  %3508 = vmatprep.mubr.bf16.mxu0 0
  %3509 = vmatmul.mubr.bf16.gmra.mrb[0].mxu0 %v3471
  %v3510 = vpop.f32.mrb[0].mxu0
  %v3511 = vadd.f32 0.0, %v3510
  %v3512 = vpop.f32.mrb[0].mxu0
  %v3513 = vpop.f32.mrb[0].mxu0
  %v3514 = vadd.f32 0.0, %v3513
  %v3515 = vpop.f32.mrb[0].mxu0
  %3516 = vmatprep.mubr.bf16.mxu0 0
  %3517 = vmatmul.mubr.bf16.gmra.mrb[0].mxu0 %v3474
  %v3518 = vpop.f32.mrb[0].mxu0
  %v3519 = vadd.f32 0.0, %v3518
  %v3520 = vpop.f32.mrb[0].mxu0
  %v3521 = vpop.f32.mrb[0].mxu0
  %v3522 = vadd.f32 0.0, %v3521
  %v3523 = vpop.f32.mrb[0].mxu0
  %3524 = vdwg.mxu0
  %3525 = vrot.lane.b32.xlu0 %v3345, 120
  %v3526 = vpop.permute.xlu0 %3525
  %3527 = vrot.lane.b32.xlu0 %v3346, 120
  %v3528 = vpop.permute.xlu0 %3527
  %3529 = vrot.lane.b32.xlu0 %v3345, 88
  %v3530 = vpop.permute.xlu0 %3529
  %3531 = vrot.lane.b32.xlu0 %v3346, 88
  %v3532 = vpop.permute.xlu0 %3531
  %v3534 = vsel %vm336, %v3526, 0
  %v3537 = vsel %vm336, %v3528, 0
  %v3540 = vsel %vm336, %v3530, 0
  %v3543 = vsel %vm336, %v3532, 0
  %3545 = vmatprep.subr.bf16.mxu0 0
  %3546 = vmatpush1.bf16.xpose.msra.mxu0 %v3540
  %3547 = vmatprep.subr.bf16.mxu0 0
  %3548 = vmatpush1.bf16.xpose.msra.mxu0 %v3543
  %3549 = vmatprep.subr.bf16.mxu0 0
  %3550 = vmatpush1.bf16.xpose.msra.mxu0 0
  %3551 = vmatprep.subr.bf16.mxu0 0
  %3552 = vmatpush1.bf16.xpose.msra.mxu0 0
  %3553 = vmatprep.subr.bf16.mxu0 0
  %3554 = vmatpush1.bf16.xpose.msra.mxu0 0
  %3555 = vmatprep.subr.bf16.mxu0 0
  %3556 = vmatpush1.bf16.xpose.msra.mxu0 0
  %3557 = vmatprep.subr.bf16.mxu0 0
  %3558 = vmatpush1.bf16.xpose.msra.mxu0 0
  %3559 = vmatprep.subr.bf16.mxu0 0
  %3560 = vmatpush1.bf16.xpose.msra.mxu0 0
  %3561 = vmatprep.subr.bf16.mxu0 0
  %3562 = vmatpush1.bf16.xpose.msra.mxu0 0
  %3563 = vmatprep.subr.bf16.mxu0 0
  %3564 = vmatpush1.bf16.xpose.msra.mxu0 0
  %3565 = vmatprep.subr.bf16.mxu0 0
  %3566 = vmatpush1.bf16.xpose.msra.mxu0 0
  %3567 = vmatprep.subr.bf16.mxu0 0
  %3568 = vmatpush1.bf16.xpose.msra.mxu0 0
  %3569 = vmatprep.subr.bf16.mxu0 0
  %3570 = vmatpush1.bf16.xpose.msra.mxu0 0
  %3571 = vmatprep.subr.bf16.mxu0 0
  %3572 = vmatpush1.bf16.xpose.msra.mxu0 0
  %3573 = vmatprep.subr.bf16.mxu0 0
  %3574 = vmatpush1.bf16.xpose.msra.mxu0 0
  %3575 = vmatprep.subr.bf16.mxu0 0
  %3576 = vmatpush1.bf16.xpose.msra.mxu0 0
  %3577 = vmatprep.mubr.bf16.mxu0 0
  %3578 = vmatmul.mubr.bf16.gmra.mrb[0].mxu0 %v3534
  %v3579 = vpop.f32.mrb[0].mxu0
  %v3580 = vadd.f32 0.0, %v3579
  %v3581 = vpop.f32.mrb[0].mxu0
  %v3582 = vpop.f32.mrb[0].mxu0
  %v3583 = vadd.f32 0.0, %v3582
  %v3584 = vpop.f32.mrb[0].mxu0
  %3585 = vmatprep.mubr.bf16.mxu0 0
  %3586 = vmatmul.mubr.bf16.gmra.mrb[0].mxu0 %v3537
  %v3587 = vpop.f32.mrb[0].mxu0
  %v3588 = vadd.f32 0.0, %v3587
  %v3589 = vpop.f32.mrb[0].mxu0
  %v3590 = vpop.f32.mrb[0].mxu0
  %v3591 = vadd.f32 0.0, %v3590
  %v3592 = vpop.f32.mrb[0].mxu0
  %3593 = vdwg.mxu0
  %v3594 = vmul.f32 %v3580, 0.35355338
  %v3595 = vmul.f32 %v3583, 0.35355338
  %v3596 = vmul.f32 %v3588, 0.35355338
  %v3597 = vmul.f32 %v3591, 0.35355338
  %v3598 = vsel %vm250, %v3594, -inf
  %3599 = vmax.xlane.f32.xlu0 %v3598
  %v3600 = vpop.xlane.xlu0 %3599
  %v3601 = vsel %vm250, %v3595, -inf
  %3602 = vmax.xlane.f32.xlu0 %v3601
  %v3603 = vpop.xlane.xlu0 %3602
  %v3604 = vsel %vm250, %v3596, -inf
  %3605 = vmax.xlane.f32.xlu0 %v3604
  %v3606 = vpop.xlane.xlu0 %3605
  %v3607 = vsel %vm250, %v3597, -inf
  %3608 = vmax.xlane.f32.xlu0 %v3607
  %v3609 = vpop.xlane.xlu0 %3608
  %v3610 = vsub.f32 %v3594, %v3600
  %v3611 = vsub.f32 %v3595, %v3603
  %v3612 = vsub.f32 %v3596, %v3606
  %v3613 = vsub.f32 %v3597, %v3609
  %v3614 = vmul.f32 %v3610, 1.442695
  %v3615 = vpow.pop %v3614
  %v3616 = vmul.f32 %v3611, 1.442695
  %v3617 = vpow.pop %v3616
  %v3618 = vmul.f32 %v3612, 1.442695
  %v3619 = vpow.pop %v3618
  %v3620 = vmul.f32 %v3613, 1.442695
  %v3621 = vpow.pop %v3620
  %v3622 = vsel %vm250, %v3615, 0.0
  %3623 = vadd.xlane.f32.xlu0 %v3622
  %v3624 = vpop.xlane.xlu0 %3623
  %v3625 = vsel %vm250, %v3617, 0.0
  %3626 = vadd.xlane.f32.xlu0 %v3625
  %v3627 = vpop.xlane.xlu0 %3626
  %v3628 = vsel %vm250, %v3619, 0.0
  %3629 = vadd.xlane.f32.xlu0 %v3628
  %v3630 = vpop.xlane.xlu0 %3629
  %v3631 = vsel %vm250, %v3621, 0.0
  %3632 = vadd.xlane.f32.xlu0 %v3631
  %v3633 = vpop.xlane.xlu0 %3632
  %v3634 = vrcp.pop %v3624
  %v3635 = vmul.f32 %v3615, %v3634
  %v3636 = vrcp.pop %v3627
  %v3637 = vmul.f32 %v3617, %v3636
  %v3638 = vrcp.pop %v3630
  %v3639 = vmul.f32 %v3619, %v3638
  %v3640 = vrcp.pop %v3633
  %v3641 = vmul.f32 %v3621, %v3640
  %v3642 = vpack.c.bf16 %v3637, %v3635
  %v3643 = vpack.c.bf16 %v3641, %v3639
  %3644 = vrot.lane.b32.xlu0 %v3345, 56
  %v3645 = vpop.permute.xlu0 %3644
  %3646 = vrot.lane.b32.xlu0 %v3346, 56
  %v3647 = vpop.permute.xlu0 %3646
  %v3651 = vsel %vm250, %v3642, 0
  %v3654 = vsel %vm250, %v3643, 0
  %3656 = vmatprep.subr.bf16.mxu0 0
  %3657 = vmatpush1.bf16.msra.mxu0 %v3645
  %3658 = vmatprep.subr.bf16.mxu0 0
  %3659 = vmatpush1.bf16.msra.mxu0 %v3647
  %3660 = vmatprep.subr.bf16.mxu0 0
  %3661 = vmatpush1.bf16.msra.mxu0 0
  %3662 = vmatprep.subr.bf16.mxu0 0
  %3663 = vmatpush1.bf16.msra.mxu0 0
  %3664 = vmatprep.subr.bf16.mxu0 0
  %3665 = vmatpush1.bf16.msra.mxu0 0
  %3666 = vmatprep.subr.bf16.mxu0 0
  %3667 = vmatpush1.bf16.msra.mxu0 0
  %3668 = vmatprep.subr.bf16.mxu0 0
  %3669 = vmatpush1.bf16.msra.mxu0 0
  %3670 = vmatprep.subr.bf16.mxu0 0
  %3671 = vmatpush1.bf16.msra.mxu0 0
  %3672 = vmatprep.subr.bf16.mxu0 0
  %3673 = vmatpush1.bf16.msra.mxu0 0
  %3674 = vmatprep.subr.bf16.mxu0 0
  %3675 = vmatpush1.bf16.msra.mxu0 0
  %3676 = vmatprep.subr.bf16.mxu0 0
  %3677 = vmatpush1.bf16.msra.mxu0 0
  %3678 = vmatprep.subr.bf16.mxu0 0
  %3679 = vmatpush1.bf16.msra.mxu0 0
  %3680 = vmatprep.subr.bf16.mxu0 0
  %3681 = vmatpush1.bf16.msra.mxu0 0
  %3682 = vmatprep.subr.bf16.mxu0 0
  %3683 = vmatpush1.bf16.msra.mxu0 0
  %3684 = vmatprep.subr.bf16.mxu0 0
  %3685 = vmatpush1.bf16.msra.mxu0 0
  %3686 = vmatprep.subr.bf16.mxu0 0
  %3687 = vmatpush1.bf16.msra.mxu0 0
  %3688 = vmatprep.mubr.bf16.mxu0 0
  %3689 = vmatmul.mubr.bf16.gmra.mrb[0].mxu0 %v3651
  %v3690 = vpop.f32.mrb[0].mxu0
  %v3691 = vadd.f32 0.0, %v3690
  %v3692 = vpop.f32.mrb[0].mxu0
  %v3693 = vpop.f32.mrb[0].mxu0
  %v3694 = vadd.f32 0.0, %v3693
  %v3695 = vpop.f32.mrb[0].mxu0
  %3696 = vmatprep.mubr.bf16.mxu0 0
  %3697 = vmatmul.mubr.bf16.gmra.mrb[0].mxu0 %v3654
  %v3698 = vpop.f32.mrb[0].mxu0
  %v3699 = vadd.f32 0.0, %v3698
  %v3700 = vpop.f32.mrb[0].mxu0
  %v3701 = vpop.f32.mrb[0].mxu0
  %v3702 = vadd.f32 0.0, %v3701
  %v3703 = vpop.f32.mrb[0].mxu0
  %3704 = vdwg.mxu0
  %3705 = vrot.lane.b32.xlu0 %v3345, 112
  %v3706 = vpop.permute.xlu0 %3705
  %3707 = vrot.lane.b32.xlu0 %v3346, 112
  %v3708 = vpop.permute.xlu0 %3707
  %3709 = vrot.lane.b32.xlu0 %v3345, 80
  %v3710 = vpop.permute.xlu0 %3709
  %3711 = vrot.lane.b32.xlu0 %v3346, 80
  %v3712 = vpop.permute.xlu0 %3711
  %v3714 = vsel %vm336, %v3706, 0
  %v3717 = vsel %vm336, %v3708, 0
  %v3720 = vsel %vm336, %v3710, 0
  %v3723 = vsel %vm336, %v3712, 0
  %3725 = vmatprep.subr.bf16.mxu0 0
  %3726 = vmatpush1.bf16.xpose.msra.mxu0 %v3720
  %3727 = vmatprep.subr.bf16.mxu0 0
  %3728 = vmatpush1.bf16.xpose.msra.mxu0 %v3723
  %3729 = vmatprep.subr.bf16.mxu0 0
  %3730 = vmatpush1.bf16.xpose.msra.mxu0 0
  %3731 = vmatprep.subr.bf16.mxu0 0
  %3732 = vmatpush1.bf16.xpose.msra.mxu0 0
  %3733 = vmatprep.subr.bf16.mxu0 0
  %3734 = vmatpush1.bf16.xpose.msra.mxu0 0
  %3735 = vmatprep.subr.bf16.mxu0 0
  %3736 = vmatpush1.bf16.xpose.msra.mxu0 0
  %3737 = vmatprep.subr.bf16.mxu0 0
  %3738 = vmatpush1.bf16.xpose.msra.mxu0 0
  %3739 = vmatprep.subr.bf16.mxu0 0
  %3740 = vmatpush1.bf16.xpose.msra.mxu0 0
  %3741 = vmatprep.subr.bf16.mxu0 0
  %3742 = vmatpush1.bf16.xpose.msra.mxu0 0
  %3743 = vmatprep.subr.bf16.mxu0 0
  %3744 = vmatpush1.bf16.xpose.msra.mxu0 0
  %3745 = vmatprep.subr.bf16.mxu0 0
  %3746 = vmatpush1.bf16.xpose.msra.mxu0 0
  %3747 = vmatprep.subr.bf16.mxu0 0
  %3748 = vmatpush1.bf16.xpose.msra.mxu0 0
  %3749 = vmatprep.subr.bf16.mxu0 0
  %3750 = vmatpush1.bf16.xpose.msra.mxu0 0
  %3751 = vmatprep.subr.bf16.mxu0 0
  %3752 = vmatpush1.bf16.xpose.msra.mxu0 0
  %3753 = vmatprep.subr.bf16.mxu0 0
  %3754 = vmatpush1.bf16.xpose.msra.mxu0 0
  %3755 = vmatprep.subr.bf16.mxu0 0
  %3756 = vmatpush1.bf16.xpose.msra.mxu0 0
  %3757 = vmatprep.mubr.bf16.mxu0 0
  %3758 = vmatmul.mubr.bf16.gmra.mrb[0].mxu0 %v3714
  %v3759 = vpop.f32.mrb[0].mxu0
  %v3760 = vadd.f32 0.0, %v3759
  %v3761 = vpop.f32.mrb[0].mxu0
  %v3762 = vpop.f32.mrb[0].mxu0
  %v3763 = vadd.f32 0.0, %v3762
  %v3764 = vpop.f32.mrb[0].mxu0
  %3765 = vmatprep.mubr.bf16.mxu0 0
  %3766 = vmatmul.mubr.bf16.gmra.mrb[0].mxu0 %v3717
  %v3767 = vpop.f32.mrb[0].mxu0
  %v3768 = vadd.f32 0.0, %v3767
  %v3769 = vpop.f32.mrb[0].mxu0
  %v3770 = vpop.f32.mrb[0].mxu0
  %v3771 = vadd.f32 0.0, %v3770
  %v3772 = vpop.f32.mrb[0].mxu0
  %3773 = vdwg.mxu0
  %v3774 = vmul.f32 %v3760, 0.35355338
  %v3775 = vmul.f32 %v3763, 0.35355338
  %v3776 = vmul.f32 %v3768, 0.35355338
  %v3777 = vmul.f32 %v3771, 0.35355338
  %v3778 = vsel %vm250, %v3774, -inf
  %3779 = vmax.xlane.f32.xlu0 %v3778
  %v3780 = vpop.xlane.xlu0 %3779
  %v3781 = vsel %vm250, %v3775, -inf
  %3782 = vmax.xlane.f32.xlu0 %v3781
  %v3783 = vpop.xlane.xlu0 %3782
  %v3784 = vsel %vm250, %v3776, -inf
  %3785 = vmax.xlane.f32.xlu0 %v3784
  %v3786 = vpop.xlane.xlu0 %3785
  %v3787 = vsel %vm250, %v3777, -inf
  %3788 = vmax.xlane.f32.xlu0 %v3787
  %v3789 = vpop.xlane.xlu0 %3788
  %v3790 = vsub.f32 %v3774, %v3780
  %v3791 = vsub.f32 %v3775, %v3783
  %v3792 = vsub.f32 %v3776, %v3786
  %v3793 = vsub.f32 %v3777, %v3789
  %v3794 = vmul.f32 %v3790, 1.442695
  %v3795 = vpow.pop %v3794
  %v3796 = vmul.f32 %v3791, 1.442695
  %v3797 = vpow.pop %v3796
  %v3798 = vmul.f32 %v3792, 1.442695
  %v3799 = vpow.pop %v3798
  %v3800 = vmul.f32 %v3793, 1.442695
  %v3801 = vpow.pop %v3800
  %v3802 = vsel %vm250, %v3795, 0.0
  %3803 = vadd.xlane.f32.xlu0 %v3802
  %v3804 = vpop.xlane.xlu0 %3803
  %v3805 = vsel %vm250, %v3797, 0.0
  %3806 = vadd.xlane.f32.xlu0 %v3805
  %v3807 = vpop.xlane.xlu0 %3806
  %v3808 = vsel %vm250, %v3799, 0.0
  %3809 = vadd.xlane.f32.xlu0 %v3808
  %v3810 = vpop.xlane.xlu0 %3809
  %v3811 = vsel %vm250, %v3801, 0.0
  %3812 = vadd.xlane.f32.xlu0 %v3811
  %v3813 = vpop.xlane.xlu0 %3812
  %v3814 = vrcp.pop %v3804
  %v3815 = vmul.f32 %v3795, %v3814
  %v3816 = vrcp.pop %v3807
  %v3817 = vmul.f32 %v3797, %v3816
  %v3818 = vrcp.pop %v3810
  %v3819 = vmul.f32 %v3799, %v3818
  %v3820 = vrcp.pop %v3813
  %v3821 = vmul.f32 %v3801, %v3820
  %v3822 = vpack.c.bf16 %v3817, %v3815
  %v3823 = vpack.c.bf16 %v3821, %v3819
  %3824 = vrot.lane.b32.xlu0 %v3345, 48
  %v3825 = vpop.permute.xlu0 %3824
  %3826 = vrot.lane.b32.xlu0 %v3346, 48
  %v3827 = vpop.permute.xlu0 %3826
  %v3831 = vsel %vm250, %v3822, 0
  %v3834 = vsel %vm250, %v3823, 0
  %3836 = vmatprep.subr.bf16.mxu0 0
  %3837 = vmatpush1.bf16.msra.mxu0 %v3825
  %3838 = vmatprep.subr.bf16.mxu0 0
  %3839 = vmatpush1.bf16.msra.mxu0 %v3827
  %3840 = vmatprep.subr.bf16.mxu0 0
  %3841 = vmatpush1.bf16.msra.mxu0 0
  %3842 = vmatprep.subr.bf16.mxu0 0
  %3843 = vmatpush1.bf16.msra.mxu0 0
  %3844 = vmatprep.subr.bf16.mxu0 0
  %3845 = vmatpush1.bf16.msra.mxu0 0
  %3846 = vmatprep.subr.bf16.mxu0 0
  %3847 = vmatpush1.bf16.msra.mxu0 0
  %3848 = vmatprep.subr.bf16.mxu0 0
  %3849 = vmatpush1.bf16.msra.mxu0 0
  %3850 = vmatprep.subr.bf16.mxu0 0
  %3851 = vmatpush1.bf16.msra.mxu0 0
  %3852 = vmatprep.subr.bf16.mxu0 0
  %3853 = vmatpush1.bf16.msra.mxu0 0
  %3854 = vmatprep.subr.bf16.mxu0 0
  %3855 = vmatpush1.bf16.msra.mxu0 0
  %3856 = vmatprep.subr.bf16.mxu0 0
  %3857 = vmatpush1.bf16.msra.mxu0 0
  %3858 = vmatprep.subr.bf16.mxu0 0
  %3859 = vmatpush1.bf16.msra.mxu0 0
  %3860 = vmatprep.subr.bf16.mxu0 0
  %3861 = vmatpush1.bf16.msra.mxu0 0
  %3862 = vmatprep.subr.bf16.mxu0 0
  %3863 = vmatpush1.bf16.msra.mxu0 0
  %3864 = vmatprep.subr.bf16.mxu0 0
  %3865 = vmatpush1.bf16.msra.mxu0 0
  %3866 = vmatprep.subr.bf16.mxu0 0
  %3867 = vmatpush1.bf16.msra.mxu0 0
  %3868 = vmatprep.mubr.bf16.mxu0 0
  %3869 = vmatmul.mubr.bf16.gmra.mrb[0].mxu0 %v3831
  %v3870 = vpop.f32.mrb[0].mxu0
  %v3871 = vadd.f32 0.0, %v3870
  %v3872 = vpop.f32.mrb[0].mxu0
  %v3873 = vpop.f32.mrb[0].mxu0
  %v3874 = vadd.f32 0.0, %v3873
  %v3875 = vpop.f32.mrb[0].mxu0
  %3876 = vmatprep.mubr.bf16.mxu0 0
  %3877 = vmatmul.mubr.bf16.gmra.mrb[0].mxu0 %v3834
  %v3878 = vpop.f32.mrb[0].mxu0
  %v3879 = vadd.f32 0.0, %v3878
  %v3880 = vpop.f32.mrb[0].mxu0
  %v3881 = vpop.f32.mrb[0].mxu0
  %v3882 = vadd.f32 0.0, %v3881
  %v3883 = vpop.f32.mrb[0].mxu0
  %3884 = vdwg.mxu0
  %3885 = vrot.lane.b32.xlu0 %v3345, 104
  %v3886 = vpop.permute.xlu0 %3885
  %3887 = vrot.lane.b32.xlu0 %v3346, 104
  %v3888 = vpop.permute.xlu0 %3887
  %3889 = vrot.lane.b32.xlu0 %v3345, 72
  %v3890 = vpop.permute.xlu0 %3889
  %3891 = vrot.lane.b32.xlu0 %v3346, 72
  %v3892 = vpop.permute.xlu0 %3891
  %v3894 = vsel %vm336, %v3886, 0
  %v3897 = vsel %vm336, %v3888, 0
  %v3900 = vsel %vm336, %v3890, 0
  %v3903 = vsel %vm336, %v3892, 0
  %3905 = vmatprep.subr.bf16.mxu0 0
  %3906 = vmatpush1.bf16.xpose.msra.mxu0 %v3900
  %3907 = vmatprep.subr.bf16.mxu0 0
  %3908 = vmatpush1.bf16.xpose.msra.mxu0 %v3903
  %3909 = vmatprep.subr.bf16.mxu0 0
  %3910 = vmatpush1.bf16.xpose.msra.mxu0 0
  %3911 = vmatprep.subr.bf16.mxu0 0
  %3912 = vmatpush1.bf16.xpose.msra.mxu0 0
  %3913 = vmatprep.subr.bf16.mxu0 0
  %3914 = vmatpush1.bf16.xpose.msra.mxu0 0
  %3915 = vmatprep.subr.bf16.mxu0 0
  %3916 = vmatpush1.bf16.xpose.msra.mxu0 0
  %3917 = vmatprep.subr.bf16.mxu0 0
  %3918 = vmatpush1.bf16.xpose.msra.mxu0 0
  %3919 = vmatprep.subr.bf16.mxu0 0
  %3920 = vmatpush1.bf16.xpose.msra.mxu0 0
  %3921 = vmatprep.subr.bf16.mxu0 0
  %3922 = vmatpush1.bf16.xpose.msra.mxu0 0
  %3923 = vmatprep.subr.bf16.mxu0 0
  %3924 = vmatpush1.bf16.xpose.msra.mxu0 0
  %3925 = vmatprep.subr.bf16.mxu0 0
  %3926 = vmatpush1.bf16.xpose.msra.mxu0 0
  %3927 = vmatprep.subr.bf16.mxu0 0
  %3928 = vmatpush1.bf16.xpose.msra.mxu0 0
  %3929 = vmatprep.subr.bf16.mxu0 0
  %3930 = vmatpush1.bf16.xpose.msra.mxu0 0
  %3931 = vmatprep.subr.bf16.mxu0 0
  %3932 = vmatpush1.bf16.xpose.msra.mxu0 0
  %3933 = vmatprep.subr.bf16.mxu0 0
  %3934 = vmatpush1.bf16.xpose.msra.mxu0 0
  %3935 = vmatprep.subr.bf16.mxu0 0
  %3936 = vmatpush1.bf16.xpose.msra.mxu0 0
  %3937 = vmatprep.mubr.bf16.mxu0 0
  %3938 = vmatmul.mubr.bf16.gmra.mrb[0].mxu0 %v3894
  %v3939 = vpop.f32.mrb[0].mxu0
  %v3940 = vadd.f32 0.0, %v3939
  %v3941 = vpop.f32.mrb[0].mxu0
  %v3942 = vpop.f32.mrb[0].mxu0
  %v3943 = vadd.f32 0.0, %v3942
  %v3944 = vpop.f32.mrb[0].mxu0
  %3945 = vmatprep.mubr.bf16.mxu0 0
  %3946 = vmatmul.mubr.bf16.gmra.mrb[0].mxu0 %v3897
  %v3947 = vpop.f32.mrb[0].mxu0
  %v3948 = vadd.f32 0.0, %v3947
  %v3949 = vpop.f32.mrb[0].mxu0
  %v3950 = vpop.f32.mrb[0].mxu0
  %v3951 = vadd.f32 0.0, %v3950
  %v3952 = vpop.f32.mrb[0].mxu0
  %3953 = vdwg.mxu0
  %v3954 = vmul.f32 %v3940, 0.35355338
  %v3955 = vmul.f32 %v3943, 0.35355338
  %v3956 = vmul.f32 %v3948, 0.35355338
  %v3957 = vmul.f32 %v3951, 0.35355338
  %v3958 = vsel %vm250, %v3954, -inf
  %3959 = vmax.xlane.f32.xlu0 %v3958
  %v3960 = vpop.xlane.xlu0 %3959
  %v3961 = vsel %vm250, %v3955, -inf
  %3962 = vmax.xlane.f32.xlu0 %v3961
  %v3963 = vpop.xlane.xlu0 %3962
  %v3964 = vsel %vm250, %v3956, -inf
  %3965 = vmax.xlane.f32.xlu0 %v3964
  %v3966 = vpop.xlane.xlu0 %3965
  %v3967 = vsel %vm250, %v3957, -inf
  %3968 = vmax.xlane.f32.xlu0 %v3967
  %v3969 = vpop.xlane.xlu0 %3968
  %v3970 = vsub.f32 %v3954, %v3960
  %v3971 = vsub.f32 %v3955, %v3963
  %v3972 = vsub.f32 %v3956, %v3966
  %v3973 = vsub.f32 %v3957, %v3969
  %v3974 = vmul.f32 %v3970, 1.442695
  %v3975 = vpow.pop %v3974
  %v3976 = vmul.f32 %v3971, 1.442695
  %v3977 = vpow.pop %v3976
  %v3978 = vmul.f32 %v3972, 1.442695
  %v3979 = vpow.pop %v3978
  %v3980 = vmul.f32 %v3973, 1.442695
  %v3981 = vpow.pop %v3980
  %v3982 = vsel %vm250, %v3975, 0.0
  %3983 = vadd.xlane.f32.xlu0 %v3982
  %v3984 = vpop.xlane.xlu0 %3983
  %v3985 = vsel %vm250, %v3977, 0.0
  %3986 = vadd.xlane.f32.xlu0 %v3985
  %v3987 = vpop.xlane.xlu0 %3986
  %v3988 = vsel %vm250, %v3979, 0.0
  %3989 = vadd.xlane.f32.xlu0 %v3988
  %v3990 = vpop.xlane.xlu0 %3989
  %v3991 = vsel %vm250, %v3981, 0.0
  %3992 = vadd.xlane.f32.xlu0 %v3991
  %v3993 = vpop.xlane.xlu0 %3992
  %v3994 = vrcp.pop %v3984
  %v3995 = vmul.f32 %v3975, %v3994
  %v3996 = vrcp.pop %v3987
  %v3997 = vmul.f32 %v3977, %v3996
  %v3998 = vrcp.pop %v3990
  %v3999 = vmul.f32 %v3979, %v3998
  %v4000 = vrcp.pop %v3993
  %v4001 = vmul.f32 %v3981, %v4000
  %v4002 = vpack.c.bf16 %v3997, %v3995
  %v4003 = vpack.c.bf16 %v4001, %v3999
  %4004 = vrot.lane.b32.xlu0 %v3345, 40
  %v4005 = vpop.permute.xlu0 %4004
  %4006 = vrot.lane.b32.xlu0 %v3346, 40
  %v4007 = vpop.permute.xlu0 %4006
  %v4011 = vsel %vm250, %v4002, 0
  %v4014 = vsel %vm250, %v4003, 0
  %4016 = vmatprep.subr.bf16.mxu0 0
  %4017 = vmatpush1.bf16.msra.mxu0 %v4005
  %4018 = vmatprep.subr.bf16.mxu0 0
  %4019 = vmatpush1.bf16.msra.mxu0 %v4007
  %4020 = vmatprep.subr.bf16.mxu0 0
  %4021 = vmatpush1.bf16.msra.mxu0 0
  %4022 = vmatprep.subr.bf16.mxu0 0
  %4023 = vmatpush1.bf16.msra.mxu0 0
  %4024 = vmatprep.subr.bf16.mxu0 0
  %4025 = vmatpush1.bf16.msra.mxu0 0
  %4026 = vmatprep.subr.bf16.mxu0 0
  %4027 = vmatpush1.bf16.msra.mxu0 0
  %4028 = vmatprep.subr.bf16.mxu0 0
  %4029 = vmatpush1.bf16.msra.mxu0 0
  %4030 = vmatprep.subr.bf16.mxu0 0
  %4031 = vmatpush1.bf16.msra.mxu0 0
  %4032 = vmatprep.subr.bf16.mxu0 0
  %4033 = vmatpush1.bf16.msra.mxu0 0
  %4034 = vmatprep.subr.bf16.mxu0 0
  %4035 = vmatpush1.bf16.msra.mxu0 0
  %4036 = vmatprep.subr.bf16.mxu0 0
  %4037 = vmatpush1.bf16.msra.mxu0 0
  %4038 = vmatprep.subr.bf16.mxu0 0
  %4039 = vmatpush1.bf16.msra.mxu0 0
  %4040 = vmatprep.subr.bf16.mxu0 0
  %4041 = vmatpush1.bf16.msra.mxu0 0
  %4042 = vmatprep.subr.bf16.mxu0 0
  %4043 = vmatpush1.bf16.msra.mxu0 0
  %4044 = vmatprep.subr.bf16.mxu0 0
  %4045 = vmatpush1.bf16.msra.mxu0 0
  %4046 = vmatprep.subr.bf16.mxu0 0
  %4047 = vmatpush1.bf16.msra.mxu0 0
  %4048 = vmatprep.mubr.bf16.mxu0 0
  %4049 = vmatmul.mubr.bf16.gmra.mrb[0].mxu0 %v4011
  %v4050 = vpop.f32.mrb[0].mxu0
  %v4051 = vadd.f32 0.0, %v4050
  %v4052 = vpop.f32.mrb[0].mxu0
  %v4053 = vpop.f32.mrb[0].mxu0
  %v4054 = vadd.f32 0.0, %v4053
  %v4055 = vpop.f32.mrb[0].mxu0
  %4056 = vmatprep.mubr.bf16.mxu0 0
  %4057 = vmatmul.mubr.bf16.gmra.mrb[0].mxu0 %v4014
  %v4058 = vpop.f32.mrb[0].mxu0
  %v4059 = vadd.f32 0.0, %v4058
  %v4060 = vpop.f32.mrb[0].mxu0
  %v4061 = vpop.f32.mrb[0].mxu0
  %v4062 = vadd.f32 0.0, %v4061
  %v4063 = vpop.f32.mrb[0].mxu0
  %4064 = vdwg.mxu0
  %4069 = vrot.lane.b32.xlu0 %v3691, 8
  %v4070 = vpop.permute.xlu0 %4069
  %4071 = vrot.lane.b32.xlu0 %v3694, 8
  %v4072 = vpop.permute.xlu0 %4071
  %4073 = vrot.lane.b32.xlu0 %v3699, 8
  %v4074 = vpop.permute.xlu0 %4073
  %4075 = vrot.lane.b32.xlu0 %v3702, 8
  %v4076 = vpop.permute.xlu0 %4075
  %4085 = vrot.lane.b32.xlu0 %v3871, 16
  %v4086 = vpop.permute.xlu0 %4085
  %4087 = vrot.lane.b32.xlu0 %v3874, 16
  %v4088 = vpop.permute.xlu0 %4087
  %4089 = vrot.lane.b32.xlu0 %v3879, 16
  %v4090 = vpop.permute.xlu0 %4089
  %4091 = vrot.lane.b32.xlu0 %v3882, 16
  %v4092 = vpop.permute.xlu0 %4091
  %4101 = vrot.lane.b32.xlu0 %v4051, 24
  %v4102 = vpop.permute.xlu0 %4101
  %4103 = vrot.lane.b32.xlu0 %v4054, 24
  %v4104 = vpop.permute.xlu0 %4103
  %4105 = vrot.lane.b32.xlu0 %v4059, 24
  %v4106 = vpop.permute.xlu0 %4105
  %4107 = vrot.lane.b32.xlu0 %v4062, 24
  %v4108 = vpop.permute.xlu0 %4107
  %v4113 = vsel %vm336, %v3511, %v4070
  %v4114 = vsel %vm336, %v3514, %v4072
  %v4115 = vsel %vm336, %v3519, %v4074
  %v4116 = vsel %vm336, %v3522, %v4076
  %v4117 = vsel %vm112, %v4113, %v4086
  %v4118 = vsel %vm112, %v4114, %v4088
  %v4119 = vsel %vm112, %v4115, %v4090
  %v4120 = vsel %vm112, %v4116, %v4092
  %v4121 = vsel %vm1105, %v4117, %v4102
  %v4122 = vsel %vm1105, %v4118, %v4104
  %v4123 = vsel %vm1105, %v4119, %v4106
  %v4124 = vsel %vm1105, %v4120, %v4108
  %v4125 = vpack.c.bf16 %v3342, %v3341
  %v4126 = vpack.c.bf16 %v3344, %v3343
  %v4127 = vpack.c.bf16 %v4122, %v4121
  %v4128 = vpack.c.bf16 %v4124, %v4123
  %v4129 = vpack.c.bf16 %v2446, %v2445
  %v4130 = vpack.c.bf16 %v2448, %v2447
  %v4132 = vlaneseq
  %v4133 = vshrl.u32 %v4132, 7
  %v4134 = vsub.s32 0, %v4133
  %v4135 = vrot.slane %v2449, %v4134
  %v4138 = vsel %vm250, %v4125, 0
  %v4141 = vsel %vm250, %v4126, 0
  %v4144 = vsel %vm250, %v4127, 0
  %v4147 = vsel %vm250, %v4128, 0
  %4149 = vmatprep.subr.bf16.mxu0 0
  %4150 = vmatpush1.bf16.msra.mxu0 %v4129
  %4151 = vmatprep.subr.bf16.mxu0 0
  %4152 = vmatpush1.bf16.msra.mxu0 %v4130
  %4153 = vmatprep.subr.bf16.mxu0 0
  %4154 = vmatpush1.bf16.msra.mxu0 0
  %4155 = vmatprep.subr.bf16.mxu0 0
  %4156 = vmatpush1.bf16.msra.mxu0 0
  %4157 = vmatprep.subr.bf16.mxu0 0
  %4158 = vmatpush1.bf16.msra.mxu0 0
  %4159 = vmatprep.subr.bf16.mxu0 0
  %4160 = vmatpush1.bf16.msra.mxu0 0
  %4161 = vmatprep.subr.bf16.mxu0 0
  %4162 = vmatpush1.bf16.msra.mxu0 0
  %4163 = vmatprep.subr.bf16.mxu0 0
  %4164 = vmatpush1.bf16.msra.mxu0 0
  %4165 = vmatprep.subr.bf16.mxu0 0
  %4166 = vmatpush1.bf16.msra.mxu0 0
  %4167 = vmatprep.subr.bf16.mxu0 0
  %4168 = vmatpush1.bf16.msra.mxu0 0
  %4169 = vmatprep.subr.bf16.mxu0 0
  %4170 = vmatpush1.bf16.msra.mxu0 0
  %4171 = vmatprep.subr.bf16.mxu0 0
  %4172 = vmatpush1.bf16.msra.mxu0 0
  %4173 = vmatprep.subr.bf16.mxu0 0
  %4174 = vmatpush1.bf16.msra.mxu0 0
  %4175 = vmatprep.subr.bf16.mxu0 0
  %4176 = vmatpush1.bf16.msra.mxu0 0
  %4177 = vmatprep.subr.bf16.mxu0 0
  %4178 = vmatpush1.bf16.msra.mxu0 0
  %4179 = vmatprep.subr.bf16.mxu0 0
  %4180 = vmatpush1.bf16.msra.mxu0 0
  %4181 = vmatprep.mubr.bf16.mxu0 0
  %4182 = vmatmul.mubr.bf16.gmra.mrb[0].mxu0 %v4138
  %v4183 = vpop.f32.mrb[0].mxu0
  %v4184 = vadd.f32 %v4135, %v4183
  %v4185 = vpop.f32.mrb[0].mxu0
  %v4186 = vpop.f32.mrb[0].mxu0
  %v4187 = vadd.f32 %v4135, %v4186
  %v4188 = vpop.f32.mrb[0].mxu0
  %4189 = vmatprep.mubr.bf16.mxu0 0
  %4190 = vmatmul.mubr.bf16.gmra.mrb[0].mxu0 %v4141
  %v4191 = vpop.f32.mrb[0].mxu0
  %v4192 = vadd.f32 %v4135, %v4191
  %v4193 = vpop.f32.mrb[0].mxu0
  %v4194 = vpop.f32.mrb[0].mxu0
  %v4195 = vadd.f32 %v4135, %v4194
  %v4196 = vpop.f32.mrb[0].mxu0
  %4197 = vmatprep.mubr.bf16.mxu0 0
  %4198 = vmatmul.mubr.bf16.gmra.mrb[0].mxu0 %v4144
  %v4199 = vpop.f32.mrb[0].mxu0
  %v4200 = vadd.f32 %v4135, %v4199
  %v4201 = vpop.f32.mrb[0].mxu0
  %v4202 = vpop.f32.mrb[0].mxu0
  %v4203 = vadd.f32 %v4135, %v4202
  %v4204 = vpop.f32.mrb[0].mxu0
  %4205 = vmatprep.mubr.bf16.mxu0 0
  %4206 = vmatmul.mubr.bf16.gmra.mrb[0].mxu0 %v4147
  %v4207 = vpop.f32.mrb[0].mxu0
  %v4208 = vadd.f32 %v4135, %v4207
  %v4209 = vpop.f32.mrb[0].mxu0
  %v4210 = vpop.f32.mrb[0].mxu0
  %v4211 = vadd.f32 %v4135, %v4210
  %v4212 = vpop.f32.mrb[0].mxu0
  %4213 = vdwg.mxu0
  %v4214 = vadd.f32 %v2432, %v4184
  %v4215 = vadd.f32 %v2433, %v4187
  %v4216 = vadd.f32 %v2434, %v4192
  %v4217 = vadd.f32 %v2435, %v4195
  %v4218 = vadd.f32 %v2436, %v4200
  %v4219 = vadd.f32 %v2437, %v4203
  %v4220 = vadd.f32 %v2438, %v4208
  %v4221 = vadd.f32 %v2439, %v4211
  %v4222 = vsel %vm250, %v4214, 0.0
  %4223 = vadd.xlane.f32.xlu0 %v4222
  %v4224 = vpop.xlane.xlu0 %4223
  %v4225 = vsel %vm250, %v4215, 0.0
  %4226 = vadd.xlane.f32.xlu0 %v4225
  %v4227 = vpop.xlane.xlu0 %4226
  %v4228 = vsel %vm250, %v4216, 0.0
  %4229 = vadd.xlane.f32.xlu0 %v4228
  %v4230 = vpop.xlane.xlu0 %4229
  %v4231 = vsel %vm250, %v4217, 0.0
  %4232 = vadd.xlane.f32.xlu0 %v4231
  %v4233 = vpop.xlane.xlu0 %4232
  %v4234 = vsel %vm250, %v4218, 0.0
  %4235 = vadd.xlane.f32.xlu0 %v4234
  %v4236 = vpop.xlane.xlu0 %4235
  %v4237 = vsel %vm250, %v4219, 0.0
  %4238 = vadd.xlane.f32.xlu0 %v4237
  %v4239 = vpop.xlane.xlu0 %4238
  %v4240 = vsel %vm250, %v4220, 0.0
  %4241 = vadd.xlane.f32.xlu0 %v4240
  %v4242 = vpop.xlane.xlu0 %4241
  %v4243 = vsel %vm250, %v4221, 0.0
  %4244 = vadd.xlane.f32.xlu0 %v4243
  %v4245 = vpop.xlane.xlu0 %4244
  %v4246 = vmul.f32 %v4224, %v2011
  %v4247 = vmul.f32 %v4227, %v2011
  %v4248 = vmul.f32 %v4230, %v2011
  %v4249 = vmul.f32 %v4233, %v2011
  %v4250 = vmul.f32 %v4236, %v2011
  %v4251 = vmul.f32 %v4239, %v2011
  %v4252 = vmul.f32 %v4242, %v2011
  %v4253 = vmul.f32 %v4245, %v2011
  %v4254 = vsub.f32 %v4214, %v4246
  %v4255 = vsub.f32 %v4215, %v4247
  %v4256 = vsub.f32 %v4216, %v4248
  %v4257 = vsub.f32 %v4217, %v4249
  %v4258 = vsub.f32 %v4218, %v4250
  %v4259 = vsub.f32 %v4219, %v4251
  %v4260 = vsub.f32 %v4220, %v4252
  %v4261 = vsub.f32 %v4221, %v4253
  %v4262 = vmul.f32 %v4254, %v4254
  %v4263 = vmul.f32 %v4255, %v4255
  %v4264 = vmul.f32 %v4256, %v4256
  %v4265 = vmul.f32 %v4257, %v4257
  %v4266 = vmul.f32 %v4258, %v4258
  %v4267 = vmul.f32 %v4259, %v4259
  %v4268 = vmul.f32 %v4260, %v4260
  %v4269 = vmul.f32 %v4261, %v4261
  %v4270 = vsel %vm250, %v4262, 0.0
  %4271 = vadd.xlane.f32.xlu0 %v4270
  %v4272 = vpop.xlane.xlu0 %4271
  %v4273 = vsel %vm250, %v4263, 0.0
  %4274 = vadd.xlane.f32.xlu0 %v4273
  %v4275 = vpop.xlane.xlu0 %4274
  %v4276 = vsel %vm250, %v4264, 0.0
  %4277 = vadd.xlane.f32.xlu0 %v4276
  %v4278 = vpop.xlane.xlu0 %4277
  %v4279 = vsel %vm250, %v4265, 0.0
  %4280 = vadd.xlane.f32.xlu0 %v4279
  %v4281 = vpop.xlane.xlu0 %4280
  %v4282 = vsel %vm250, %v4266, 0.0
  %4283 = vadd.xlane.f32.xlu0 %v4282
  %v4284 = vpop.xlane.xlu0 %4283
  %v4285 = vsel %vm250, %v4267, 0.0
  %4286 = vadd.xlane.f32.xlu0 %v4285
  %v4287 = vpop.xlane.xlu0 %4286
  %v4288 = vsel %vm250, %v4268, 0.0
  %4289 = vadd.xlane.f32.xlu0 %v4288
  %v4290 = vpop.xlane.xlu0 %4289
  %v4291 = vsel %vm250, %v4269, 0.0
  %4292 = vadd.xlane.f32.xlu0 %v4291
  %v4293 = vpop.xlane.xlu0 %4292
  %v4294 = vmul.f32 %v4272, %v2011
  %v4295 = vmul.f32 %v4275, %v2011
  %v4296 = vmul.f32 %v4278, %v2011
  %v4297 = vmul.f32 %v4281, %v2011
  %v4298 = vmul.f32 %v4284, %v2011
  %v4299 = vmul.f32 %v4287, %v2011
  %v4300 = vmul.f32 %v4290, %v2011
  %v4301 = vmul.f32 %v4293, %v2011
  %v4302 = vadd.f32 %v4294, 1e-05
  %v4303 = vadd.f32 %v4295, 1e-05
  %v4304 = vadd.f32 %v4296, 1e-05
  %v4305 = vadd.f32 %v4297, 1e-05
  %v4306 = vadd.f32 %v4298, 1e-05
  %v4307 = vadd.f32 %v4299, 1e-05
  %v4308 = vadd.f32 %v4300, 1e-05
  %v4309 = vadd.f32 %v4301, 1e-05
  %v4310 = vrsqrt.pop %v4302
  %v4311 = vrsqrt.pop %v4303
  %v4312 = vrsqrt.pop %v4304
  %v4313 = vrsqrt.pop %v4305
  %v4314 = vrsqrt.pop %v4306
  %v4315 = vrsqrt.pop %v4307
  %v4316 = vrsqrt.pop %v4308
  %v4317 = vrsqrt.pop %v4309
  %v4318 = vmul.f32 %v4254, %v4310
  %v4319 = vmul.f32 %v4255, %v4311
  %v4320 = vmul.f32 %v4256, %v4312
  %v4321 = vmul.f32 %v4257, %v4313
  %v4322 = vmul.f32 %v4258, %v4314
  %v4323 = vmul.f32 %v4259, %v4315
  %v4324 = vmul.f32 %v4260, %v4316
  %v4325 = vmul.f32 %v4261, %v4317
  %v4327 = vlaneseq
  %v4328 = vshrl.u32 %v4327, 7
  %v4329 = vsub.s32 0, %v4328
  %v4330 = vrot.slane %v2472, %v4329
  %v4332 = vmul.f32 %v4318, %v4330
  %v4333 = vmul.f32 %v4319, %v4330
  %v4334 = vmul.f32 %v4320, %v4330
  %v4335 = vmul.f32 %v4321, %v4330
  %v4336 = vmul.f32 %v4322, %v4330
  %v4337 = vmul.f32 %v4323, %v4330
  %v4338 = vmul.f32 %v4324, %v4330
  %v4339 = vmul.f32 %v4325, %v4330
  %v4341 = vlaneseq
  %v4342 = vshrl.u32 %v4341, 7
  %v4343 = vsub.s32 0, %v4342
  %v4344 = vrot.slane %v2473, %v4343
  %v4346 = vadd.f32 %v4332, %v4344
  %v4347 = vadd.f32 %v4333, %v4344
  %v4348 = vadd.f32 %v4334, %v4344
  %v4349 = vadd.f32 %v4335, %v4344
  %v4350 = vadd.f32 %v4336, %v4344
  %v4351 = vadd.f32 %v4337, %v4344
  %v4352 = vadd.f32 %v4338, %v4344
  %v4353 = vadd.f32 %v4339, %v4344
  %v4354 = vpack.c.bf16 %v4347, %v4346
  %v4355 = vpack.c.bf16 %v4349, %v4348
  %v4356 = vpack.c.bf16 %v4351, %v4350
  %v4357 = vpack.c.bf16 %v4353, %v4352
  %v4358 = vpack.c.bf16 %v2451, %v2450
  %v4359 = vpack.c.bf16 %v2453, %v2452
  %v4361 = vlaneseq
  %v4362 = vshrl.u32 %v4361, 7
  %v4363 = vsub.s32 0, %v4362
  %v4364 = vrot.slane %v2454, %v4363
  %v4367 = vsel %vm250, %v4354, 0
  %v4370 = vsel %vm250, %v4355, 0
  %v4373 = vsel %vm250, %v4356, 0
  %v4376 = vsel %vm250, %v4357, 0
  %4378 = vmatprep.subr.bf16.mxu0 0
  %4379 = vmatpush1.bf16.msra.mxu0 %v4358
  %4380 = vmatprep.subr.bf16.mxu0 0
  %4381 = vmatpush1.bf16.msra.mxu0 %v4359
  %4382 = vmatprep.subr.bf16.mxu0 0
  %4383 = vmatpush1.bf16.msra.mxu0 0
  %4384 = vmatprep.subr.bf16.mxu0 0
  %4385 = vmatpush1.bf16.msra.mxu0 0
  %4386 = vmatprep.subr.bf16.mxu0 0
  %4387 = vmatpush1.bf16.msra.mxu0 0
  %4388 = vmatprep.subr.bf16.mxu0 0
  %4389 = vmatpush1.bf16.msra.mxu0 0
  %4390 = vmatprep.subr.bf16.mxu0 0
  %4391 = vmatpush1.bf16.msra.mxu0 0
  %4392 = vmatprep.subr.bf16.mxu0 0
  %4393 = vmatpush1.bf16.msra.mxu0 0
  %4394 = vmatprep.subr.bf16.mxu0 0
  %4395 = vmatpush1.bf16.msra.mxu0 0
  %4396 = vmatprep.subr.bf16.mxu0 0
  %4397 = vmatpush1.bf16.msra.mxu0 0
  %4398 = vmatprep.subr.bf16.mxu0 0
  %4399 = vmatpush1.bf16.msra.mxu0 0
  %4400 = vmatprep.subr.bf16.mxu0 0
  %4401 = vmatpush1.bf16.msra.mxu0 0
  %4402 = vmatprep.subr.bf16.mxu0 0
  %4403 = vmatpush1.bf16.msra.mxu0 0
  %4404 = vmatprep.subr.bf16.mxu0 0
  %4405 = vmatpush1.bf16.msra.mxu0 0
  %4406 = vmatprep.subr.bf16.mxu0 0
  %4407 = vmatpush1.bf16.msra.mxu0 0
  %4408 = vmatprep.subr.bf16.mxu0 0
  %4409 = vmatpush1.bf16.msra.mxu0 0
  %4410 = vmatprep.mubr.bf16.mxu0 0
  %4411 = vmatmul.mubr.bf16.gmra.mrb[0].mxu0 %v4367
  %v4412 = vpop.f32.mrb[0].mxu0
  %v4413 = vadd.f32 %v4364, %v4412
  %v4414 = vpop.f32.mrb[0].mxu0
  %v4415 = vpop.f32.mrb[0].mxu0
  %v4416 = vadd.f32 %v4364, %v4415
  %v4417 = vpop.f32.mrb[0].mxu0
  %4418 = vmatprep.mubr.bf16.mxu0 0
  %4419 = vmatmul.mubr.bf16.gmra.mrb[0].mxu0 %v4370
  %v4420 = vpop.f32.mrb[0].mxu0
  %v4421 = vadd.f32 %v4364, %v4420
  %v4422 = vpop.f32.mrb[0].mxu0
  %v4423 = vpop.f32.mrb[0].mxu0
  %v4424 = vadd.f32 %v4364, %v4423
  %v4425 = vpop.f32.mrb[0].mxu0
  %4426 = vmatprep.mubr.bf16.mxu0 0
  %4427 = vmatmul.mubr.bf16.gmra.mrb[0].mxu0 %v4373
  %v4428 = vpop.f32.mrb[0].mxu0
  %v4429 = vadd.f32 %v4364, %v4428
  %v4430 = vpop.f32.mrb[0].mxu0
  %v4431 = vpop.f32.mrb[0].mxu0
  %v4432 = vadd.f32 %v4364, %v4431
  %v4433 = vpop.f32.mrb[0].mxu0
  %4434 = vmatprep.mubr.bf16.mxu0 0
  %4435 = vmatmul.mubr.bf16.gmra.mrb[0].mxu0 %v4376
  %v4436 = vpop.f32.mrb[0].mxu0
  %v4437 = vadd.f32 %v4364, %v4436
  %v4438 = vpop.f32.mrb[0].mxu0
  %v4439 = vpop.f32.mrb[0].mxu0
  %v4440 = vadd.f32 %v4364, %v4439
  %v4441 = vpop.f32.mrb[0].mxu0
  %4442 = vdwg.mxu0
  %v4443 = vmax.f32 %v4413, 0.0
  %v4444 = vmax.f32 %v4416, 0.0
  %v4445 = vmax.f32 %v4421, 0.0
  %v4446 = vmax.f32 %v4424, 0.0
  %v4447 = vmax.f32 %v4429, 0.0
  %v4448 = vmax.f32 %v4432, 0.0
  %v4449 = vmax.f32 %v4437, 0.0
  %v4450 = vmax.f32 %v4440, 0.0
  %v4451 = vpack.c.bf16 %v4444, %v4443
  %v4452 = vpack.c.bf16 %v4446, %v4445
  %v4453 = vpack.c.bf16 %v4448, %v4447
  %v4454 = vpack.c.bf16 %v4450, %v4449
  %v4455 = vpack.c.bf16 %v2456, %v2455
  %v4456 = vpack.c.bf16 %v2458, %v2457
  %v4457 = vpack.c.bf16 %v2460, %v2459
  %v4458 = vpack.c.bf16 %v2462, %v2461
  %v4459 = vpack.c.bf16 %v2464, %v2463
  %v4460 = vpack.c.bf16 %v2466, %v2465
  %v4461 = vpack.c.bf16 %v2468, %v2467
  %v4462 = vpack.c.bf16 %v2470, %v2469
  %v4464 = vlaneseq
  %v4465 = vshrl.u32 %v4464, 7
  %v4466 = vsub.s32 0, %v4465
  %v4467 = vrot.slane %v2471, %v4466
  %4469 = vmatprep.subr.bf16.mxu0 0
  %4470 = vmatpush1.bf16.msra.mxu0 %v4455
  %4471 = vmatprep.subr.bf16.mxu0 0
  %4472 = vmatpush1.bf16.msra.mxu0 %v4456
  %4473 = vmatprep.subr.bf16.mxu0 0
  %4474 = vmatpush1.bf16.msra.mxu0 %v4457
  %4475 = vmatprep.subr.bf16.mxu0 0
  %4476 = vmatpush1.bf16.msra.mxu0 %v4458
  %4477 = vmatprep.subr.bf16.mxu0 0
  %4478 = vmatpush1.bf16.msra.mxu0 %v4459
  %4479 = vmatprep.subr.bf16.mxu0 0
  %4480 = vmatpush1.bf16.msra.mxu0 %v4460
  %4481 = vmatprep.subr.bf16.mxu0 0
  %4482 = vmatpush1.bf16.msra.mxu0 %v4461
  %4483 = vmatprep.subr.bf16.mxu0 0
  %4484 = vmatpush1.bf16.msra.mxu0 %v4462
  %4485 = vmatprep.subr.bf16.mxu0 0
  %4486 = vmatpush1.bf16.msra.mxu0 0
  %4487 = vmatprep.subr.bf16.mxu0 0
  %4488 = vmatpush1.bf16.msra.mxu0 0
  %4489 = vmatprep.subr.bf16.mxu0 0
  %4490 = vmatpush1.bf16.msra.mxu0 0
  %4491 = vmatprep.subr.bf16.mxu0 0
  %4492 = vmatpush1.bf16.msra.mxu0 0
  %4493 = vmatprep.subr.bf16.mxu0 0
  %4494 = vmatpush1.bf16.msra.mxu0 0
  %4495 = vmatprep.subr.bf16.mxu0 0
  %4496 = vmatpush1.bf16.msra.mxu0 0
  %4497 = vmatprep.subr.bf16.mxu0 0
  %4498 = vmatpush1.bf16.msra.mxu0 0
  %4499 = vmatprep.subr.bf16.mxu0 0
  %4500 = vmatpush1.bf16.msra.mxu0 0
  %4501 = vmatprep.mubr.bf16.mxu0 0
  %4502 = vmatmul.mubr.bf16.gmra.mrb[0].mxu0 %v4451
  %v4503 = vpop.f32.mrb[0].mxu0
  %v4504 = vadd.f32 %v4467, %v4503
  %v4505 = vpop.f32.mrb[0].mxu0
  %v4506 = vpop.f32.mrb[0].mxu0
  %v4507 = vadd.f32 %v4467, %v4506
  %v4508 = vpop.f32.mrb[0].mxu0
  %4509 = vmatprep.mubr.bf16.mxu0 0
  %4510 = vmatmul.mubr.bf16.gmra.mrb[0].mxu0 %v4452
  %v4511 = vpop.f32.mrb[0].mxu0
  %v4512 = vadd.f32 %v4467, %v4511
  %v4513 = vpop.f32.mrb[0].mxu0
  %v4514 = vpop.f32.mrb[0].mxu0
  %v4515 = vadd.f32 %v4467, %v4514
  %v4516 = vpop.f32.mrb[0].mxu0
  %4517 = vmatprep.mubr.bf16.mxu0 0
  %4518 = vmatmul.mubr.bf16.gmra.mrb[0].mxu0 %v4453
  %v4519 = vpop.f32.mrb[0].mxu0
  %v4520 = vadd.f32 %v4467, %v4519
  %v4521 = vpop.f32.mrb[0].mxu0
  %v4522 = vpop.f32.mrb[0].mxu0
  %v4523 = vadd.f32 %v4467, %v4522
  %v4524 = vpop.f32.mrb[0].mxu0
  %4525 = vmatprep.mubr.bf16.mxu0 0
  %4526 = vmatmul.mubr.bf16.gmra.mrb[0].mxu0 %v4454
  %v4527 = vpop.f32.mrb[0].mxu0
  %v4528 = vadd.f32 %v4467, %v4527
  %v4529 = vpop.f32.mrb[0].mxu0
  %v4530 = vpop.f32.mrb[0].mxu0
  %v4531 = vadd.f32 %v4467, %v4530
  %v4532 = vpop.f32.mrb[0].mxu0
  %4533 = vdwg.mxu0
  %v4534 = vadd.f32 %v4346, %v4504
  %v4535 = vadd.f32 %v4347, %v4507
  %v4536 = vadd.f32 %v4348, %v4512
  %v4537 = vadd.f32 %v4349, %v4515
  %v4538 = vadd.f32 %v4350, %v4520
  %v4539 = vadd.f32 %v4351, %v4523
  %v4540 = vadd.f32 %v4352, %v4528
  %v4541 = vadd.f32 %v4353, %v4531
  %v4542 = vsel %vm250, %v4534, 0.0
  %4543 = vadd.xlane.f32.xlu0 %v4542
  %v4544 = vpop.xlane.xlu0 %4543
  %v4545 = vsel %vm250, %v4535, 0.0
  %4546 = vadd.xlane.f32.xlu0 %v4545
  %v4547 = vpop.xlane.xlu0 %4546
  %v4548 = vsel %vm250, %v4536, 0.0
  %4549 = vadd.xlane.f32.xlu0 %v4548
  %v4550 = vpop.xlane.xlu0 %4549
  %v4551 = vsel %vm250, %v4537, 0.0
  %4552 = vadd.xlane.f32.xlu0 %v4551
  %v4553 = vpop.xlane.xlu0 %4552
  %v4554 = vsel %vm250, %v4538, 0.0
  %4555 = vadd.xlane.f32.xlu0 %v4554
  %v4556 = vpop.xlane.xlu0 %4555
  %v4557 = vsel %vm250, %v4539, 0.0
  %4558 = vadd.xlane.f32.xlu0 %v4557
  %v4559 = vpop.xlane.xlu0 %4558
  %v4560 = vsel %vm250, %v4540, 0.0
  %4561 = vadd.xlane.f32.xlu0 %v4560
  %v4562 = vpop.xlane.xlu0 %4561
  %v4563 = vsel %vm250, %v4541, 0.0
  %4564 = vadd.xlane.f32.xlu0 %v4563
  %v4565 = vpop.xlane.xlu0 %4564
  %v4566 = vmul.f32 %v4544, %v2011
  %v4567 = vmul.f32 %v4547, %v2011
  %v4568 = vmul.f32 %v4550, %v2011
  %v4569 = vmul.f32 %v4553, %v2011
  %v4570 = vmul.f32 %v4556, %v2011
  %v4571 = vmul.f32 %v4559, %v2011
  %v4572 = vmul.f32 %v4562, %v2011
  %v4573 = vmul.f32 %v4565, %v2011
  %v4574 = vsub.f32 %v4534, %v4566
  %v4575 = vsub.f32 %v4535, %v4567
  %v4576 = vsub.f32 %v4536, %v4568
  %v4577 = vsub.f32 %v4537, %v4569
  %v4578 = vsub.f32 %v4538, %v4570
  %v4579 = vsub.f32 %v4539, %v4571
  %v4580 = vsub.f32 %v4540, %v4572
  %v4581 = vsub.f32 %v4541, %v4573
  %v4582 = vmul.f32 %v4574, %v4574
  %v4583 = vmul.f32 %v4575, %v4575
  %v4584 = vmul.f32 %v4576, %v4576
  %v4585 = vmul.f32 %v4577, %v4577
  %v4586 = vmul.f32 %v4578, %v4578
  %v4587 = vmul.f32 %v4579, %v4579
  %v4588 = vmul.f32 %v4580, %v4580
  %v4589 = vmul.f32 %v4581, %v4581
  %v4590 = vsel %vm250, %v4582, 0.0
  %4591 = vadd.xlane.f32.xlu0 %v4590
  %v4592 = vpop.xlane.xlu0 %4591
  %v4593 = vsel %vm250, %v4583, 0.0
  %4594 = vadd.xlane.f32.xlu0 %v4593
  %v4595 = vpop.xlane.xlu0 %4594
  %v4596 = vsel %vm250, %v4584, 0.0
  %4597 = vadd.xlane.f32.xlu0 %v4596
  %v4598 = vpop.xlane.xlu0 %4597
  %v4599 = vsel %vm250, %v4585, 0.0
  %4600 = vadd.xlane.f32.xlu0 %v4599
  %v4601 = vpop.xlane.xlu0 %4600
  %v4602 = vsel %vm250, %v4586, 0.0
  %4603 = vadd.xlane.f32.xlu0 %v4602
  %v4604 = vpop.xlane.xlu0 %4603
  %v4605 = vsel %vm250, %v4587, 0.0
  %4606 = vadd.xlane.f32.xlu0 %v4605
  %v4607 = vpop.xlane.xlu0 %4606
  %v4608 = vsel %vm250, %v4588, 0.0
  %4609 = vadd.xlane.f32.xlu0 %v4608
  %v4610 = vpop.xlane.xlu0 %4609
  %v4611 = vsel %vm250, %v4589, 0.0
  %4612 = vadd.xlane.f32.xlu0 %v4611
  %v4613 = vpop.xlane.xlu0 %4612
  %v4614 = vmul.f32 %v4592, %v2011
  %v4615 = vmul.f32 %v4595, %v2011
  %v4616 = vmul.f32 %v4598, %v2011
  %v4617 = vmul.f32 %v4601, %v2011
  %v4618 = vmul.f32 %v4604, %v2011
  %v4619 = vmul.f32 %v4607, %v2011
  %v4620 = vmul.f32 %v4610, %v2011
  %v4621 = vmul.f32 %v4613, %v2011
  %v4622 = vadd.f32 %v4614, 1e-05
  %v4623 = vadd.f32 %v4615, 1e-05
  %v4624 = vadd.f32 %v4616, 1e-05
  %v4625 = vadd.f32 %v4617, 1e-05
  %v4626 = vadd.f32 %v4618, 1e-05
  %v4627 = vadd.f32 %v4619, 1e-05
  %v4628 = vadd.f32 %v4620, 1e-05
  %v4629 = vadd.f32 %v4621, 1e-05
  %v4630 = vrsqrt.pop %v4622
  %v4631 = vrsqrt.pop %v4623
  %v4632 = vrsqrt.pop %v4624
  %v4633 = vrsqrt.pop %v4625
  %v4634 = vrsqrt.pop %v4626
  %v4635 = vrsqrt.pop %v4627
  %v4636 = vrsqrt.pop %v4628
  %v4637 = vrsqrt.pop %v4629
  %v4638 = vmul.f32 %v4574, %v4630
  %v4639 = vmul.f32 %v4575, %v4631
  %v4640 = vmul.f32 %v4576, %v4632
  %v4641 = vmul.f32 %v4577, %v4633
  %v4642 = vmul.f32 %v4578, %v4634
  %v4643 = vmul.f32 %v4579, %v4635
  %v4644 = vmul.f32 %v4580, %v4636
  %v4645 = vmul.f32 %v4581, %v4637
  %v4647 = vlaneseq
  %v4648 = vshrl.u32 %v4647, 7
  %v4649 = vsub.s32 0, %v4648
  %v4650 = vrot.slane %v2474, %v4649
  %v4652 = vmul.f32 %v4638, %v4650
  %v4653 = vmul.f32 %v4639, %v4650
  %v4654 = vmul.f32 %v4640, %v4650
  %v4655 = vmul.f32 %v4641, %v4650
  %v4656 = vmul.f32 %v4642, %v4650
  %v4657 = vmul.f32 %v4643, %v4650
  %v4658 = vmul.f32 %v4644, %v4650
  %v4659 = vmul.f32 %v4645, %v4650
  %v4661 = vlaneseq
  %v4662 = vshrl.u32 %v4661, 7
  %v4663 = vsub.s32 0, %v4662
  %v4664 = vrot.slane %v2475, %v4663
  %v4666 = vadd.f32 %v4652, %v4664
  %v4667 = vadd.f32 %v4653, %v4664
  %v4668 = vadd.f32 %v4654, %v4664
  %v4669 = vadd.f32 %v4655, %v4664
  %v4670 = vadd.f32 %v4656, %v4664
  %v4671 = vadd.f32 %v4657, %v4664
  %v4672 = vadd.f32 %v4658, %v4664
  %v4673 = vadd.f32 %v4659, %v4664
  %4674 = vst.msk [vmem:[%s28] sm:$0xff] %vm250, %v4666
  %4675 = vst.msk [vmem:[%s28 + $0x8] sm:$0xff] %vm250, %v4667
  %4676 = vst.msk [vmem:[%s28 + $0x10] sm:$0xff] %vm250, %v4668
  %4677 = vst.msk [vmem:[%s28 + $0x18] sm:$0xff] %vm250, %v4669
  %4678 = vst.msk [vmem:[%s28 + $0x20] sm:$0xff] %vm250, %v4670
  %4679 = vst.msk [vmem:[%s28 + $0x28] sm:$0xff] %vm250, %v4671
  %4680 = vst.msk [vmem:[%s28 + $0x30] sm:$0xff] %vm250, %v4672
  %4681 = vst.msk [vmem:[%s28 + $0x38] sm:$0xff] %vm250, %v4673
  // Predicated region
  $region114: #{vitvae_forward.3} parent=0 // pred_check
    _
  $region115: #{vitvae_forward.3} parent=0 // pred_check_branch
    %4683 = sbr.rel (0) target = $region117
  $region116: #{vitvae_forward.3} parent=0 // pred_region
    _
  $region117: #{vitvae_forward.3} parent=0 // pred_fallthru
    _
  // Predicated region
  $region118: #{vitvae_forward.3} parent=0 // pred_check
    _
  $region119: #{vitvae_forward.3} parent=0 // pred_check_branch
    %4685 = sbr.rel (0) target = $region121
  $region120: #{vitvae_forward.3} parent=0 // pred_region
    _
  $region121: #{vitvae_forward.3} parent=0 // pred_fallthru
    _

</llo_original>
